<compile_context>
chip_gen: v7x
topology: tpu7x:2x2x1
jax: 0.10.0
libtpu: 0.0.40
codegen_flags: <defaults>
</compile_context>

<pallas_src>
import jax
import jax.numpy as jnp
from jax import lax
from jax.experimental import pallas as pl
from jax.experimental.pallas import tpu as pltpu


LANES = 128


# ----------------------------- Pallas kernel -------------------------------


def _fused_residual_block_kernel(x_ref, w1_ref, b1_ref, w2_ref, b2_ref, o_ref,
                                 y1_ref, slab_ref):
    """One B_blk-image block per grid step: conv1+BN1+ReLU -> conv2+BN2+add+ReLU.

    x_ref  : (B, H+2, W+2, Cp)  zero-padded NHWC images, bf16 (1-pixel halo + lane pad)
    w1_ref : (9*Cp, Cp)         conv1 weights, BN1 scale folded, bf16
    b1_ref : (1, Cp)            folded BN1 bias, f32
    w2_ref : (9*Cp, Cp)         conv2 weights, BN2 scale folded, bf16
    b2_ref : (1, Cp)            folded BN2 bias, f32
    o_ref  : (B*H*W, Cp)        bf16 output (flattened, lane-dense)
    y1_ref : (B, H+2, W+2, Cp)  VMEM scratch for relu(BN1(conv1)) with zero halo
    slab_ref: (B*H*W, 9*Cp)     VMEM scratch im2col patch slab (reused by both convs)
    """
    B, Hp, Wp, C = x_ref.shape
    H, W = Hp - 2, Wp - 2
    M = B * H * W

    # ---- conv1 as a single K-concatenated GEMM ------------------------------
    # Column block k = kh*3+kw of the slab holds the (kh, kw)-shifted window.
    for kh in range(3):
        for kw in range(3):
            k = kh * 3 + kw
            slab_ref[:, k * C:(k + 1) * C] = (
                x_ref[:, kh:kh + H, kw:kw + W, :].reshape(M, C))
    acc1 = jnp.dot(slab_ref[...], w1_ref[...],
                   preferred_element_type=jnp.float32)           # K = 9*Cp
    y1 = jnp.maximum(acc1 + b1_ref[...], 0.0)

    # conv2's padding=1 is reproduced by the zeroed halo ring of y1_ref.
    y1_ref[...] = jnp.zeros_like(y1_ref)
    y1_ref[:, 1:1 + H, 1:1 + W, :] = y1.astype(y1_ref.dtype).reshape(B, H, W, C)

    # ---- conv2 as a single K-concatenated GEMM + BN2 bias + residual + ReLU --
    for kh in range(3):
        for kw in range(3):
            k = kh * 3 + kw
            slab_ref[:, k * C:(k + 1) * C] = (
                y1_ref[:, kh:kh + H, kw:kw + W, :].reshape(M, C))
    acc2 = jnp.dot(slab_ref[...], w2_ref[...],
                   preferred_element_type=jnp.float32)
    residual = x_ref[:, 1:1 + H, 1:1 + W, :].reshape(M, C).astype(jnp.float32)
    o_ref[...] = jnp.maximum(acc2 + b2_ref[...] + residual, 0.0).astype(o_ref.dtype)


# ------------------------------- Wrapper ------------------------------------


def _pick_batch_block(n, h, w, cp, slab_budget_bytes=4 << 20):
    """Largest divisor of n whose bf16 patch slab fits the budget, preferring
    to keep >=2 grid steps (pipeline depth / megacore sharding)."""
    per_img = h * w * 9 * cp * 2  # bf16 slab bytes per image
    cap = max(1, slab_budget_bytes // per_img)
    divs = [d for d in range(1, n + 1) if n % d == 0]
    fitting = [d for d in divs if d <= cap] or [1]
    multi = [d for d in fitting if n // d >= 2]
    return max(multi) if multi else max(fitting)


def residual_block_forward(x_nchw, params, stride=1, compute_dtype=jnp.bfloat16,
                           b_blk=None):
    """ResidualBlock.forward for the default config (stride=1, shortcut=None)."""
    # TODO(synk): stride!=1 and a (1x1-conv + BN) projection shortcut are not
    # implemented; only the module-default identity-residual path is.
    w1, s1, b1, w2, s2, b2 = params
    assert stride == 1, "fused kernel implements the default stride=1 path only"
    N, Cin, H, W = x_nchw.shape
    Cout = w1.shape[-1]
    assert Cin == Cout, "identity shortcut requires c_in == c_out"

    # Lane-dense channel padding (zeros stay zero through the whole block).
    Cp = ((Cout + LANES - 1) // LANES) * LANES

    # Cast to bf16 BEFORE transpose/pad so the wrapper HBM traffic is halved;
    # 1-pixel spatial halo (conv padding=1) + channel pad in one jnp.pad.
    x = jnp.transpose(x_nchw.astype(compute_dtype), (0, 2, 3, 1))       # NHWC
    xp = jnp.pad(x, ((0, 0), (1, 1), (1, 1), (0, Cp - Cin)))

    # Fold BN scale into the conv weights; pad channels; HWIO -> (9*Cp, Cp).
    def fold(w, s, c_in_actual):
        wf = (w * s.reshape(1, 1, 1, Cout)).astype(jnp.float32)
        wf = jnp.pad(wf, ((0, 0), (0, 0), (0, Cp - c_in_actual), (0, Cp - Cout)))
        return wf.reshape(9 * Cp, Cp).astype(compute_dtype)

    w1f = fold(w1, s1, Cin)
    w2f = fold(w2, s2, Cout)
    b1f = jnp.pad(b1.reshape(1, Cout), ((0, 0), (0, Cp - Cout))).astype(jnp.float32)
    b2f = jnp.pad(b2.reshape(1, Cout), ((0, 0), (0, Cp - Cout))).astype(jnp.float32)

    if b_blk is None:
        b_blk = _pick_batch_block(N, H, W, Cp)
    assert N % b_blk == 0
    grid_n = N // b_blk
    assert grid_n == 1 or (b_blk * H * W) % 8 == 0, "row tile must be sublane aligned"

    out = pl.pallas_call(
        _fused_residual_block_kernel,
        out_shape=jax.ShapeDtypeStruct((N * H * W, Cp), compute_dtype),
        grid_spec=pltpu.PrefetchScalarGridSpec(
            num_scalar_prefetch=0,
            grid=(grid_n,),
            in_specs=[
                pl.BlockSpec((b_blk, H + 2, W + 2, Cp), lambda n: (n, 0, 0, 0)),
                pl.BlockSpec((9 * Cp, Cp), lambda n: (0, 0)),
                pl.BlockSpec((1, Cp), lambda n: (0, 0)),
                pl.BlockSpec((9 * Cp, Cp), lambda n: (0, 0)),
                pl.BlockSpec((1, Cp), lambda n: (0, 0)),
            ],
            out_specs=pl.BlockSpec((b_blk * H * W, Cp), lambda n: (n, 0)),
            scratch_shapes=[
                pltpu.VMEM((b_blk, H + 2, W + 2, Cp), compute_dtype),   # y1 (zero halo)
                pltpu.VMEM((b_blk * H * W, 9 * Cp), compute_dtype),     # patch slab
            ],
        ),
        compiler_params=pltpu.CompilerParams(
            dimension_semantics=("parallel",),      # batch-block axis -> megacore
            vmem_limit_bytes=32 * 1024 * 1024,
        ),
    )(xp, w1f, b1f, w2f, b2f)

    out = out.reshape(N, H, W, Cp)[..., :Cout].astype(jnp.float32)
    return jnp.transpose(out, (0, 3, 1, 2))  # NHWC -> NCHW


# ------------------------------ References ----------------------------------


def residual_block_reference(x_nchw, params, stride=1):
    """Pure f32 reference (lax convs), module semantics with folded BN."""
    w1, s1, b1, w2, s2, b2 = params
    x = jnp.transpose(x_nchw, (0, 2, 3, 1)).astype(jnp.float32)
    dn = ("NHWC", "HWIO", "NHWC")
    hp = lax.Precision.HIGHEST
    y = lax.conv_general_dilated(x, w1, (stride, stride), ((1, 1), (1, 1)),
                                 dimension_numbers=dn, precision=hp)
    y = jnp.maximum(y * s1.reshape(1, 1, 1, -1) + b1.reshape(1, 1, 1, -1), 0.0)
    y = lax.conv_general_dilated(y, w2, (1, 1), ((1, 1), (1, 1)),
                                 dimension_numbers=dn, precision=hp)
    y = y * s2.reshape(1, 1, 1, -1) + b2.reshape(1, 1, 1, -1) + x
    return jnp.transpose(jnp.maximum(y, 0.0), (0, 3, 1, 2))


def residual_block_reference_quantized(x_nchw, params, compute_dtype=jnp.bfloat16):
    """Mirrors the kernel's numerics (bf16 operands, f32 accumulation, bf16 out)."""
    w1, s1, b1, w2, s2, b2 = params
    Cout = w1.shape[-1]
    q = lambda a: a.astype(compute_dtype).astype(jnp.float32)
    x = q(jnp.transpose(x_nchw, (0, 2, 3, 1)).astype(jnp.float32))
    w1f = q(w1 * s1.reshape(1, 1, 1, Cout))
    w2f = q(w2 * s2.reshape(1, 1, 1, Cout))
    dn = ("NHWC", "HWIO", "NHWC")
    hp = lax.Precision.HIGHEST
    y = lax.conv_general_dilated(x, w1f, (1, 1), ((1, 1), (1, 1)),
                                 dimension_numbers=dn, precision=hp)
    y = jnp.maximum(y + b1.reshape(1, 1, 1, -1), 0.0)
    y = lax.conv_general_dilated(q(y), w2f, (1, 1), ((1, 1), (1, 1)),
                                 dimension_numbers=dn, precision=hp)
    y = y + b2.reshape(1, 1, 1, -1) + x
    y = q(jnp.maximum(y, 0.0))          # kernel stores bf16 output
    return jnp.transpose(y, (0, 3, 1, 2))


def init_params(key, c_in, c_out, eps=1e-5):
    """Deterministic synthetic parameters (shapes from the nn.Module __init__)."""
    ks = jax.random.split(key, 10)
    # Conv weights stored HWIO == PyTorch OIHW weight transposed (2,3,1,0).
    w1 = 0.1 * jax.random.normal(ks[0], (3, 3, c_in, c_out), jnp.float32)
    w2 = 0.1 * jax.random.normal(ks[1], (3, 3, c_out, c_out), jnp.float32)

    def fold_bn(kg, kb, km, kv):
        gamma = 1.0 + 0.1 * jax.random.normal(kg, (c_out,), jnp.float32)
        beta = 0.1 * jax.random.normal(kb, (c_out,), jnp.float32)
        mean = 0.1 * jax.random.normal(km, (c_out,), jnp.float32)
        var = 1.0 + 0.1 * jax.random.uniform(kv, (c_out,), jnp.float32)
        scale = gamma / jnp.sqrt(var + eps)
        bias = beta - mean * scale
        return scale.reshape(1, c_out), bias.reshape(1, c_out)

    s1, b1 = fold_bn(ks[2], ks[3], ks[4], ks[5])
    s2, b2 = fold_bn(ks[6], ks[7], ks[8], ks[9])
    return (w1, s1, b1, w2, s2, b2)


if __name__ == "__main__":
    key = jax.random.PRNGKey(0)
    kx, kp = jax.random.split(key)

    N, C, H, W = 2, 4, 16, 16  # small shapes; c_in == c_out, stride=1, shortcut=None
    x = jax.random.normal(kx, (N, C, H, W), jnp.float32)
    params = init_params(kp, C, C)

    out = jax.block_until_ready(residual_block_forward(x, params, stride=1))
    assert out.shape == (N, C, H, W), out.shape

    # Tight check vs a reference mirroring the kernel numerics exactly
    # (bf16 operands, f32 accumulation, bf16 output); tolerance covers 1 bf16 ulp.
    ref_q = jax.block_until_ready(residual_block_reference_quantized(x, params))
    err_q = float(jnp.max(jnp.abs(out - ref_q)))
    assert jnp.allclose(out, ref_q, atol=2e-2, rtol=2e-2), err_q

    # Loose check vs the pure-f32 module semantics (bf16 quantization error).
    ref_f = jax.block_until_ready(residual_block_reference(x, params, stride=1))
    err_f = float(jnp.max(jnp.abs(out - ref_f)))
    assert jnp.allclose(out, ref_f, atol=1e-1, rtol=5e-2), err_f

    print("KERNEL_OK")
</pallas_src>

<mosaic_0001>
module attributes {stable_mosaic.version = 11 : i64} {
  func.func @_fused_residual_block_kernel(%arg0: i32, %arg1: memref<1x18x18x128xbf16, #tpu.memory_space<vmem>>, %arg2: memref<1152x128xbf16, #tpu.memory_space<vmem>>, %arg3: memref<1x128xf32, #tpu.memory_space<vmem>>, %arg4: memref<1152x128xbf16, #tpu.memory_space<vmem>>, %arg5: memref<1x128xf32, #tpu.memory_space<vmem>>, %arg6: memref<256x128xbf16, #tpu.memory_space<vmem>>, %arg7: memref<1x18x18x128xbf16, #tpu.memory_space<vmem>>, %arg8: memref<256x1152xbf16, #tpu.memory_space<vmem>>) attributes {dimension_semantics = [#tpu.dimension_semantics<parallel>], iteration_bounds = array<i64: 2>, scalar_prefetch = 0 : i64, scratch_operands = 2 : i64, tpu.core_type = #tpu.core_type<tc>, window_params = [{transform_indices = @transform_0, window_bounds = array<i64: 1, 18, 18, 128>}, {pipeline_mode = #tpu.pipeline_mode<synchronous>, transform_indices = @transform_1, window_bounds = array<i64: 1152, 128>}, {pipeline_mode = #tpu.pipeline_mode<synchronous>, transform_indices = @transform_2, window_bounds = array<i64: 1, 128>}, {pipeline_mode = #tpu.pipeline_mode<synchronous>, transform_indices = @transform_3, window_bounds = array<i64: 1152, 128>}, {pipeline_mode = #tpu.pipeline_mode<synchronous>, transform_indices = @transform_4, window_bounds = array<i64: 1, 128>}, {transform_indices = @transform_5, window_bounds = array<i64: 256, 128>}]} {
    %c0 = arith.constant 0 : index
    %c0_0 = arith.constant 0 : index
    %c0_1 = arith.constant 0 : index
    %c0_2 = arith.constant 0 : index
    %0 = vector.load %arg1[%c0, %c0_0, %c0_1, %c0_2] : memref<1x18x18x128xbf16, #tpu.memory_space<vmem>>, vector<1x16x16x128xbf16>
    %1 = vector.shape_cast %0 : vector<1x16x16x128xbf16> to vector<256x128xbf16>
    %c0_3 = arith.constant 0 : index
    %c0_4 = arith.constant 0 : index
    %2 = vector.load %arg8[%c0_3, %c0_4] : memref<256x1152xbf16, #tpu.memory_space<vmem>>, vector<256x128xbf16>
    tpu.vector_store %arg8[%c0_3, %c0_4], %1 {strides = array<i32>} : memref<256x1152xbf16, #tpu.memory_space<vmem>>, vector<256x128xbf16>,
    %c0_5 = arith.constant 0 : index
    %c0_6 = arith.constant 0 : index
    %c1 = arith.constant 1 : index
    %c0_7 = arith.constant 0 : index
    %3 = vector.load %arg1[%c0_5, %c0_6, %c1, %c0_7] : memref<1x18x18x128xbf16, #tpu.memory_space<vmem>>, vector<1x16x16x128xbf16>
    %4 = vector.shape_cast %3 : vector<1x16x16x128xbf16> to vector<256x128xbf16>
    %c0_8 = arith.constant 0 : index
    %c128 = arith.constant 128 : index
    %5 = vector.load %arg8[%c0_8, %c128] : memref<256x1152xbf16, #tpu.memory_space<vmem>>, vector<256x128xbf16>
    tpu.vector_store %arg8[%c0_8, %c128], %4 {strides = array<i32>} : memref<256x1152xbf16, #tpu.memory_space<vmem>>, vector<256x128xbf16>,
    %c0_9 = arith.constant 0 : index
    %c0_10 = arith.constant 0 : index
    %c2 = arith.constant 2 : index
    %c0_11 = arith.constant 0 : index
    %6 = vector.load %arg1[%c0_9, %c0_10, %c2, %c0_11] : memref<1x18x18x128xbf16, #tpu.memory_space<vmem>>, vector<1x16x16x128xbf16>
    %7 = vector.shape_cast %6 : vector<1x16x16x128xbf16> to vector<256x128xbf16>
    %c0_12 = arith.constant 0 : index
    %c256 = arith.constant 256 : index
    %8 = vector.load %arg8[%c0_12, %c256] : memref<256x1152xbf16, #tpu.memory_space<vmem>>, vector<256x128xbf16>
    tpu.vector_store %arg8[%c0_12, %c256], %7 {strides = array<i32>} : memref<256x1152xbf16, #tpu.memory_space<vmem>>, vector<256x128xbf16>,
    %c0_13 = arith.constant 0 : index
    %c1_14 = arith.constant 1 : index
    %c0_15 = arith.constant 0 : index
    %c0_16 = arith.constant 0 : index
    %9 = vector.load %arg1[%c0_13, %c1_14, %c0_15, %c0_16] : memref<1x18x18x128xbf16, #tpu.memory_space<vmem>>, vector<1x16x16x128xbf16>
    %10 = vector.shape_cast %9 : vector<1x16x16x128xbf16> to vector<256x128xbf16>
    %c0_17 = arith.constant 0 : index
    %c384 = arith.constant 384 : index
    %11 = vector.load %arg8[%c0_17, %c384] : memref<256x1152xbf16, #tpu.memory_space<vmem>>, vector<256x128xbf16>
    tpu.vector_store %arg8[%c0_17, %c384], %10 {strides = array<i32>} : memref<256x1152xbf16, #tpu.memory_space<vmem>>, vector<256x128xbf16>,
    %c0_18 = arith.constant 0 : index
    %c1_19 = arith.constant 1 : index
    %c1_20 = arith.constant 1 : index
    %c0_21 = arith.constant 0 : index
    %12 = vector.load %arg1[%c0_18, %c1_19, %c1_20, %c0_21] : memref<1x18x18x128xbf16, #tpu.memory_space<vmem>>, vector<1x16x16x128xbf16>
    %13 = vector.shape_cast %12 : vector<1x16x16x128xbf16> to vector<256x128xbf16>
    %c0_22 = arith.constant 0 : index
    %c512 = arith.constant 512 : index
    %14 = vector.load %arg8[%c0_22, %c512] : memref<256x1152xbf16, #tpu.memory_space<vmem>>, vector<256x128xbf16>
    tpu.vector_store %arg8[%c0_22, %c512], %13 {strides = array<i32>} : memref<256x1152xbf16, #tpu.memory_space<vmem>>, vector<256x128xbf16>,
    %c0_23 = arith.constant 0 : index
    %c1_24 = arith.constant 1 : index
    %c2_25 = arith.constant 2 : index
    %c0_26 = arith.constant 0 : index
    %15 = vector.load %arg1[%c0_23, %c1_24, %c2_25, %c0_26] : memref<1x18x18x128xbf16, #tpu.memory_space<vmem>>, vector<1x16x16x128xbf16>
    %16 = vector.shape_cast %15 : vector<1x16x16x128xbf16> to vector<256x128xbf16>
    %c0_27 = arith.constant 0 : index
    %c640 = arith.constant 640 : index
    %17 = vector.load %arg8[%c0_27, %c640] : memref<256x1152xbf16, #tpu.memory_space<vmem>>, vector<256x128xbf16>
    tpu.vector_store %arg8[%c0_27, %c640], %16 {strides = array<i32>} : memref<256x1152xbf16, #tpu.memory_space<vmem>>, vector<256x128xbf16>,
    %c0_28 = arith.constant 0 : index
    %c2_29 = arith.constant 2 : index
    %c0_30 = arith.constant 0 : index
    %c0_31 = arith.constant 0 : index
    %18 = vector.load %arg1[%c0_28, %c2_29, %c0_30, %c0_31] : memref<1x18x18x128xbf16, #tpu.memory_space<vmem>>, vector<1x16x16x128xbf16>
    %19 = vector.shape_cast %18 : vector<1x16x16x128xbf16> to vector<256x128xbf16>
    %c0_32 = arith.constant 0 : index
    %c768 = arith.constant 768 : index
    %20 = vector.load %arg8[%c0_32, %c768] : memref<256x1152xbf16, #tpu.memory_space<vmem>>, vector<256x128xbf16>
    tpu.vector_store %arg8[%c0_32, %c768], %19 {strides = array<i32>} : memref<256x1152xbf16, #tpu.memory_space<vmem>>, vector<256x128xbf16>,
    %c0_33 = arith.constant 0 : index
    %c2_34 = arith.constant 2 : index
    %c1_35 = arith.constant 1 : index
    %c0_36 = arith.constant 0 : index
    %21 = vector.load %arg1[%c0_33, %c2_34, %c1_35, %c0_36] : memref<1x18x18x128xbf16, #tpu.memory_space<vmem>>, vector<1x16x16x128xbf16>
    %22 = vector.shape_cast %21 : vector<1x16x16x128xbf16> to vector<256x128xbf16>
    %c0_37 = arith.constant 0 : index
    %c896 = arith.constant 896 : index
    %23 = vector.load %arg8[%c0_37, %c896] : memref<256x1152xbf16, #tpu.memory_space<vmem>>, vector<256x128xbf16>
    tpu.vector_store %arg8[%c0_37, %c896], %22 {strides = array<i32>} : memref<256x1152xbf16, #tpu.memory_space<vmem>>, vector<256x128xbf16>,
    %c0_38 = arith.constant 0 : index
    %c2_39 = arith.constant 2 : index
    %c2_40 = arith.constant 2 : index
    %c0_41 = arith.constant 0 : index
    %24 = vector.load %arg1[%c0_38, %c2_39, %c2_40, %c0_41] : memref<1x18x18x128xbf16, #tpu.memory_space<vmem>>, vector<1x16x16x128xbf16>
    %25 = vector.shape_cast %24 : vector<1x16x16x128xbf16> to vector<256x128xbf16>
    %c0_42 = arith.constant 0 : index
    %c1024 = arith.constant 1024 : index
    %26 = vector.load %arg8[%c0_42, %c1024] : memref<256x1152xbf16, #tpu.memory_space<vmem>>, vector<256x128xbf16>
    tpu.vector_store %arg8[%c0_42, %c1024], %25 {strides = array<i32>} : memref<256x1152xbf16, #tpu.memory_space<vmem>>, vector<256x128xbf16>,
    %c0_43 = arith.constant 0 : index
    %c0_44 = arith.constant 0 : index
    %27 = vector.load %arg8[%c0_43, %c0_44] : memref<256x1152xbf16, #tpu.memory_space<vmem>>, vector<256x1152xbf16>
    %c0_45 = arith.constant 0 : index
    %c0_46 = arith.constant 0 : index
    %28 = vector.load %arg2[%c0_45, %c0_46] : memref<1152x128xbf16, #tpu.memory_space<vmem>>, vector<1152x128xbf16>
    %cst = arith.constant dense<0.000000e+00> : vector<256x128xf32>
    %29 = tpu.matmul %27, %28, %cst {dimension_numbers = #tpu.dot_dimension_numbers<[1], [0], [0], [1], [0, 0, 1, 1], [], []>} : vector<256x1152xbf16>, vector<1152x128xbf16>, vector<256x128xf32> -> vector<256x128xf32>
    %c0_47 = arith.constant 0 : index
    %c0_48 = arith.constant 0 : index
    %30 = vector.load %arg3[%c0_47, %c0_48] : memref<1x128xf32, #tpu.memory_space<vmem>>, vector<1x128xf32>
    %31 = vector.broadcast %30 : vector<1x128xf32> to vector<256x128xf32>
    %32 = arith.addf %29, %31 : vector<256x128xf32>
    %cst_49 = arith.constant 0.000000e+00 : f32
    %33 = vector.broadcast %cst_49 : f32 to vector<256x128xf32>
    %34 = arith.maximumf %32, %33 : vector<256x128xf32>
    %cst_50 = arith.constant 0.000000e+00 : bf16
    %35 = vector.broadcast %cst_50 : bf16 to vector<1x18x18x128xbf16>
    %c0_51 = arith.constant 0 : index
    %c0_52 = arith.constant 0 : index
    %c0_53 = arith.constant 0 : index
    %c0_54 = arith.constant 0 : index
    %36 = vector.load %arg7[%c0_51, %c0_52, %c0_53, %c0_54] : memref<1x18x18x128xbf16, #tpu.memory_space<vmem>>, vector<1x18x18x128xbf16>
    tpu.vector_store %arg7[%c0_51, %c0_52, %c0_53, %c0_54], %35 {strides = array<i32>} : memref<1x18x18x128xbf16, #tpu.memory_space<vmem>>, vector<1x18x18x128xbf16>,
    %37 = arith.truncf %34 : vector<256x128xf32> to vector<256x128xbf16>
    %38 = vector.shape_cast %37 : vector<256x128xbf16> to vector<1x16x16x128xbf16>
    %c0_55 = arith.constant 0 : index
    %c1_56 = arith.constant 1 : index
    %c1_57 = arith.constant 1 : index
    %c0_58 = arith.constant 0 : index
    %39 = vector.load %arg7[%c0_55, %c1_56, %c1_57, %c0_58] : memref<1x18x18x128xbf16, #tpu.memory_space<vmem>>, vector<1x16x16x128xbf16>
    tpu.vector_store %arg7[%c0_55, %c1_56, %c1_57, %c0_58], %38 {strides = array<i32>} : memref<1x18x18x128xbf16, #tpu.memory_space<vmem>>, vector<1x16x16x128xbf16>,
    %c0_59 = arith.constant 0 : index
    %c0_60 = arith.constant 0 : index
    %c0_61 = arith.constant 0 : index
    %c0_62 = arith.constant 0 : index
    %40 = vector.load %arg7[%c0_59, %c0_60, %c0_61, %c0_62] : memref<1x18x18x128xbf16, #tpu.memory_space<vmem>>, vector<1x16x16x128xbf16>
    %41 = vector.shape_cast %40 : vector<1x16x16x128xbf16> to vector<256x128xbf16>
    %c0_63 = arith.constant 0 : index
    %c0_64 = arith.constant 0 : index
    %42 = vector.load %arg8[%c0_63, %c0_64] : memref<256x1152xbf16, #tpu.memory_space<vmem>>, vector<256x128xbf16>
    tpu.vector_store %arg8[%c0_63, %c0_64], %41 {strides = array<i32>} : memref<256x1152xbf16, #tpu.memory_space<vmem>>, vector<256x128xbf16>,
    %c0_65 = arith.constant 0 : index
    %c0_66 = arith.constant 0 : index
    %c1_67 = arith.constant 1 : index
    %c0_68 = arith.constant 0 : index
    %43 = vector.load %arg7[%c0_65, %c0_66, %c1_67, %c0_68] : memref<1x18x18x128xbf16, #tpu.memory_space<vmem>>, vector<1x16x16x128xbf16>
    %44 = vector.shape_cast %43 : vector<1x16x16x128xbf16> to vector<256x128xbf16>
    %c0_69 = arith.constant 0 : index
    %c128_70 = arith.constant 128 : index
    %45 = vector.load %arg8[%c0_69, %c128_70] : memref<256x1152xbf16, #tpu.memory_space<vmem>>, vector<256x128xbf16>
    tpu.vector_store %arg8[%c0_69, %c128_70], %44 {strides = array<i32>} : memref<256x1152xbf16, #tpu.memory_space<vmem>>, vector<256x128xbf16>,
    %c0_71 = arith.constant 0 : index
    %c0_72 = arith.constant 0 : index
    %c2_73 = arith.constant 2 : index
    %c0_74 = arith.constant 0 : index
    %46 = vector.load %arg7[%c0_71, %c0_72, %c2_73, %c0_74] : memref<1x18x18x128xbf16, #tpu.memory_space<vmem>>, vector<1x16x16x128xbf16>
    %47 = vector.shape_cast %46 : vector<1x16x16x128xbf16> to vector<256x128xbf16>
    %c0_75 = arith.constant 0 : index
    %c256_76 = arith.constant 256 : index
    %48 = vector.load %arg8[%c0_75, %c256_76] : memref<256x1152xbf16, #tpu.memory_space<vmem>>, vector<256x128xbf16>
    tpu.vector_store %arg8[%c0_75, %c256_76], %47 {strides = array<i32>} : memref<256x1152xbf16, #tpu.memory_space<vmem>>, vector<256x128xbf16>,
    %c0_77 = arith.constant 0 : index
    %c1_78 = arith.constant 1 : index
    %c0_79 = arith.constant 0 : index
    %c0_80 = arith.constant 0 : index
    %49 = vector.load %arg7[%c0_77, %c1_78, %c0_79, %c0_80] : memref<1x18x18x128xbf16, #tpu.memory_space<vmem>>, vector<1x16x16x128xbf16>
    %50 = vector.shape_cast %49 : vector<1x16x16x128xbf16> to vector<256x128xbf16>
    %c0_81 = arith.constant 0 : index
    %c384_82 = arith.constant 384 : index
    %51 = vector.load %arg8[%c0_81, %c384_82] : memref<256x1152xbf16, #tpu.memory_space<vmem>>, vector<256x128xbf16>
    tpu.vector_store %arg8[%c0_81, %c384_82], %50 {strides = array<i32>} : memref<256x1152xbf16, #tpu.memory_space<vmem>>, vector<256x128xbf16>,
    %c0_83 = arith.constant 0 : index
    %c1_84 = arith.constant 1 : index
    %c1_85 = arith.constant 1 : index
    %c0_86 = arith.constant 0 : index
    %52 = vector.load %arg7[%c0_83, %c1_84, %c1_85, %c0_86] : memref<1x18x18x128xbf16, #tpu.memory_space<vmem>>, vector<1x16x16x128xbf16>
    %53 = vector.shape_cast %52 : vector<1x16x16x128xbf16> to vector<256x128xbf16>
    %c0_87 = arith.constant 0 : index
    %c512_88 = arith.constant 512 : index
    %54 = vector.load %arg8[%c0_87, %c512_88] : memref<256x1152xbf16, #tpu.memory_space<vmem>>, vector<256x128xbf16>
    tpu.vector_store %arg8[%c0_87, %c512_88], %53 {strides = array<i32>} : memref<256x1152xbf16, #tpu.memory_space<vmem>>, vector<256x128xbf16>,
    %c0_89 = arith.constant 0 : index
    %c1_90 = arith.constant 1 : index
    %c2_91 = arith.constant 2 : index
    %c0_92 = arith.constant 0 : index
    %55 = vector.load %arg7[%c0_89, %c1_90, %c2_91, %c0_92] : memref<1x18x18x128xbf16, #tpu.memory_space<vmem>>, vector<1x16x16x128xbf16>
    %56 = vector.shape_cast %55 : vector<1x16x16x128xbf16> to vector<256x128xbf16>
    %c0_93 = arith.constant 0 : index
    %c640_94 = arith.constant 640 : index
    %57 = vector.load %arg8[%c0_93, %c640_94] : memref<256x1152xbf16, #tpu.memory_space<vmem>>, vector<256x128xbf16>
    tpu.vector_store %arg8[%c0_93, %c640_94], %56 {strides = array<i32>} : memref<256x1152xbf16, #tpu.memory_space<vmem>>, vector<256x128xbf16>,
    %c0_95 = arith.constant 0 : index
    %c2_96 = arith.constant 2 : index
    %c0_97 = arith.constant 0 : index
    %c0_98 = arith.constant 0 : index
    %58 = vector.load %arg7[%c0_95, %c2_96, %c0_97, %c0_98] : memref<1x18x18x128xbf16, #tpu.memory_space<vmem>>, vector<1x16x16x128xbf16>
    %59 = vector.shape_cast %58 : vector<1x16x16x128xbf16> to vector<256x128xbf16>
    %c0_99 = arith.constant 0 : index
    %c768_100 = arith.constant 768 : index
    %60 = vector.load %arg8[%c0_99, %c768_100] : memref<256x1152xbf16, #tpu.memory_space<vmem>>, vector<256x128xbf16>
    tpu.vector_store %arg8[%c0_99, %c768_100], %59 {strides = array<i32>} : memref<256x1152xbf16, #tpu.memory_space<vmem>>, vector<256x128xbf16>,
    %c0_101 = arith.constant 0 : index
    %c2_102 = arith.constant 2 : index
    %c1_103 = arith.constant 1 : index
    %c0_104 = arith.constant 0 : index
    %61 = vector.load %arg7[%c0_101, %c2_102, %c1_103, %c0_104] : memref<1x18x18x128xbf16, #tpu.memory_space<vmem>>, vector<1x16x16x128xbf16>
    %62 = vector.shape_cast %61 : vector<1x16x16x128xbf16> to vector<256x128xbf16>
    %c0_105 = arith.constant 0 : index
    %c896_106 = arith.constant 896 : index
    %63 = vector.load %arg8[%c0_105, %c896_106] : memref<256x1152xbf16, #tpu.memory_space<vmem>>, vector<256x128xbf16>
    tpu.vector_store %arg8[%c0_105, %c896_106], %62 {strides = array<i32>} : memref<256x1152xbf16, #tpu.memory_space<vmem>>, vector<256x128xbf16>,
    %c0_107 = arith.constant 0 : index
    %c2_108 = arith.constant 2 : index
    %c2_109 = arith.constant 2 : index
    %c0_110 = arith.constant 0 : index
    %64 = vector.load %arg7[%c0_107, %c2_108, %c2_109, %c0_110] : memref<1x18x18x128xbf16, #tpu.memory_space<vmem>>, vector<1x16x16x128xbf16>
    %65 = vector.shape_cast %64 : vector<1x16x16x128xbf16> to vector<256x128xbf16>
    %c0_111 = arith.constant 0 : index
    %c1024_112 = arith.constant 1024 : index
    %66 = vector.load %arg8[%c0_111, %c1024_112] : memref<256x1152xbf16, #tpu.memory_space<vmem>>, vector<256x128xbf16>
    tpu.vector_store %arg8[%c0_111, %c1024_112], %65 {strides = array<i32>} : memref<256x1152xbf16, #tpu.memory_space<vmem>>, vector<256x128xbf16>,
    %c0_113 = arith.constant 0 : index
    %c0_114 = arith.constant 0 : index
    %67 = vector.load %arg8[%c0_113, %c0_114] : memref<256x1152xbf16, #tpu.memory_space<vmem>>, vector<256x1152xbf16>
    %c0_115 = arith.constant 0 : index
    %c0_116 = arith.constant 0 : index
    %68 = vector.load %arg4[%c0_115, %c0_116] : memref<1152x128xbf16, #tpu.memory_space<vmem>>, vector<1152x128xbf16>
    %cst_117 = arith.constant dense<0.000000e+00> : vector<256x128xf32>
    %69 = tpu.matmul %67, %68, %cst_117 {dimension_numbers = #tpu.dot_dimension_numbers<[1], [0], [0], [1], [0, 0, 1, 1], [], []>} : vector<256x1152xbf16>, vector<1152x128xbf16>, vector<256x128xf32> -> vector<256x128xf32>
    %c0_118 = arith.constant 0 : index
    %c1_119 = arith.constant 1 : index
    %c1_120 = arith.constant 1 : index
    %c0_121 = arith.constant 0 : index
    %70 = vector.load %arg1[%c0_118, %c1_119, %c1_120, %c0_121] : memref<1x18x18x128xbf16, #tpu.memory_space<vmem>>, vector<1x16x16x128xbf16>
    %71 = vector.shape_cast %70 : vector<1x16x16x128xbf16> to vector<256x128xbf16>
    %72 = arith.extf %71 : vector<256x128xbf16> to vector<256x128xf32>
    %c0_122 = arith.constant 0 : index
    %c0_123 = arith.constant 0 : index
    %73 = vector.load %arg5[%c0_122, %c0_123] : memref<1x128xf32, #tpu.memory_space<vmem>>, vector<1x128xf32>
    %74 = vector.broadcast %73 : vector<1x128xf32> to vector<256x128xf32>
    %75 = arith.addf %69, %74 : vector<256x128xf32>
    %76 = arith.addf %75, %72 : vector<256x128xf32>
    %cst_124 = arith.constant 0.000000e+00 : f32
    %77 = vector.broadcast %cst_124 : f32 to vector<256x128xf32>
    %78 = arith.maximumf %76, %77 : vector<256x128xf32>
    %79 = arith.truncf %78 : vector<256x128xf32> to vector<256x128xbf16>
    %c0_125 = arith.constant 0 : index
    %c0_126 = arith.constant 0 : index
    %80 = vector.load %arg6[%c0_125, %c0_126] : memref<256x128xbf16, #tpu.memory_space<vmem>>, vector<256x128xbf16>
    tpu.vector_store %arg6[%c0_125, %c0_126], %79 {strides = array<i32>} : memref<256x128xbf16, #tpu.memory_space<vmem>>, vector<256x128xbf16>,
    return
  }
  func.func @transform_0(%arg0: i32) -> (i32, i32, i32, i32) {
    %c0_i32 = arith.constant 0 : i32
    %c0_i32_0 = arith.constant 0 : i32
    %c0_i32_1 = arith.constant 0 : i32
    %c0_i32_2 = arith.constant 0 : i32
    return %arg0, %c0_i32, %c0_i32_0, %c0_i32_1 : i32, i32, i32, i32
  }
  func.func @transform_1(%arg0: i32) -> (i32, i32) {
    %c0_i32 = arith.constant 0 : i32
    %c0_i32_0 = arith.constant 0 : i32
    %c0_i32_1 = arith.constant 0 : i32
    return %c0_i32, %c0_i32_0 : i32, i32
  }
  func.func @transform_2(%arg0: i32) -> (i32, i32) {
    %c0_i32 = arith.constant 0 : i32
    %c0_i32_0 = arith.constant 0 : i32
    %c0_i32_1 = arith.constant 0 : i32
    return %c0_i32, %c0_i32_0 : i32, i32
  }
  func.func @transform_3(%arg0: i32) -> (i32, i32) {
    %c0_i32 = arith.constant 0 : i32
    %c0_i32_0 = arith.constant 0 : i32
    %c0_i32_1 = arith.constant 0 : i32
    return %c0_i32, %c0_i32_0 : i32, i32
  }
  func.func @transform_4(%arg0: i32) -> (i32, i32) {
    %c0_i32 = arith.constant 0 : i32
    %c0_i32_0 = arith.constant 0 : i32
    %c0_i32_1 = arith.constant 0 : i32
    return %c0_i32, %c0_i32_0 : i32, i32
  }
  func.func @transform_5(%arg0: i32) -> (i32, i32) {
    %c0_i32 = arith.constant 0 : i32
    %c0_i32_0 = arith.constant 0 : i32
    return %arg0, %c0_i32 : i32, i32
  }
}

</mosaic_0001>

<llo_original>
// kernel: tpu_custom_call.1
$region0: #{tpu_custom_call.1}
  #allocation0 [shape = 'u32[]', space=smem, size = 0x4, offset = 0x4, fixed_abs, tag = 'smem constant byte address 0x4 - core index']
  #allocation1 [shape = 'u32[144,128]{1,0:T(1,128)}', space=vmem, size = 0x12000, scoped, tag = 'internal scratch']
  #allocation2 [shape = 'bf16[1,18,18,128]{3,2,1,0:T(8,128)(2,1)}', space=vmem, size = 0x1b000, scoped, tag = 'scratch operand']
  #allocation3 [shape = 'bf16[256,1152]{1,0:T(16,128)(2,1)}', space=vmem, size = 0x90000, scoped, tag = 'scratch operand']
  %s0 = inlined_call_operand.vmem [shape: bf16[2,18,18,128], index: 0, kind: input, shape index: {}]
  %s1 = inlined_call_operand.vmem [shape: bf16[1152,128], index: 1, kind: input, shape index: {}]
  %s2 = inlined_call_operand.vmem [shape: f32[1,128], index: 2, kind: input, shape index: {}]
  %s3 = inlined_call_operand.hbm [shape: bf16[1152,128], index: 3, kind: input, shape index: {}]
  %s4 = inlined_call_operand.vmem [shape: f32[1,128], index: 4, kind: input, shape index: {}]
  %s5 = inlined_call_operand.hbm [shape: bf16[512,128], index: 5, kind: output, shape index: {}]
  %s6 = sld [smem:[#allocation0]]
  $region57: #{tpu_custom_call.1} parent=0
    _
  %s8 = ssub.s32 1, %s6
  %s9 = scalar_select 0, %s8, %s6
  $region1: #{tpu_custom_call.1} parent=0
    #allocation4 [shape = 'u8[294912]{0}', space=vmem, size = 0x48000, scoped, tag = 'input window, operand 3, single buffered']
    #allocation5 [shape = 's32[2]{0}', space=sflag, size = 0x8, scoped, tag = 'scoped memory for tpu_custom_call.1']
    #allocation6 [shape = 's32[2]{0}', space=sflag, size = 0x8, scoped, tag = 'scoped memory for tpu_custom_call.1']
    #allocation7 [shape = 'u8[131072]{0}', space=vmem, size = 0x20000, scoped, tag = 'output window, operand 0']
    %10 = vsyncpa [#allocation5], 0
    %11 = vsyncpa [#allocation6], 0
    %s12 = scalar_lea.sflag [#allocation6], 1
    %13 = vsyncpa %s12, 0
    loop: start=0, step=1, limit=4
    $region2: #{tpu_custom_call.1} parent=1 // loop_pre_header
      _
    $region3: #{tpu_custom_call.1} parent=1 // loop_header
      %s15 = sphi 0, %s19
      %p16 = scmp.ge.s32.totalorder %s15, 4
      %s25 = sphi 0, %s27
      %s28 = sphi 0, %s25
      %s29 = sphi 0, %s28
      %s45 = sphi 0, %s29
      %s49 = sphi 0, %s49
      %s51 = sphi 0, %s49
      %s52 = sphi 0, %s51
      %s66 = sphi 0, %s52
      %s70 = sphi 0, %s70
      %s72 = sphi 0, %s70
      %s73 = sphi 0, %s72
      %s87 = sphi 0, %s73
      %s91 = sphi 0, %s91
      %s93 = sphi 0, %s91
      %s94 = sphi 0, %s93
      %s108 = sphi 0, %s94
      %s112 = sphi 0, %s112
      %s114 = sphi 0, %s112
      %s115 = sphi 0, %s114
      %s129 = sphi 0, %s115
      %s135 = sphi 0, %s137
      %s138 = sphi 0, %s135
      %s139 = sphi 0, %s138
      %s155 = sphi 0, %s139
    $region4: #{tpu_custom_call.1} parent=1 // loop_header_branch
      %18 = sbr.rel (%p16) target = $region8
    $region5: #{tpu_custom_call.1} parent=1 // loop_body
      %s20 = ssub.s32 %s15, 1
      %s21 = ssub.s32 %s15, 2
      %s22 = sadd.s32 %s15, 1
      %s23 = ssub.s32 %s15, %s22
      %p24 = scmp.eq.s32.totalorder %s23, 0
      %s26 = sadd.s32 %s25, 1
      %s27 = scalar_select %p24, %s25, %s26
      %p30 = pneg %p24
      %p31 = scmp.eq.s32.totalorder %s15, 1
      %p32 = por %p30, %p31
      %p33 = scmp.ne.s32.totalorder %s25, %s28
      %p34 = scmp.eq.s32.totalorder %s15, 0
      %p35 = por %p33, %p34
      %p36 = scmp.ne.s32.totalorder %s25, %s28
      %p37 = scmp.eq.s32.totalorder %s20, 1
      %p38 = por %p36, %p37
      %p39 = scmp.ne.s32.totalorder %s28, %s29
      %p40 = scmp.eq.s32.totalorder %s20, 0
      %p41 = por %p39, %p40
      %p42 = scmp.ne.s32.totalorder %s28, %s29
      %p43 = scmp.eq.s32.totalorder %s21, 1
      %p44 = por %p42, %p43
      %p46 = scmp.ne.s32.totalorder %s29, %s45
      %p47 = scmp.eq.s32.totalorder %s21, 0
      %p48 = por %p46, %p47
      %s50 = sadd.s32 %s49, 1
      %p53 = scmp.eq.s32.totalorder %s15, 1
      %p54 = scmp.ne.s32.totalorder %s49, %s51
      %p55 = scmp.eq.s32.totalorder %s15, 0
      %p56 = por %p54, %p55
      %p57 = scmp.ne.s32.totalorder %s49, %s51
      %p58 = scmp.eq.s32.totalorder %s20, 1
      %p59 = por %p57, %p58
      %p60 = scmp.ne.s32.totalorder %s51, %s52
      %p61 = scmp.eq.s32.totalorder %s20, 0
      %p62 = por %p60, %p61
      %p63 = scmp.ne.s32.totalorder %s51, %s52
      %p64 = scmp.eq.s32.totalorder %s21, 1
      %p65 = por %p63, %p64
      %p67 = scmp.ne.s32.totalorder %s52, %s66
      %p68 = scmp.eq.s32.totalorder %s21, 0
      %p69 = por %p67, %p68
      %s71 = sadd.s32 %s70, 1
      %p74 = scmp.eq.s32.totalorder %s15, 1
      %p75 = scmp.ne.s32.totalorder %s70, %s72
      %p76 = scmp.eq.s32.totalorder %s15, 0
      %p77 = por %p75, %p76
      %p78 = scmp.ne.s32.totalorder %s70, %s72
      %p79 = scmp.eq.s32.totalorder %s20, 1
      %p80 = por %p78, %p79
      %p81 = scmp.ne.s32.totalorder %s72, %s73
      %p82 = scmp.eq.s32.totalorder %s20, 0
      %p83 = por %p81, %p82
      %p84 = scmp.ne.s32.totalorder %s72, %s73
      %p85 = scmp.eq.s32.totalorder %s21, 1
      %p86 = por %p84, %p85
      %p88 = scmp.ne.s32.totalorder %s73, %s87
      %p89 = scmp.eq.s32.totalorder %s21, 0
      %p90 = por %p88, %p89
      %s92 = sadd.s32 %s91, 1
      %p95 = scmp.eq.s32.totalorder %s15, 1
      %p96 = scmp.ne.s32.totalorder %s91, %s93
      %p97 = scmp.eq.s32.totalorder %s15, 0
      %p98 = por %p96, %p97
      %p99 = scmp.ne.s32.totalorder %s91, %s93
      %p100 = scmp.eq.s32.totalorder %s20, 1
      %p101 = por %p99, %p100
      %p102 = scmp.ne.s32.totalorder %s93, %s94
      %p103 = scmp.eq.s32.totalorder %s20, 0
      %p104 = por %p102, %p103
      %p105 = scmp.ne.s32.totalorder %s93, %s94
      %p106 = scmp.eq.s32.totalorder %s21, 1
      %p107 = por %p105, %p106
      %p109 = scmp.ne.s32.totalorder %s94, %s108
      %p110 = scmp.eq.s32.totalorder %s21, 0
      %p111 = por %p109, %p110
      %s113 = sadd.s32 %s112, 1
      %p116 = scmp.eq.s32.totalorder %s15, 1
      %p117 = scmp.ne.s32.totalorder %s112, %s114
      %p118 = scmp.eq.s32.totalorder %s15, 0
      %p119 = por %p117, %p118
      %p120 = scmp.ne.s32.totalorder %s112, %s114
      %p121 = scmp.eq.s32.totalorder %s20, 1
      %p122 = por %p120, %p121
      %p123 = scmp.ne.s32.totalorder %s114, %s115
      %p124 = scmp.eq.s32.totalorder %s20, 0
      %p125 = por %p123, %p124
      %p126 = scmp.ne.s32.totalorder %s114, %s115
      %p127 = scmp.eq.s32.totalorder %s21, 1
      %p128 = por %p126, %p127
      %p130 = scmp.ne.s32.totalorder %s115, %s129
      %p131 = scmp.eq.s32.totalorder %s21, 0
      %p132 = por %p130, %p131
      %s133 = ssub.s32 %s15, %s22
      %p134 = scmp.eq.s32.totalorder %s133, 0
      %s136 = sadd.s32 %s135, 1
      %s137 = scalar_select %p134, %s135, %s136
      %p140 = pneg %p134
      %p141 = scmp.eq.s32.totalorder %s15, 1
      %p142 = por %p140, %p141
      %p143 = scmp.ne.s32.totalorder %s135, %s138
      %p144 = scmp.eq.s32.totalorder %s15, 0
      %p145 = por %p143, %p144
      %p146 = scmp.ne.s32.totalorder %s135, %s138
      %p147 = scmp.eq.s32.totalorder %s20, 1
      %p148 = por %p146, %p147
      %p149 = scmp.ne.s32.totalorder %s138, %s139
      %p150 = scmp.eq.s32.totalorder %s20, 0
      %p151 = por %p149, %p150
      %p152 = scmp.ne.s32.totalorder %s138, %s139
      %p153 = scmp.eq.s32.totalorder %s21, 1
      %p154 = por %p152, %p153
      %p156 = scmp.ne.s32.totalorder %s139, %s155
      %p157 = scmp.eq.s32.totalorder %s21, 0
      %p158 = por %p156, %p157
      %p159 = scmp.le.s32.totalorder 1, %s15
      %p160 = scmp.lt.s32.totalorder %s15, 3
      %p161 = pnand %p159, %p160
      %p162 = pneg %p161
      // Predicated region
      $region9: #{tpu_custom_call.1} parent=5 // pred_check
        _
      $region10: #{tpu_custom_call.1} parent=5 // pred_check_branch
        %164 = sbr.rel (%p161) target = $region12
      $region11: #{tpu_custom_call.1} parent=5 // pred_region
        %s165 = ssub.s32 %s15, 1
        // Predicated region
        $region13: #{tpu_custom_call.1} parent=11 // pred_check
          %p166 = pneg %p62
        $region14: #{tpu_custom_call.1} parent=11 // pred_check_branch
          %168 = sbr.rel (%p166) target = $region16
        $region15: #{tpu_custom_call.1} parent=11 // pred_region
          _
        $region16: #{tpu_custom_call.1} parent=11 // pred_fallthru
          _
        // Predicated region
        $region17: #{tpu_custom_call.1} parent=11 // pred_check
          %p169 = pneg %p83
        $region18: #{tpu_custom_call.1} parent=11 // pred_check_branch
          %171 = sbr.rel (%p169) target = $region20
        $region19: #{tpu_custom_call.1} parent=11 // pred_region
          _
        $region20: #{tpu_custom_call.1} parent=11 // pred_fallthru
          _
        // Predicated region
        $region21: #{tpu_custom_call.1} parent=11 // pred_check
          %p172 = pneg %p104
        $region22: #{tpu_custom_call.1} parent=11 // pred_check_branch
          %174 = sbr.rel (%p172) target = $region24
        $region23: #{tpu_custom_call.1} parent=11 // pred_region
          %s176 = ssub.s32 9216, 9216
          %177 = vsyncadd [#allocation5], %s176
          %s178 = sshll.u32 [#allocation4], 4
          %s179 = int_to_ptr.vmem [resolvable:$true] %s178
          %184 = dma.hbm_to_vmem [thread:$0]  %s3, 9216, %s179, [#allocation5], 64, 64, 4
        $region24: #{tpu_custom_call.1} parent=11 // pred_fallthru
          _
        // Predicated region
        $region25: #{tpu_custom_call.1} parent=11 // pred_check
          %p185 = pneg %p125
        $region26: #{tpu_custom_call.1} parent=11 // pred_check_branch
          %187 = sbr.rel (%p185) target = $region28
        $region27: #{tpu_custom_call.1} parent=11 // pred_region
          _
        $region28: #{tpu_custom_call.1} parent=11 // pred_fallthru
          _
      $region12: #{tpu_custom_call.1} parent=5 // pred_fallthru
        _
      %p188 = scmp.lt.s32.totalorder %s15, 2
      // Predicated region
      $region29: #{tpu_custom_call.1} parent=5 // pred_check
        %p189 = pneg %p188
      $region30: #{tpu_custom_call.1} parent=5 // pred_check_branch
        %191 = sbr.rel (%p189) target = $region32
      $region31: #{tpu_custom_call.1} parent=5 // pred_region
        // Predicated region
        $region33: #{tpu_custom_call.1} parent=31 // pred_check
          %p192 = pneg %p35
        $region34: #{tpu_custom_call.1} parent=31 // pred_check_branch
          %194 = sbr.rel (%p192) target = $region36
        $region35: #{tpu_custom_call.1} parent=31 // pred_region
          %p195 = scmp.lt.s32.totalorder %s15, 1
          %s196 = scalar_select %p195, %s15, 1
          %s197 = smul.addr %s196, 54
          %s198 = smul.addr %s197, 4
          %s199 = scalar_lea.vmem %s0, %s198
        $region36: #{tpu_custom_call.1} parent=31 // pred_fallthru
          _
      $region32: #{tpu_custom_call.1} parent=5 // pred_fallthru
        _
      %p200 = scmp.le.s32.totalorder 1, %s15
      %p201 = scmp.lt.s32.totalorder %s15, 3
      %p202 = pnand %p200, %p201
      %p203 = pneg %p202
      // Predicated region
      $region37: #{tpu_custom_call.1} parent=5 // pred_check
        _
      $region38: #{tpu_custom_call.1} parent=5 // pred_check_branch
        %205 = sbr.rel (%p202) target = $region40
      $region39: #{tpu_custom_call.1} parent=5 // pred_region
        %s206 = ssub.s32 %s15, 1
        // Predicated region
        $region41: #{tpu_custom_call.1} parent=39 // pred_check
          %p207 = pneg %p104
        $region42: #{tpu_custom_call.1} parent=39 // pred_check_branch
          %209 = sbr.rel (%p207) target = $region44
        $region43: #{tpu_custom_call.1} parent=39 // pred_region
          %210 = dma.done [#allocation5], 9216
        $region44: #{tpu_custom_call.1} parent=39 // pred_fallthru
          _
        %p211 = scmp.lt.s32.totalorder %s20, 1
        %s212 = scalar_select %p211, %s20, 1
        %s213 = smul.addr %s212, 54
        %s214 = smul.addr %s213, 4
        %s215 = scalar_lea.vmem %s0, %s214
        %p216 = pneg %p41
        %p217 = pneg %p38
        %p218 = pneg %p62
        %p219 = pneg %p59
        %p220 = pneg %p83
        %p221 = pneg %p80
        %p222 = pneg %p104
        %p223 = pneg %p101
        %p224 = pneg %p125
        %p225 = pneg %p122
        %p226 = pneg %p151
        %p227 = pneg %p148
        %s228 = sand.u32 %s138, 1
        %s229 = scalar_lea.sflag [#allocation6], %s228
        %s230 = sand.u32 %s138, 1
        %s231 = smul.addr %s230, 128
        %s232 = scalar_lea.vmem [#allocation7], %s231
        %p233 = scmp.lt.s32.totalorder %s20, 1
        %s234 = scalar_select %p233, %s20, 1
        %s235 = smul.addr %s234, 54
        %s236 = smul.addr %s235, 4
        %s237 = scalar_lea.vmem %s0, %s236
        %s238 = smul.u32 32, %s20
        %v240 = vld [vmem:[%s237] sm:$0xf]
        %v241 = vld [vmem:[%s237 + $0x4] sm:$0xf]
        %v242 = vld [vmem:[%s237 + $0xc] sm:$0xf]
        %v243 = vld [vmem:[%s237 + $0x10] sm:$0xf]
        %v244 = vld [vmem:[%s237 + $0x18] sm:$0xf]
        %v245 = vld [vmem:[%s237 + $0x1c] sm:$0xf]
        %v246 = vld [vmem:[%s237 + $0x24] sm:$0xf]
        %v247 = vld [vmem:[%s237 + $0x28] sm:$0xf]
        %v248 = vld [vmem:[%s237 + $0x30] sm:$0xf]
        %v249 = vld [vmem:[%s237 + $0x34] sm:$0xf]
        %v250 = vld [vmem:[%s237 + $0x3c] sm:$0xf]
        %v251 = vld [vmem:[%s237 + $0x40] sm:$0xf]
        %v252 = vld [vmem:[%s237 + $0x48] sm:$0xf]
        %v253 = vld [vmem:[%s237 + $0x4c] sm:$0xf]
        %v254 = vld [vmem:[%s237 + $0x54] sm:$0xf]
        %v255 = vld [vmem:[%s237 + $0x58] sm:$0xf]
        %v256 = vld [vmem:[%s237 + $0x60] sm:$0xf]
        %v257 = vld [vmem:[%s237 + $0x64] sm:$0xf]
        %v258 = vld [vmem:[%s237 + $0x6c] sm:$0xf]
        %v259 = vld [vmem:[%s237 + $0x70] sm:$0xf]
        %v260 = vld [vmem:[%s237 + $0x78] sm:$0xf]
        %v261 = vld [vmem:[%s237 + $0x7c] sm:$0xf]
        %v262 = vld [vmem:[%s237 + $0x84] sm:$0xf]
        %v263 = vld [vmem:[%s237 + $0x88] sm:$0xf]
        %v264 = vld [vmem:[%s237 + $0x90] sm:$0xf]
        %v265 = vld [vmem:[%s237 + $0x94] sm:$0xf]
        %v266 = vld [vmem:[%s237 + $0x9c] sm:$0xf]
        %v267 = vld [vmem:[%s237 + $0xa0] sm:$0xf]
        %v268 = vld [vmem:[%s237 + $0xa8] sm:$0xf]
        %v269 = vld [vmem:[%s237 + $0xac] sm:$0xf]
        %v270 = vld [vmem:[%s237 + $0xb4] sm:$0xf]
        %v271 = vld [vmem:[%s237 + $0xb8] sm:$0xf]
        %v304 = vunpack.c.l.b16 %v240
        %v305 = vunpack.c.l.b16 %v241
        %v306 = vunpack.c.l.b16 %v242
        %v307 = vunpack.c.l.b16 %v243
        %v308 = vunpack.c.l.b16 %v244
        %v309 = vunpack.c.l.b16 %v245
        %v310 = vunpack.c.l.b16 %v246
        %v311 = vunpack.c.l.b16 %v247
        %v312 = vunpack.c.l.b16 %v248
        %v313 = vunpack.c.l.b16 %v249
        %v314 = vunpack.c.l.b16 %v250
        %v315 = vunpack.c.l.b16 %v251
        %v316 = vunpack.c.l.b16 %v252
        %v317 = vunpack.c.l.b16 %v253
        %v318 = vunpack.c.l.b16 %v254
        %v319 = vunpack.c.l.b16 %v255
        %v320 = vunpack.c.l.b16 %v256
        %v321 = vunpack.c.l.b16 %v257
        %v322 = vunpack.c.l.b16 %v258
        %v323 = vunpack.c.l.b16 %v259
        %v324 = vunpack.c.l.b16 %v260
        %v325 = vunpack.c.l.b16 %v261
        %v326 = vunpack.c.l.b16 %v262
        %v327 = vunpack.c.l.b16 %v263
        %v328 = vunpack.c.l.b16 %v264
        %v329 = vunpack.c.l.b16 %v265
        %v330 = vunpack.c.l.b16 %v266
        %v331 = vunpack.c.l.b16 %v267
        %v332 = vunpack.c.l.b16 %v268
        %v333 = vunpack.c.l.b16 %v269
        %v334 = vunpack.c.l.b16 %v270
        %v335 = vunpack.c.l.b16 %v271
        %v336 = vpack.c.b16 %v305, %v304
        %v337 = vpack.c.b16 %v307, %v306
        %v338 = vpack.c.b16 %v309, %v308
        %v339 = vpack.c.b16 %v311, %v310
        %v340 = vpack.c.b16 %v313, %v312
        %v341 = vpack.c.b16 %v315, %v314
        %v342 = vpack.c.b16 %v317, %v316
        %v343 = vpack.c.b16 %v319, %v318
        %v344 = vpack.c.b16 %v321, %v320
        %v345 = vpack.c.b16 %v323, %v322
        %v346 = vpack.c.b16 %v325, %v324
        %v347 = vpack.c.b16 %v327, %v326
        %v348 = vpack.c.b16 %v329, %v328
        %v349 = vpack.c.b16 %v331, %v330
        %v350 = vpack.c.b16 %v333, %v332
        %v351 = vpack.c.b16 %v335, %v334
        %368 = vst [vmem:[#allocation3] sm:$0xff] %v336
        %369 = vst [vmem:[#allocation3 + $0x48] sm:$0xff] %v337
        %370 = vst [vmem:[#allocation3 + $0x90] sm:$0xff] %v338
        %371 = vst [vmem:[#allocation3 + $0xd8] sm:$0xff] %v339
        %372 = vst [vmem:[#allocation3 + $0x120] sm:$0xff] %v340
        %373 = vst [vmem:[#allocation3 + $0x168] sm:$0xff] %v341
        %374 = vst [vmem:[#allocation3 + $0x1b0] sm:$0xff] %v342
        %375 = vst [vmem:[#allocation3 + $0x1f8] sm:$0xff] %v343
        %376 = vst [vmem:[#allocation3 + $0x240] sm:$0xff] %v344
        %377 = vst [vmem:[#allocation3 + $0x288] sm:$0xff] %v345
        %378 = vst [vmem:[#allocation3 + $0x2d0] sm:$0xff] %v346
        %379 = vst [vmem:[#allocation3 + $0x318] sm:$0xff] %v347
        %380 = vst [vmem:[#allocation3 + $0x360] sm:$0xff] %v348
        %381 = vst [vmem:[#allocation3 + $0x3a8] sm:$0xff] %v349
        %382 = vst [vmem:[#allocation3 + $0x3f0] sm:$0xff] %v350
        %383 = vst [vmem:[#allocation3 + $0x438] sm:$0xff] %v351
        %v384 = vld [vmem:[%s237] sm:$0xf]
        %v385 = vld [vmem:[%s237 + $0x4] sm:$0xf]
        %v386 = vld [vmem:[%s237 + $0x8] sm:$0x1]
        %v387 = vld [vmem:[%s237 + $0xc] sm:$0xf]
        %v388 = vld [vmem:[%s237 + $0x10] sm:$0xf]
        %v389 = vld [vmem:[%s237 + $0x14] sm:$0x1]
        %v390 = vld [vmem:[%s237 + $0x18] sm:$0xf]
        %v391 = vld [vmem:[%s237 + $0x1c] sm:$0xf]
        %v392 = vld [vmem:[%s237 + $0x20] sm:$0x1]
        %v393 = vld [vmem:[%s237 + $0x24] sm:$0xf]
        %v394 = vld [vmem:[%s237 + $0x28] sm:$0xf]
        %v395 = vld [vmem:[%s237 + $0x2c] sm:$0x1]
        %v396 = vld [vmem:[%s237 + $0x30] sm:$0xf]
        %v397 = vld [vmem:[%s237 + $0x34] sm:$0xf]
        %v398 = vld [vmem:[%s237 + $0x38] sm:$0x1]
        %v399 = vld [vmem:[%s237 + $0x3c] sm:$0xf]
        %v400 = vld [vmem:[%s237 + $0x40] sm:$0xf]
        %v401 = vld [vmem:[%s237 + $0x44] sm:$0x1]
        %v402 = vld [vmem:[%s237 + $0x48] sm:$0xf]
        %v403 = vld [vmem:[%s237 + $0x4c] sm:$0xf]
        %v404 = vld [vmem:[%s237 + $0x50] sm:$0x1]
        %v405 = vld [vmem:[%s237 + $0x54] sm:$0xf]
        %v406 = vld [vmem:[%s237 + $0x58] sm:$0xf]
        %v407 = vld [vmem:[%s237 + $0x5c] sm:$0x1]
        %v408 = vld [vmem:[%s237 + $0x60] sm:$0xf]
        %v409 = vld [vmem:[%s237 + $0x64] sm:$0xf]
        %v410 = vld [vmem:[%s237 + $0x68] sm:$0x1]
        %v411 = vld [vmem:[%s237 + $0x6c] sm:$0xf]
        %v412 = vld [vmem:[%s237 + $0x70] sm:$0xf]
        %v413 = vld [vmem:[%s237 + $0x74] sm:$0x1]
        %v414 = vld [vmem:[%s237 + $0x78] sm:$0xf]
        %v415 = vld [vmem:[%s237 + $0x7c] sm:$0xf]
        %v416 = vld [vmem:[%s237 + $0x80] sm:$0x1]
        %v417 = vld [vmem:[%s237 + $0x84] sm:$0xf]
        %v418 = vld [vmem:[%s237 + $0x88] sm:$0xf]
        %v419 = vld [vmem:[%s237 + $0x8c] sm:$0x1]
        %v420 = vld [vmem:[%s237 + $0x90] sm:$0xf]
        %v421 = vld [vmem:[%s237 + $0x94] sm:$0xf]
        %v422 = vld [vmem:[%s237 + $0x98] sm:$0x1]
        %v423 = vld [vmem:[%s237 + $0x9c] sm:$0xf]
        %v424 = vld [vmem:[%s237 + $0xa0] sm:$0xf]
        %v425 = vld [vmem:[%s237 + $0xa4] sm:$0x1]
        %v426 = vld [vmem:[%s237 + $0xa8] sm:$0xf]
        %v427 = vld [vmem:[%s237 + $0xac] sm:$0xf]
        %v428 = vld [vmem:[%s237 + $0xb0] sm:$0x1]
        %v429 = vld [vmem:[%s237 + $0xb4] sm:$0xf]
        %v430 = vld [vmem:[%s237 + $0xb8] sm:$0xf]
        %v431 = vld [vmem:[%s237 + $0xbc] sm:$0x1]
        %vm432 = vsmask.f32 3328
        %vm433 = vsmask.f32 7440
        %vm434 = vmor %vm432, %vm433
        %v436 = vshrl.u32 %v384, 16
        %v438 = vrot.slane %v436, 4
        %v439 = vshll.u32 %v384, 16
        %v441 = vrot.slane %v439, 5
        %v442 = vor.u32 %v438, %v441
        %v443 = vrot.slane %v442, 4
        %v445 = vshll.u32 %v385, 16
        %v447 = vrot.slane %v445, 5
        %v448 = vsel %vm434, %v443, %v447
        %v449 = vshrl.u32 %v385, 16
        %v451 = vrot.slane %v449, 4
        %v452 = vor.u32 %v451, %v447
        %v453 = vrot.slane %v452, 4
        %v455 = vshll.u32 %v386, 16
        %v457 = vrot.slane %v455, 5
        %v458 = vsel %vm434, %v453, %v457
        %v460 = vshrl.u32 %v387, 16
        %v462 = vrot.slane %v460, 4
        %v463 = vshll.u32 %v387, 16
        %v465 = vrot.slane %v463, 5
        %v466 = vor.u32 %v462, %v465
        %v467 = vrot.slane %v466, 4
        %v469 = vshll.u32 %v388, 16
        %v471 = vrot.slane %v469, 5
        %v472 = vsel %vm434, %v467, %v471
        %v473 = vshrl.u32 %v388, 16
        %v475 = vrot.slane %v473, 4
        %v476 = vor.u32 %v475, %v471
        %v477 = vrot.slane %v476, 4
        %v479 = vshll.u32 %v389, 16
        %v481 = vrot.slane %v479, 5
        %v482 = vsel %vm434, %v477, %v481
        %v484 = vshrl.u32 %v390, 16
        %v486 = vrot.slane %v484, 4
        %v487 = vshll.u32 %v390, 16
        %v489 = vrot.slane %v487, 5
        %v490 = vor.u32 %v486, %v489
        %v491 = vrot.slane %v490, 4
        %v493 = vshll.u32 %v391, 16
        %v495 = vrot.slane %v493, 5
        %v496 = vsel %vm434, %v491, %v495
        %v497 = vshrl.u32 %v391, 16
        %v499 = vrot.slane %v497, 4
        %v500 = vor.u32 %v499, %v495
        %v501 = vrot.slane %v500, 4
        %v503 = vshll.u32 %v392, 16
        %v505 = vrot.slane %v503, 5
        %v506 = vsel %vm434, %v501, %v505
        %v508 = vshrl.u32 %v393, 16
        %v510 = vrot.slane %v508, 4
        %v511 = vshll.u32 %v393, 16
        %v513 = vrot.slane %v511, 5
        %v514 = vor.u32 %v510, %v513
        %v515 = vrot.slane %v514, 4
        %v517 = vshll.u32 %v394, 16
        %v519 = vrot.slane %v517, 5
        %v520 = vsel %vm434, %v515, %v519
        %v521 = vshrl.u32 %v394, 16
        %v523 = vrot.slane %v521, 4
        %v524 = vor.u32 %v523, %v519
        %v525 = vrot.slane %v524, 4
        %v527 = vshll.u32 %v395, 16
        %v529 = vrot.slane %v527, 5
        %v530 = vsel %vm434, %v525, %v529
        %v532 = vshrl.u32 %v396, 16
        %v534 = vrot.slane %v532, 4
        %v535 = vshll.u32 %v396, 16
        %v537 = vrot.slane %v535, 5
        %v538 = vor.u32 %v534, %v537
        %v539 = vrot.slane %v538, 4
        %v541 = vshll.u32 %v397, 16
        %v543 = vrot.slane %v541, 5
        %v544 = vsel %vm434, %v539, %v543
        %v545 = vshrl.u32 %v397, 16
        %v547 = vrot.slane %v545, 4
        %v548 = vor.u32 %v547, %v543
        %v549 = vrot.slane %v548, 4
        %v551 = vshll.u32 %v398, 16
        %v553 = vrot.slane %v551, 5
        %v554 = vsel %vm434, %v549, %v553
        %v556 = vshrl.u32 %v399, 16
        %v558 = vrot.slane %v556, 4
        %v559 = vshll.u32 %v399, 16
        %v561 = vrot.slane %v559, 5
        %v562 = vor.u32 %v558, %v561
        %v563 = vrot.slane %v562, 4
        %v565 = vshll.u32 %v400, 16
        %v567 = vrot.slane %v565, 5
        %v568 = vsel %vm434, %v563, %v567
        %v569 = vshrl.u32 %v400, 16
        %v571 = vrot.slane %v569, 4
        %v572 = vor.u32 %v571, %v567
        %v573 = vrot.slane %v572, 4
        %v575 = vshll.u32 %v401, 16
        %v577 = vrot.slane %v575, 5
        %v578 = vsel %vm434, %v573, %v577
        %v580 = vshrl.u32 %v402, 16
        %v582 = vrot.slane %v580, 4
        %v583 = vshll.u32 %v402, 16
        %v585 = vrot.slane %v583, 5
        %v586 = vor.u32 %v582, %v585
        %v587 = vrot.slane %v586, 4
        %v589 = vshll.u32 %v403, 16
        %v591 = vrot.slane %v589, 5
        %v592 = vsel %vm434, %v587, %v591
        %v593 = vshrl.u32 %v403, 16
        %v595 = vrot.slane %v593, 4
        %v596 = vor.u32 %v595, %v591
        %v597 = vrot.slane %v596, 4
        %v599 = vshll.u32 %v404, 16
        %v601 = vrot.slane %v599, 5
        %v602 = vsel %vm434, %v597, %v601
        %v604 = vshrl.u32 %v405, 16
        %v606 = vrot.slane %v604, 4
        %v607 = vshll.u32 %v405, 16
        %v609 = vrot.slane %v607, 5
        %v610 = vor.u32 %v606, %v609
        %v611 = vrot.slane %v610, 4
        %v613 = vshll.u32 %v406, 16
        %v615 = vrot.slane %v613, 5
        %v616 = vsel %vm434, %v611, %v615
        %v617 = vshrl.u32 %v406, 16
        %v619 = vrot.slane %v617, 4
        %v620 = vor.u32 %v619, %v615
        %v621 = vrot.slane %v620, 4
        %v623 = vshll.u32 %v407, 16
        %v625 = vrot.slane %v623, 5
        %v626 = vsel %vm434, %v621, %v625
        %v628 = vshrl.u32 %v408, 16
        %v630 = vrot.slane %v628, 4
        %v631 = vshll.u32 %v408, 16
        %v633 = vrot.slane %v631, 5
        %v634 = vor.u32 %v630, %v633
        %v635 = vrot.slane %v634, 4
        %v637 = vshll.u32 %v409, 16
        %v639 = vrot.slane %v637, 5
        %v640 = vsel %vm434, %v635, %v639
        %v641 = vshrl.u32 %v409, 16
        %v643 = vrot.slane %v641, 4
        %v644 = vor.u32 %v643, %v639
        %v645 = vrot.slane %v644, 4
        %v647 = vshll.u32 %v410, 16
        %v649 = vrot.slane %v647, 5
        %v650 = vsel %vm434, %v645, %v649
        %v652 = vshrl.u32 %v411, 16
        %v654 = vrot.slane %v652, 4
        %v655 = vshll.u32 %v411, 16
        %v657 = vrot.slane %v655, 5
        %v658 = vor.u32 %v654, %v657
        %v659 = vrot.slane %v658, 4
        %v661 = vshll.u32 %v412, 16
        %v663 = vrot.slane %v661, 5
        %v664 = vsel %vm434, %v659, %v663
        %v665 = vshrl.u32 %v412, 16
        %v667 = vrot.slane %v665, 4
        %v668 = vor.u32 %v667, %v663
        %v669 = vrot.slane %v668, 4
        %v671 = vshll.u32 %v413, 16
        %v673 = vrot.slane %v671, 5
        %v674 = vsel %vm434, %v669, %v673
        %v676 = vshrl.u32 %v414, 16
        %v678 = vrot.slane %v676, 4
        %v679 = vshll.u32 %v414, 16
        %v681 = vrot.slane %v679, 5
        %v682 = vor.u32 %v678, %v681
        %v683 = vrot.slane %v682, 4
        %v685 = vshll.u32 %v415, 16
        %v687 = vrot.slane %v685, 5
        %v688 = vsel %vm434, %v683, %v687
        %v689 = vshrl.u32 %v415, 16
        %v691 = vrot.slane %v689, 4
        %v692 = vor.u32 %v691, %v687
        %v693 = vrot.slane %v692, 4
        %v695 = vshll.u32 %v416, 16
        %v697 = vrot.slane %v695, 5
        %v698 = vsel %vm434, %v693, %v697
        %v700 = vshrl.u32 %v417, 16
        %v702 = vrot.slane %v700, 4
        %v703 = vshll.u32 %v417, 16
        %v705 = vrot.slane %v703, 5
        %v706 = vor.u32 %v702, %v705
        %v707 = vrot.slane %v706, 4
        %v709 = vshll.u32 %v418, 16
        %v711 = vrot.slane %v709, 5
        %v712 = vsel %vm434, %v707, %v711
        %v713 = vshrl.u32 %v418, 16
        %v715 = vrot.slane %v713, 4
        %v716 = vor.u32 %v715, %v711
        %v717 = vrot.slane %v716, 4
        %v719 = vshll.u32 %v419, 16
        %v721 = vrot.slane %v719, 5
        %v722 = vsel %vm434, %v717, %v721
        %v724 = vshrl.u32 %v420, 16
        %v726 = vrot.slane %v724, 4
        %v727 = vshll.u32 %v420, 16
        %v729 = vrot.slane %v727, 5
        %v730 = vor.u32 %v726, %v729
        %v731 = vrot.slane %v730, 4
        %v733 = vshll.u32 %v421, 16
        %v735 = vrot.slane %v733, 5
        %v736 = vsel %vm434, %v731, %v735
        %v737 = vshrl.u32 %v421, 16
        %v739 = vrot.slane %v737, 4
        %v740 = vor.u32 %v739, %v735
        %v741 = vrot.slane %v740, 4
        %v743 = vshll.u32 %v422, 16
        %v745 = vrot.slane %v743, 5
        %v746 = vsel %vm434, %v741, %v745
        %v748 = vshrl.u32 %v423, 16
        %v750 = vrot.slane %v748, 4
        %v751 = vshll.u32 %v423, 16
        %v753 = vrot.slane %v751, 5
        %v754 = vor.u32 %v750, %v753
        %v755 = vrot.slane %v754, 4
        %v757 = vshll.u32 %v424, 16
        %v759 = vrot.slane %v757, 5
        %v760 = vsel %vm434, %v755, %v759
        %v761 = vshrl.u32 %v424, 16
        %v763 = vrot.slane %v761, 4
        %v764 = vor.u32 %v763, %v759
        %v765 = vrot.slane %v764, 4
        %v767 = vshll.u32 %v425, 16
        %v769 = vrot.slane %v767, 5
        %v770 = vsel %vm434, %v765, %v769
        %v772 = vshrl.u32 %v426, 16
        %v774 = vrot.slane %v772, 4
        %v775 = vshll.u32 %v426, 16
        %v777 = vrot.slane %v775, 5
        %v778 = vor.u32 %v774, %v777
        %v779 = vrot.slane %v778, 4
        %v781 = vshll.u32 %v427, 16
        %v783 = vrot.slane %v781, 5
        %v784 = vsel %vm434, %v779, %v783
        %v785 = vshrl.u32 %v427, 16
        %v787 = vrot.slane %v785, 4
        %v788 = vor.u32 %v787, %v783
        %v789 = vrot.slane %v788, 4
        %v791 = vshll.u32 %v428, 16
        %v793 = vrot.slane %v791, 5
        %v794 = vsel %vm434, %v789, %v793
        %v796 = vshrl.u32 %v429, 16
        %v798 = vrot.slane %v796, 4
        %v799 = vshll.u32 %v429, 16
        %v801 = vrot.slane %v799, 5
        %v802 = vor.u32 %v798, %v801
        %v803 = vrot.slane %v802, 4
        %v805 = vshll.u32 %v430, 16
        %v807 = vrot.slane %v805, 5
        %v808 = vsel %vm434, %v803, %v807
        %v809 = vshrl.u32 %v430, 16
        %v811 = vrot.slane %v809, 4
        %v812 = vor.u32 %v811, %v807
        %v813 = vrot.slane %v812, 4
        %v815 = vshll.u32 %v431, 16
        %v817 = vrot.slane %v815, 5
        %v818 = vsel %vm434, %v813, %v817
        %v819 = vunpack.c.l.b16 %v448
        %v820 = vunpack.c.l.b16 %v458
        %v821 = vunpack.c.l.b16 %v472
        %v822 = vunpack.c.l.b16 %v482
        %v823 = vunpack.c.l.b16 %v496
        %v824 = vunpack.c.l.b16 %v506
        %v825 = vunpack.c.l.b16 %v520
        %v826 = vunpack.c.l.b16 %v530
        %v827 = vunpack.c.l.b16 %v544
        %v828 = vunpack.c.l.b16 %v554
        %v829 = vunpack.c.l.b16 %v568
        %v830 = vunpack.c.l.b16 %v578
        %v831 = vunpack.c.l.b16 %v592
        %v832 = vunpack.c.l.b16 %v602
        %v833 = vunpack.c.l.b16 %v616
        %v834 = vunpack.c.l.b16 %v626
        %v835 = vunpack.c.l.b16 %v640
        %v836 = vunpack.c.l.b16 %v650
        %v837 = vunpack.c.l.b16 %v664
        %v838 = vunpack.c.l.b16 %v674
        %v839 = vunpack.c.l.b16 %v688
        %v840 = vunpack.c.l.b16 %v698
        %v841 = vunpack.c.l.b16 %v712
        %v842 = vunpack.c.l.b16 %v722
        %v843 = vunpack.c.l.b16 %v736
        %v844 = vunpack.c.l.b16 %v746
        %v845 = vunpack.c.l.b16 %v760
        %v846 = vunpack.c.l.b16 %v770
        %v847 = vunpack.c.l.b16 %v784
        %v848 = vunpack.c.l.b16 %v794
        %v849 = vunpack.c.l.b16 %v808
        %v850 = vunpack.c.l.b16 %v818
        %v851 = vpack.c.b16 %v820, %v819
        %v852 = vpack.c.b16 %v822, %v821
        %v853 = vpack.c.b16 %v824, %v823
        %v854 = vpack.c.b16 %v826, %v825
        %v855 = vpack.c.b16 %v828, %v827
        %v856 = vpack.c.b16 %v830, %v829
        %v857 = vpack.c.b16 %v832, %v831
        %v858 = vpack.c.b16 %v834, %v833
        %v859 = vpack.c.b16 %v836, %v835
        %v860 = vpack.c.b16 %v838, %v837
        %v861 = vpack.c.b16 %v840, %v839
        %v862 = vpack.c.b16 %v842, %v841
        %v863 = vpack.c.b16 %v844, %v843
        %v864 = vpack.c.b16 %v846, %v845
        %v865 = vpack.c.b16 %v848, %v847
        %v866 = vpack.c.b16 %v850, %v849
        %883 = vst [vmem:[#allocation3 + $0x8] sm:$0xff] %v851
        %884 = vst [vmem:[#allocation3 + $0x50] sm:$0xff] %v852
        %885 = vst [vmem:[#allocation3 + $0x98] sm:$0xff] %v853
        %886 = vst [vmem:[#allocation3 + $0xe0] sm:$0xff] %v854
        %887 = vst [vmem:[#allocation3 + $0x128] sm:$0xff] %v855
        %888 = vst [vmem:[#allocation3 + $0x170] sm:$0xff] %v856
        %889 = vst [vmem:[#allocation3 + $0x1b8] sm:$0xff] %v857
        %890 = vst [vmem:[#allocation3 + $0x200] sm:$0xff] %v858
        %891 = vst [vmem:[#allocation3 + $0x248] sm:$0xff] %v859
        %892 = vst [vmem:[#allocation3 + $0x290] sm:$0xff] %v860
        %893 = vst [vmem:[#allocation3 + $0x2d8] sm:$0xff] %v861
        %894 = vst [vmem:[#allocation3 + $0x320] sm:$0xff] %v862
        %895 = vst [vmem:[#allocation3 + $0x368] sm:$0xff] %v863
        %896 = vst [vmem:[#allocation3 + $0x3b0] sm:$0xff] %v864
        %897 = vst [vmem:[#allocation3 + $0x3f8] sm:$0xff] %v865
        %898 = vst [vmem:[#allocation3 + $0x440] sm:$0xff] %v866
        %v899 = vld [vmem:[%s237] sm:$0xe]
        %v900 = vld [vmem:[%s237 + $0x4] sm:$0xf]
        %v901 = vld [vmem:[%s237 + $0x8] sm:$0x1]
        %v902 = vld [vmem:[%s237 + $0xc] sm:$0xe]
        %v903 = vld [vmem:[%s237 + $0x10] sm:$0xf]
        %v904 = vld [vmem:[%s237 + $0x14] sm:$0x1]
        %v905 = vld [vmem:[%s237 + $0x18] sm:$0xe]
        %v906 = vld [vmem:[%s237 + $0x1c] sm:$0xf]
        %v907 = vld [vmem:[%s237 + $0x20] sm:$0x1]
        %v908 = vld [vmem:[%s237 + $0x24] sm:$0xe]
        %v909 = vld [vmem:[%s237 + $0x28] sm:$0xf]
        %v910 = vld [vmem:[%s237 + $0x2c] sm:$0x1]
        %v911 = vld [vmem:[%s237 + $0x30] sm:$0xe]
        %v912 = vld [vmem:[%s237 + $0x34] sm:$0xf]
        %v913 = vld [vmem:[%s237 + $0x38] sm:$0x1]
        %v914 = vld [vmem:[%s237 + $0x3c] sm:$0xe]
        %v915 = vld [vmem:[%s237 + $0x40] sm:$0xf]
        %v916 = vld [vmem:[%s237 + $0x44] sm:$0x1]
        %v917 = vld [vmem:[%s237 + $0x48] sm:$0xe]
        %v918 = vld [vmem:[%s237 + $0x4c] sm:$0xf]
        %v919 = vld [vmem:[%s237 + $0x50] sm:$0x1]
        %v920 = vld [vmem:[%s237 + $0x54] sm:$0xe]
        %v921 = vld [vmem:[%s237 + $0x58] sm:$0xf]
        %v922 = vld [vmem:[%s237 + $0x5c] sm:$0x1]
        %v923 = vld [vmem:[%s237 + $0x60] sm:$0xe]
        %v924 = vld [vmem:[%s237 + $0x64] sm:$0xf]
        %v925 = vld [vmem:[%s237 + $0x68] sm:$0x1]
        %v926 = vld [vmem:[%s237 + $0x6c] sm:$0xe]
        %v927 = vld [vmem:[%s237 + $0x70] sm:$0xf]
        %v928 = vld [vmem:[%s237 + $0x74] sm:$0x1]
        %v929 = vld [vmem:[%s237 + $0x78] sm:$0xe]
        %v930 = vld [vmem:[%s237 + $0x7c] sm:$0xf]
        %v931 = vld [vmem:[%s237 + $0x80] sm:$0x1]
        %v932 = vld [vmem:[%s237 + $0x84] sm:$0xe]
        %v933 = vld [vmem:[%s237 + $0x88] sm:$0xf]
        %v934 = vld [vmem:[%s237 + $0x8c] sm:$0x1]
        %v935 = vld [vmem:[%s237 + $0x90] sm:$0xe]
        %v936 = vld [vmem:[%s237 + $0x94] sm:$0xf]
        %v937 = vld [vmem:[%s237 + $0x98] sm:$0x1]
        %v938 = vld [vmem:[%s237 + $0x9c] sm:$0xe]
        %v939 = vld [vmem:[%s237 + $0xa0] sm:$0xf]
        %v940 = vld [vmem:[%s237 + $0xa4] sm:$0x1]
        %v941 = vld [vmem:[%s237 + $0xa8] sm:$0xe]
        %v942 = vld [vmem:[%s237 + $0xac] sm:$0xf]
        %v943 = vld [vmem:[%s237 + $0xb0] sm:$0x1]
        %v944 = vld [vmem:[%s237 + $0xb4] sm:$0xe]
        %v945 = vld [vmem:[%s237 + $0xb8] sm:$0xf]
        %v946 = vld [vmem:[%s237 + $0xbc] sm:$0x1]
        %vm995 = vcmask 1042432
        %vm996 = vcmask 1046532
        %vm997 = vmor %vm995, %vm996
        %v998 = vrot.slane %v899, 5
        %v999 = vrot.slane %v998, 4
        %v1000 = vrot.slane %v900, 5
        %v1001 = vsel %vm997, %v999, %v1000
        %v1002 = vrot.slane %v1000, 4
        %v1003 = vrot.slane %v901, 5
        %v1004 = vsel %vm997, %v1002, %v1003
        %v1005 = vrot.slane %v902, 5
        %v1006 = vrot.slane %v1005, 4
        %v1007 = vrot.slane %v903, 5
        %v1008 = vsel %vm997, %v1006, %v1007
        %v1009 = vrot.slane %v1007, 4
        %v1010 = vrot.slane %v904, 5
        %v1011 = vsel %vm997, %v1009, %v1010
        %v1012 = vrot.slane %v905, 5
        %v1013 = vrot.slane %v1012, 4
        %v1014 = vrot.slane %v906, 5
        %v1015 = vsel %vm997, %v1013, %v1014
        %v1016 = vrot.slane %v1014, 4
        %v1017 = vrot.slane %v907, 5
        %v1018 = vsel %vm997, %v1016, %v1017
        %v1019 = vrot.slane %v908, 5
        %v1020 = vrot.slane %v1019, 4
        %v1021 = vrot.slane %v909, 5
        %v1022 = vsel %vm997, %v1020, %v1021
        %v1023 = vrot.slane %v1021, 4
        %v1024 = vrot.slane %v910, 5
        %v1025 = vsel %vm997, %v1023, %v1024
        %v1026 = vrot.slane %v911, 5
        %v1027 = vrot.slane %v1026, 4
        %v1028 = vrot.slane %v912, 5
        %v1029 = vsel %vm997, %v1027, %v1028
        %v1030 = vrot.slane %v1028, 4
        %v1031 = vrot.slane %v913, 5
        %v1032 = vsel %vm997, %v1030, %v1031
        %v1033 = vrot.slane %v914, 5
        %v1034 = vrot.slane %v1033, 4
        %v1035 = vrot.slane %v915, 5
        %v1036 = vsel %vm997, %v1034, %v1035
        %v1037 = vrot.slane %v1035, 4
        %v1038 = vrot.slane %v916, 5
        %v1039 = vsel %vm997, %v1037, %v1038
        %v1040 = vrot.slane %v917, 5
        %v1041 = vrot.slane %v1040, 4
        %v1042 = vrot.slane %v918, 5
        %v1043 = vsel %vm997, %v1041, %v1042
        %v1044 = vrot.slane %v1042, 4
        %v1045 = vrot.slane %v919, 5
        %v1046 = vsel %vm997, %v1044, %v1045
        %v1047 = vrot.slane %v920, 5
        %v1048 = vrot.slane %v1047, 4
        %v1049 = vrot.slane %v921, 5
        %v1050 = vsel %vm997, %v1048, %v1049
        %v1051 = vrot.slane %v1049, 4
        %v1052 = vrot.slane %v922, 5
        %v1053 = vsel %vm997, %v1051, %v1052
        %v1054 = vrot.slane %v923, 5
        %v1055 = vrot.slane %v1054, 4
        %v1056 = vrot.slane %v924, 5
        %v1057 = vsel %vm997, %v1055, %v1056
        %v1058 = vrot.slane %v1056, 4
        %v1059 = vrot.slane %v925, 5
        %v1060 = vsel %vm997, %v1058, %v1059
        %v1061 = vrot.slane %v926, 5
        %v1062 = vrot.slane %v1061, 4
        %v1063 = vrot.slane %v927, 5
        %v1064 = vsel %vm997, %v1062, %v1063
        %v1065 = vrot.slane %v1063, 4
        %v1066 = vrot.slane %v928, 5
        %v1067 = vsel %vm997, %v1065, %v1066
        %v1068 = vrot.slane %v929, 5
        %v1069 = vrot.slane %v1068, 4
        %v1070 = vrot.slane %v930, 5
        %v1071 = vsel %vm997, %v1069, %v1070
        %v1072 = vrot.slane %v1070, 4
        %v1073 = vrot.slane %v931, 5
        %v1074 = vsel %vm997, %v1072, %v1073
        %v1075 = vrot.slane %v932, 5
        %v1076 = vrot.slane %v1075, 4
        %v1077 = vrot.slane %v933, 5
        %v1078 = vsel %vm997, %v1076, %v1077
        %v1079 = vrot.slane %v1077, 4
        %v1080 = vrot.slane %v934, 5
        %v1081 = vsel %vm997, %v1079, %v1080
        %v1082 = vrot.slane %v935, 5
        %v1083 = vrot.slane %v1082, 4
        %v1084 = vrot.slane %v936, 5
        %v1085 = vsel %vm997, %v1083, %v1084
        %v1086 = vrot.slane %v1084, 4
        %v1087 = vrot.slane %v937, 5
        %v1088 = vsel %vm997, %v1086, %v1087
        %v1089 = vrot.slane %v938, 5
        %v1090 = vrot.slane %v1089, 4
        %v1091 = vrot.slane %v939, 5
        %v1092 = vsel %vm997, %v1090, %v1091
        %v1093 = vrot.slane %v1091, 4
        %v1094 = vrot.slane %v940, 5
        %v1095 = vsel %vm997, %v1093, %v1094
        %v1096 = vrot.slane %v941, 5
        %v1097 = vrot.slane %v1096, 4
        %v1098 = vrot.slane %v942, 5
        %v1099 = vsel %vm997, %v1097, %v1098
        %v1100 = vrot.slane %v1098, 4
        %v1101 = vrot.slane %v943, 5
        %v1102 = vsel %vm997, %v1100, %v1101
        %v1103 = vrot.slane %v944, 5
        %v1104 = vrot.slane %v1103, 4
        %v1105 = vrot.slane %v945, 5
        %v1106 = vsel %vm997, %v1104, %v1105
        %v1107 = vrot.slane %v1105, 4
        %v1108 = vrot.slane %v946, 5
        %v1109 = vsel %vm997, %v1107, %v1108
        %v1110 = vunpack.c.l.b16 %v1001
        %v1111 = vunpack.c.l.b16 %v1004
        %v1112 = vunpack.c.l.b16 %v1008
        %v1113 = vunpack.c.l.b16 %v1011
        %v1114 = vunpack.c.l.b16 %v1015
        %v1115 = vunpack.c.l.b16 %v1018
        %v1116 = vunpack.c.l.b16 %v1022
        %v1117 = vunpack.c.l.b16 %v1025
        %v1118 = vunpack.c.l.b16 %v1029
        %v1119 = vunpack.c.l.b16 %v1032
        %v1120 = vunpack.c.l.b16 %v1036
        %v1121 = vunpack.c.l.b16 %v1039
        %v1122 = vunpack.c.l.b16 %v1043
        %v1123 = vunpack.c.l.b16 %v1046
        %v1124 = vunpack.c.l.b16 %v1050
        %v1125 = vunpack.c.l.b16 %v1053
        %v1126 = vunpack.c.l.b16 %v1057
        %v1127 = vunpack.c.l.b16 %v1060
        %v1128 = vunpack.c.l.b16 %v1064
        %v1129 = vunpack.c.l.b16 %v1067
        %v1130 = vunpack.c.l.b16 %v1071
        %v1131 = vunpack.c.l.b16 %v1074
        %v1132 = vunpack.c.l.b16 %v1078
        %v1133 = vunpack.c.l.b16 %v1081
        %v1134 = vunpack.c.l.b16 %v1085
        %v1135 = vunpack.c.l.b16 %v1088
        %v1136 = vunpack.c.l.b16 %v1092
        %v1137 = vunpack.c.l.b16 %v1095
        %v1138 = vunpack.c.l.b16 %v1099
        %v1139 = vunpack.c.l.b16 %v1102
        %v1140 = vunpack.c.l.b16 %v1106
        %v1141 = vunpack.c.l.b16 %v1109
        %v1142 = vpack.c.b16 %v1111, %v1110
        %v1143 = vpack.c.b16 %v1113, %v1112
        %v1144 = vpack.c.b16 %v1115, %v1114
        %v1145 = vpack.c.b16 %v1117, %v1116
        %v1146 = vpack.c.b16 %v1119, %v1118
        %v1147 = vpack.c.b16 %v1121, %v1120
        %v1148 = vpack.c.b16 %v1123, %v1122
        %v1149 = vpack.c.b16 %v1125, %v1124
        %v1150 = vpack.c.b16 %v1127, %v1126
        %v1151 = vpack.c.b16 %v1129, %v1128
        %v1152 = vpack.c.b16 %v1131, %v1130
        %v1153 = vpack.c.b16 %v1133, %v1132
        %v1154 = vpack.c.b16 %v1135, %v1134
        %v1155 = vpack.c.b16 %v1137, %v1136
        %v1156 = vpack.c.b16 %v1139, %v1138
        %v1157 = vpack.c.b16 %v1141, %v1140
        %1174 = vst [vmem:[#allocation3 + $0x10] sm:$0xff] %v1142
        %1175 = vst [vmem:[#allocation3 + $0x58] sm:$0xff] %v1143
        %1176 = vst [vmem:[#allocation3 + $0xa0] sm:$0xff] %v1144
        %1177 = vst [vmem:[#allocation3 + $0xe8] sm:$0xff] %v1145
        %1178 = vst [vmem:[#allocation3 + $0x130] sm:$0xff] %v1146
        %1179 = vst [vmem:[#allocation3 + $0x178] sm:$0xff] %v1147
        %1180 = vst [vmem:[#allocation3 + $0x1c0] sm:$0xff] %v1148
        %1181 = vst [vmem:[#allocation3 + $0x208] sm:$0xff] %v1149
        %1182 = vst [vmem:[#allocation3 + $0x250] sm:$0xff] %v1150
        %1183 = vst [vmem:[#allocation3 + $0x298] sm:$0xff] %v1151
        %1184 = vst [vmem:[#allocation3 + $0x2e0] sm:$0xff] %v1152
        %1185 = vst [vmem:[#allocation3 + $0x328] sm:$0xff] %v1153
        %1186 = vst [vmem:[#allocation3 + $0x370] sm:$0xff] %v1154
        %1187 = vst [vmem:[#allocation3 + $0x3b8] sm:$0xff] %v1155
        %1188 = vst [vmem:[#allocation3 + $0x400] sm:$0xff] %v1156
        %1189 = vst [vmem:[#allocation3 + $0x448] sm:$0xff] %v1157
        %s1190 = scalar_lea.vmem %s237, 12
        %v1191 = vld [vmem:[%s1190] sm:$0xf]
        %v1192 = vld [vmem:[%s1190 + $0x4] sm:$0xf]
        %v1193 = vld [vmem:[%s1190 + $0xc] sm:$0xf]
        %v1194 = vld [vmem:[%s1190 + $0x10] sm:$0xf]
        %v1195 = vld [vmem:[%s1190 + $0x18] sm:$0xf]
        %v1196 = vld [vmem:[%s1190 + $0x1c] sm:$0xf]
        %v1197 = vld [vmem:[%s1190 + $0x24] sm:$0xf]
        %v1198 = vld [vmem:[%s1190 + $0x28] sm:$0xf]
        %v1199 = vld [vmem:[%s1190 + $0x30] sm:$0xf]
        %v1200 = vld [vmem:[%s1190 + $0x34] sm:$0xf]
        %v1201 = vld [vmem:[%s1190 + $0x3c] sm:$0xf]
        %v1202 = vld [vmem:[%s1190 + $0x40] sm:$0xf]
        %v1203 = vld [vmem:[%s1190 + $0x48] sm:$0xf]
        %v1204 = vld [vmem:[%s1190 + $0x4c] sm:$0xf]
        %v1205 = vld [vmem:[%s1190 + $0x54] sm:$0xf]
        %v1206 = vld [vmem:[%s1190 + $0x58] sm:$0xf]
        %v1207 = vld [vmem:[%s1190 + $0x60] sm:$0xf]
        %v1208 = vld [vmem:[%s1190 + $0x64] sm:$0xf]
        %v1209 = vld [vmem:[%s1190 + $0x6c] sm:$0xf]
        %v1210 = vld [vmem:[%s1190 + $0x70] sm:$0xf]
        %v1211 = vld [vmem:[%s1190 + $0x78] sm:$0xf]
        %v1212 = vld [vmem:[%s1190 + $0x7c] sm:$0xf]
        %v1213 = vld [vmem:[%s1190 + $0x84] sm:$0xf]
        %v1214 = vld [vmem:[%s1190 + $0x88] sm:$0xf]
        %v1215 = vld [vmem:[%s1190 + $0x90] sm:$0xf]
        %v1216 = vld [vmem:[%s1190 + $0x94] sm:$0xf]
        %v1217 = vld [vmem:[%s1190 + $0x9c] sm:$0xf]
        %v1218 = vld [vmem:[%s1190 + $0xa0] sm:$0xf]
        %v1219 = vld [vmem:[%s1190 + $0xa8] sm:$0xf]
        %v1220 = vld [vmem:[%s1190 + $0xac] sm:$0xf]
        %v1221 = vld [vmem:[%s1190 + $0xb4] sm:$0xf]
        %v1222 = vld [vmem:[%s1190 + $0xb8] sm:$0xf]
        %v1255 = vunpack.c.l.b16 %v1191
        %v1256 = vunpack.c.l.b16 %v1192
        %v1257 = vunpack.c.l.b16 %v1193
        %v1258 = vunpack.c.l.b16 %v1194
        %v1259 = vunpack.c.l.b16 %v1195
        %v1260 = vunpack.c.l.b16 %v1196
        %v1261 = vunpack.c.l.b16 %v1197
        %v1262 = vunpack.c.l.b16 %v1198
        %v1263 = vunpack.c.l.b16 %v1199
        %v1264 = vunpack.c.l.b16 %v1200
        %v1265 = vunpack.c.l.b16 %v1201
        %v1266 = vunpack.c.l.b16 %v1202
        %v1267 = vunpack.c.l.b16 %v1203
        %v1268 = vunpack.c.l.b16 %v1204
        %v1269 = vunpack.c.l.b16 %v1205
        %v1270 = vunpack.c.l.b16 %v1206
        %v1271 = vunpack.c.l.b16 %v1207
        %v1272 = vunpack.c.l.b16 %v1208
        %v1273 = vunpack.c.l.b16 %v1209
        %v1274 = vunpack.c.l.b16 %v1210
        %v1275 = vunpack.c.l.b16 %v1211
        %v1276 = vunpack.c.l.b16 %v1212
        %v1277 = vunpack.c.l.b16 %v1213
        %v1278 = vunpack.c.l.b16 %v1214
        %v1279 = vunpack.c.l.b16 %v1215
        %v1280 = vunpack.c.l.b16 %v1216
        %v1281 = vunpack.c.l.b16 %v1217
        %v1282 = vunpack.c.l.b16 %v1218
        %v1283 = vunpack.c.l.b16 %v1219
        %v1284 = vunpack.c.l.b16 %v1220
        %v1285 = vunpack.c.l.b16 %v1221
        %v1286 = vunpack.c.l.b16 %v1222
        %v1287 = vpack.c.b16 %v1256, %v1255
        %v1288 = vpack.c.b16 %v1258, %v1257
        %v1289 = vpack.c.b16 %v1260, %v1259
        %v1290 = vpack.c.b16 %v1262, %v1261
        %v1291 = vpack.c.b16 %v1264, %v1263
        %v1292 = vpack.c.b16 %v1266, %v1265
        %v1293 = vpack.c.b16 %v1268, %v1267
        %v1294 = vpack.c.b16 %v1270, %v1269
        %v1295 = vpack.c.b16 %v1272, %v1271
        %v1296 = vpack.c.b16 %v1274, %v1273
        %v1297 = vpack.c.b16 %v1276, %v1275
        %v1298 = vpack.c.b16 %v1278, %v1277
        %v1299 = vpack.c.b16 %v1280, %v1279
        %v1300 = vpack.c.b16 %v1282, %v1281
        %v1301 = vpack.c.b16 %v1284, %v1283
        %v1302 = vpack.c.b16 %v1286, %v1285
        %1319 = vst [vmem:[#allocation3 + $0x18] sm:$0xff] %v1287
        %1320 = vst [vmem:[#allocation3 + $0x60] sm:$0xff] %v1288
        %1321 = vst [vmem:[#allocation3 + $0xa8] sm:$0xff] %v1289
        %1322 = vst [vmem:[#allocation3 + $0xf0] sm:$0xff] %v1290
        %1323 = vst [vmem:[#allocation3 + $0x138] sm:$0xff] %v1291
        %1324 = vst [vmem:[#allocation3 + $0x180] sm:$0xff] %v1292
        %1325 = vst [vmem:[#allocation3 + $0x1c8] sm:$0xff] %v1293
        %1326 = vst [vmem:[#allocation3 + $0x210] sm:$0xff] %v1294
        %1327 = vst [vmem:[#allocation3 + $0x258] sm:$0xff] %v1295
        %1328 = vst [vmem:[#allocation3 + $0x2a0] sm:$0xff] %v1296
        %1329 = vst [vmem:[#allocation3 + $0x2e8] sm:$0xff] %v1297
        %1330 = vst [vmem:[#allocation3 + $0x330] sm:$0xff] %v1298
        %1331 = vst [vmem:[#allocation3 + $0x378] sm:$0xff] %v1299
        %1332 = vst [vmem:[#allocation3 + $0x3c0] sm:$0xff] %v1300
        %1333 = vst [vmem:[#allocation3 + $0x408] sm:$0xff] %v1301
        %1334 = vst [vmem:[#allocation3 + $0x450] sm:$0xff] %v1302
        %v1335 = vld [vmem:[%s1190] sm:$0xf]
        %v1336 = vld [vmem:[%s1190 + $0x4] sm:$0xf]
        %v1337 = vld [vmem:[%s1190 + $0x8] sm:$0x1]
        %v1338 = vld [vmem:[%s1190 + $0xc] sm:$0xf]
        %v1339 = vld [vmem:[%s1190 + $0x10] sm:$0xf]
        %v1340 = vld [vmem:[%s1190 + $0x14] sm:$0x1]
        %v1341 = vld [vmem:[%s1190 + $0x18] sm:$0xf]
        %v1342 = vld [vmem:[%s1190 + $0x1c] sm:$0xf]
        %v1343 = vld [vmem:[%s1190 + $0x20] sm:$0x1]
        %v1344 = vld [vmem:[%s1190 + $0x24] sm:$0xf]
        %v1345 = vld [vmem:[%s1190 + $0x28] sm:$0xf]
        %v1346 = vld [vmem:[%s1190 + $0x2c] sm:$0x1]
        %v1347 = vld [vmem:[%s1190 + $0x30] sm:$0xf]
        %v1348 = vld [vmem:[%s1190 + $0x34] sm:$0xf]
        %v1349 = vld [vmem:[%s1190 + $0x38] sm:$0x1]
        %v1350 = vld [vmem:[%s1190 + $0x3c] sm:$0xf]
        %v1351 = vld [vmem:[%s1190 + $0x40] sm:$0xf]
        %v1352 = vld [vmem:[%s1190 + $0x44] sm:$0x1]
        %v1353 = vld [vmem:[%s1190 + $0x48] sm:$0xf]
        %v1354 = vld [vmem:[%s1190 + $0x4c] sm:$0xf]
        %v1355 = vld [vmem:[%s1190 + $0x50] sm:$0x1]
        %v1356 = vld [vmem:[%s1190 + $0x54] sm:$0xf]
        %v1357 = vld [vmem:[%s1190 + $0x58] sm:$0xf]
        %v1358 = vld [vmem:[%s1190 + $0x5c] sm:$0x1]
        %v1359 = vld [vmem:[%s1190 + $0x60] sm:$0xf]
        %v1360 = vld [vmem:[%s1190 + $0x64] sm:$0xf]
        %v1361 = vld [vmem:[%s1190 + $0x68] sm:$0x1]
        %v1362 = vld [vmem:[%s1190 + $0x6c] sm:$0xf]
        %v1363 = vld [vmem:[%s1190 + $0x70] sm:$0xf]
        %v1364 = vld [vmem:[%s1190 + $0x74] sm:$0x1]
        %v1365 = vld [vmem:[%s1190 + $0x78] sm:$0xf]
        %v1366 = vld [vmem:[%s1190 + $0x7c] sm:$0xf]
        %v1367 = vld [vmem:[%s1190 + $0x80] sm:$0x1]
        %v1368 = vld [vmem:[%s1190 + $0x84] sm:$0xf]
        %v1369 = vld [vmem:[%s1190 + $0x88] sm:$0xf]
        %v1370 = vld [vmem:[%s1190 + $0x8c] sm:$0x1]
        %v1371 = vld [vmem:[%s1190 + $0x90] sm:$0xf]
        %v1372 = vld [vmem:[%s1190 + $0x94] sm:$0xf]
        %v1373 = vld [vmem:[%s1190 + $0x98] sm:$0x1]
        %v1374 = vld [vmem:[%s1190 + $0x9c] sm:$0xf]
        %v1375 = vld [vmem:[%s1190 + $0xa0] sm:$0xf]
        %v1376 = vld [vmem:[%s1190 + $0xa4] sm:$0x1]
        %v1377 = vld [vmem:[%s1190 + $0xa8] sm:$0xf]
        %v1378 = vld [vmem:[%s1190 + $0xac] sm:$0xf]
        %v1379 = vld [vmem:[%s1190 + $0xb0] sm:$0x1]
        %v1380 = vld [vmem:[%s1190 + $0xb4] sm:$0xf]
        %v1381 = vld [vmem:[%s1190 + $0xb8] sm:$0xf]
        %v1382 = vld [vmem:[%s1190 + $0xbc] sm:$0x1]
        %v1384 = vshrl.u32 %v1335, 16
        %v1386 = vrot.slane %v1384, 4
        %v1387 = vshll.u32 %v1335, 16
        %v1389 = vrot.slane %v1387, 5
        %v1390 = vor.u32 %v1386, %v1389
        %v1391 = vrot.slane %v1390, 4
        %v1393 = vshll.u32 %v1336, 16
        %v1395 = vrot.slane %v1393, 5
        %v1396 = vsel %vm434, %v1391, %v1395
        %v1397 = vshrl.u32 %v1336, 16
        %v1399 = vrot.slane %v1397, 4
        %v1400 = vor.u32 %v1399, %v1395
        %v1401 = vrot.slane %v1400, 4
        %v1403 = vshll.u32 %v1337, 16
        %v1405 = vrot.slane %v1403, 5
        %v1406 = vsel %vm434, %v1401, %v1405
        %v1408 = vshrl.u32 %v1338, 16
        %v1410 = vrot.slane %v1408, 4
        %v1411 = vshll.u32 %v1338, 16
        %v1413 = vrot.slane %v1411, 5
        %v1414 = vor.u32 %v1410, %v1413
        %v1415 = vrot.slane %v1414, 4
        %v1417 = vshll.u32 %v1339, 16
        %v1419 = vrot.slane %v1417, 5
        %v1420 = vsel %vm434, %v1415, %v1419
        %v1421 = vshrl.u32 %v1339, 16
        %v1423 = vrot.slane %v1421, 4
        %v1424 = vor.u32 %v1423, %v1419
        %v1425 = vrot.slane %v1424, 4
        %v1427 = vshll.u32 %v1340, 16
        %v1429 = vrot.slane %v1427, 5
        %v1430 = vsel %vm434, %v1425, %v1429
        %v1432 = vshrl.u32 %v1341, 16
        %v1434 = vrot.slane %v1432, 4
        %v1435 = vshll.u32 %v1341, 16
        %v1437 = vrot.slane %v1435, 5
        %v1438 = vor.u32 %v1434, %v1437
        %v1439 = vrot.slane %v1438, 4
        %v1441 = vshll.u32 %v1342, 16
        %v1443 = vrot.slane %v1441, 5
        %v1444 = vsel %vm434, %v1439, %v1443
        %v1445 = vshrl.u32 %v1342, 16
        %v1447 = vrot.slane %v1445, 4
        %v1448 = vor.u32 %v1447, %v1443
        %v1449 = vrot.slane %v1448, 4
        %v1451 = vshll.u32 %v1343, 16
        %v1453 = vrot.slane %v1451, 5
        %v1454 = vsel %vm434, %v1449, %v1453
        %v1456 = vshrl.u32 %v1344, 16
        %v1458 = vrot.slane %v1456, 4
        %v1459 = vshll.u32 %v1344, 16
        %v1461 = vrot.slane %v1459, 5
        %v1462 = vor.u32 %v1458, %v1461
        %v1463 = vrot.slane %v1462, 4
        %v1465 = vshll.u32 %v1345, 16
        %v1467 = vrot.slane %v1465, 5
        %v1468 = vsel %vm434, %v1463, %v1467
        %v1469 = vshrl.u32 %v1345, 16
        %v1471 = vrot.slane %v1469, 4
        %v1472 = vor.u32 %v1471, %v1467
        %v1473 = vrot.slane %v1472, 4
        %v1475 = vshll.u32 %v1346, 16
        %v1477 = vrot.slane %v1475, 5
        %v1478 = vsel %vm434, %v1473, %v1477
        %v1480 = vshrl.u32 %v1347, 16
        %v1482 = vrot.slane %v1480, 4
        %v1483 = vshll.u32 %v1347, 16
        %v1485 = vrot.slane %v1483, 5
        %v1486 = vor.u32 %v1482, %v1485
        %v1487 = vrot.slane %v1486, 4
        %v1489 = vshll.u32 %v1348, 16
        %v1491 = vrot.slane %v1489, 5
        %v1492 = vsel %vm434, %v1487, %v1491
        %v1493 = vshrl.u32 %v1348, 16
        %v1495 = vrot.slane %v1493, 4
        %v1496 = vor.u32 %v1495, %v1491
        %v1497 = vrot.slane %v1496, 4
        %v1499 = vshll.u32 %v1349, 16
        %v1501 = vrot.slane %v1499, 5
        %v1502 = vsel %vm434, %v1497, %v1501
        %v1504 = vshrl.u32 %v1350, 16
        %v1506 = vrot.slane %v1504, 4
        %v1507 = vshll.u32 %v1350, 16
        %v1509 = vrot.slane %v1507, 5
        %v1510 = vor.u32 %v1506, %v1509
        %v1511 = vrot.slane %v1510, 4
        %v1513 = vshll.u32 %v1351, 16
        %v1515 = vrot.slane %v1513, 5
        %v1516 = vsel %vm434, %v1511, %v1515
        %v1517 = vshrl.u32 %v1351, 16
        %v1519 = vrot.slane %v1517, 4
        %v1520 = vor.u32 %v1519, %v1515
        %v1521 = vrot.slane %v1520, 4
        %v1523 = vshll.u32 %v1352, 16
        %v1525 = vrot.slane %v1523, 5
        %v1526 = vsel %vm434, %v1521, %v1525
        %v1528 = vshrl.u32 %v1353, 16
        %v1530 = vrot.slane %v1528, 4
        %v1531 = vshll.u32 %v1353, 16
        %v1533 = vrot.slane %v1531, 5
        %v1534 = vor.u32 %v1530, %v1533
        %v1535 = vrot.slane %v1534, 4
        %v1537 = vshll.u32 %v1354, 16
        %v1539 = vrot.slane %v1537, 5
        %v1540 = vsel %vm434, %v1535, %v1539
        %v1541 = vshrl.u32 %v1354, 16
        %v1543 = vrot.slane %v1541, 4
        %v1544 = vor.u32 %v1543, %v1539
        %v1545 = vrot.slane %v1544, 4
        %v1547 = vshll.u32 %v1355, 16
        %v1549 = vrot.slane %v1547, 5
        %v1550 = vsel %vm434, %v1545, %v1549
        %v1552 = vshrl.u32 %v1356, 16
        %v1554 = vrot.slane %v1552, 4
        %v1555 = vshll.u32 %v1356, 16
        %v1557 = vrot.slane %v1555, 5
        %v1558 = vor.u32 %v1554, %v1557
        %v1559 = vrot.slane %v1558, 4
        %v1561 = vshll.u32 %v1357, 16
        %v1563 = vrot.slane %v1561, 5
        %v1564 = vsel %vm434, %v1559, %v1563
        %v1565 = vshrl.u32 %v1357, 16
        %v1567 = vrot.slane %v1565, 4
        %v1568 = vor.u32 %v1567, %v1563
        %v1569 = vrot.slane %v1568, 4
        %v1571 = vshll.u32 %v1358, 16
        %v1573 = vrot.slane %v1571, 5
        %v1574 = vsel %vm434, %v1569, %v1573
        %v1576 = vshrl.u32 %v1359, 16
        %v1578 = vrot.slane %v1576, 4
        %v1579 = vshll.u32 %v1359, 16
        %v1581 = vrot.slane %v1579, 5
        %v1582 = vor.u32 %v1578, %v1581
        %v1583 = vrot.slane %v1582, 4
        %v1585 = vshll.u32 %v1360, 16
        %v1587 = vrot.slane %v1585, 5
        %v1588 = vsel %vm434, %v1583, %v1587
        %v1589 = vshrl.u32 %v1360, 16
        %v1591 = vrot.slane %v1589, 4
        %v1592 = vor.u32 %v1591, %v1587
        %v1593 = vrot.slane %v1592, 4
        %v1595 = vshll.u32 %v1361, 16
        %v1597 = vrot.slane %v1595, 5
        %v1598 = vsel %vm434, %v1593, %v1597
        %v1600 = vshrl.u32 %v1362, 16
        %v1602 = vrot.slane %v1600, 4
        %v1603 = vshll.u32 %v1362, 16
        %v1605 = vrot.slane %v1603, 5
        %v1606 = vor.u32 %v1602, %v1605
        %v1607 = vrot.slane %v1606, 4
        %v1609 = vshll.u32 %v1363, 16
        %v1611 = vrot.slane %v1609, 5
        %v1612 = vsel %vm434, %v1607, %v1611
        %v1613 = vshrl.u32 %v1363, 16
        %v1615 = vrot.slane %v1613, 4
        %v1616 = vor.u32 %v1615, %v1611
        %v1617 = vrot.slane %v1616, 4
        %v1619 = vshll.u32 %v1364, 16
        %v1621 = vrot.slane %v1619, 5
        %v1622 = vsel %vm434, %v1617, %v1621
        %v1624 = vshrl.u32 %v1365, 16
        %v1626 = vrot.slane %v1624, 4
        %v1627 = vshll.u32 %v1365, 16
        %v1629 = vrot.slane %v1627, 5
        %v1630 = vor.u32 %v1626, %v1629
        %v1631 = vrot.slane %v1630, 4
        %v1633 = vshll.u32 %v1366, 16
        %v1635 = vrot.slane %v1633, 5
        %v1636 = vsel %vm434, %v1631, %v1635
        %v1637 = vshrl.u32 %v1366, 16
        %v1639 = vrot.slane %v1637, 4
        %v1640 = vor.u32 %v1639, %v1635
        %v1641 = vrot.slane %v1640, 4
        %v1643 = vshll.u32 %v1367, 16
        %v1645 = vrot.slane %v1643, 5
        %v1646 = vsel %vm434, %v1641, %v1645
        %v1648 = vshrl.u32 %v1368, 16
        %v1650 = vrot.slane %v1648, 4
        %v1651 = vshll.u32 %v1368, 16
        %v1653 = vrot.slane %v1651, 5
        %v1654 = vor.u32 %v1650, %v1653
        %v1655 = vrot.slane %v1654, 4
        %v1657 = vshll.u32 %v1369, 16
        %v1659 = vrot.slane %v1657, 5
        %v1660 = vsel %vm434, %v1655, %v1659
        %v1661 = vshrl.u32 %v1369, 16
        %v1663 = vrot.slane %v1661, 4
        %v1664 = vor.u32 %v1663, %v1659
        %v1665 = vrot.slane %v1664, 4
        %v1667 = vshll.u32 %v1370, 16
        %v1669 = vrot.slane %v1667, 5
        %v1670 = vsel %vm434, %v1665, %v1669
        %v1672 = vshrl.u32 %v1371, 16
        %v1674 = vrot.slane %v1672, 4
        %v1675 = vshll.u32 %v1371, 16
        %v1677 = vrot.slane %v1675, 5
        %v1678 = vor.u32 %v1674, %v1677
        %v1679 = vrot.slane %v1678, 4
        %v1681 = vshll.u32 %v1372, 16
        %v1683 = vrot.slane %v1681, 5
        %v1684 = vsel %vm434, %v1679, %v1683
        %v1685 = vshrl.u32 %v1372, 16
        %v1687 = vrot.slane %v1685, 4
        %v1688 = vor.u32 %v1687, %v1683
        %v1689 = vrot.slane %v1688, 4
        %v1691 = vshll.u32 %v1373, 16
        %v1693 = vrot.slane %v1691, 5
        %v1694 = vsel %vm434, %v1689, %v1693
        %v1696 = vshrl.u32 %v1374, 16
        %v1698 = vrot.slane %v1696, 4
        %v1699 = vshll.u32 %v1374, 16
        %v1701 = vrot.slane %v1699, 5
        %v1702 = vor.u32 %v1698, %v1701
        %v1703 = vrot.slane %v1702, 4
        %v1705 = vshll.u32 %v1375, 16
        %v1707 = vrot.slane %v1705, 5
        %v1708 = vsel %vm434, %v1703, %v1707
        %v1709 = vshrl.u32 %v1375, 16
        %v1711 = vrot.slane %v1709, 4
        %v1712 = vor.u32 %v1711, %v1707
        %v1713 = vrot.slane %v1712, 4
        %v1715 = vshll.u32 %v1376, 16
        %v1717 = vrot.slane %v1715, 5
        %v1718 = vsel %vm434, %v1713, %v1717
        %v1720 = vshrl.u32 %v1377, 16
        %v1722 = vrot.slane %v1720, 4
        %v1723 = vshll.u32 %v1377, 16
        %v1725 = vrot.slane %v1723, 5
        %v1726 = vor.u32 %v1722, %v1725
        %v1727 = vrot.slane %v1726, 4
        %v1729 = vshll.u32 %v1378, 16
        %v1731 = vrot.slane %v1729, 5
        %v1732 = vsel %vm434, %v1727, %v1731
        %v1733 = vshrl.u32 %v1378, 16
        %v1735 = vrot.slane %v1733, 4
        %v1736 = vor.u32 %v1735, %v1731
        %v1737 = vrot.slane %v1736, 4
        %v1739 = vshll.u32 %v1379, 16
        %v1741 = vrot.slane %v1739, 5
        %v1742 = vsel %vm434, %v1737, %v1741
        %v1744 = vshrl.u32 %v1380, 16
        %v1746 = vrot.slane %v1744, 4
        %v1747 = vshll.u32 %v1380, 16
        %v1749 = vrot.slane %v1747, 5
        %v1750 = vor.u32 %v1746, %v1749
        %v1751 = vrot.slane %v1750, 4
        %v1753 = vshll.u32 %v1381, 16
        %v1755 = vrot.slane %v1753, 5
        %v1756 = vsel %vm434, %v1751, %v1755
        %v1757 = vshrl.u32 %v1381, 16
        %v1759 = vrot.slane %v1757, 4
        %v1760 = vor.u32 %v1759, %v1755
        %v1761 = vrot.slane %v1760, 4
        %v1763 = vshll.u32 %v1382, 16
        %v1765 = vrot.slane %v1763, 5
        %v1766 = vsel %vm434, %v1761, %v1765
        %v1767 = vunpack.c.l.b16 %v1396
        %v1768 = vunpack.c.l.b16 %v1406
        %v1769 = vunpack.c.l.b16 %v1420
        %v1770 = vunpack.c.l.b16 %v1430
        %v1771 = vunpack.c.l.b16 %v1444
        %v1772 = vunpack.c.l.b16 %v1454
        %v1773 = vunpack.c.l.b16 %v1468
        %v1774 = vunpack.c.l.b16 %v1478
        %v1775 = vunpack.c.l.b16 %v1492
        %v1776 = vunpack.c.l.b16 %v1502
        %v1777 = vunpack.c.l.b16 %v1516
        %v1778 = vunpack.c.l.b16 %v1526
        %v1779 = vunpack.c.l.b16 %v1540
        %v1780 = vunpack.c.l.b16 %v1550
        %v1781 = vunpack.c.l.b16 %v1564
        %v1782 = vunpack.c.l.b16 %v1574
        %v1783 = vunpack.c.l.b16 %v1588
        %v1784 = vunpack.c.l.b16 %v1598
        %v1785 = vunpack.c.l.b16 %v1612
        %v1786 = vunpack.c.l.b16 %v1622
        %v1787 = vunpack.c.l.b16 %v1636
        %v1788 = vunpack.c.l.b16 %v1646
        %v1789 = vunpack.c.l.b16 %v1660
        %v1790 = vunpack.c.l.b16 %v1670
        %v1791 = vunpack.c.l.b16 %v1684
        %v1792 = vunpack.c.l.b16 %v1694
        %v1793 = vunpack.c.l.b16 %v1708
        %v1794 = vunpack.c.l.b16 %v1718
        %v1795 = vunpack.c.l.b16 %v1732
        %v1796 = vunpack.c.l.b16 %v1742
        %v1797 = vunpack.c.l.b16 %v1756
        %v1798 = vunpack.c.l.b16 %v1766
        %v1799 = vpack.c.b16 %v1768, %v1767
        %v1800 = vpack.c.b16 %v1770, %v1769
        %v1801 = vpack.c.b16 %v1772, %v1771
        %v1802 = vpack.c.b16 %v1774, %v1773
        %v1803 = vpack.c.b16 %v1776, %v1775
        %v1804 = vpack.c.b16 %v1778, %v1777
        %v1805 = vpack.c.b16 %v1780, %v1779
        %v1806 = vpack.c.b16 %v1782, %v1781
        %v1807 = vpack.c.b16 %v1784, %v1783
        %v1808 = vpack.c.b16 %v1786, %v1785
        %v1809 = vpack.c.b16 %v1788, %v1787
        %v1810 = vpack.c.b16 %v1790, %v1789
        %v1811 = vpack.c.b16 %v1792, %v1791
        %v1812 = vpack.c.b16 %v1794, %v1793
        %v1813 = vpack.c.b16 %v1796, %v1795
        %v1814 = vpack.c.b16 %v1798, %v1797
        %1831 = vst [vmem:[#allocation3 + $0x20] sm:$0xff] %v1799
        %1832 = vst [vmem:[#allocation3 + $0x68] sm:$0xff] %v1800
        %1833 = vst [vmem:[#allocation3 + $0xb0] sm:$0xff] %v1801
        %1834 = vst [vmem:[#allocation3 + $0xf8] sm:$0xff] %v1802
        %1835 = vst [vmem:[#allocation3 + $0x140] sm:$0xff] %v1803
        %1836 = vst [vmem:[#allocation3 + $0x188] sm:$0xff] %v1804
        %1837 = vst [vmem:[#allocation3 + $0x1d0] sm:$0xff] %v1805
        %1838 = vst [vmem:[#allocation3 + $0x218] sm:$0xff] %v1806
        %1839 = vst [vmem:[#allocation3 + $0x260] sm:$0xff] %v1807
        %1840 = vst [vmem:[#allocation3 + $0x2a8] sm:$0xff] %v1808
        %1841 = vst [vmem:[#allocation3 + $0x2f0] sm:$0xff] %v1809
        %1842 = vst [vmem:[#allocation3 + $0x338] sm:$0xff] %v1810
        %1843 = vst [vmem:[#allocation3 + $0x380] sm:$0xff] %v1811
        %1844 = vst [vmem:[#allocation3 + $0x3c8] sm:$0xff] %v1812
        %1845 = vst [vmem:[#allocation3 + $0x410] sm:$0xff] %v1813
        %1846 = vst [vmem:[#allocation3 + $0x458] sm:$0xff] %v1814
        %v1847 = vld [vmem:[%s1190] sm:$0xe]
        %v1848 = vld [vmem:[%s1190 + $0x4] sm:$0xf]
        %v1849 = vld [vmem:[%s1190 + $0x8] sm:$0x1]
        %v1850 = vld [vmem:[%s1190 + $0xc] sm:$0xe]
        %v1851 = vld [vmem:[%s1190 + $0x10] sm:$0xf]
        %v1852 = vld [vmem:[%s1190 + $0x14] sm:$0x1]
        %v1853 = vld [vmem:[%s1190 + $0x18] sm:$0xe]
        %v1854 = vld [vmem:[%s1190 + $0x1c] sm:$0xf]
        %v1855 = vld [vmem:[%s1190 + $0x20] sm:$0x1]
        %v1856 = vld [vmem:[%s1190 + $0x24] sm:$0xe]
        %v1857 = vld [vmem:[%s1190 + $0x28] sm:$0xf]
        %v1858 = vld [vmem:[%s1190 + $0x2c] sm:$0x1]
        %v1859 = vld [vmem:[%s1190 + $0x30] sm:$0xe]
        %v1860 = vld [vmem:[%s1190 + $0x34] sm:$0xf]
        %v1861 = vld [vmem:[%s1190 + $0x38] sm:$0x1]
        %v1862 = vld [vmem:[%s1190 + $0x3c] sm:$0xe]
        %v1863 = vld [vmem:[%s1190 + $0x40] sm:$0xf]
        %v1864 = vld [vmem:[%s1190 + $0x44] sm:$0x1]
        %v1865 = vld [vmem:[%s1190 + $0x48] sm:$0xe]
        %v1866 = vld [vmem:[%s1190 + $0x4c] sm:$0xf]
        %v1867 = vld [vmem:[%s1190 + $0x50] sm:$0x1]
        %v1868 = vld [vmem:[%s1190 + $0x54] sm:$0xe]
        %v1869 = vld [vmem:[%s1190 + $0x58] sm:$0xf]
        %v1870 = vld [vmem:[%s1190 + $0x5c] sm:$0x1]
        %v1871 = vld [vmem:[%s1190 + $0x60] sm:$0xe]
        %v1872 = vld [vmem:[%s1190 + $0x64] sm:$0xf]
        %v1873 = vld [vmem:[%s1190 + $0x68] sm:$0x1]
        %v1874 = vld [vmem:[%s1190 + $0x6c] sm:$0xe]
        %v1875 = vld [vmem:[%s1190 + $0x70] sm:$0xf]
        %v1876 = vld [vmem:[%s1190 + $0x74] sm:$0x1]
        %v1877 = vld [vmem:[%s1190 + $0x78] sm:$0xe]
        %v1878 = vld [vmem:[%s1190 + $0x7c] sm:$0xf]
        %v1879 = vld [vmem:[%s1190 + $0x80] sm:$0x1]
        %v1880 = vld [vmem:[%s1190 + $0x84] sm:$0xe]
        %v1881 = vld [vmem:[%s1190 + $0x88] sm:$0xf]
        %v1882 = vld [vmem:[%s1190 + $0x8c] sm:$0x1]
        %v1883 = vld [vmem:[%s1190 + $0x90] sm:$0xe]
        %v1884 = vld [vmem:[%s1190 + $0x94] sm:$0xf]
        %v1885 = vld [vmem:[%s1190 + $0x98] sm:$0x1]
        %v1886 = vld [vmem:[%s1190 + $0x9c] sm:$0xe]
        %v1887 = vld [vmem:[%s1190 + $0xa0] sm:$0xf]
        %v1888 = vld [vmem:[%s1190 + $0xa4] sm:$0x1]
        %v1889 = vld [vmem:[%s1190 + $0xa8] sm:$0xe]
        %v1890 = vld [vmem:[%s1190 + $0xac] sm:$0xf]
        %v1891 = vld [vmem:[%s1190 + $0xb0] sm:$0x1]
        %v1892 = vld [vmem:[%s1190 + $0xb4] sm:$0xe]
        %v1893 = vld [vmem:[%s1190 + $0xb8] sm:$0xf]
        %v1894 = vld [vmem:[%s1190 + $0xbc] sm:$0x1]
        %v1943 = vrot.slane %v1847, 5
        %v1944 = vrot.slane %v1943, 4
        %v1945 = vrot.slane %v1848, 5
        %v1946 = vsel %vm997, %v1944, %v1945
        %v1947 = vrot.slane %v1945, 4
        %v1948 = vrot.slane %v1849, 5
        %v1949 = vsel %vm997, %v1947, %v1948
        %v1950 = vrot.slane %v1850, 5
        %v1951 = vrot.slane %v1950, 4
        %v1952 = vrot.slane %v1851, 5
        %v1953 = vsel %vm997, %v1951, %v1952
        %v1954 = vrot.slane %v1952, 4
        %v1955 = vrot.slane %v1852, 5
        %v1956 = vsel %vm997, %v1954, %v1955
        %v1957 = vrot.slane %v1853, 5
        %v1958 = vrot.slane %v1957, 4
        %v1959 = vrot.slane %v1854, 5
        %v1960 = vsel %vm997, %v1958, %v1959
        %v1961 = vrot.slane %v1959, 4
        %v1962 = vrot.slane %v1855, 5
        %v1963 = vsel %vm997, %v1961, %v1962
        %v1964 = vrot.slane %v1856, 5
        %v1965 = vrot.slane %v1964, 4
        %v1966 = vrot.slane %v1857, 5
        %v1967 = vsel %vm997, %v1965, %v1966
        %v1968 = vrot.slane %v1966, 4
        %v1969 = vrot.slane %v1858, 5
        %v1970 = vsel %vm997, %v1968, %v1969
        %v1971 = vrot.slane %v1859, 5
        %v1972 = vrot.slane %v1971, 4
        %v1973 = vrot.slane %v1860, 5
        %v1974 = vsel %vm997, %v1972, %v1973
        %v1975 = vrot.slane %v1973, 4
        %v1976 = vrot.slane %v1861, 5
        %v1977 = vsel %vm997, %v1975, %v1976
        %v1978 = vrot.slane %v1862, 5
        %v1979 = vrot.slane %v1978, 4
        %v1980 = vrot.slane %v1863, 5
        %v1981 = vsel %vm997, %v1979, %v1980
        %v1982 = vrot.slane %v1980, 4
        %v1983 = vrot.slane %v1864, 5
        %v1984 = vsel %vm997, %v1982, %v1983
        %v1985 = vrot.slane %v1865, 5
        %v1986 = vrot.slane %v1985, 4
        %v1987 = vrot.slane %v1866, 5
        %v1988 = vsel %vm997, %v1986, %v1987
        %v1989 = vrot.slane %v1987, 4
        %v1990 = vrot.slane %v1867, 5
        %v1991 = vsel %vm997, %v1989, %v1990
        %v1992 = vrot.slane %v1868, 5
        %v1993 = vrot.slane %v1992, 4
        %v1994 = vrot.slane %v1869, 5
        %v1995 = vsel %vm997, %v1993, %v1994
        %v1996 = vrot.slane %v1994, 4
        %v1997 = vrot.slane %v1870, 5
        %v1998 = vsel %vm997, %v1996, %v1997
        %v1999 = vrot.slane %v1871, 5
        %v2000 = vrot.slane %v1999, 4
        %v2001 = vrot.slane %v1872, 5
        %v2002 = vsel %vm997, %v2000, %v2001
        %v2003 = vrot.slane %v2001, 4
        %v2004 = vrot.slane %v1873, 5
        %v2005 = vsel %vm997, %v2003, %v2004
        %v2006 = vrot.slane %v1874, 5
        %v2007 = vrot.slane %v2006, 4
        %v2008 = vrot.slane %v1875, 5
        %v2009 = vsel %vm997, %v2007, %v2008
        %v2010 = vrot.slane %v2008, 4
        %v2011 = vrot.slane %v1876, 5
        %v2012 = vsel %vm997, %v2010, %v2011
        %v2013 = vrot.slane %v1877, 5
        %v2014 = vrot.slane %v2013, 4
        %v2015 = vrot.slane %v1878, 5
        %v2016 = vsel %vm997, %v2014, %v2015
        %v2017 = vrot.slane %v2015, 4
        %v2018 = vrot.slane %v1879, 5
        %v2019 = vsel %vm997, %v2017, %v2018
        %v2020 = vrot.slane %v1880, 5
        %v2021 = vrot.slane %v2020, 4
        %v2022 = vrot.slane %v1881, 5
        %v2023 = vsel %vm997, %v2021, %v2022
        %v2024 = vrot.slane %v2022, 4
        %v2025 = vrot.slane %v1882, 5
        %v2026 = vsel %vm997, %v2024, %v2025
        %v2027 = vrot.slane %v1883, 5
        %v2028 = vrot.slane %v2027, 4
        %v2029 = vrot.slane %v1884, 5
        %v2030 = vsel %vm997, %v2028, %v2029
        %v2031 = vrot.slane %v2029, 4
        %v2032 = vrot.slane %v1885, 5
        %v2033 = vsel %vm997, %v2031, %v2032
        %v2034 = vrot.slane %v1886, 5
        %v2035 = vrot.slane %v2034, 4
        %v2036 = vrot.slane %v1887, 5
        %v2037 = vsel %vm997, %v2035, %v2036
        %v2038 = vrot.slane %v2036, 4
        %v2039 = vrot.slane %v1888, 5
        %v2040 = vsel %vm997, %v2038, %v2039
        %v2041 = vrot.slane %v1889, 5
        %v2042 = vrot.slane %v2041, 4
        %v2043 = vrot.slane %v1890, 5
        %v2044 = vsel %vm997, %v2042, %v2043
        %v2045 = vrot.slane %v2043, 4
        %v2046 = vrot.slane %v1891, 5
        %v2047 = vsel %vm997, %v2045, %v2046
        %v2048 = vrot.slane %v1892, 5
        %v2049 = vrot.slane %v2048, 4
        %v2050 = vrot.slane %v1893, 5
        %v2051 = vsel %vm997, %v2049, %v2050
        %v2052 = vrot.slane %v2050, 4
        %v2053 = vrot.slane %v1894, 5
        %v2054 = vsel %vm997, %v2052, %v2053
        %v2055 = vunpack.c.l.b16 %v1946
        %v2056 = vunpack.c.l.b16 %v1949
        %v2057 = vunpack.c.l.b16 %v1953
        %v2058 = vunpack.c.l.b16 %v1956
        %v2059 = vunpack.c.l.b16 %v1960
        %v2060 = vunpack.c.l.b16 %v1963
        %v2061 = vunpack.c.l.b16 %v1967
        %v2062 = vunpack.c.l.b16 %v1970
        %v2063 = vunpack.c.l.b16 %v1974
        %v2064 = vunpack.c.l.b16 %v1977
        %v2065 = vunpack.c.l.b16 %v1981
        %v2066 = vunpack.c.l.b16 %v1984
        %v2067 = vunpack.c.l.b16 %v1988
        %v2068 = vunpack.c.l.b16 %v1991
        %v2069 = vunpack.c.l.b16 %v1995
        %v2070 = vunpack.c.l.b16 %v1998
        %v2071 = vunpack.c.l.b16 %v2002
        %v2072 = vunpack.c.l.b16 %v2005
        %v2073 = vunpack.c.l.b16 %v2009
        %v2074 = vunpack.c.l.b16 %v2012
        %v2075 = vunpack.c.l.b16 %v2016
        %v2076 = vunpack.c.l.b16 %v2019
        %v2077 = vunpack.c.l.b16 %v2023
        %v2078 = vunpack.c.l.b16 %v2026
        %v2079 = vunpack.c.l.b16 %v2030
        %v2080 = vunpack.c.l.b16 %v2033
        %v2081 = vunpack.c.l.b16 %v2037
        %v2082 = vunpack.c.l.b16 %v2040
        %v2083 = vunpack.c.l.b16 %v2044
        %v2084 = vunpack.c.l.b16 %v2047
        %v2085 = vunpack.c.l.b16 %v2051
        %v2086 = vunpack.c.l.b16 %v2054
        %v2087 = vpack.c.b16 %v2056, %v2055
        %v2088 = vpack.c.b16 %v2058, %v2057
        %v2089 = vpack.c.b16 %v2060, %v2059
        %v2090 = vpack.c.b16 %v2062, %v2061
        %v2091 = vpack.c.b16 %v2064, %v2063
        %v2092 = vpack.c.b16 %v2066, %v2065
        %v2093 = vpack.c.b16 %v2068, %v2067
        %v2094 = vpack.c.b16 %v2070, %v2069
        %v2095 = vpack.c.b16 %v2072, %v2071
        %v2096 = vpack.c.b16 %v2074, %v2073
        %v2097 = vpack.c.b16 %v2076, %v2075
        %v2098 = vpack.c.b16 %v2078, %v2077
        %v2099 = vpack.c.b16 %v2080, %v2079
        %v2100 = vpack.c.b16 %v2082, %v2081
        %v2101 = vpack.c.b16 %v2084, %v2083
        %v2102 = vpack.c.b16 %v2086, %v2085
        %2119 = vst [vmem:[#allocation3 + $0x28] sm:$0xff] %v2087
        %2120 = vst [vmem:[#allocation3 + $0x70] sm:$0xff] %v2088
        %2121 = vst [vmem:[#allocation3 + $0xb8] sm:$0xff] %v2089
        %2122 = vst [vmem:[#allocation3 + $0x100] sm:$0xff] %v2090
        %2123 = vst [vmem:[#allocation3 + $0x148] sm:$0xff] %v2091
        %2124 = vst [vmem:[#allocation3 + $0x190] sm:$0xff] %v2092
        %2125 = vst [vmem:[#allocation3 + $0x1d8] sm:$0xff] %v2093
        %2126 = vst [vmem:[#allocation3 + $0x220] sm:$0xff] %v2094
        %2127 = vst [vmem:[#allocation3 + $0x268] sm:$0xff] %v2095
        %2128 = vst [vmem:[#allocation3 + $0x2b0] sm:$0xff] %v2096
        %2129 = vst [vmem:[#allocation3 + $0x2f8] sm:$0xff] %v2097
        %2130 = vst [vmem:[#allocation3 + $0x340] sm:$0xff] %v2098
        %2131 = vst [vmem:[#allocation3 + $0x388] sm:$0xff] %v2099
        %2132 = vst [vmem:[#allocation3 + $0x3d0] sm:$0xff] %v2100
        %2133 = vst [vmem:[#allocation3 + $0x418] sm:$0xff] %v2101
        %2134 = vst [vmem:[#allocation3 + $0x460] sm:$0xff] %v2102
        %s2135 = scalar_lea.vmem %s237, 24
        %v2136 = vld [vmem:[%s2135] sm:$0xf]
        %v2137 = vld [vmem:[%s2135 + $0x4] sm:$0xf]
        %v2138 = vld [vmem:[%s2135 + $0xc] sm:$0xf]
        %v2139 = vld [vmem:[%s2135 + $0x10] sm:$0xf]
        %v2140 = vld [vmem:[%s2135 + $0x18] sm:$0xf]
        %v2141 = vld [vmem:[%s2135 + $0x1c] sm:$0xf]
        %v2142 = vld [vmem:[%s2135 + $0x24] sm:$0xf]
        %v2143 = vld [vmem:[%s2135 + $0x28] sm:$0xf]
        %v2144 = vld [vmem:[%s2135 + $0x30] sm:$0xf]
        %v2145 = vld [vmem:[%s2135 + $0x34] sm:$0xf]
        %v2146 = vld [vmem:[%s2135 + $0x3c] sm:$0xf]
        %v2147 = vld [vmem:[%s2135 + $0x40] sm:$0xf]
        %v2148 = vld [vmem:[%s2135 + $0x48] sm:$0xf]
        %v2149 = vld [vmem:[%s2135 + $0x4c] sm:$0xf]
        %v2150 = vld [vmem:[%s2135 + $0x54] sm:$0xf]
        %v2151 = vld [vmem:[%s2135 + $0x58] sm:$0xf]
        %v2152 = vld [vmem:[%s2135 + $0x60] sm:$0xf]
        %v2153 = vld [vmem:[%s2135 + $0x64] sm:$0xf]
        %v2154 = vld [vmem:[%s2135 + $0x6c] sm:$0xf]
        %v2155 = vld [vmem:[%s2135 + $0x70] sm:$0xf]
        %v2156 = vld [vmem:[%s2135 + $0x78] sm:$0xf]
        %v2157 = vld [vmem:[%s2135 + $0x7c] sm:$0xf]
        %v2158 = vld [vmem:[%s2135 + $0x84] sm:$0xf]
        %v2159 = vld [vmem:[%s2135 + $0x88] sm:$0xf]
        %v2160 = vld [vmem:[%s2135 + $0x90] sm:$0xf]
        %v2161 = vld [vmem:[%s2135 + $0x94] sm:$0xf]
        %v2162 = vld [vmem:[%s2135 + $0x9c] sm:$0xf]
        %v2163 = vld [vmem:[%s2135 + $0xa0] sm:$0xf]
        %v2164 = vld [vmem:[%s2135 + $0xa8] sm:$0xf]
        %v2165 = vld [vmem:[%s2135 + $0xac] sm:$0xf]
        %v2166 = vld [vmem:[%s2135 + $0xb4] sm:$0xf]
        %v2167 = vld [vmem:[%s2135 + $0xb8] sm:$0xf]
        %v2200 = vunpack.c.l.b16 %v2136
        %v2201 = vunpack.c.l.b16 %v2137
        %v2202 = vunpack.c.l.b16 %v2138
        %v2203 = vunpack.c.l.b16 %v2139
        %v2204 = vunpack.c.l.b16 %v2140
        %v2205 = vunpack.c.l.b16 %v2141
        %v2206 = vunpack.c.l.b16 %v2142
        %v2207 = vunpack.c.l.b16 %v2143
        %v2208 = vunpack.c.l.b16 %v2144
        %v2209 = vunpack.c.l.b16 %v2145
        %v2210 = vunpack.c.l.b16 %v2146
        %v2211 = vunpack.c.l.b16 %v2147
        %v2212 = vunpack.c.l.b16 %v2148
        %v2213 = vunpack.c.l.b16 %v2149
        %v2214 = vunpack.c.l.b16 %v2150
        %v2215 = vunpack.c.l.b16 %v2151
        %v2216 = vunpack.c.l.b16 %v2152
        %v2217 = vunpack.c.l.b16 %v2153
        %v2218 = vunpack.c.l.b16 %v2154
        %v2219 = vunpack.c.l.b16 %v2155
        %v2220 = vunpack.c.l.b16 %v2156
        %v2221 = vunpack.c.l.b16 %v2157
        %v2222 = vunpack.c.l.b16 %v2158
        %v2223 = vunpack.c.l.b16 %v2159
        %v2224 = vunpack.c.l.b16 %v2160
        %v2225 = vunpack.c.l.b16 %v2161
        %v2226 = vunpack.c.l.b16 %v2162
        %v2227 = vunpack.c.l.b16 %v2163
        %v2228 = vunpack.c.l.b16 %v2164
        %v2229 = vunpack.c.l.b16 %v2165
        %v2230 = vunpack.c.l.b16 %v2166
        %v2231 = vunpack.c.l.b16 %v2167
        %v2232 = vpack.c.b16 %v2201, %v2200
        %v2233 = vpack.c.b16 %v2203, %v2202
        %v2234 = vpack.c.b16 %v2205, %v2204
        %v2235 = vpack.c.b16 %v2207, %v2206
        %v2236 = vpack.c.b16 %v2209, %v2208
        %v2237 = vpack.c.b16 %v2211, %v2210
        %v2238 = vpack.c.b16 %v2213, %v2212
        %v2239 = vpack.c.b16 %v2215, %v2214
        %v2240 = vpack.c.b16 %v2217, %v2216
        %v2241 = vpack.c.b16 %v2219, %v2218
        %v2242 = vpack.c.b16 %v2221, %v2220
        %v2243 = vpack.c.b16 %v2223, %v2222
        %v2244 = vpack.c.b16 %v2225, %v2224
        %v2245 = vpack.c.b16 %v2227, %v2226
        %v2246 = vpack.c.b16 %v2229, %v2228
        %v2247 = vpack.c.b16 %v2231, %v2230
        %2264 = vst [vmem:[#allocation3 + $0x30] sm:$0xff] %v2232
        %2265 = vst [vmem:[#allocation3 + $0x78] sm:$0xff] %v2233
        %2266 = vst [vmem:[#allocation3 + $0xc0] sm:$0xff] %v2234
        %2267 = vst [vmem:[#allocation3 + $0x108] sm:$0xff] %v2235
        %2268 = vst [vmem:[#allocation3 + $0x150] sm:$0xff] %v2236
        %2269 = vst [vmem:[#allocation3 + $0x198] sm:$0xff] %v2237
        %2270 = vst [vmem:[#allocation3 + $0x1e0] sm:$0xff] %v2238
        %2271 = vst [vmem:[#allocation3 + $0x228] sm:$0xff] %v2239
        %2272 = vst [vmem:[#allocation3 + $0x270] sm:$0xff] %v2240
        %2273 = vst [vmem:[#allocation3 + $0x2b8] sm:$0xff] %v2241
        %2274 = vst [vmem:[#allocation3 + $0x300] sm:$0xff] %v2242
        %2275 = vst [vmem:[#allocation3 + $0x348] sm:$0xff] %v2243
        %2276 = vst [vmem:[#allocation3 + $0x390] sm:$0xff] %v2244
        %2277 = vst [vmem:[#allocation3 + $0x3d8] sm:$0xff] %v2245
        %2278 = vst [vmem:[#allocation3 + $0x420] sm:$0xff] %v2246
        %2279 = vst [vmem:[#allocation3 + $0x468] sm:$0xff] %v2247
        %v2280 = vld [vmem:[%s2135] sm:$0xf]
        %v2281 = vld [vmem:[%s2135 + $0x4] sm:$0xf]
        %v2282 = vld [vmem:[%s2135 + $0x8] sm:$0x1]
        %v2283 = vld [vmem:[%s2135 + $0xc] sm:$0xf]
        %v2284 = vld [vmem:[%s2135 + $0x10] sm:$0xf]
        %v2285 = vld [vmem:[%s2135 + $0x14] sm:$0x1]
        %v2286 = vld [vmem:[%s2135 + $0x18] sm:$0xf]
        %v2287 = vld [vmem:[%s2135 + $0x1c] sm:$0xf]
        %v2288 = vld [vmem:[%s2135 + $0x20] sm:$0x1]
        %v2289 = vld [vmem:[%s2135 + $0x24] sm:$0xf]
        %v2290 = vld [vmem:[%s2135 + $0x28] sm:$0xf]
        %v2291 = vld [vmem:[%s2135 + $0x2c] sm:$0x1]
        %v2292 = vld [vmem:[%s2135 + $0x30] sm:$0xf]
        %v2293 = vld [vmem:[%s2135 + $0x34] sm:$0xf]
        %v2294 = vld [vmem:[%s2135 + $0x38] sm:$0x1]
        %v2295 = vld [vmem:[%s2135 + $0x3c] sm:$0xf]
        %v2296 = vld [vmem:[%s2135 + $0x40] sm:$0xf]
        %v2297 = vld [vmem:[%s2135 + $0x44] sm:$0x1]
        %v2298 = vld [vmem:[%s2135 + $0x48] sm:$0xf]
        %v2299 = vld [vmem:[%s2135 + $0x4c] sm:$0xf]
        %v2300 = vld [vmem:[%s2135 + $0x50] sm:$0x1]
        %v2301 = vld [vmem:[%s2135 + $0x54] sm:$0xf]
        %v2302 = vld [vmem:[%s2135 + $0x58] sm:$0xf]
        %v2303 = vld [vmem:[%s2135 + $0x5c] sm:$0x1]
        %v2304 = vld [vmem:[%s2135 + $0x60] sm:$0xf]
        %v2305 = vld [vmem:[%s2135 + $0x64] sm:$0xf]
        %v2306 = vld [vmem:[%s2135 + $0x68] sm:$0x1]
        %v2307 = vld [vmem:[%s2135 + $0x6c] sm:$0xf]
        %v2308 = vld [vmem:[%s2135 + $0x70] sm:$0xf]
        %v2309 = vld [vmem:[%s2135 + $0x74] sm:$0x1]
        %v2310 = vld [vmem:[%s2135 + $0x78] sm:$0xf]
        %v2311 = vld [vmem:[%s2135 + $0x7c] sm:$0xf]
        %v2312 = vld [vmem:[%s2135 + $0x80] sm:$0x1]
        %v2313 = vld [vmem:[%s2135 + $0x84] sm:$0xf]
        %v2314 = vld [vmem:[%s2135 + $0x88] sm:$0xf]
        %v2315 = vld [vmem:[%s2135 + $0x8c] sm:$0x1]
        %v2316 = vld [vmem:[%s2135 + $0x90] sm:$0xf]
        %v2317 = vld [vmem:[%s2135 + $0x94] sm:$0xf]
        %v2318 = vld [vmem:[%s2135 + $0x98] sm:$0x1]
        %v2319 = vld [vmem:[%s2135 + $0x9c] sm:$0xf]
        %v2320 = vld [vmem:[%s2135 + $0xa0] sm:$0xf]
        %v2321 = vld [vmem:[%s2135 + $0xa4] sm:$0x1]
        %v2322 = vld [vmem:[%s2135 + $0xa8] sm:$0xf]
        %v2323 = vld [vmem:[%s2135 + $0xac] sm:$0xf]
        %v2324 = vld [vmem:[%s2135 + $0xb0] sm:$0x1]
        %v2325 = vld [vmem:[%s2135 + $0xb4] sm:$0xf]
        %v2326 = vld [vmem:[%s2135 + $0xb8] sm:$0xf]
        %v2327 = vld [vmem:[%s2135 + $0xbc] sm:$0x1]
        %v2329 = vshrl.u32 %v2280, 16
        %v2331 = vrot.slane %v2329, 4
        %v2332 = vshll.u32 %v2280, 16
        %v2334 = vrot.slane %v2332, 5
        %v2335 = vor.u32 %v2331, %v2334
        %v2336 = vrot.slane %v2335, 4
        %v2338 = vshll.u32 %v2281, 16
        %v2340 = vrot.slane %v2338, 5
        %v2341 = vsel %vm434, %v2336, %v2340
        %v2342 = vshrl.u32 %v2281, 16
        %v2344 = vrot.slane %v2342, 4
        %v2345 = vor.u32 %v2344, %v2340
        %v2346 = vrot.slane %v2345, 4
        %v2348 = vshll.u32 %v2282, 16
        %v2350 = vrot.slane %v2348, 5
        %v2351 = vsel %vm434, %v2346, %v2350
        %v2353 = vshrl.u32 %v2283, 16
        %v2355 = vrot.slane %v2353, 4
        %v2356 = vshll.u32 %v2283, 16
        %v2358 = vrot.slane %v2356, 5
        %v2359 = vor.u32 %v2355, %v2358
        %v2360 = vrot.slane %v2359, 4
        %v2362 = vshll.u32 %v2284, 16
        %v2364 = vrot.slane %v2362, 5
        %v2365 = vsel %vm434, %v2360, %v2364
        %v2366 = vshrl.u32 %v2284, 16
        %v2368 = vrot.slane %v2366, 4
        %v2369 = vor.u32 %v2368, %v2364
        %v2370 = vrot.slane %v2369, 4
        %v2372 = vshll.u32 %v2285, 16
        %v2374 = vrot.slane %v2372, 5
        %v2375 = vsel %vm434, %v2370, %v2374
        %v2377 = vshrl.u32 %v2286, 16
        %v2379 = vrot.slane %v2377, 4
        %v2380 = vshll.u32 %v2286, 16
        %v2382 = vrot.slane %v2380, 5
        %v2383 = vor.u32 %v2379, %v2382
        %v2384 = vrot.slane %v2383, 4
        %v2386 = vshll.u32 %v2287, 16
        %v2388 = vrot.slane %v2386, 5
        %v2389 = vsel %vm434, %v2384, %v2388
        %v2390 = vshrl.u32 %v2287, 16
        %v2392 = vrot.slane %v2390, 4
        %v2393 = vor.u32 %v2392, %v2388
        %v2394 = vrot.slane %v2393, 4
        %v2396 = vshll.u32 %v2288, 16
        %v2398 = vrot.slane %v2396, 5
        %v2399 = vsel %vm434, %v2394, %v2398
        %v2401 = vshrl.u32 %v2289, 16
        %v2403 = vrot.slane %v2401, 4
        %v2404 = vshll.u32 %v2289, 16
        %v2406 = vrot.slane %v2404, 5
        %v2407 = vor.u32 %v2403, %v2406
        %v2408 = vrot.slane %v2407, 4
        %v2410 = vshll.u32 %v2290, 16
        %v2412 = vrot.slane %v2410, 5
        %v2413 = vsel %vm434, %v2408, %v2412
        %v2414 = vshrl.u32 %v2290, 16
        %v2416 = vrot.slane %v2414, 4
        %v2417 = vor.u32 %v2416, %v2412
        %v2418 = vrot.slane %v2417, 4
        %v2420 = vshll.u32 %v2291, 16
        %v2422 = vrot.slane %v2420, 5
        %v2423 = vsel %vm434, %v2418, %v2422
        %v2425 = vshrl.u32 %v2292, 16
        %v2427 = vrot.slane %v2425, 4
        %v2428 = vshll.u32 %v2292, 16
        %v2430 = vrot.slane %v2428, 5
        %v2431 = vor.u32 %v2427, %v2430
        %v2432 = vrot.slane %v2431, 4
        %v2434 = vshll.u32 %v2293, 16
        %v2436 = vrot.slane %v2434, 5
        %v2437 = vsel %vm434, %v2432, %v2436
        %v2438 = vshrl.u32 %v2293, 16
        %v2440 = vrot.slane %v2438, 4
        %v2441 = vor.u32 %v2440, %v2436
        %v2442 = vrot.slane %v2441, 4
        %v2444 = vshll.u32 %v2294, 16
        %v2446 = vrot.slane %v2444, 5
        %v2447 = vsel %vm434, %v2442, %v2446
        %v2449 = vshrl.u32 %v2295, 16
        %v2451 = vrot.slane %v2449, 4
        %v2452 = vshll.u32 %v2295, 16
        %v2454 = vrot.slane %v2452, 5
        %v2455 = vor.u32 %v2451, %v2454
        %v2456 = vrot.slane %v2455, 4
        %v2458 = vshll.u32 %v2296, 16
        %v2460 = vrot.slane %v2458, 5
        %v2461 = vsel %vm434, %v2456, %v2460
        %v2462 = vshrl.u32 %v2296, 16
        %v2464 = vrot.slane %v2462, 4
        %v2465 = vor.u32 %v2464, %v2460
        %v2466 = vrot.slane %v2465, 4
        %v2468 = vshll.u32 %v2297, 16
        %v2470 = vrot.slane %v2468, 5
        %v2471 = vsel %vm434, %v2466, %v2470
        %v2473 = vshrl.u32 %v2298, 16
        %v2475 = vrot.slane %v2473, 4
        %v2476 = vshll.u32 %v2298, 16
        %v2478 = vrot.slane %v2476, 5
        %v2479 = vor.u32 %v2475, %v2478
        %v2480 = vrot.slane %v2479, 4
        %v2482 = vshll.u32 %v2299, 16
        %v2484 = vrot.slane %v2482, 5
        %v2485 = vsel %vm434, %v2480, %v2484
        %v2486 = vshrl.u32 %v2299, 16
        %v2488 = vrot.slane %v2486, 4
        %v2489 = vor.u32 %v2488, %v2484
        %v2490 = vrot.slane %v2489, 4
        %v2492 = vshll.u32 %v2300, 16
        %v2494 = vrot.slane %v2492, 5
        %v2495 = vsel %vm434, %v2490, %v2494
        %v2497 = vshrl.u32 %v2301, 16
        %v2499 = vrot.slane %v2497, 4
        %v2500 = vshll.u32 %v2301, 16
        %v2502 = vrot.slane %v2500, 5
        %v2503 = vor.u32 %v2499, %v2502
        %v2504 = vrot.slane %v2503, 4
        %v2506 = vshll.u32 %v2302, 16
        %v2508 = vrot.slane %v2506, 5
        %v2509 = vsel %vm434, %v2504, %v2508
        %v2510 = vshrl.u32 %v2302, 16
        %v2512 = vrot.slane %v2510, 4
        %v2513 = vor.u32 %v2512, %v2508
        %v2514 = vrot.slane %v2513, 4
        %v2516 = vshll.u32 %v2303, 16
        %v2518 = vrot.slane %v2516, 5
        %v2519 = vsel %vm434, %v2514, %v2518
        %v2521 = vshrl.u32 %v2304, 16
        %v2523 = vrot.slane %v2521, 4
        %v2524 = vshll.u32 %v2304, 16
        %v2526 = vrot.slane %v2524, 5
        %v2527 = vor.u32 %v2523, %v2526
        %v2528 = vrot.slane %v2527, 4
        %v2530 = vshll.u32 %v2305, 16
        %v2532 = vrot.slane %v2530, 5
        %v2533 = vsel %vm434, %v2528, %v2532
        %v2534 = vshrl.u32 %v2305, 16
        %v2536 = vrot.slane %v2534, 4
        %v2537 = vor.u32 %v2536, %v2532
        %v2538 = vrot.slane %v2537, 4
        %v2540 = vshll.u32 %v2306, 16
        %v2542 = vrot.slane %v2540, 5
        %v2543 = vsel %vm434, %v2538, %v2542
        %v2545 = vshrl.u32 %v2307, 16
        %v2547 = vrot.slane %v2545, 4
        %v2548 = vshll.u32 %v2307, 16
        %v2550 = vrot.slane %v2548, 5
        %v2551 = vor.u32 %v2547, %v2550
        %v2552 = vrot.slane %v2551, 4
        %v2554 = vshll.u32 %v2308, 16
        %v2556 = vrot.slane %v2554, 5
        %v2557 = vsel %vm434, %v2552, %v2556
        %v2558 = vshrl.u32 %v2308, 16
        %v2560 = vrot.slane %v2558, 4
        %v2561 = vor.u32 %v2560, %v2556
        %v2562 = vrot.slane %v2561, 4
        %v2564 = vshll.u32 %v2309, 16
        %v2566 = vrot.slane %v2564, 5
        %v2567 = vsel %vm434, %v2562, %v2566
        %v2569 = vshrl.u32 %v2310, 16
        %v2571 = vrot.slane %v2569, 4
        %v2572 = vshll.u32 %v2310, 16
        %v2574 = vrot.slane %v2572, 5
        %v2575 = vor.u32 %v2571, %v2574
        %v2576 = vrot.slane %v2575, 4
        %v2578 = vshll.u32 %v2311, 16
        %v2580 = vrot.slane %v2578, 5
        %v2581 = vsel %vm434, %v2576, %v2580
        %v2582 = vshrl.u32 %v2311, 16
        %v2584 = vrot.slane %v2582, 4
        %v2585 = vor.u32 %v2584, %v2580
        %v2586 = vrot.slane %v2585, 4
        %v2588 = vshll.u32 %v2312, 16
        %v2590 = vrot.slane %v2588, 5
        %v2591 = vsel %vm434, %v2586, %v2590
        %v2593 = vshrl.u32 %v2313, 16
        %v2595 = vrot.slane %v2593, 4
        %v2596 = vshll.u32 %v2313, 16
        %v2598 = vrot.slane %v2596, 5
        %v2599 = vor.u32 %v2595, %v2598
        %v2600 = vrot.slane %v2599, 4
        %v2602 = vshll.u32 %v2314, 16
        %v2604 = vrot.slane %v2602, 5
        %v2605 = vsel %vm434, %v2600, %v2604
        %v2606 = vshrl.u32 %v2314, 16
        %v2608 = vrot.slane %v2606, 4
        %v2609 = vor.u32 %v2608, %v2604
        %v2610 = vrot.slane %v2609, 4
        %v2612 = vshll.u32 %v2315, 16
        %v2614 = vrot.slane %v2612, 5
        %v2615 = vsel %vm434, %v2610, %v2614
        %v2617 = vshrl.u32 %v2316, 16
        %v2619 = vrot.slane %v2617, 4
        %v2620 = vshll.u32 %v2316, 16
        %v2622 = vrot.slane %v2620, 5
        %v2623 = vor.u32 %v2619, %v2622
        %v2624 = vrot.slane %v2623, 4
        %v2626 = vshll.u32 %v2317, 16
        %v2628 = vrot.slane %v2626, 5
        %v2629 = vsel %vm434, %v2624, %v2628
        %v2630 = vshrl.u32 %v2317, 16
        %v2632 = vrot.slane %v2630, 4
        %v2633 = vor.u32 %v2632, %v2628
        %v2634 = vrot.slane %v2633, 4
        %v2636 = vshll.u32 %v2318, 16
        %v2638 = vrot.slane %v2636, 5
        %v2639 = vsel %vm434, %v2634, %v2638
        %v2641 = vshrl.u32 %v2319, 16
        %v2643 = vrot.slane %v2641, 4
        %v2644 = vshll.u32 %v2319, 16
        %v2646 = vrot.slane %v2644, 5
        %v2647 = vor.u32 %v2643, %v2646
        %v2648 = vrot.slane %v2647, 4
        %v2650 = vshll.u32 %v2320, 16
        %v2652 = vrot.slane %v2650, 5
        %v2653 = vsel %vm434, %v2648, %v2652
        %v2654 = vshrl.u32 %v2320, 16
        %v2656 = vrot.slane %v2654, 4
        %v2657 = vor.u32 %v2656, %v2652
        %v2658 = vrot.slane %v2657, 4
        %v2660 = vshll.u32 %v2321, 16
        %v2662 = vrot.slane %v2660, 5
        %v2663 = vsel %vm434, %v2658, %v2662
        %v2665 = vshrl.u32 %v2322, 16
        %v2667 = vrot.slane %v2665, 4
        %v2668 = vshll.u32 %v2322, 16
        %v2670 = vrot.slane %v2668, 5
        %v2671 = vor.u32 %v2667, %v2670
        %v2672 = vrot.slane %v2671, 4
        %v2674 = vshll.u32 %v2323, 16
        %v2676 = vrot.slane %v2674, 5
        %v2677 = vsel %vm434, %v2672, %v2676
        %v2678 = vshrl.u32 %v2323, 16
        %v2680 = vrot.slane %v2678, 4
        %v2681 = vor.u32 %v2680, %v2676
        %v2682 = vrot.slane %v2681, 4
        %v2684 = vshll.u32 %v2324, 16
        %v2686 = vrot.slane %v2684, 5
        %v2687 = vsel %vm434, %v2682, %v2686
        %v2689 = vshrl.u32 %v2325, 16
        %v2691 = vrot.slane %v2689, 4
        %v2692 = vshll.u32 %v2325, 16
        %v2694 = vrot.slane %v2692, 5
        %v2695 = vor.u32 %v2691, %v2694
        %v2696 = vrot.slane %v2695, 4
        %v2698 = vshll.u32 %v2326, 16
        %v2700 = vrot.slane %v2698, 5
        %v2701 = vsel %vm434, %v2696, %v2700
        %v2702 = vshrl.u32 %v2326, 16
        %v2704 = vrot.slane %v2702, 4
        %v2705 = vor.u32 %v2704, %v2700
        %v2706 = vrot.slane %v2705, 4
        %v2708 = vshll.u32 %v2327, 16
        %v2710 = vrot.slane %v2708, 5
        %v2711 = vsel %vm434, %v2706, %v2710
        %v2712 = vunpack.c.l.b16 %v2341
        %v2713 = vunpack.c.l.b16 %v2351
        %v2714 = vunpack.c.l.b16 %v2365
        %v2715 = vunpack.c.l.b16 %v2375
        %v2716 = vunpack.c.l.b16 %v2389
        %v2717 = vunpack.c.l.b16 %v2399
        %v2718 = vunpack.c.l.b16 %v2413
        %v2719 = vunpack.c.l.b16 %v2423
        %v2720 = vunpack.c.l.b16 %v2437
        %v2721 = vunpack.c.l.b16 %v2447
        %v2722 = vunpack.c.l.b16 %v2461
        %v2723 = vunpack.c.l.b16 %v2471
        %v2724 = vunpack.c.l.b16 %v2485
        %v2725 = vunpack.c.l.b16 %v2495
        %v2726 = vunpack.c.l.b16 %v2509
        %v2727 = vunpack.c.l.b16 %v2519
        %v2728 = vunpack.c.l.b16 %v2533
        %v2729 = vunpack.c.l.b16 %v2543
        %v2730 = vunpack.c.l.b16 %v2557
        %v2731 = vunpack.c.l.b16 %v2567
        %v2732 = vunpack.c.l.b16 %v2581
        %v2733 = vunpack.c.l.b16 %v2591
        %v2734 = vunpack.c.l.b16 %v2605
        %v2735 = vunpack.c.l.b16 %v2615
        %v2736 = vunpack.c.l.b16 %v2629
        %v2737 = vunpack.c.l.b16 %v2639
        %v2738 = vunpack.c.l.b16 %v2653
        %v2739 = vunpack.c.l.b16 %v2663
        %v2740 = vunpack.c.l.b16 %v2677
        %v2741 = vunpack.c.l.b16 %v2687
        %v2742 = vunpack.c.l.b16 %v2701
        %v2743 = vunpack.c.l.b16 %v2711
        %v2744 = vpack.c.b16 %v2713, %v2712
        %v2745 = vpack.c.b16 %v2715, %v2714
        %v2746 = vpack.c.b16 %v2717, %v2716
        %v2747 = vpack.c.b16 %v2719, %v2718
        %v2748 = vpack.c.b16 %v2721, %v2720
        %v2749 = vpack.c.b16 %v2723, %v2722
        %v2750 = vpack.c.b16 %v2725, %v2724
        %v2751 = vpack.c.b16 %v2727, %v2726
        %v2752 = vpack.c.b16 %v2729, %v2728
        %v2753 = vpack.c.b16 %v2731, %v2730
        %v2754 = vpack.c.b16 %v2733, %v2732
        %v2755 = vpack.c.b16 %v2735, %v2734
        %v2756 = vpack.c.b16 %v2737, %v2736
        %v2757 = vpack.c.b16 %v2739, %v2738
        %v2758 = vpack.c.b16 %v2741, %v2740
        %v2759 = vpack.c.b16 %v2743, %v2742
        %2776 = vst [vmem:[#allocation3 + $0x38] sm:$0xff] %v2744
        %2777 = vst [vmem:[#allocation3 + $0x80] sm:$0xff] %v2745
        %2778 = vst [vmem:[#allocation3 + $0xc8] sm:$0xff] %v2746
        %2779 = vst [vmem:[#allocation3 + $0x110] sm:$0xff] %v2747
        %2780 = vst [vmem:[#allocation3 + $0x158] sm:$0xff] %v2748
        %2781 = vst [vmem:[#allocation3 + $0x1a0] sm:$0xff] %v2749
        %2782 = vst [vmem:[#allocation3 + $0x1e8] sm:$0xff] %v2750
        %2783 = vst [vmem:[#allocation3 + $0x230] sm:$0xff] %v2751
        %2784 = vst [vmem:[#allocation3 + $0x278] sm:$0xff] %v2752
        %2785 = vst [vmem:[#allocation3 + $0x2c0] sm:$0xff] %v2753
        %2786 = vst [vmem:[#allocation3 + $0x308] sm:$0xff] %v2754
        %2787 = vst [vmem:[#allocation3 + $0x350] sm:$0xff] %v2755
        %2788 = vst [vmem:[#allocation3 + $0x398] sm:$0xff] %v2756
        %2789 = vst [vmem:[#allocation3 + $0x3e0] sm:$0xff] %v2757
        %2790 = vst [vmem:[#allocation3 + $0x428] sm:$0xff] %v2758
        %2791 = vst [vmem:[#allocation3 + $0x470] sm:$0xff] %v2759
        %v2792 = vld [vmem:[%s2135] sm:$0xe]
        %v2793 = vld [vmem:[%s2135 + $0x4] sm:$0xf]
        %v2794 = vld [vmem:[%s2135 + $0x8] sm:$0x1]
        %v2795 = vld [vmem:[%s2135 + $0xc] sm:$0xe]
        %v2796 = vld [vmem:[%s2135 + $0x10] sm:$0xf]
        %v2797 = vld [vmem:[%s2135 + $0x14] sm:$0x1]
        %v2798 = vld [vmem:[%s2135 + $0x18] sm:$0xe]
        %v2799 = vld [vmem:[%s2135 + $0x1c] sm:$0xf]
        %v2800 = vld [vmem:[%s2135 + $0x20] sm:$0x1]
        %v2801 = vld [vmem:[%s2135 + $0x24] sm:$0xe]
        %v2802 = vld [vmem:[%s2135 + $0x28] sm:$0xf]
        %v2803 = vld [vmem:[%s2135 + $0x2c] sm:$0x1]
        %v2804 = vld [vmem:[%s2135 + $0x30] sm:$0xe]
        %v2805 = vld [vmem:[%s2135 + $0x34] sm:$0xf]
        %v2806 = vld [vmem:[%s2135 + $0x38] sm:$0x1]
        %v2807 = vld [vmem:[%s2135 + $0x3c] sm:$0xe]
        %v2808 = vld [vmem:[%s2135 + $0x40] sm:$0xf]
        %v2809 = vld [vmem:[%s2135 + $0x44] sm:$0x1]
        %v2810 = vld [vmem:[%s2135 + $0x48] sm:$0xe]
        %v2811 = vld [vmem:[%s2135 + $0x4c] sm:$0xf]
        %v2812 = vld [vmem:[%s2135 + $0x50] sm:$0x1]
        %v2813 = vld [vmem:[%s2135 + $0x54] sm:$0xe]
        %v2814 = vld [vmem:[%s2135 + $0x58] sm:$0xf]
        %v2815 = vld [vmem:[%s2135 + $0x5c] sm:$0x1]
        %v2816 = vld [vmem:[%s2135 + $0x60] sm:$0xe]
        %v2817 = vld [vmem:[%s2135 + $0x64] sm:$0xf]
        %v2818 = vld [vmem:[%s2135 + $0x68] sm:$0x1]
        %v2819 = vld [vmem:[%s2135 + $0x6c] sm:$0xe]
        %v2820 = vld [vmem:[%s2135 + $0x70] sm:$0xf]
        %v2821 = vld [vmem:[%s2135 + $0x74] sm:$0x1]
        %v2822 = vld [vmem:[%s2135 + $0x78] sm:$0xe]
        %v2823 = vld [vmem:[%s2135 + $0x7c] sm:$0xf]
        %v2824 = vld [vmem:[%s2135 + $0x80] sm:$0x1]
        %v2825 = vld [vmem:[%s2135 + $0x84] sm:$0xe]
        %v2826 = vld [vmem:[%s2135 + $0x88] sm:$0xf]
        %v2827 = vld [vmem:[%s2135 + $0x8c] sm:$0x1]
        %v2828 = vld [vmem:[%s2135 + $0x90] sm:$0xe]
        %v2829 = vld [vmem:[%s2135 + $0x94] sm:$0xf]
        %v2830 = vld [vmem:[%s2135 + $0x98] sm:$0x1]
        %v2831 = vld [vmem:[%s2135 + $0x9c] sm:$0xe]
        %v2832 = vld [vmem:[%s2135 + $0xa0] sm:$0xf]
        %v2833 = vld [vmem:[%s2135 + $0xa4] sm:$0x1]
        %v2834 = vld [vmem:[%s2135 + $0xa8] sm:$0xe]
        %v2835 = vld [vmem:[%s2135 + $0xac] sm:$0xf]
        %v2836 = vld [vmem:[%s2135 + $0xb0] sm:$0x1]
        %v2837 = vld [vmem:[%s2135 + $0xb4] sm:$0xe]
        %v2838 = vld [vmem:[%s2135 + $0xb8] sm:$0xf]
        %v2839 = vld [vmem:[%s2135 + $0xbc] sm:$0x1]
        %v2888 = vrot.slane %v2792, 5
        %v2889 = vrot.slane %v2888, 4
        %v2890 = vrot.slane %v2793, 5
        %v2891 = vsel %vm997, %v2889, %v2890
        %v2892 = vrot.slane %v2890, 4
        %v2893 = vrot.slane %v2794, 5
        %v2894 = vsel %vm997, %v2892, %v2893
        %v2895 = vrot.slane %v2795, 5
        %v2896 = vrot.slane %v2895, 4
        %v2897 = vrot.slane %v2796, 5
        %v2898 = vsel %vm997, %v2896, %v2897
        %v2899 = vrot.slane %v2897, 4
        %v2900 = vrot.slane %v2797, 5
        %v2901 = vsel %vm997, %v2899, %v2900
        %v2902 = vrot.slane %v2798, 5
        %v2903 = vrot.slane %v2902, 4
        %v2904 = vrot.slane %v2799, 5
        %v2905 = vsel %vm997, %v2903, %v2904
        %v2906 = vrot.slane %v2904, 4
        %v2907 = vrot.slane %v2800, 5
        %v2908 = vsel %vm997, %v2906, %v2907
        %v2909 = vrot.slane %v2801, 5
        %v2910 = vrot.slane %v2909, 4
        %v2911 = vrot.slane %v2802, 5
        %v2912 = vsel %vm997, %v2910, %v2911
        %v2913 = vrot.slane %v2911, 4
        %v2914 = vrot.slane %v2803, 5
        %v2915 = vsel %vm997, %v2913, %v2914
        %v2916 = vrot.slane %v2804, 5
        %v2917 = vrot.slane %v2916, 4
        %v2918 = vrot.slane %v2805, 5
        %v2919 = vsel %vm997, %v2917, %v2918
        %v2920 = vrot.slane %v2918, 4
        %v2921 = vrot.slane %v2806, 5
        %v2922 = vsel %vm997, %v2920, %v2921
        %v2923 = vrot.slane %v2807, 5
        %v2924 = vrot.slane %v2923, 4
        %v2925 = vrot.slane %v2808, 5
        %v2926 = vsel %vm997, %v2924, %v2925
        %v2927 = vrot.slane %v2925, 4
        %v2928 = vrot.slane %v2809, 5
        %v2929 = vsel %vm997, %v2927, %v2928
        %v2930 = vrot.slane %v2810, 5
        %v2931 = vrot.slane %v2930, 4
        %v2932 = vrot.slane %v2811, 5
        %v2933 = vsel %vm997, %v2931, %v2932
        %v2934 = vrot.slane %v2932, 4
        %v2935 = vrot.slane %v2812, 5
        %v2936 = vsel %vm997, %v2934, %v2935
        %v2937 = vrot.slane %v2813, 5
        %v2938 = vrot.slane %v2937, 4
        %v2939 = vrot.slane %v2814, 5
        %v2940 = vsel %vm997, %v2938, %v2939
        %v2941 = vrot.slane %v2939, 4
        %v2942 = vrot.slane %v2815, 5
        %v2943 = vsel %vm997, %v2941, %v2942
        %v2944 = vrot.slane %v2816, 5
        %v2945 = vrot.slane %v2944, 4
        %v2946 = vrot.slane %v2817, 5
        %v2947 = vsel %vm997, %v2945, %v2946
        %v2948 = vrot.slane %v2946, 4
        %v2949 = vrot.slane %v2818, 5
        %v2950 = vsel %vm997, %v2948, %v2949
        %v2951 = vrot.slane %v2819, 5
        %v2952 = vrot.slane %v2951, 4
        %v2953 = vrot.slane %v2820, 5
        %v2954 = vsel %vm997, %v2952, %v2953
        %v2955 = vrot.slane %v2953, 4
        %v2956 = vrot.slane %v2821, 5
        %v2957 = vsel %vm997, %v2955, %v2956
        %v2958 = vrot.slane %v2822, 5
        %v2959 = vrot.slane %v2958, 4
        %v2960 = vrot.slane %v2823, 5
        %v2961 = vsel %vm997, %v2959, %v2960
        %v2962 = vrot.slane %v2960, 4
        %v2963 = vrot.slane %v2824, 5
        %v2964 = vsel %vm997, %v2962, %v2963
        %v2965 = vrot.slane %v2825, 5
        %v2966 = vrot.slane %v2965, 4
        %v2967 = vrot.slane %v2826, 5
        %v2968 = vsel %vm997, %v2966, %v2967
        %v2969 = vrot.slane %v2967, 4
        %v2970 = vrot.slane %v2827, 5
        %v2971 = vsel %vm997, %v2969, %v2970
        %v2972 = vrot.slane %v2828, 5
        %v2973 = vrot.slane %v2972, 4
        %v2974 = vrot.slane %v2829, 5
        %v2975 = vsel %vm997, %v2973, %v2974
        %v2976 = vrot.slane %v2974, 4
        %v2977 = vrot.slane %v2830, 5
        %v2978 = vsel %vm997, %v2976, %v2977
        %v2979 = vrot.slane %v2831, 5
        %v2980 = vrot.slane %v2979, 4
        %v2981 = vrot.slane %v2832, 5
        %v2982 = vsel %vm997, %v2980, %v2981
        %v2983 = vrot.slane %v2981, 4
        %v2984 = vrot.slane %v2833, 5
        %v2985 = vsel %vm997, %v2983, %v2984
        %v2986 = vrot.slane %v2834, 5
        %v2987 = vrot.slane %v2986, 4
        %v2988 = vrot.slane %v2835, 5
        %v2989 = vsel %vm997, %v2987, %v2988
        %v2990 = vrot.slane %v2988, 4
        %v2991 = vrot.slane %v2836, 5
        %v2992 = vsel %vm997, %v2990, %v2991
        %v2993 = vrot.slane %v2837, 5
        %v2994 = vrot.slane %v2993, 4
        %v2995 = vrot.slane %v2838, 5
        %v2996 = vsel %vm997, %v2994, %v2995
        %v2997 = vrot.slane %v2995, 4
        %v2998 = vrot.slane %v2839, 5
        %v2999 = vsel %vm997, %v2997, %v2998
        %v3000 = vunpack.c.l.b16 %v2891
        %v3001 = vunpack.c.l.b16 %v2894
        %v3002 = vunpack.c.l.b16 %v2898
        %v3003 = vunpack.c.l.b16 %v2901
        %v3004 = vunpack.c.l.b16 %v2905
        %v3005 = vunpack.c.l.b16 %v2908
        %v3006 = vunpack.c.l.b16 %v2912
        %v3007 = vunpack.c.l.b16 %v2915
        %v3008 = vunpack.c.l.b16 %v2919
        %v3009 = vunpack.c.l.b16 %v2922
        %v3010 = vunpack.c.l.b16 %v2926
        %v3011 = vunpack.c.l.b16 %v2929
        %v3012 = vunpack.c.l.b16 %v2933
        %v3013 = vunpack.c.l.b16 %v2936
        %v3014 = vunpack.c.l.b16 %v2940
        %v3015 = vunpack.c.l.b16 %v2943
        %v3016 = vunpack.c.l.b16 %v2947
        %v3017 = vunpack.c.l.b16 %v2950
        %v3018 = vunpack.c.l.b16 %v2954
        %v3019 = vunpack.c.l.b16 %v2957
        %v3020 = vunpack.c.l.b16 %v2961
        %v3021 = vunpack.c.l.b16 %v2964
        %v3022 = vunpack.c.l.b16 %v2968
        %v3023 = vunpack.c.l.b16 %v2971
        %v3024 = vunpack.c.l.b16 %v2975
        %v3025 = vunpack.c.l.b16 %v2978
        %v3026 = vunpack.c.l.b16 %v2982
        %v3027 = vunpack.c.l.b16 %v2985
        %v3028 = vunpack.c.l.b16 %v2989
        %v3029 = vunpack.c.l.b16 %v2992
        %v3030 = vunpack.c.l.b16 %v2996
        %v3031 = vunpack.c.l.b16 %v2999
        %v3032 = vpack.c.b16 %v3001, %v3000
        %v3033 = vpack.c.b16 %v3003, %v3002
        %v3034 = vpack.c.b16 %v3005, %v3004
        %v3035 = vpack.c.b16 %v3007, %v3006
        %v3036 = vpack.c.b16 %v3009, %v3008
        %v3037 = vpack.c.b16 %v3011, %v3010
        %v3038 = vpack.c.b16 %v3013, %v3012
        %v3039 = vpack.c.b16 %v3015, %v3014
        %v3040 = vpack.c.b16 %v3017, %v3016
        %v3041 = vpack.c.b16 %v3019, %v3018
        %v3042 = vpack.c.b16 %v3021, %v3020
        %v3043 = vpack.c.b16 %v3023, %v3022
        %v3044 = vpack.c.b16 %v3025, %v3024
        %v3045 = vpack.c.b16 %v3027, %v3026
        %v3046 = vpack.c.b16 %v3029, %v3028
        %v3047 = vpack.c.b16 %v3031, %v3030
        %3064 = vst [vmem:[#allocation3 + $0x40] sm:$0xff] %v3032
        %3065 = vst [vmem:[#allocation3 + $0x88] sm:$0xff] %v3033
        %3066 = vst [vmem:[#allocation3 + $0xd0] sm:$0xff] %v3034
        %3067 = vst [vmem:[#allocation3 + $0x118] sm:$0xff] %v3035
        %3068 = vst [vmem:[#allocation3 + $0x160] sm:$0xff] %v3036
        %3069 = vst [vmem:[#allocation3 + $0x1a8] sm:$0xff] %v3037
        %3070 = vst [vmem:[#allocation3 + $0x1f0] sm:$0xff] %v3038
        %3071 = vst [vmem:[#allocation3 + $0x238] sm:$0xff] %v3039
        %3072 = vst [vmem:[#allocation3 + $0x280] sm:$0xff] %v3040
        %3073 = vst [vmem:[#allocation3 + $0x2c8] sm:$0xff] %v3041
        %3074 = vst [vmem:[#allocation3 + $0x310] sm:$0xff] %v3042
        %3075 = vst [vmem:[#allocation3 + $0x358] sm:$0xff] %v3043
        %3076 = vst [vmem:[#allocation3 + $0x3a0] sm:$0xff] %v3044
        %3077 = vst [vmem:[#allocation3 + $0x3e8] sm:$0xff] %v3045
        %3078 = vst [vmem:[#allocation3 + $0x430] sm:$0xff] %v3046
        %3079 = vst [vmem:[#allocation3 + $0x478] sm:$0xff] %v3047
        %v3080 = vld [vmem:[#allocation3] sm:$0xff]
        %v3081 = vld [vmem:[#allocation3 + $0x8] sm:$0xff]
        %v3082 = vld [vmem:[#allocation3 + $0x10] sm:$0xff]
        %v3083 = vld [vmem:[#allocation3 + $0x18] sm:$0xff]
        %v3084 = vld [vmem:[#allocation3 + $0x20] sm:$0xff]
        %v3085 = vld [vmem:[#allocation3 + $0x28] sm:$0xff]
        %v3086 = vld [vmem:[#allocation3 + $0x30] sm:$0xff]
        %v3087 = vld [vmem:[#allocation3 + $0x38] sm:$0xff]
        %v3088 = vld [vmem:[#allocation3 + $0x40] sm:$0xff]
        %v3089 = vld [vmem:[#allocation3 + $0x48] sm:$0xff]
        %v3090 = vld [vmem:[#allocation3 + $0x50] sm:$0xff]
        %v3091 = vld [vmem:[#allocation3 + $0x58] sm:$0xff]
        %v3092 = vld [vmem:[#allocation3 + $0x60] sm:$0xff]
        %v3093 = vld [vmem:[#allocation3 + $0x68] sm:$0xff]
        %v3094 = vld [vmem:[#allocation3 + $0x70] sm:$0xff]
        %v3095 = vld [vmem:[#allocation3 + $0x78] sm:$0xff]
        %v3096 = vld [vmem:[#allocation3 + $0x80] sm:$0xff]
        %v3097 = vld [vmem:[#allocation3 + $0x88] sm:$0xff]
        %v3098 = vld [vmem:[#allocation3 + $0x90] sm:$0xff]
        %v3099 = vld [vmem:[#allocation3 + $0x98] sm:$0xff]
        %v3100 = vld [vmem:[#allocation3 + $0xa0] sm:$0xff]
        %v3101 = vld [vmem:[#allocation3 + $0xa8] sm:$0xff]
        %v3102 = vld [vmem:[#allocation3 + $0xb0] sm:$0xff]
        %v3103 = vld [vmem:[#allocation3 + $0xb8] sm:$0xff]
        %v3104 = vld [vmem:[#allocation3 + $0xc0] sm:$0xff]
        %v3105 = vld [vmem:[#allocation3 + $0xc8] sm:$0xff]
        %v3106 = vld [vmem:[#allocation3 + $0xd0] sm:$0xff]
        %v3107 = vld [vmem:[#allocation3 + $0xd8] sm:$0xff]
        %v3108 = vld [vmem:[#allocation3 + $0xe0] sm:$0xff]
        %v3109 = vld [vmem:[#allocation3 + $0xe8] sm:$0xff]
        %v3110 = vld [vmem:[#allocation3 + $0xf0] sm:$0xff]
        %v3111 = vld [vmem:[#allocation3 + $0xf8] sm:$0xff]
        %v3112 = vld [vmem:[#allocation3 + $0x100] sm:$0xff]
        %v3113 = vld [vmem:[#allocation3 + $0x108] sm:$0xff]
        %v3114 = vld [vmem:[#allocation3 + $0x110] sm:$0xff]
        %v3115 = vld [vmem:[#allocation3 + $0x118] sm:$0xff]
        %v3116 = vld [vmem:[#allocation3 + $0x120] sm:$0xff]
        %v3117 = vld [vmem:[#allocation3 + $0x128] sm:$0xff]
        %v3118 = vld [vmem:[#allocation3 + $0x130] sm:$0xff]
        %v3119 = vld [vmem:[#allocation3 + $0x138] sm:$0xff]
        %v3120 = vld [vmem:[#allocation3 + $0x140] sm:$0xff]
        %v3121 = vld [vmem:[#allocation3 + $0x148] sm:$0xff]
        %v3122 = vld [vmem:[#allocation3 + $0x150] sm:$0xff]
        %v3123 = vld [vmem:[#allocation3 + $0x158] sm:$0xff]
        %v3124 = vld [vmem:[#allocation3 + $0x160] sm:$0xff]
        %v3125 = vld [vmem:[#allocation3 + $0x168] sm:$0xff]
        %v3126 = vld [vmem:[#allocation3 + $0x170] sm:$0xff]
        %v3127 = vld [vmem:[#allocation3 + $0x178] sm:$0xff]
        %v3128 = vld [vmem:[#allocation3 + $0x180] sm:$0xff]
        %v3129 = vld [vmem:[#allocation3 + $0x188] sm:$0xff]
        %v3130 = vld [vmem:[#allocation3 + $0x190] sm:$0xff]
        %v3131 = vld [vmem:[#allocation3 + $0x198] sm:$0xff]
        %v3132 = vld [vmem:[#allocation3 + $0x1a0] sm:$0xff]
        %v3133 = vld [vmem:[#allocation3 + $0x1a8] sm:$0xff]
        %v3134 = vld [vmem:[#allocation3 + $0x1b0] sm:$0xff]
        %v3135 = vld [vmem:[#allocation3 + $0x1b8] sm:$0xff]
        %v3136 = vld [vmem:[#allocation3 + $0x1c0] sm:$0xff]
        %v3137 = vld [vmem:[#allocation3 + $0x1c8] sm:$0xff]
        %v3138 = vld [vmem:[#allocation3 + $0x1d0] sm:$0xff]
        %v3139 = vld [vmem:[#allocation3 + $0x1d8] sm:$0xff]
        %v3140 = vld [vmem:[#allocation3 + $0x1e0] sm:$0xff]
        %v3141 = vld [vmem:[#allocation3 + $0x1e8] sm:$0xff]
        %v3142 = vld [vmem:[#allocation3 + $0x1f0] sm:$0xff]
        %v3143 = vld [vmem:[#allocation3 + $0x1f8] sm:$0xff]
        %v3144 = vld [vmem:[#allocation3 + $0x200] sm:$0xff]
        %v3145 = vld [vmem:[#allocation3 + $0x208] sm:$0xff]
        %v3146 = vld [vmem:[#allocation3 + $0x210] sm:$0xff]
        %v3147 = vld [vmem:[#allocation3 + $0x218] sm:$0xff]
        %v3148 = vld [vmem:[#allocation3 + $0x220] sm:$0xff]
        %v3149 = vld [vmem:[#allocation3 + $0x228] sm:$0xff]
        %v3150 = vld [vmem:[#allocation3 + $0x230] sm:$0xff]
        %v3151 = vld [vmem:[#allocation3 + $0x238] sm:$0xff]
        %v3152 = vld [vmem:[#allocation3 + $0x240] sm:$0xff]
        %v3153 = vld [vmem:[#allocation3 + $0x248] sm:$0xff]
        %v3154 = vld [vmem:[#allocation3 + $0x250] sm:$0xff]
        %v3155 = vld [vmem:[#allocation3 + $0x258] sm:$0xff]
        %v3156 = vld [vmem:[#allocation3 + $0x260] sm:$0xff]
        %v3157 = vld [vmem:[#allocation3 + $0x268] sm:$0xff]
        %v3158 = vld [vmem:[#allocation3 + $0x270] sm:$0xff]
        %v3159 = vld [vmem:[#allocation3 + $0x278] sm:$0xff]
        %v3160 = vld [vmem:[#allocation3 + $0x280] sm:$0xff]
        %v3161 = vld [vmem:[#allocation3 + $0x288] sm:$0xff]
        %v3162 = vld [vmem:[#allocation3 + $0x290] sm:$0xff]
        %v3163 = vld [vmem:[#allocation3 + $0x298] sm:$0xff]
        %v3164 = vld [vmem:[#allocation3 + $0x2a0] sm:$0xff]
        %v3165 = vld [vmem:[#allocation3 + $0x2a8] sm:$0xff]
        %v3166 = vld [vmem:[#allocation3 + $0x2b0] sm:$0xff]
        %v3167 = vld [vmem:[#allocation3 + $0x2b8] sm:$0xff]
        %v3168 = vld [vmem:[#allocation3 + $0x2c0] sm:$0xff]
        %v3169 = vld [vmem:[#allocation3 + $0x2c8] sm:$0xff]
        %v3170 = vld [vmem:[#allocation3 + $0x2d0] sm:$0xff]
        %v3171 = vld [vmem:[#allocation3 + $0x2d8] sm:$0xff]
        %v3172 = vld [vmem:[#allocation3 + $0x2e0] sm:$0xff]
        %v3173 = vld [vmem:[#allocation3 + $0x2e8] sm:$0xff]
        %v3174 = vld [vmem:[#allocation3 + $0x2f0] sm:$0xff]
        %v3175 = vld [vmem:[#allocation3 + $0x2f8] sm:$0xff]
        %v3176 = vld [vmem:[#allocation3 + $0x300] sm:$0xff]
        %v3177 = vld [vmem:[#allocation3 + $0x308] sm:$0xff]
        %v3178 = vld [vmem:[#allocation3 + $0x310] sm:$0xff]
        %v3179 = vld [vmem:[#allocation3 + $0x318] sm:$0xff]
        %v3180 = vld [vmem:[#allocation3 + $0x320] sm:$0xff]
        %v3181 = vld [vmem:[#allocation3 + $0x328] sm:$0xff]
        %v3182 = vld [vmem:[#allocation3 + $0x330] sm:$0xff]
        %v3183 = vld [vmem:[#allocation3 + $0x338] sm:$0xff]
        %v3184 = vld [vmem:[#allocation3 + $0x340] sm:$0xff]
        %v3185 = vld [vmem:[#allocation3 + $0x348] sm:$0xff]
        %v3186 = vld [vmem:[#allocation3 + $0x350] sm:$0xff]
        %v3187 = vld [vmem:[#allocation3 + $0x358] sm:$0xff]
        %v3188 = vld [vmem:[#allocation3 + $0x360] sm:$0xff]
        %v3189 = vld [vmem:[#allocation3 + $0x368] sm:$0xff]
        %v3190 = vld [vmem:[#allocation3 + $0x370] sm:$0xff]
        %v3191 = vld [vmem:[#allocation3 + $0x378] sm:$0xff]
        %v3192 = vld [vmem:[#allocation3 + $0x380] sm:$0xff]
        %v3193 = vld [vmem:[#allocation3 + $0x388] sm:$0xff]
        %v3194 = vld [vmem:[#allocation3 + $0x390] sm:$0xff]
        %v3195 = vld [vmem:[#allocation3 + $0x398] sm:$0xff]
        %v3196 = vld [vmem:[#allocation3 + $0x3a0] sm:$0xff]
        %v3197 = vld [vmem:[#allocation3 + $0x3a8] sm:$0xff]
        %v3198 = vld [vmem:[#allocation3 + $0x3b0] sm:$0xff]
        %v3199 = vld [vmem:[#allocation3 + $0x3b8] sm:$0xff]
        %v3200 = vld [vmem:[#allocation3 + $0x3c0] sm:$0xff]
        %v3201 = vld [vmem:[#allocation3 + $0x3c8] sm:$0xff]
        %v3202 = vld [vmem:[#allocation3 + $0x3d0] sm:$0xff]
        %v3203 = vld [vmem:[#allocation3 + $0x3d8] sm:$0xff]
        %v3204 = vld [vmem:[#allocation3 + $0x3e0] sm:$0xff]
        %v3205 = vld [vmem:[#allocation3 + $0x3e8] sm:$0xff]
        %v3206 = vld [vmem:[#allocation3 + $0x3f0] sm:$0xff]
        %v3207 = vld [vmem:[#allocation3 + $0x3f8] sm:$0xff]
        %v3208 = vld [vmem:[#allocation3 + $0x400] sm:$0xff]
        %v3209 = vld [vmem:[#allocation3 + $0x408] sm:$0xff]
        %v3210 = vld [vmem:[#allocation3 + $0x410] sm:$0xff]
        %v3211 = vld [vmem:[#allocation3 + $0x418] sm:$0xff]
        %v3212 = vld [vmem:[#allocation3 + $0x420] sm:$0xff]
        %v3213 = vld [vmem:[#allocation3 + $0x428] sm:$0xff]
        %v3214 = vld [vmem:[#allocation3 + $0x430] sm:$0xff]
        %v3215 = vld [vmem:[#allocation3 + $0x438] sm:$0xff]
        %v3216 = vld [vmem:[#allocation3 + $0x440] sm:$0xff]
        %v3217 = vld [vmem:[#allocation3 + $0x448] sm:$0xff]
        %v3218 = vld [vmem:[#allocation3 + $0x450] sm:$0xff]
        %v3219 = vld [vmem:[#allocation3 + $0x458] sm:$0xff]
        %v3220 = vld [vmem:[#allocation3 + $0x460] sm:$0xff]
        %v3221 = vld [vmem:[#allocation3 + $0x468] sm:$0xff]
        %v3222 = vld [vmem:[#allocation3 + $0x470] sm:$0xff]
        %v3223 = vld [vmem:[#allocation3 + $0x478] sm:$0xff]
        %v3224 = vld [vmem:[%s1] sm:$0xf]
        %v3225 = vld [vmem:[%s1 + $0x4] sm:$0xf]
        %v3226 = vld [vmem:[%s1 + $0x8] sm:$0xf]
        %v3227 = vld [vmem:[%s1 + $0xc] sm:$0xf]
        %v3228 = vld [vmem:[%s1 + $0x10] sm:$0xf]
        %v3229 = vld [vmem:[%s1 + $0x14] sm:$0xf]
        %v3230 = vld [vmem:[%s1 + $0x18] sm:$0xf]
        %v3231 = vld [vmem:[%s1 + $0x1c] sm:$0xf]
        %v3232 = vld [vmem:[%s1 + $0x20] sm:$0xf]
        %v3233 = vld [vmem:[%s1 + $0x24] sm:$0xf]
        %v3234 = vld [vmem:[%s1 + $0x28] sm:$0xf]
        %v3235 = vld [vmem:[%s1 + $0x2c] sm:$0xf]
        %v3236 = vld [vmem:[%s1 + $0x30] sm:$0xf]
        %v3237 = vld [vmem:[%s1 + $0x34] sm:$0xf]
        %v3238 = vld [vmem:[%s1 + $0x38] sm:$0xf]
        %v3239 = vld [vmem:[%s1 + $0x3c] sm:$0xf]
        %v3240 = vld [vmem:[%s1 + $0x40] sm:$0xf]
        %v3241 = vld [vmem:[%s1 + $0x44] sm:$0xf]
        %v3242 = vld [vmem:[%s1 + $0x48] sm:$0xf]
        %v3243 = vld [vmem:[%s1 + $0x4c] sm:$0xf]
        %v3244 = vld [vmem:[%s1 + $0x50] sm:$0xf]
        %v3245 = vld [vmem:[%s1 + $0x54] sm:$0xf]
        %v3246 = vld [vmem:[%s1 + $0x58] sm:$0xf]
        %v3247 = vld [vmem:[%s1 + $0x5c] sm:$0xf]
        %v3248 = vld [vmem:[%s1 + $0x60] sm:$0xf]
        %v3249 = vld [vmem:[%s1 + $0x64] sm:$0xf]
        %v3250 = vld [vmem:[%s1 + $0x68] sm:$0xf]
        %v3251 = vld [vmem:[%s1 + $0x6c] sm:$0xf]
        %v3252 = vld [vmem:[%s1 + $0x70] sm:$0xf]
        %v3253 = vld [vmem:[%s1 + $0x74] sm:$0xf]
        %v3254 = vld [vmem:[%s1 + $0x78] sm:$0xf]
        %v3255 = vld [vmem:[%s1 + $0x7c] sm:$0xf]
        %v3256 = vld [vmem:[%s1 + $0x80] sm:$0xf]
        %v3257 = vld [vmem:[%s1 + $0x84] sm:$0xf]
        %v3258 = vld [vmem:[%s1 + $0x88] sm:$0xf]
        %v3259 = vld [vmem:[%s1 + $0x8c] sm:$0xf]
        %v3260 = vld [vmem:[%s1 + $0x90] sm:$0xf]
        %v3261 = vld [vmem:[%s1 + $0x94] sm:$0xf]
        %v3262 = vld [vmem:[%s1 + $0x98] sm:$0xf]
        %v3263 = vld [vmem:[%s1 + $0x9c] sm:$0xf]
        %v3264 = vld [vmem:[%s1 + $0xa0] sm:$0xf]
        %v3265 = vld [vmem:[%s1 + $0xa4] sm:$0xf]
        %v3266 = vld [vmem:[%s1 + $0xa8] sm:$0xf]
        %v3267 = vld [vmem:[%s1 + $0xac] sm:$0xf]
        %v3268 = vld [vmem:[%s1 + $0xb0] sm:$0xf]
        %v3269 = vld [vmem:[%s1 + $0xb4] sm:$0xf]
        %v3270 = vld [vmem:[%s1 + $0xb8] sm:$0xf]
        %v3271 = vld [vmem:[%s1 + $0xbc] sm:$0xf]
        %v3272 = vld [vmem:[%s1 + $0xc0] sm:$0xf]
        %v3273 = vld [vmem:[%s1 + $0xc4] sm:$0xf]
        %v3274 = vld [vmem:[%s1 + $0xc8] sm:$0xf]
        %v3275 = vld [vmem:[%s1 + $0xcc] sm:$0xf]
        %v3276 = vld [vmem:[%s1 + $0xd0] sm:$0xf]
        %v3277 = vld [vmem:[%s1 + $0xd4] sm:$0xf]
        %v3278 = vld [vmem:[%s1 + $0xd8] sm:$0xf]
        %v3279 = vld [vmem:[%s1 + $0xdc] sm:$0xf]
        %v3280 = vld [vmem:[%s1 + $0xe0] sm:$0xf]
        %v3281 = vld [vmem:[%s1 + $0xe4] sm:$0xf]
        %v3282 = vld [vmem:[%s1 + $0xe8] sm:$0xf]
        %v3283 = vld [vmem:[%s1 + $0xec] sm:$0xf]
        %v3284 = vld [vmem:[%s1 + $0xf0] sm:$0xf]
        %v3285 = vld [vmem:[%s1 + $0xf4] sm:$0xf]
        %v3286 = vld [vmem:[%s1 + $0xf8] sm:$0xf]
        %v3287 = vld [vmem:[%s1 + $0xfc] sm:$0xf]
        %v3288 = vld [vmem:[%s1 + $0x100] sm:$0xf]
        %v3289 = vld [vmem:[%s1 + $0x104] sm:$0xf]
        %v3290 = vld [vmem:[%s1 + $0x108] sm:$0xf]
        %v3291 = vld [vmem:[%s1 + $0x10c] sm:$0xf]
        %v3292 = vld [vmem:[%s1 + $0x110] sm:$0xf]
        %v3293 = vld [vmem:[%s1 + $0x114] sm:$0xf]
        %v3294 = vld [vmem:[%s1 + $0x118] sm:$0xf]
        %v3295 = vld [vmem:[%s1 + $0x11c] sm:$0xf]
        %v3296 = vld [vmem:[%s1 + $0x120] sm:$0xf]
        %v3297 = vld [vmem:[%s1 + $0x124] sm:$0xf]
        %v3298 = vld [vmem:[%s1 + $0x128] sm:$0xf]
        %v3299 = vld [vmem:[%s1 + $0x12c] sm:$0xf]
        %v3300 = vld [vmem:[%s1 + $0x130] sm:$0xf]
        %v3301 = vld [vmem:[%s1 + $0x134] sm:$0xf]
        %v3302 = vld [vmem:[%s1 + $0x138] sm:$0xf]
        %v3303 = vld [vmem:[%s1 + $0x13c] sm:$0xf]
        %v3304 = vld [vmem:[%s1 + $0x140] sm:$0xf]
        %v3305 = vld [vmem:[%s1 + $0x144] sm:$0xf]
        %v3306 = vld [vmem:[%s1 + $0x148] sm:$0xf]
        %v3307 = vld [vmem:[%s1 + $0x14c] sm:$0xf]
        %v3308 = vld [vmem:[%s1 + $0x150] sm:$0xf]
        %v3309 = vld [vmem:[%s1 + $0x154] sm:$0xf]
        %v3310 = vld [vmem:[%s1 + $0x158] sm:$0xf]
        %v3311 = vld [vmem:[%s1 + $0x15c] sm:$0xf]
        %v3312 = vld [vmem:[%s1 + $0x160] sm:$0xf]
        %v3313 = vld [vmem:[%s1 + $0x164] sm:$0xf]
        %v3314 = vld [vmem:[%s1 + $0x168] sm:$0xf]
        %v3315 = vld [vmem:[%s1 + $0x16c] sm:$0xf]
        %v3316 = vld [vmem:[%s1 + $0x170] sm:$0xf]
        %v3317 = vld [vmem:[%s1 + $0x174] sm:$0xf]
        %v3318 = vld [vmem:[%s1 + $0x178] sm:$0xf]
        %v3319 = vld [vmem:[%s1 + $0x17c] sm:$0xf]
        %v3320 = vld [vmem:[%s1 + $0x180] sm:$0xf]
        %v3321 = vld [vmem:[%s1 + $0x184] sm:$0xf]
        %v3322 = vld [vmem:[%s1 + $0x188] sm:$0xf]
        %v3323 = vld [vmem:[%s1 + $0x18c] sm:$0xf]
        %v3324 = vld [vmem:[%s1 + $0x190] sm:$0xf]
        %v3325 = vld [vmem:[%s1 + $0x194] sm:$0xf]
        %v3326 = vld [vmem:[%s1 + $0x198] sm:$0xf]
        %v3327 = vld [vmem:[%s1 + $0x19c] sm:$0xf]
        %v3328 = vld [vmem:[%s1 + $0x1a0] sm:$0xf]
        %v3329 = vld [vmem:[%s1 + $0x1a4] sm:$0xf]
        %v3330 = vld [vmem:[%s1 + $0x1a8] sm:$0xf]
        %v3331 = vld [vmem:[%s1 + $0x1ac] sm:$0xf]
        %v3332 = vld [vmem:[%s1 + $0x1b0] sm:$0xf]
        %v3333 = vld [vmem:[%s1 + $0x1b4] sm:$0xf]
        %v3334 = vld [vmem:[%s1 + $0x1b8] sm:$0xf]
        %v3335 = vld [vmem:[%s1 + $0x1bc] sm:$0xf]
        %v3336 = vld [vmem:[%s1 + $0x1c0] sm:$0xf]
        %v3337 = vld [vmem:[%s1 + $0x1c4] sm:$0xf]
        %v3338 = vld [vmem:[%s1 + $0x1c8] sm:$0xf]
        %v3339 = vld [vmem:[%s1 + $0x1cc] sm:$0xf]
        %v3340 = vld [vmem:[%s1 + $0x1d0] sm:$0xf]
        %v3341 = vld [vmem:[%s1 + $0x1d4] sm:$0xf]
        %v3342 = vld [vmem:[%s1 + $0x1d8] sm:$0xf]
        %v3343 = vld [vmem:[%s1 + $0x1dc] sm:$0xf]
        %v3344 = vld [vmem:[%s1 + $0x1e0] sm:$0xf]
        %v3345 = vld [vmem:[%s1 + $0x1e4] sm:$0xf]
        %v3346 = vld [vmem:[%s1 + $0x1e8] sm:$0xf]
        %v3347 = vld [vmem:[%s1 + $0x1ec] sm:$0xf]
        %v3348 = vld [vmem:[%s1 + $0x1f0] sm:$0xf]
        %v3349 = vld [vmem:[%s1 + $0x1f4] sm:$0xf]
        %v3350 = vld [vmem:[%s1 + $0x1f8] sm:$0xf]
        %v3351 = vld [vmem:[%s1 + $0x1fc] sm:$0xf]
        %v3352 = vld [vmem:[%s1 + $0x200] sm:$0xf]
        %v3353 = vld [vmem:[%s1 + $0x204] sm:$0xf]
        %v3354 = vld [vmem:[%s1 + $0x208] sm:$0xf]
        %v3355 = vld [vmem:[%s1 + $0x20c] sm:$0xf]
        %v3356 = vld [vmem:[%s1 + $0x210] sm:$0xf]
        %v3357 = vld [vmem:[%s1 + $0x214] sm:$0xf]
        %v3358 = vld [vmem:[%s1 + $0x218] sm:$0xf]
        %v3359 = vld [vmem:[%s1 + $0x21c] sm:$0xf]
        %v3360 = vld [vmem:[%s1 + $0x220] sm:$0xf]
        %v3361 = vld [vmem:[%s1 + $0x224] sm:$0xf]
        %v3362 = vld [vmem:[%s1 + $0x228] sm:$0xf]
        %v3363 = vld [vmem:[%s1 + $0x22c] sm:$0xf]
        %v3364 = vld [vmem:[%s1 + $0x230] sm:$0xf]
        %v3365 = vld [vmem:[%s1 + $0x234] sm:$0xf]
        %v3366 = vld [vmem:[%s1 + $0x238] sm:$0xf]
        %v3367 = vld [vmem:[%s1 + $0x23c] sm:$0xf]
        %v3368 = vld [vmem:[%s2] sm:$0x1]
        %v3370 = vlaneseq
        %v3371 = vshrl.u32 %v3370, 7
        %v3372 = vsub.s32 0, %v3371
        %v3373 = vrot.slane %v3368, %v3372
        %v3519 = vunpack.c.l.b16 %v3224
        %v3520 = vunpack.c.l.b16 %v3225
        %v3521 = vunpack.c.l.b16 %v3226
        %v3522 = vunpack.c.l.b16 %v3227
        %v3523 = vunpack.c.l.b16 %v3228
        %v3524 = vunpack.c.l.b16 %v3229
        %v3525 = vunpack.c.l.b16 %v3230
        %v3526 = vunpack.c.l.b16 %v3231
        %v3527 = vunpack.c.l.b16 %v3232
        %v3528 = vunpack.c.l.b16 %v3233
        %v3529 = vunpack.c.l.b16 %v3234
        %v3530 = vunpack.c.l.b16 %v3235
        %v3531 = vunpack.c.l.b16 %v3236
        %v3532 = vunpack.c.l.b16 %v3237
        %v3533 = vunpack.c.l.b16 %v3238
        %v3534 = vunpack.c.l.b16 %v3239
        %v3535 = vunpack.c.l.b16 %v3240
        %v3536 = vunpack.c.l.b16 %v3241
        %v3537 = vunpack.c.l.b16 %v3242
        %v3538 = vunpack.c.l.b16 %v3243
        %v3539 = vunpack.c.l.b16 %v3244
        %v3540 = vunpack.c.l.b16 %v3245
        %v3541 = vunpack.c.l.b16 %v3246
        %v3542 = vunpack.c.l.b16 %v3247
        %v3543 = vunpack.c.l.b16 %v3248
        %v3544 = vunpack.c.l.b16 %v3249
        %v3545 = vunpack.c.l.b16 %v3250
        %v3546 = vunpack.c.l.b16 %v3251
        %v3547 = vunpack.c.l.b16 %v3252
        %v3548 = vunpack.c.l.b16 %v3253
        %v3549 = vunpack.c.l.b16 %v3254
        %v3550 = vunpack.c.l.b16 %v3255
        %v3551 = vunpack.c.l.b16 %v3256
        %v3552 = vunpack.c.l.b16 %v3257
        %v3553 = vunpack.c.l.b16 %v3258
        %v3554 = vunpack.c.l.b16 %v3259
        %v3555 = vunpack.c.l.b16 %v3260
        %v3556 = vunpack.c.l.b16 %v3261
        %v3557 = vunpack.c.l.b16 %v3262
        %v3558 = vunpack.c.l.b16 %v3263
        %v3559 = vunpack.c.l.b16 %v3264
        %v3560 = vunpack.c.l.b16 %v3265
        %v3561 = vunpack.c.l.b16 %v3266
        %v3562 = vunpack.c.l.b16 %v3267
        %v3563 = vunpack.c.l.b16 %v3268
        %v3564 = vunpack.c.l.b16 %v3269
        %v3565 = vunpack.c.l.b16 %v3270
        %v3566 = vunpack.c.l.b16 %v3271
        %v3567 = vunpack.c.l.b16 %v3272
        %v3568 = vunpack.c.l.b16 %v3273
        %v3569 = vunpack.c.l.b16 %v3274
        %v3570 = vunpack.c.l.b16 %v3275
        %v3571 = vunpack.c.l.b16 %v3276
        %v3572 = vunpack.c.l.b16 %v3277
        %v3573 = vunpack.c.l.b16 %v3278
        %v3574 = vunpack.c.l.b16 %v3279
        %v3575 = vunpack.c.l.b16 %v3280
        %v3576 = vunpack.c.l.b16 %v3281
        %v3577 = vunpack.c.l.b16 %v3282
        %v3578 = vunpack.c.l.b16 %v3283
        %v3579 = vunpack.c.l.b16 %v3284
        %v3580 = vunpack.c.l.b16 %v3285
        %v3581 = vunpack.c.l.b16 %v3286
        %v3582 = vunpack.c.l.b16 %v3287
        %v3583 = vunpack.c.l.b16 %v3288
        %v3584 = vunpack.c.l.b16 %v3289
        %v3585 = vunpack.c.l.b16 %v3290
        %v3586 = vunpack.c.l.b16 %v3291
        %v3587 = vunpack.c.l.b16 %v3292
        %v3588 = vunpack.c.l.b16 %v3293
        %v3589 = vunpack.c.l.b16 %v3294
        %v3590 = vunpack.c.l.b16 %v3295
        %v3591 = vunpack.c.l.b16 %v3296
        %v3592 = vunpack.c.l.b16 %v3297
        %v3593 = vunpack.c.l.b16 %v3298
        %v3594 = vunpack.c.l.b16 %v3299
        %v3595 = vunpack.c.l.b16 %v3300
        %v3596 = vunpack.c.l.b16 %v3301
        %v3597 = vunpack.c.l.b16 %v3302
        %v3598 = vunpack.c.l.b16 %v3303
        %v3599 = vunpack.c.l.b16 %v3304
        %v3600 = vunpack.c.l.b16 %v3305
        %v3601 = vunpack.c.l.b16 %v3306
        %v3602 = vunpack.c.l.b16 %v3307
        %v3603 = vunpack.c.l.b16 %v3308
        %v3604 = vunpack.c.l.b16 %v3309
        %v3605 = vunpack.c.l.b16 %v3310
        %v3606 = vunpack.c.l.b16 %v3311
        %v3607 = vunpack.c.l.b16 %v3312
        %v3608 = vunpack.c.l.b16 %v3313
        %v3609 = vunpack.c.l.b16 %v3314
        %v3610 = vunpack.c.l.b16 %v3315
        %v3611 = vunpack.c.l.b16 %v3316
        %v3612 = vunpack.c.l.b16 %v3317
        %v3613 = vunpack.c.l.b16 %v3318
        %v3614 = vunpack.c.l.b16 %v3319
        %v3615 = vunpack.c.l.b16 %v3320
        %v3616 = vunpack.c.l.b16 %v3321
        %v3617 = vunpack.c.l.b16 %v3322
        %v3618 = vunpack.c.l.b16 %v3323
        %v3619 = vunpack.c.l.b16 %v3324
        %v3620 = vunpack.c.l.b16 %v3325
        %v3621 = vunpack.c.l.b16 %v3326
        %v3622 = vunpack.c.l.b16 %v3327
        %v3623 = vunpack.c.l.b16 %v3328
        %v3624 = vunpack.c.l.b16 %v3329
        %v3625 = vunpack.c.l.b16 %v3330
        %v3626 = vunpack.c.l.b16 %v3331
        %v3627 = vunpack.c.l.b16 %v3332
        %v3628 = vunpack.c.l.b16 %v3333
        %v3629 = vunpack.c.l.b16 %v3334
        %v3630 = vunpack.c.l.b16 %v3335
        %v3631 = vunpack.c.l.b16 %v3336
        %v3632 = vunpack.c.l.b16 %v3337
        %v3633 = vunpack.c.l.b16 %v3338
        %v3634 = vunpack.c.l.b16 %v3339
        %v3635 = vunpack.c.l.b16 %v3340
        %v3636 = vunpack.c.l.b16 %v3341
        %v3637 = vunpack.c.l.b16 %v3342
        %v3638 = vunpack.c.l.b16 %v3343
        %v3639 = vunpack.c.l.b16 %v3344
        %v3640 = vunpack.c.l.b16 %v3345
        %v3641 = vunpack.c.l.b16 %v3346
        %v3642 = vunpack.c.l.b16 %v3347
        %v3643 = vunpack.c.l.b16 %v3348
        %v3644 = vunpack.c.l.b16 %v3349
        %v3645 = vunpack.c.l.b16 %v3350
        %v3646 = vunpack.c.l.b16 %v3351
        %v3647 = vunpack.c.l.b16 %v3352
        %v3648 = vunpack.c.l.b16 %v3353
        %v3649 = vunpack.c.l.b16 %v3354
        %v3650 = vunpack.c.l.b16 %v3355
        %v3651 = vunpack.c.l.b16 %v3356
        %v3652 = vunpack.c.l.b16 %v3357
        %v3653 = vunpack.c.l.b16 %v3358
        %v3654 = vunpack.c.l.b16 %v3359
        %v3655 = vunpack.c.l.b16 %v3360
        %v3656 = vunpack.c.l.b16 %v3361
        %v3657 = vunpack.c.l.b16 %v3362
        %v3658 = vunpack.c.l.b16 %v3363
        %v3659 = vunpack.c.l.b16 %v3364
        %v3660 = vunpack.c.l.b16 %v3365
        %v3661 = vunpack.c.l.b16 %v3366
        %v3662 = vunpack.c.l.b16 %v3367
        %v3663 = vpack.c.b16 %v3520, %v3519
        %v3664 = vpack.c.b16 %v3522, %v3521
        %v3665 = vpack.c.b16 %v3524, %v3523
        %v3666 = vpack.c.b16 %v3526, %v3525
        %v3667 = vpack.c.b16 %v3528, %v3527
        %v3668 = vpack.c.b16 %v3530, %v3529
        %v3669 = vpack.c.b16 %v3532, %v3531
        %v3670 = vpack.c.b16 %v3534, %v3533
        %v3671 = vpack.c.b16 %v3536, %v3535
        %v3672 = vpack.c.b16 %v3538, %v3537
        %v3673 = vpack.c.b16 %v3540, %v3539
        %v3674 = vpack.c.b16 %v3542, %v3541
        %v3675 = vpack.c.b16 %v3544, %v3543
        %v3676 = vpack.c.b16 %v3546, %v3545
        %v3677 = vpack.c.b16 %v3548, %v3547
        %v3678 = vpack.c.b16 %v3550, %v3549
        %v3679 = vpack.c.b16 %v3552, %v3551
        %v3680 = vpack.c.b16 %v3554, %v3553
        %v3681 = vpack.c.b16 %v3556, %v3555
        %v3682 = vpack.c.b16 %v3558, %v3557
        %v3683 = vpack.c.b16 %v3560, %v3559
        %v3684 = vpack.c.b16 %v3562, %v3561
        %v3685 = vpack.c.b16 %v3564, %v3563
        %v3686 = vpack.c.b16 %v3566, %v3565
        %v3687 = vpack.c.b16 %v3568, %v3567
        %v3688 = vpack.c.b16 %v3570, %v3569
        %v3689 = vpack.c.b16 %v3572, %v3571
        %v3690 = vpack.c.b16 %v3574, %v3573
        %v3691 = vpack.c.b16 %v3576, %v3575
        %v3692 = vpack.c.b16 %v3578, %v3577
        %v3693 = vpack.c.b16 %v3580, %v3579
        %v3694 = vpack.c.b16 %v3582, %v3581
        %v3695 = vpack.c.b16 %v3584, %v3583
        %v3696 = vpack.c.b16 %v3586, %v3585
        %v3697 = vpack.c.b16 %v3588, %v3587
        %v3698 = vpack.c.b16 %v3590, %v3589
        %v3699 = vpack.c.b16 %v3592, %v3591
        %v3700 = vpack.c.b16 %v3594, %v3593
        %v3701 = vpack.c.b16 %v3596, %v3595
        %v3702 = vpack.c.b16 %v3598, %v3597
        %v3703 = vpack.c.b16 %v3600, %v3599
        %v3704 = vpack.c.b16 %v3602, %v3601
        %v3705 = vpack.c.b16 %v3604, %v3603
        %v3706 = vpack.c.b16 %v3606, %v3605
        %v3707 = vpack.c.b16 %v3608, %v3607
        %v3708 = vpack.c.b16 %v3610, %v3609
        %v3709 = vpack.c.b16 %v3612, %v3611
        %v3710 = vpack.c.b16 %v3614, %v3613
        %v3711 = vpack.c.b16 %v3616, %v3615
        %v3712 = vpack.c.b16 %v3618, %v3617
        %v3713 = vpack.c.b16 %v3620, %v3619
        %v3714 = vpack.c.b16 %v3622, %v3621
        %v3715 = vpack.c.b16 %v3624, %v3623
        %v3716 = vpack.c.b16 %v3626, %v3625
        %v3717 = vpack.c.b16 %v3628, %v3627
        %v3718 = vpack.c.b16 %v3630, %v3629
        %v3719 = vpack.c.b16 %v3632, %v3631
        %v3720 = vpack.c.b16 %v3634, %v3633
        %v3721 = vpack.c.b16 %v3636, %v3635
        %v3722 = vpack.c.b16 %v3638, %v3637
        %v3723 = vpack.c.b16 %v3640, %v3639
        %v3724 = vpack.c.b16 %v3642, %v3641
        %v3725 = vpack.c.b16 %v3644, %v3643
        %v3726 = vpack.c.b16 %v3646, %v3645
        %v3727 = vpack.c.b16 %v3648, %v3647
        %v3728 = vpack.c.b16 %v3650, %v3649
        %v3729 = vpack.c.b16 %v3652, %v3651
        %v3730 = vpack.c.b16 %v3654, %v3653
        %v3731 = vpack.c.b16 %v3656, %v3655
        %v3732 = vpack.c.b16 %v3658, %v3657
        %v3733 = vpack.c.b16 %v3660, %v3659
        %v3734 = vpack.c.b16 %v3662, %v3661
        %3807 = vmatprep.subr.bf16.mxu0 0
        %3808 = vmatpush1.bf16.msra.mxu0 %v3663
        %3809 = vmatprep.subr.bf16.mxu0 0
        %3810 = vmatpush1.bf16.msra.mxu0 %v3664
        %3811 = vmatprep.subr.bf16.mxu0 0
        %3812 = vmatpush1.bf16.msra.mxu0 %v3665
        %3813 = vmatprep.subr.bf16.mxu0 0
        %3814 = vmatpush1.bf16.msra.mxu0 %v3666
        %3815 = vmatprep.subr.bf16.mxu0 0
        %3816 = vmatpush1.bf16.msra.mxu0 %v3667
        %3817 = vmatprep.subr.bf16.mxu0 0
        %3818 = vmatpush1.bf16.msra.mxu0 %v3668
        %3819 = vmatprep.subr.bf16.mxu0 0
        %3820 = vmatpush1.bf16.msra.mxu0 %v3669
        %3821 = vmatprep.subr.bf16.mxu0 0
        %3822 = vmatpush1.bf16.msra.mxu0 %v3670
        %3823 = vmatprep.subr.bf16.mxu0 0
        %3824 = vmatpush1.bf16.msra.mxu0 %v3671
        %3825 = vmatprep.subr.bf16.mxu0 0
        %3826 = vmatpush1.bf16.msra.mxu0 %v3672
        %3827 = vmatprep.subr.bf16.mxu0 0
        %3828 = vmatpush1.bf16.msra.mxu0 %v3673
        %3829 = vmatprep.subr.bf16.mxu0 0
        %3830 = vmatpush1.bf16.msra.mxu0 %v3674
        %3831 = vmatprep.subr.bf16.mxu0 0
        %3832 = vmatpush1.bf16.msra.mxu0 %v3675
        %3833 = vmatprep.subr.bf16.mxu0 0
        %3834 = vmatpush1.bf16.msra.mxu0 %v3676
        %3835 = vmatprep.subr.bf16.mxu0 0
        %3836 = vmatpush1.bf16.msra.mxu0 %v3677
        %3837 = vmatprep.subr.bf16.mxu0 0
        %3838 = vmatpush1.bf16.msra.mxu0 %v3678
        %3839 = vmatprep.mubr.bf16.mxu0 %v3081
        %3840 = vmatmul.mubr.bf16.gmra.mrb[0].mxu0 %v3080
        %v3841 = vpop.f32.mrb[0].mxu0
        %v3842 = vadd.f32 %v3373, %v3841
        %v3843 = vpop.f32.mrb[0].mxu0
        %v3844 = vpop.f32.mrb[0].mxu0
        %v3845 = vadd.f32 %v3373, %v3844
        %v3846 = vpop.f32.mrb[0].mxu0
        %3847 = vmatprep.mubr.bf16.mxu0 %v3090
        %3848 = vmatmul.mubr.bf16.gmra.mrb[0].mxu0 %v3089
        %v3849 = vpop.f32.mrb[0].mxu0
        %v3850 = vadd.f32 %v3373, %v3849
        %v3851 = vpop.f32.mrb[0].mxu0
        %v3852 = vpop.f32.mrb[0].mxu0
        %v3853 = vadd.f32 %v3373, %v3852
        %v3854 = vpop.f32.mrb[0].mxu0
        %3855 = vmatprep.mubr.bf16.mxu0 %v3099
        %3856 = vmatmul.mubr.bf16.gmra.mrb[0].mxu0 %v3098
        %v3857 = vpop.f32.mrb[0].mxu0
        %v3858 = vadd.f32 %v3373, %v3857
        %v3859 = vpop.f32.mrb[0].mxu0
        %v3860 = vpop.f32.mrb[0].mxu0
        %v3861 = vadd.f32 %v3373, %v3860
        %v3862 = vpop.f32.mrb[0].mxu0
        %3863 = vmatprep.mubr.bf16.mxu0 %v3108
        %3864 = vmatmul.mubr.bf16.gmra.mrb[0].mxu0 %v3107
        %v3865 = vpop.f32.mrb[0].mxu0
        %v3866 = vadd.f32 %v3373, %v3865
        %v3867 = vpop.f32.mrb[0].mxu0
        %v3868 = vpop.f32.mrb[0].mxu0
        %v3869 = vadd.f32 %v3373, %v3868
        %v3870 = vpop.f32.mrb[0].mxu0
        %3871 = vmatprep.mubr.bf16.mxu0 %v3117
        %3872 = vmatmul.mubr.bf16.gmra.mrb[0].mxu0 %v3116
        %v3873 = vpop.f32.mrb[0].mxu0
        %v3874 = vadd.f32 %v3373, %v3873
        %v3875 = vpop.f32.mrb[0].mxu0
        %v3876 = vpop.f32.mrb[0].mxu0
        %v3877 = vadd.f32 %v3373, %v3876
        %v3878 = vpop.f32.mrb[0].mxu0
        %3879 = vmatprep.mubr.bf16.mxu0 %v3126
        %3880 = vmatmul.mubr.bf16.gmra.mrb[0].mxu0 %v3125
        %v3881 = vpop.f32.mrb[0].mxu0
        %v3882 = vadd.f32 %v3373, %v3881
        %v3883 = vpop.f32.mrb[0].mxu0
        %v3884 = vpop.f32.mrb[0].mxu0
        %v3885 = vadd.f32 %v3373, %v3884
        %v3886 = vpop.f32.mrb[0].mxu0
        %3887 = vmatprep.mubr.bf16.mxu0 %v3135
        %3888 = vmatmul.mubr.bf16.gmra.mrb[0].mxu0 %v3134
        %v3889 = vpop.f32.mrb[0].mxu0
        %v3890 = vadd.f32 %v3373, %v3889
        %v3891 = vpop.f32.mrb[0].mxu0
        %v3892 = vpop.f32.mrb[0].mxu0
        %v3893 = vadd.f32 %v3373, %v3892
        %v3894 = vpop.f32.mrb[0].mxu0
        %3895 = vmatprep.mubr.bf16.mxu0 %v3144
        %3896 = vmatmul.mubr.bf16.gmra.mrb[0].mxu0 %v3143
        %v3897 = vpop.f32.mrb[0].mxu0
        %v3898 = vadd.f32 %v3373, %v3897
        %v3899 = vpop.f32.mrb[0].mxu0
        %v3900 = vpop.f32.mrb[0].mxu0
        %v3901 = vadd.f32 %v3373, %v3900
        %v3902 = vpop.f32.mrb[0].mxu0
        %3903 = vmatprep.mubr.bf16.mxu0 %v3153
        %3904 = vmatmul.mubr.bf16.gmra.mrb[0].mxu0 %v3152
        %v3905 = vpop.f32.mrb[0].mxu0
        %v3906 = vadd.f32 %v3373, %v3905
        %v3907 = vpop.f32.mrb[0].mxu0
        %v3908 = vpop.f32.mrb[0].mxu0
        %v3909 = vadd.f32 %v3373, %v3908
        %v3910 = vpop.f32.mrb[0].mxu0
        %3911 = vmatprep.mubr.bf16.mxu0 %v3162
        %3912 = vmatmul.mubr.bf16.gmra.mrb[0].mxu0 %v3161
        %v3913 = vpop.f32.mrb[0].mxu0
        %v3914 = vadd.f32 %v3373, %v3913
        %v3915 = vpop.f32.mrb[0].mxu0
        %v3916 = vpop.f32.mrb[0].mxu0
        %v3917 = vadd.f32 %v3373, %v3916
        %v3918 = vpop.f32.mrb[0].mxu0
        %3919 = vmatprep.mubr.bf16.mxu0 %v3171
        %3920 = vmatmul.mubr.bf16.gmra.mrb[0].mxu0 %v3170
        %v3921 = vpop.f32.mrb[0].mxu0
        %v3922 = vadd.f32 %v3373, %v3921
        %v3923 = vpop.f32.mrb[0].mxu0
        %v3924 = vpop.f32.mrb[0].mxu0
        %v3925 = vadd.f32 %v3373, %v3924
        %v3926 = vpop.f32.mrb[0].mxu0
        %3927 = vmatprep.mubr.bf16.mxu0 %v3180
        %3928 = vmatmul.mubr.bf16.gmra.mrb[0].mxu0 %v3179
        %v3929 = vpop.f32.mrb[0].mxu0
        %v3930 = vadd.f32 %v3373, %v3929
        %v3931 = vpop.f32.mrb[0].mxu0
        %v3932 = vpop.f32.mrb[0].mxu0
        %v3933 = vadd.f32 %v3373, %v3932
        %v3934 = vpop.f32.mrb[0].mxu0
        %3935 = vmatprep.mubr.bf16.mxu0 %v3189
        %3936 = vmatmul.mubr.bf16.gmra.mrb[0].mxu0 %v3188
        %v3937 = vpop.f32.mrb[0].mxu0
        %v3938 = vadd.f32 %v3373, %v3937
        %v3939 = vpop.f32.mrb[0].mxu0
        %v3940 = vpop.f32.mrb[0].mxu0
        %v3941 = vadd.f32 %v3373, %v3940
        %v3942 = vpop.f32.mrb[0].mxu0
        %3943 = vmatprep.mubr.bf16.mxu0 %v3198
        %3944 = vmatmul.mubr.bf16.gmra.mrb[0].mxu0 %v3197
        %v3945 = vpop.f32.mrb[0].mxu0
        %v3946 = vadd.f32 %v3373, %v3945
        %v3947 = vpop.f32.mrb[0].mxu0
        %v3948 = vpop.f32.mrb[0].mxu0
        %v3949 = vadd.f32 %v3373, %v3948
        %v3950 = vpop.f32.mrb[0].mxu0
        %3951 = vmatprep.mubr.bf16.mxu0 %v3207
        %3952 = vmatmul.mubr.bf16.gmra.mrb[0].mxu0 %v3206
        %v3953 = vpop.f32.mrb[0].mxu0
        %v3954 = vadd.f32 %v3373, %v3953
        %v3955 = vpop.f32.mrb[0].mxu0
        %v3956 = vpop.f32.mrb[0].mxu0
        %v3957 = vadd.f32 %v3373, %v3956
        %v3958 = vpop.f32.mrb[0].mxu0
        %3959 = vmatprep.mubr.bf16.mxu0 %v3216
        %3960 = vmatmul.mubr.bf16.gmra.mrb[0].mxu0 %v3215
        %v3961 = vpop.f32.mrb[0].mxu0
        %v3962 = vadd.f32 %v3373, %v3961
        %v3963 = vpop.f32.mrb[0].mxu0
        %v3964 = vpop.f32.mrb[0].mxu0
        %v3965 = vadd.f32 %v3373, %v3964
        %v3966 = vpop.f32.mrb[0].mxu0
        %3967 = vdwg.mxu0
        %3968 = vmatprep.subr.bf16.mxu0 0
        %3969 = vmatpush1.bf16.msra.mxu0 %v3679
        %3970 = vmatprep.subr.bf16.mxu0 0
        %3971 = vmatpush1.bf16.msra.mxu0 %v3680
        %3972 = vmatprep.subr.bf16.mxu0 0
        %3973 = vmatpush1.bf16.msra.mxu0 %v3681
        %3974 = vmatprep.subr.bf16.mxu0 0
        %3975 = vmatpush1.bf16.msra.mxu0 %v3682
        %3976 = vmatprep.subr.bf16.mxu0 0
        %3977 = vmatpush1.bf16.msra.mxu0 %v3683
        %3978 = vmatprep.subr.bf16.mxu0 0
        %3979 = vmatpush1.bf16.msra.mxu0 %v3684
        %3980 = vmatprep.subr.bf16.mxu0 0
        %3981 = vmatpush1.bf16.msra.mxu0 %v3685
        %3982 = vmatprep.subr.bf16.mxu0 0
        %3983 = vmatpush1.bf16.msra.mxu0 %v3686
        %3984 = vmatprep.subr.bf16.mxu0 0
        %3985 = vmatpush1.bf16.msra.mxu0 %v3687
        %3986 = vmatprep.subr.bf16.mxu0 0
        %3987 = vmatpush1.bf16.msra.mxu0 %v3688
        %3988 = vmatprep.subr.bf16.mxu0 0
        %3989 = vmatpush1.bf16.msra.mxu0 %v3689
        %3990 = vmatprep.subr.bf16.mxu0 0
        %3991 = vmatpush1.bf16.msra.mxu0 %v3690
        %3992 = vmatprep.subr.bf16.mxu0 0
        %3993 = vmatpush1.bf16.msra.mxu0 %v3691
        %3994 = vmatprep.subr.bf16.mxu0 0
        %3995 = vmatpush1.bf16.msra.mxu0 %v3692
        %3996 = vmatprep.subr.bf16.mxu0 0
        %3997 = vmatpush1.bf16.msra.mxu0 %v3693
        %3998 = vmatprep.subr.bf16.mxu0 0
        %3999 = vmatpush1.bf16.msra.mxu0 %v3694
        %4000 = vmatprep.mubr.bf16.mxu0 %v3083
        %4001 = vmatmul.mubr.bf16.gmra.mrb[0].mxu0 %v3082
        %v4002 = vpop.f32.mrb[0].mxu0
        %v4003 = vadd.f32 %v3842, %v4002
        %v4004 = vpop.f32.mrb[0].mxu0
        %v4005 = vpop.f32.mrb[0].mxu0
        %v4006 = vadd.f32 %v3845, %v4005
        %v4007 = vpop.f32.mrb[0].mxu0
        %4008 = vmatprep.mubr.bf16.mxu0 %v3092
        %4009 = vmatmul.mubr.bf16.gmra.mrb[0].mxu0 %v3091
        %v4010 = vpop.f32.mrb[0].mxu0
        %v4011 = vadd.f32 %v3850, %v4010
        %v4012 = vpop.f32.mrb[0].mxu0
        %v4013 = vpop.f32.mrb[0].mxu0
        %v4014 = vadd.f32 %v3853, %v4013
        %v4015 = vpop.f32.mrb[0].mxu0
        %4016 = vmatprep.mubr.bf16.mxu0 %v3101
        %4017 = vmatmul.mubr.bf16.gmra.mrb[0].mxu0 %v3100
        %v4018 = vpop.f32.mrb[0].mxu0
        %v4019 = vadd.f32 %v3858, %v4018
        %v4020 = vpop.f32.mrb[0].mxu0
        %v4021 = vpop.f32.mrb[0].mxu0
        %v4022 = vadd.f32 %v3861, %v4021
        %v4023 = vpop.f32.mrb[0].mxu0
        %4024 = vmatprep.mubr.bf16.mxu0 %v3110
        %4025 = vmatmul.mubr.bf16.gmra.mrb[0].mxu0 %v3109
        %v4026 = vpop.f32.mrb[0].mxu0
        %v4027 = vadd.f32 %v3866, %v4026
        %v4028 = vpop.f32.mrb[0].mxu0
        %v4029 = vpop.f32.mrb[0].mxu0
        %v4030 = vadd.f32 %v3869, %v4029
        %v4031 = vpop.f32.mrb[0].mxu0
        %4032 = vmatprep.mubr.bf16.mxu0 %v3119
        %4033 = vmatmul.mubr.bf16.gmra.mrb[0].mxu0 %v3118
        %v4034 = vpop.f32.mrb[0].mxu0
        %v4035 = vadd.f32 %v3874, %v4034
        %v4036 = vpop.f32.mrb[0].mxu0
        %v4037 = vpop.f32.mrb[0].mxu0
        %v4038 = vadd.f32 %v3877, %v4037
        %v4039 = vpop.f32.mrb[0].mxu0
        %4040 = vmatprep.mubr.bf16.mxu0 %v3128
        %4041 = vmatmul.mubr.bf16.gmra.mrb[0].mxu0 %v3127
        %v4042 = vpop.f32.mrb[0].mxu0
        %v4043 = vadd.f32 %v3882, %v4042
        %v4044 = vpop.f32.mrb[0].mxu0
        %v4045 = vpop.f32.mrb[0].mxu0
        %v4046 = vadd.f32 %v3885, %v4045
        %v4047 = vpop.f32.mrb[0].mxu0
        %4048 = vmatprep.mubr.bf16.mxu0 %v3137
        %4049 = vmatmul.mubr.bf16.gmra.mrb[0].mxu0 %v3136
        %v4050 = vpop.f32.mrb[0].mxu0
        %v4051 = vadd.f32 %v3890, %v4050
        %v4052 = vpop.f32.mrb[0].mxu0
        %v4053 = vpop.f32.mrb[0].mxu0
        %v4054 = vadd.f32 %v3893, %v4053
        %v4055 = vpop.f32.mrb[0].mxu0
        %4056 = vmatprep.mubr.bf16.mxu0 %v3146
        %4057 = vmatmul.mubr.bf16.gmra.mrb[0].mxu0 %v3145
        %v4058 = vpop.f32.mrb[0].mxu0
        %v4059 = vadd.f32 %v3898, %v4058
        %v4060 = vpop.f32.mrb[0].mxu0
        %v4061 = vpop.f32.mrb[0].mxu0
        %v4062 = vadd.f32 %v3901, %v4061
        %v4063 = vpop.f32.mrb[0].mxu0
        %4064 = vmatprep.mubr.bf16.mxu0 %v3155
        %4065 = vmatmul.mubr.bf16.gmra.mrb[0].mxu0 %v3154
        %v4066 = vpop.f32.mrb[0].mxu0
        %v4067 = vadd.f32 %v3906, %v4066
        %v4068 = vpop.f32.mrb[0].mxu0
        %v4069 = vpop.f32.mrb[0].mxu0
        %v4070 = vadd.f32 %v3909, %v4069
        %v4071 = vpop.f32.mrb[0].mxu0
        %4072 = vmatprep.mubr.bf16.mxu0 %v3164
        %4073 = vmatmul.mubr.bf16.gmra.mrb[0].mxu0 %v3163
        %v4074 = vpop.f32.mrb[0].mxu0
        %v4075 = vadd.f32 %v3914, %v4074
        %v4076 = vpop.f32.mrb[0].mxu0
        %v4077 = vpop.f32.mrb[0].mxu0
        %v4078 = vadd.f32 %v3917, %v4077
        %v4079 = vpop.f32.mrb[0].mxu0
        %4080 = vmatprep.mubr.bf16.mxu0 %v3173
        %4081 = vmatmul.mubr.bf16.gmra.mrb[0].mxu0 %v3172
        %v4082 = vpop.f32.mrb[0].mxu0
        %v4083 = vadd.f32 %v3922, %v4082
        %v4084 = vpop.f32.mrb[0].mxu0
        %v4085 = vpop.f32.mrb[0].mxu0
        %v4086 = vadd.f32 %v3925, %v4085
        %v4087 = vpop.f32.mrb[0].mxu0
        %4088 = vmatprep.mubr.bf16.mxu0 %v3182
        %4089 = vmatmul.mubr.bf16.gmra.mrb[0].mxu0 %v3181
        %v4090 = vpop.f32.mrb[0].mxu0
        %v4091 = vadd.f32 %v3930, %v4090
        %v4092 = vpop.f32.mrb[0].mxu0
        %v4093 = vpop.f32.mrb[0].mxu0
        %v4094 = vadd.f32 %v3933, %v4093
        %v4095 = vpop.f32.mrb[0].mxu0
        %4096 = vmatprep.mubr.bf16.mxu0 %v3191
        %4097 = vmatmul.mubr.bf16.gmra.mrb[0].mxu0 %v3190
        %v4098 = vpop.f32.mrb[0].mxu0
        %v4099 = vadd.f32 %v3938, %v4098
        %v4100 = vpop.f32.mrb[0].mxu0
        %v4101 = vpop.f32.mrb[0].mxu0
        %v4102 = vadd.f32 %v3941, %v4101
        %v4103 = vpop.f32.mrb[0].mxu0
        %4104 = vmatprep.mubr.bf16.mxu0 %v3200
        %4105 = vmatmul.mubr.bf16.gmra.mrb[0].mxu0 %v3199
        %v4106 = vpop.f32.mrb[0].mxu0
        %v4107 = vadd.f32 %v3946, %v4106
        %v4108 = vpop.f32.mrb[0].mxu0
        %v4109 = vpop.f32.mrb[0].mxu0
        %v4110 = vadd.f32 %v3949, %v4109
        %v4111 = vpop.f32.mrb[0].mxu0
        %4112 = vmatprep.mubr.bf16.mxu0 %v3209
        %4113 = vmatmul.mubr.bf16.gmra.mrb[0].mxu0 %v3208
        %v4114 = vpop.f32.mrb[0].mxu0
        %v4115 = vadd.f32 %v3954, %v4114
        %v4116 = vpop.f32.mrb[0].mxu0
        %v4117 = vpop.f32.mrb[0].mxu0
        %v4118 = vadd.f32 %v3957, %v4117
        %v4119 = vpop.f32.mrb[0].mxu0
        %4120 = vmatprep.mubr.bf16.mxu0 %v3218
        %4121 = vmatmul.mubr.bf16.gmra.mrb[0].mxu0 %v3217
        %v4122 = vpop.f32.mrb[0].mxu0
        %v4123 = vadd.f32 %v3962, %v4122
        %v4124 = vpop.f32.mrb[0].mxu0
        %v4125 = vpop.f32.mrb[0].mxu0
        %v4126 = vadd.f32 %v3965, %v4125
        %v4127 = vpop.f32.mrb[0].mxu0
        %4128 = vdwg.mxu0
        %4129 = vmatprep.subr.bf16.mxu0 0
        %4130 = vmatpush1.bf16.msra.mxu0 %v3695
        %4131 = vmatprep.subr.bf16.mxu0 0
        %4132 = vmatpush1.bf16.msra.mxu0 %v3696
        %4133 = vmatprep.subr.bf16.mxu0 0
        %4134 = vmatpush1.bf16.msra.mxu0 %v3697
        %4135 = vmatprep.subr.bf16.mxu0 0
        %4136 = vmatpush1.bf16.msra.mxu0 %v3698
        %4137 = vmatprep.subr.bf16.mxu0 0
        %4138 = vmatpush1.bf16.msra.mxu0 %v3699
        %4139 = vmatprep.subr.bf16.mxu0 0
        %4140 = vmatpush1.bf16.msra.mxu0 %v3700
        %4141 = vmatprep.subr.bf16.mxu0 0
        %4142 = vmatpush1.bf16.msra.mxu0 %v3701
        %4143 = vmatprep.subr.bf16.mxu0 0
        %4144 = vmatpush1.bf16.msra.mxu0 %v3702
        %4145 = vmatprep.subr.bf16.mxu0 0
        %4146 = vmatpush1.bf16.msra.mxu0 %v3703
        %4147 = vmatprep.subr.bf16.mxu0 0
        %4148 = vmatpush1.bf16.msra.mxu0 %v3704
        %4149 = vmatprep.subr.bf16.mxu0 0
        %4150 = vmatpush1.bf16.msra.mxu0 %v3705
        %4151 = vmatprep.subr.bf16.mxu0 0
        %4152 = vmatpush1.bf16.msra.mxu0 %v3706
        %4153 = vmatprep.subr.bf16.mxu0 0
        %4154 = vmatpush1.bf16.msra.mxu0 %v3707
        %4155 = vmatprep.subr.bf16.mxu0 0
        %4156 = vmatpush1.bf16.msra.mxu0 %v3708
        %4157 = vmatprep.subr.bf16.mxu0 0
        %4158 = vmatpush1.bf16.msra.mxu0 %v3709
        %4159 = vmatprep.subr.bf16.mxu0 0
        %4160 = vmatpush1.bf16.msra.mxu0 %v3710
        %4161 = vmatprep.mubr.bf16.mxu0 %v3085
        %4162 = vmatmul.mubr.bf16.gmra.mrb[0].mxu0 %v3084
        %v4163 = vpop.f32.mrb[0].mxu0
        %v4164 = vadd.f32 %v4003, %v4163
        %v4165 = vpop.f32.mrb[0].mxu0
        %v4166 = vpop.f32.mrb[0].mxu0
        %v4167 = vadd.f32 %v4006, %v4166
        %v4168 = vpop.f32.mrb[0].mxu0
        %4169 = vmatprep.mubr.bf16.mxu0 %v3094
        %4170 = vmatmul.mubr.bf16.gmra.mrb[0].mxu0 %v3093
        %v4171 = vpop.f32.mrb[0].mxu0
        %v4172 = vadd.f32 %v4011, %v4171
        %v4173 = vpop.f32.mrb[0].mxu0
        %v4174 = vpop.f32.mrb[0].mxu0
        %v4175 = vadd.f32 %v4014, %v4174
        %v4176 = vpop.f32.mrb[0].mxu0
        %4177 = vmatprep.mubr.bf16.mxu0 %v3103
        %4178 = vmatmul.mubr.bf16.gmra.mrb[0].mxu0 %v3102
        %v4179 = vpop.f32.mrb[0].mxu0
        %v4180 = vadd.f32 %v4019, %v4179
        %v4181 = vpop.f32.mrb[0].mxu0
        %v4182 = vpop.f32.mrb[0].mxu0
        %v4183 = vadd.f32 %v4022, %v4182
        %v4184 = vpop.f32.mrb[0].mxu0
        %4185 = vmatprep.mubr.bf16.mxu0 %v3112
        %4186 = vmatmul.mubr.bf16.gmra.mrb[0].mxu0 %v3111
        %v4187 = vpop.f32.mrb[0].mxu0
        %v4188 = vadd.f32 %v4027, %v4187
        %v4189 = vpop.f32.mrb[0].mxu0
        %v4190 = vpop.f32.mrb[0].mxu0
        %v4191 = vadd.f32 %v4030, %v4190
        %v4192 = vpop.f32.mrb[0].mxu0
        %4193 = vmatprep.mubr.bf16.mxu0 %v3121
        %4194 = vmatmul.mubr.bf16.gmra.mrb[0].mxu0 %v3120
        %v4195 = vpop.f32.mrb[0].mxu0
        %v4196 = vadd.f32 %v4035, %v4195
        %v4197 = vpop.f32.mrb[0].mxu0
        %v4198 = vpop.f32.mrb[0].mxu0
        %v4199 = vadd.f32 %v4038, %v4198
        %v4200 = vpop.f32.mrb[0].mxu0
        %4201 = vmatprep.mubr.bf16.mxu0 %v3130
        %4202 = vmatmul.mubr.bf16.gmra.mrb[0].mxu0 %v3129
        %v4203 = vpop.f32.mrb[0].mxu0
        %v4204 = vadd.f32 %v4043, %v4203
        %v4205 = vpop.f32.mrb[0].mxu0
        %v4206 = vpop.f32.mrb[0].mxu0
        %v4207 = vadd.f32 %v4046, %v4206
        %v4208 = vpop.f32.mrb[0].mxu0
        %4209 = vmatprep.mubr.bf16.mxu0 %v3139
        %4210 = vmatmul.mubr.bf16.gmra.mrb[0].mxu0 %v3138
        %v4211 = vpop.f32.mrb[0].mxu0
        %v4212 = vadd.f32 %v4051, %v4211
        %v4213 = vpop.f32.mrb[0].mxu0
        %v4214 = vpop.f32.mrb[0].mxu0
        %v4215 = vadd.f32 %v4054, %v4214
        %v4216 = vpop.f32.mrb[0].mxu0
        %4217 = vmatprep.mubr.bf16.mxu0 %v3148
        %4218 = vmatmul.mubr.bf16.gmra.mrb[0].mxu0 %v3147
        %v4219 = vpop.f32.mrb[0].mxu0
        %v4220 = vadd.f32 %v4059, %v4219
        %v4221 = vpop.f32.mrb[0].mxu0
        %v4222 = vpop.f32.mrb[0].mxu0
        %v4223 = vadd.f32 %v4062, %v4222
        %v4224 = vpop.f32.mrb[0].mxu0
        %4225 = vmatprep.mubr.bf16.mxu0 %v3157
        %4226 = vmatmul.mubr.bf16.gmra.mrb[0].mxu0 %v3156
        %v4227 = vpop.f32.mrb[0].mxu0
        %v4228 = vadd.f32 %v4067, %v4227
        %v4229 = vpop.f32.mrb[0].mxu0
        %v4230 = vpop.f32.mrb[0].mxu0
        %v4231 = vadd.f32 %v4070, %v4230
        %v4232 = vpop.f32.mrb[0].mxu0
        %4233 = vmatprep.mubr.bf16.mxu0 %v3166
        %4234 = vmatmul.mubr.bf16.gmra.mrb[0].mxu0 %v3165
        %v4235 = vpop.f32.mrb[0].mxu0
        %v4236 = vadd.f32 %v4075, %v4235
        %v4237 = vpop.f32.mrb[0].mxu0
        %v4238 = vpop.f32.mrb[0].mxu0
        %v4239 = vadd.f32 %v4078, %v4238
        %v4240 = vpop.f32.mrb[0].mxu0
        %4241 = vmatprep.mubr.bf16.mxu0 %v3175
        %4242 = vmatmul.mubr.bf16.gmra.mrb[0].mxu0 %v3174
        %v4243 = vpop.f32.mrb[0].mxu0
        %v4244 = vadd.f32 %v4083, %v4243
        %v4245 = vpop.f32.mrb[0].mxu0
        %v4246 = vpop.f32.mrb[0].mxu0
        %v4247 = vadd.f32 %v4086, %v4246
        %v4248 = vpop.f32.mrb[0].mxu0
        %4249 = vmatprep.mubr.bf16.mxu0 %v3184
        %4250 = vmatmul.mubr.bf16.gmra.mrb[0].mxu0 %v3183
        %v4251 = vpop.f32.mrb[0].mxu0
        %v4252 = vadd.f32 %v4091, %v4251
        %v4253 = vpop.f32.mrb[0].mxu0
        %v4254 = vpop.f32.mrb[0].mxu0
        %v4255 = vadd.f32 %v4094, %v4254
        %v4256 = vpop.f32.mrb[0].mxu0
        %4257 = vmatprep.mubr.bf16.mxu0 %v3193
        %4258 = vmatmul.mubr.bf16.gmra.mrb[0].mxu0 %v3192
        %v4259 = vpop.f32.mrb[0].mxu0
        %v4260 = vadd.f32 %v4099, %v4259
        %v4261 = vpop.f32.mrb[0].mxu0
        %v4262 = vpop.f32.mrb[0].mxu0
        %v4263 = vadd.f32 %v4102, %v4262
        %v4264 = vpop.f32.mrb[0].mxu0
        %4265 = vmatprep.mubr.bf16.mxu0 %v3202
        %4266 = vmatmul.mubr.bf16.gmra.mrb[0].mxu0 %v3201
        %v4267 = vpop.f32.mrb[0].mxu0
        %v4268 = vadd.f32 %v4107, %v4267
        %v4269 = vpop.f32.mrb[0].mxu0
        %v4270 = vpop.f32.mrb[0].mxu0
        %v4271 = vadd.f32 %v4110, %v4270
        %v4272 = vpop.f32.mrb[0].mxu0
        %4273 = vmatprep.mubr.bf16.mxu0 %v3211
        %4274 = vmatmul.mubr.bf16.gmra.mrb[0].mxu0 %v3210
        %v4275 = vpop.f32.mrb[0].mxu0
        %v4276 = vadd.f32 %v4115, %v4275
        %v4277 = vpop.f32.mrb[0].mxu0
        %v4278 = vpop.f32.mrb[0].mxu0
        %v4279 = vadd.f32 %v4118, %v4278
        %v4280 = vpop.f32.mrb[0].mxu0
        %4281 = vmatprep.mubr.bf16.mxu0 %v3220
        %4282 = vmatmul.mubr.bf16.gmra.mrb[0].mxu0 %v3219
        %v4283 = vpop.f32.mrb[0].mxu0
        %v4284 = vadd.f32 %v4123, %v4283
        %v4285 = vpop.f32.mrb[0].mxu0
        %v4286 = vpop.f32.mrb[0].mxu0
        %v4287 = vadd.f32 %v4126, %v4286
        %v4288 = vpop.f32.mrb[0].mxu0
        %4289 = vdwg.mxu0
        %4290 = vmatprep.subr.bf16.mxu0 0
        %4291 = vmatpush1.bf16.msra.mxu0 %v3711
        %4292 = vmatprep.subr.bf16.mxu0 0
        %4293 = vmatpush1.bf16.msra.mxu0 %v3712
        %4294 = vmatprep.subr.bf16.mxu0 0
        %4295 = vmatpush1.bf16.msra.mxu0 %v3713
        %4296 = vmatprep.subr.bf16.mxu0 0
        %4297 = vmatpush1.bf16.msra.mxu0 %v3714
        %4298 = vmatprep.subr.bf16.mxu0 0
        %4299 = vmatpush1.bf16.msra.mxu0 %v3715
        %4300 = vmatprep.subr.bf16.mxu0 0
        %4301 = vmatpush1.bf16.msra.mxu0 %v3716
        %4302 = vmatprep.subr.bf16.mxu0 0
        %4303 = vmatpush1.bf16.msra.mxu0 %v3717
        %4304 = vmatprep.subr.bf16.mxu0 0
        %4305 = vmatpush1.bf16.msra.mxu0 %v3718
        %4306 = vmatprep.subr.bf16.mxu0 0
        %4307 = vmatpush1.bf16.msra.mxu0 %v3719
        %4308 = vmatprep.subr.bf16.mxu0 0
        %4309 = vmatpush1.bf16.msra.mxu0 %v3720
        %4310 = vmatprep.subr.bf16.mxu0 0
        %4311 = vmatpush1.bf16.msra.mxu0 %v3721
        %4312 = vmatprep.subr.bf16.mxu0 0
        %4313 = vmatpush1.bf16.msra.mxu0 %v3722
        %4314 = vmatprep.subr.bf16.mxu0 0
        %4315 = vmatpush1.bf16.msra.mxu0 %v3723
        %4316 = vmatprep.subr.bf16.mxu0 0
        %4317 = vmatpush1.bf16.msra.mxu0 %v3724
        %4318 = vmatprep.subr.bf16.mxu0 0
        %4319 = vmatpush1.bf16.msra.mxu0 %v3725
        %4320 = vmatprep.subr.bf16.mxu0 0
        %4321 = vmatpush1.bf16.msra.mxu0 %v3726
        %4322 = vmatprep.mubr.bf16.mxu0 %v3087
        %4323 = vmatmul.mubr.bf16.gmra.mrb[0].mxu0 %v3086
        %v4324 = vpop.f32.mrb[0].mxu0
        %v4325 = vadd.f32 %v4164, %v4324
        %v4326 = vpop.f32.mrb[0].mxu0
        %v4327 = vpop.f32.mrb[0].mxu0
        %v4328 = vadd.f32 %v4167, %v4327
        %v4329 = vpop.f32.mrb[0].mxu0
        %4330 = vmatprep.mubr.bf16.mxu0 %v3096
        %4331 = vmatmul.mubr.bf16.gmra.mrb[0].mxu0 %v3095
        %v4332 = vpop.f32.mrb[0].mxu0
        %v4333 = vadd.f32 %v4172, %v4332
        %v4334 = vpop.f32.mrb[0].mxu0
        %v4335 = vpop.f32.mrb[0].mxu0
        %v4336 = vadd.f32 %v4175, %v4335
        %v4337 = vpop.f32.mrb[0].mxu0
        %4338 = vmatprep.mubr.bf16.mxu0 %v3105
        %4339 = vmatmul.mubr.bf16.gmra.mrb[0].mxu0 %v3104
        %v4340 = vpop.f32.mrb[0].mxu0
        %v4341 = vadd.f32 %v4180, %v4340
        %v4342 = vpop.f32.mrb[0].mxu0
        %v4343 = vpop.f32.mrb[0].mxu0
        %v4344 = vadd.f32 %v4183, %v4343
        %v4345 = vpop.f32.mrb[0].mxu0
        %4346 = vmatprep.mubr.bf16.mxu0 %v3114
        %4347 = vmatmul.mubr.bf16.gmra.mrb[0].mxu0 %v3113
        %v4348 = vpop.f32.mrb[0].mxu0
        %v4349 = vadd.f32 %v4188, %v4348
        %v4350 = vpop.f32.mrb[0].mxu0
        %v4351 = vpop.f32.mrb[0].mxu0
        %v4352 = vadd.f32 %v4191, %v4351
        %v4353 = vpop.f32.mrb[0].mxu0
        %4354 = vmatprep.mubr.bf16.mxu0 %v3123
        %4355 = vmatmul.mubr.bf16.gmra.mrb[0].mxu0 %v3122
        %v4356 = vpop.f32.mrb[0].mxu0
        %v4357 = vadd.f32 %v4196, %v4356
        %v4358 = vpop.f32.mrb[0].mxu0
        %v4359 = vpop.f32.mrb[0].mxu0
        %v4360 = vadd.f32 %v4199, %v4359
        %v4361 = vpop.f32.mrb[0].mxu0
        %4362 = vmatprep.mubr.bf16.mxu0 %v3132
        %4363 = vmatmul.mubr.bf16.gmra.mrb[0].mxu0 %v3131
        %v4364 = vpop.f32.mrb[0].mxu0
        %v4365 = vadd.f32 %v4204, %v4364
        %v4366 = vpop.f32.mrb[0].mxu0
        %v4367 = vpop.f32.mrb[0].mxu0
        %v4368 = vadd.f32 %v4207, %v4367
        %v4369 = vpop.f32.mrb[0].mxu0
        %4370 = vmatprep.mubr.bf16.mxu0 %v3141
        %4371 = vmatmul.mubr.bf16.gmra.mrb[0].mxu0 %v3140
        %v4372 = vpop.f32.mrb[0].mxu0
        %v4373 = vadd.f32 %v4212, %v4372
        %v4374 = vpop.f32.mrb[0].mxu0
        %v4375 = vpop.f32.mrb[0].mxu0
        %v4376 = vadd.f32 %v4215, %v4375
        %v4377 = vpop.f32.mrb[0].mxu0
        %4378 = vmatprep.mubr.bf16.mxu0 %v3150
        %4379 = vmatmul.mubr.bf16.gmra.mrb[0].mxu0 %v3149
        %v4380 = vpop.f32.mrb[0].mxu0
        %v4381 = vadd.f32 %v4220, %v4380
        %v4382 = vpop.f32.mrb[0].mxu0
        %v4383 = vpop.f32.mrb[0].mxu0
        %v4384 = vadd.f32 %v4223, %v4383
        %v4385 = vpop.f32.mrb[0].mxu0
        %4386 = vmatprep.mubr.bf16.mxu0 %v3159
        %4387 = vmatmul.mubr.bf16.gmra.mrb[0].mxu0 %v3158
        %v4388 = vpop.f32.mrb[0].mxu0
        %v4389 = vadd.f32 %v4228, %v4388
        %v4390 = vpop.f32.mrb[0].mxu0
        %v4391 = vpop.f32.mrb[0].mxu0
        %v4392 = vadd.f32 %v4231, %v4391
        %v4393 = vpop.f32.mrb[0].mxu0
        %4394 = vmatprep.mubr.bf16.mxu0 %v3168
        %4395 = vmatmul.mubr.bf16.gmra.mrb[0].mxu0 %v3167
        %v4396 = vpop.f32.mrb[0].mxu0
        %v4397 = vadd.f32 %v4236, %v4396
        %v4398 = vpop.f32.mrb[0].mxu0
        %v4399 = vpop.f32.mrb[0].mxu0
        %v4400 = vadd.f32 %v4239, %v4399
        %v4401 = vpop.f32.mrb[0].mxu0
        %4402 = vmatprep.mubr.bf16.mxu0 %v3177
        %4403 = vmatmul.mubr.bf16.gmra.mrb[0].mxu0 %v3176
        %v4404 = vpop.f32.mrb[0].mxu0
        %v4405 = vadd.f32 %v4244, %v4404
        %v4406 = vpop.f32.mrb[0].mxu0
        %v4407 = vpop.f32.mrb[0].mxu0
        %v4408 = vadd.f32 %v4247, %v4407
        %v4409 = vpop.f32.mrb[0].mxu0
        %4410 = vmatprep.mubr.bf16.mxu0 %v3186
        %4411 = vmatmul.mubr.bf16.gmra.mrb[0].mxu0 %v3185
        %v4412 = vpop.f32.mrb[0].mxu0
        %v4413 = vadd.f32 %v4252, %v4412
        %v4414 = vpop.f32.mrb[0].mxu0
        %v4415 = vpop.f32.mrb[0].mxu0
        %v4416 = vadd.f32 %v4255, %v4415
        %v4417 = vpop.f32.mrb[0].mxu0
        %4418 = vmatprep.mubr.bf16.mxu0 %v3195
        %4419 = vmatmul.mubr.bf16.gmra.mrb[0].mxu0 %v3194
        %v4420 = vpop.f32.mrb[0].mxu0
        %v4421 = vadd.f32 %v4260, %v4420
        %v4422 = vpop.f32.mrb[0].mxu0
        %v4423 = vpop.f32.mrb[0].mxu0
        %v4424 = vadd.f32 %v4263, %v4423
        %v4425 = vpop.f32.mrb[0].mxu0
        %4426 = vmatprep.mubr.bf16.mxu0 %v3204
        %4427 = vmatmul.mubr.bf16.gmra.mrb[0].mxu0 %v3203
        %v4428 = vpop.f32.mrb[0].mxu0
        %v4429 = vadd.f32 %v4268, %v4428
        %v4430 = vpop.f32.mrb[0].mxu0
        %v4431 = vpop.f32.mrb[0].mxu0
        %v4432 = vadd.f32 %v4271, %v4431
        %v4433 = vpop.f32.mrb[0].mxu0
        %4434 = vmatprep.mubr.bf16.mxu0 %v3213
        %4435 = vmatmul.mubr.bf16.gmra.mrb[0].mxu0 %v3212
        %v4436 = vpop.f32.mrb[0].mxu0
        %v4437 = vadd.f32 %v4276, %v4436
        %v4438 = vpop.f32.mrb[0].mxu0
        %v4439 = vpop.f32.mrb[0].mxu0
        %v4440 = vadd.f32 %v4279, %v4439
        %v4441 = vpop.f32.mrb[0].mxu0
        %4442 = vmatprep.mubr.bf16.mxu0 %v3222
        %4443 = vmatmul.mubr.bf16.gmra.mrb[0].mxu0 %v3221
        %v4444 = vpop.f32.mrb[0].mxu0
        %v4445 = vadd.f32 %v4284, %v4444
        %v4446 = vpop.f32.mrb[0].mxu0
        %v4447 = vpop.f32.mrb[0].mxu0
        %v4448 = vadd.f32 %v4287, %v4447
        %v4449 = vpop.f32.mrb[0].mxu0
        %4450 = vdwg.mxu0
        %4451 = vmatprep.subr.bf16.mxu0 0
        %4452 = vmatpush1.bf16.msra.mxu0 %v3727
        %4453 = vmatprep.subr.bf16.mxu0 0
        %4454 = vmatpush1.bf16.msra.mxu0 %v3728
        %4455 = vmatprep.subr.bf16.mxu0 0
        %4456 = vmatpush1.bf16.msra.mxu0 %v3729
        %4457 = vmatprep.subr.bf16.mxu0 0
        %4458 = vmatpush1.bf16.msra.mxu0 %v3730
        %4459 = vmatprep.subr.bf16.mxu0 0
        %4460 = vmatpush1.bf16.msra.mxu0 %v3731
        %4461 = vmatprep.subr.bf16.mxu0 0
        %4462 = vmatpush1.bf16.msra.mxu0 %v3732
        %4463 = vmatprep.subr.bf16.mxu0 0
        %4464 = vmatpush1.bf16.msra.mxu0 %v3733
        %4465 = vmatprep.subr.bf16.mxu0 0
        %4466 = vmatpush1.bf16.msra.mxu0 %v3734
        %4467 = vmatprep.subr.bf16.mxu0 0
        %4468 = vmatpush1.bf16.msra.mxu0 0
        %4469 = vmatprep.subr.bf16.mxu0 0
        %4470 = vmatpush1.bf16.msra.mxu0 0
        %4471 = vmatprep.subr.bf16.mxu0 0
        %4472 = vmatpush1.bf16.msra.mxu0 0
        %4473 = vmatprep.subr.bf16.mxu0 0
        %4474 = vmatpush1.bf16.msra.mxu0 0
        %4475 = vmatprep.subr.bf16.mxu0 0
        %4476 = vmatpush1.bf16.msra.mxu0 0
        %4477 = vmatprep.subr.bf16.mxu0 0
        %4478 = vmatpush1.bf16.msra.mxu0 0
        %4479 = vmatprep.subr.bf16.mxu0 0
        %4480 = vmatpush1.bf16.msra.mxu0 0
        %4481 = vmatprep.subr.bf16.mxu0 0
        %4482 = vmatpush1.bf16.msra.mxu0 0
        %4483 = vmatprep.mubr.bf16.mxu0 0
        %4484 = vmatmul.mubr.bf16.gmra.mrb[0].mxu0 %v3088
        %v4485 = vpop.f32.mrb[0].mxu0
        %v4486 = vadd.f32 %v4325, %v4485
        %v4487 = vpop.f32.mrb[0].mxu0
        %v4488 = vpop.f32.mrb[0].mxu0
        %v4489 = vadd.f32 %v4328, %v4488
        %v4490 = vpop.f32.mrb[0].mxu0
        %4491 = vmatprep.mubr.bf16.mxu0 0
        %4492 = vmatmul.mubr.bf16.gmra.mrb[0].mxu0 %v3097
        %v4493 = vpop.f32.mrb[0].mxu0
        %v4494 = vadd.f32 %v4333, %v4493
        %v4495 = vpop.f32.mrb[0].mxu0
        %v4496 = vpop.f32.mrb[0].mxu0
        %v4497 = vadd.f32 %v4336, %v4496
        %v4498 = vpop.f32.mrb[0].mxu0
        %4499 = vmatprep.mubr.bf16.mxu0 0
        %4500 = vmatmul.mubr.bf16.gmra.mrb[0].mxu0 %v3106
        %v4501 = vpop.f32.mrb[0].mxu0
        %v4502 = vadd.f32 %v4341, %v4501
        %v4503 = vpop.f32.mrb[0].mxu0
        %v4504 = vpop.f32.mrb[0].mxu0
        %v4505 = vadd.f32 %v4344, %v4504
        %v4506 = vpop.f32.mrb[0].mxu0
        %4507 = vmatprep.mubr.bf16.mxu0 0
        %4508 = vmatmul.mubr.bf16.gmra.mrb[0].mxu0 %v3115
        %v4509 = vpop.f32.mrb[0].mxu0
        %v4510 = vadd.f32 %v4349, %v4509
        %v4511 = vpop.f32.mrb[0].mxu0
        %v4512 = vpop.f32.mrb[0].mxu0
        %v4513 = vadd.f32 %v4352, %v4512
        %v4514 = vpop.f32.mrb[0].mxu0
        %4515 = vmatprep.mubr.bf16.mxu0 0
        %4516 = vmatmul.mubr.bf16.gmra.mrb[0].mxu0 %v3124
        %v4517 = vpop.f32.mrb[0].mxu0
        %v4518 = vadd.f32 %v4357, %v4517
        %v4519 = vpop.f32.mrb[0].mxu0
        %v4520 = vpop.f32.mrb[0].mxu0
        %v4521 = vadd.f32 %v4360, %v4520
        %v4522 = vpop.f32.mrb[0].mxu0
        %4523 = vmatprep.mubr.bf16.mxu0 0
        %4524 = vmatmul.mubr.bf16.gmra.mrb[0].mxu0 %v3133
        %v4525 = vpop.f32.mrb[0].mxu0
        %v4526 = vadd.f32 %v4365, %v4525
        %v4527 = vpop.f32.mrb[0].mxu0
        %v4528 = vpop.f32.mrb[0].mxu0
        %v4529 = vadd.f32 %v4368, %v4528
        %v4530 = vpop.f32.mrb[0].mxu0
        %4531 = vmatprep.mubr.bf16.mxu0 0
        %4532 = vmatmul.mubr.bf16.gmra.mrb[0].mxu0 %v3142
        %v4533 = vpop.f32.mrb[0].mxu0
        %v4534 = vadd.f32 %v4373, %v4533
        %v4535 = vpop.f32.mrb[0].mxu0
        %v4536 = vpop.f32.mrb[0].mxu0
        %v4537 = vadd.f32 %v4376, %v4536
        %v4538 = vpop.f32.mrb[0].mxu0
        %4539 = vmatprep.mubr.bf16.mxu0 0
        %4540 = vmatmul.mubr.bf16.gmra.mrb[0].mxu0 %v3151
        %v4541 = vpop.f32.mrb[0].mxu0
        %v4542 = vadd.f32 %v4381, %v4541
        %v4543 = vpop.f32.mrb[0].mxu0
        %v4544 = vpop.f32.mrb[0].mxu0
        %v4545 = vadd.f32 %v4384, %v4544
        %v4546 = vpop.f32.mrb[0].mxu0
        %4547 = vmatprep.mubr.bf16.mxu0 0
        %4548 = vmatmul.mubr.bf16.gmra.mrb[0].mxu0 %v3160
        %v4549 = vpop.f32.mrb[0].mxu0
        %v4550 = vadd.f32 %v4389, %v4549
        %v4551 = vpop.f32.mrb[0].mxu0
        %v4552 = vpop.f32.mrb[0].mxu0
        %v4553 = vadd.f32 %v4392, %v4552
        %v4554 = vpop.f32.mrb[0].mxu0
        %4555 = vmatprep.mubr.bf16.mxu0 0
        %4556 = vmatmul.mubr.bf16.gmra.mrb[0].mxu0 %v3169
        %v4557 = vpop.f32.mrb[0].mxu0
        %v4558 = vadd.f32 %v4397, %v4557
        %v4559 = vpop.f32.mrb[0].mxu0
        %v4560 = vpop.f32.mrb[0].mxu0
        %v4561 = vadd.f32 %v4400, %v4560
        %v4562 = vpop.f32.mrb[0].mxu0
        %4563 = vmatprep.mubr.bf16.mxu0 0
        %4564 = vmatmul.mubr.bf16.gmra.mrb[0].mxu0 %v3178
        %v4565 = vpop.f32.mrb[0].mxu0
        %v4566 = vadd.f32 %v4405, %v4565
        %v4567 = vpop.f32.mrb[0].mxu0
        %v4568 = vpop.f32.mrb[0].mxu0
        %v4569 = vadd.f32 %v4408, %v4568
        %v4570 = vpop.f32.mrb[0].mxu0
        %4571 = vmatprep.mubr.bf16.mxu0 0
        %4572 = vmatmul.mubr.bf16.gmra.mrb[0].mxu0 %v3187
        %v4573 = vpop.f32.mrb[0].mxu0
        %v4574 = vadd.f32 %v4413, %v4573
        %v4575 = vpop.f32.mrb[0].mxu0
        %v4576 = vpop.f32.mrb[0].mxu0
        %v4577 = vadd.f32 %v4416, %v4576
        %v4578 = vpop.f32.mrb[0].mxu0
        %4579 = vmatprep.mubr.bf16.mxu0 0
        %4580 = vmatmul.mubr.bf16.gmra.mrb[0].mxu0 %v3196
        %v4581 = vpop.f32.mrb[0].mxu0
        %v4582 = vadd.f32 %v4421, %v4581
        %v4583 = vpop.f32.mrb[0].mxu0
        %v4584 = vpop.f32.mrb[0].mxu0
        %v4585 = vadd.f32 %v4424, %v4584
        %v4586 = vpop.f32.mrb[0].mxu0
        %4587 = vmatprep.mubr.bf16.mxu0 0
        %4588 = vmatmul.mubr.bf16.gmra.mrb[0].mxu0 %v3205
        %v4589 = vpop.f32.mrb[0].mxu0
        %v4590 = vadd.f32 %v4429, %v4589
        %v4591 = vpop.f32.mrb[0].mxu0
        %v4592 = vpop.f32.mrb[0].mxu0
        %v4593 = vadd.f32 %v4432, %v4592
        %v4594 = vpop.f32.mrb[0].mxu0
        %4595 = vmatprep.mubr.bf16.mxu0 0
        %4596 = vmatmul.mubr.bf16.gmra.mrb[0].mxu0 %v3214
        %v4597 = vpop.f32.mrb[0].mxu0
        %v4598 = vadd.f32 %v4437, %v4597
        %v4599 = vpop.f32.mrb[0].mxu0
        %v4600 = vpop.f32.mrb[0].mxu0
        %v4601 = vadd.f32 %v4440, %v4600
        %v4602 = vpop.f32.mrb[0].mxu0
        %4603 = vmatprep.mubr.bf16.mxu0 0
        %4604 = vmatmul.mubr.bf16.gmra.mrb[0].mxu0 %v3223
        %v4605 = vpop.f32.mrb[0].mxu0
        %v4606 = vadd.f32 %v4445, %v4605
        %v4607 = vpop.f32.mrb[0].mxu0
        %v4608 = vpop.f32.mrb[0].mxu0
        %v4609 = vadd.f32 %v4448, %v4608
        %v4610 = vpop.f32.mrb[0].mxu0
        %4611 = vdwg.mxu0
        %v4612 = vmax.f32 %v4486, 0.0
        %v4613 = vmax.f32 %v4489, 0.0
        %v4614 = vmax.f32 %v4494, 0.0
        %v4615 = vmax.f32 %v4497, 0.0
        %v4616 = vmax.f32 %v4502, 0.0
        %v4617 = vmax.f32 %v4505, 0.0
        %v4618 = vmax.f32 %v4510, 0.0
        %v4619 = vmax.f32 %v4513, 0.0
        %v4620 = vmax.f32 %v4518, 0.0
        %v4621 = vmax.f32 %v4521, 0.0
        %v4622 = vmax.f32 %v4526, 0.0
        %v4623 = vmax.f32 %v4529, 0.0
        %v4624 = vmax.f32 %v4534, 0.0
        %v4625 = vmax.f32 %v4537, 0.0
        %v4626 = vmax.f32 %v4542, 0.0
        %v4627 = vmax.f32 %v4545, 0.0
        %v4628 = vmax.f32 %v4550, 0.0
        %v4629 = vmax.f32 %v4553, 0.0
        %v4630 = vmax.f32 %v4558, 0.0
        %v4631 = vmax.f32 %v4561, 0.0
        %v4632 = vmax.f32 %v4566, 0.0
        %v4633 = vmax.f32 %v4569, 0.0
        %v4634 = vmax.f32 %v4574, 0.0
        %v4635 = vmax.f32 %v4577, 0.0
        %v4636 = vmax.f32 %v4582, 0.0
        %v4637 = vmax.f32 %v4585, 0.0
        %v4638 = vmax.f32 %v4590, 0.0
        %v4639 = vmax.f32 %v4593, 0.0
        %v4640 = vmax.f32 %v4598, 0.0
        %v4641 = vmax.f32 %v4601, 0.0
        %v4642 = vmax.f32 %v4606, 0.0
        %v4643 = vmax.f32 %v4609, 0.0
        %4644 = vst [vmem:[#allocation2] sm:$0xf] 0
        %4645 = vst [vmem:[#allocation2 + $0x4] sm:$0xf] 0
        %4646 = vst [vmem:[#allocation2 + $0x8] sm:$0x1] 0
        %4647 = vst [vmem:[#allocation2 + $0xc] sm:$0xf] 0
        %4648 = vst [vmem:[#allocation2 + $0x10] sm:$0xf] 0
        %4649 = vst [vmem:[#allocation2 + $0x14] sm:$0x1] 0
        %4650 = vst [vmem:[#allocation2 + $0x18] sm:$0xf] 0
        %4651 = vst [vmem:[#allocation2 + $0x1c] sm:$0xf] 0
        %4652 = vst [vmem:[#allocation2 + $0x20] sm:$0x1] 0
        %4653 = vst [vmem:[#allocation2 + $0x24] sm:$0xf] 0
        %4654 = vst [vmem:[#allocation2 + $0x28] sm:$0xf] 0
        %4655 = vst [vmem:[#allocation2 + $0x2c] sm:$0x1] 0
        %4656 = vst [vmem:[#allocation2 + $0x30] sm:$0xf] 0
        %4657 = vst [vmem:[#allocation2 + $0x34] sm:$0xf] 0
        %4658 = vst [vmem:[#allocation2 + $0x38] sm:$0x1] 0
        %4659 = vst [vmem:[#allocation2 + $0x3c] sm:$0xf] 0
        %4660 = vst [vmem:[#allocation2 + $0x40] sm:$0xf] 0
        %4661 = vst [vmem:[#allocation2 + $0x44] sm:$0x1] 0
        %4662 = vst [vmem:[#allocation2 + $0x48] sm:$0xf] 0
        %4663 = vst [vmem:[#allocation2 + $0x4c] sm:$0xf] 0
        %4664 = vst [vmem:[#allocation2 + $0x50] sm:$0x1] 0
        %4665 = vst [vmem:[#allocation2 + $0x54] sm:$0xf] 0
        %4666 = vst [vmem:[#allocation2 + $0x58] sm:$0xf] 0
        %4667 = vst [vmem:[#allocation2 + $0x5c] sm:$0x1] 0
        %4668 = vst [vmem:[#allocation2 + $0x60] sm:$0xf] 0
        %4669 = vst [vmem:[#allocation2 + $0x64] sm:$0xf] 0
        %4670 = vst [vmem:[#allocation2 + $0x68] sm:$0x1] 0
        %4671 = vst [vmem:[#allocation2 + $0x6c] sm:$0xf] 0
        %4672 = vst [vmem:[#allocation2 + $0x70] sm:$0xf] 0
        %4673 = vst [vmem:[#allocation2 + $0x74] sm:$0x1] 0
        %4674 = vst [vmem:[#allocation2 + $0x78] sm:$0xf] 0
        %4675 = vst [vmem:[#allocation2 + $0x7c] sm:$0xf] 0
        %4676 = vst [vmem:[#allocation2 + $0x80] sm:$0x1] 0
        %4677 = vst [vmem:[#allocation2 + $0x84] sm:$0xf] 0
        %4678 = vst [vmem:[#allocation2 + $0x88] sm:$0xf] 0
        %4679 = vst [vmem:[#allocation2 + $0x8c] sm:$0x1] 0
        %4680 = vst [vmem:[#allocation2 + $0x90] sm:$0xf] 0
        %4681 = vst [vmem:[#allocation2 + $0x94] sm:$0xf] 0
        %4682 = vst [vmem:[#allocation2 + $0x98] sm:$0x1] 0
        %4683 = vst [vmem:[#allocation2 + $0x9c] sm:$0xf] 0
        %4684 = vst [vmem:[#allocation2 + $0xa0] sm:$0xf] 0
        %4685 = vst [vmem:[#allocation2 + $0xa4] sm:$0x1] 0
        %4686 = vst [vmem:[#allocation2 + $0xa8] sm:$0xf] 0
        %4687 = vst [vmem:[#allocation2 + $0xac] sm:$0xf] 0
        %4688 = vst [vmem:[#allocation2 + $0xb0] sm:$0x1] 0
        %4689 = vst [vmem:[#allocation2 + $0xb4] sm:$0xf] 0
        %4690 = vst [vmem:[#allocation2 + $0xb8] sm:$0xf] 0
        %4691 = vst [vmem:[#allocation2 + $0xbc] sm:$0x1] 0
        %4692 = vst [vmem:[#allocation2 + $0xc0] sm:$0xf] 0
        %4693 = vst [vmem:[#allocation2 + $0xc4] sm:$0xf] 0
        %4694 = vst [vmem:[#allocation2 + $0xc8] sm:$0x1] 0
        %4695 = vst [vmem:[#allocation2 + $0xcc] sm:$0xf] 0
        %4696 = vst [vmem:[#allocation2 + $0xd0] sm:$0xf] 0
        %4697 = vst [vmem:[#allocation2 + $0xd4] sm:$0x1] 0
        %v4698 = vpack.c.bf16 %v4613, %v4612
        %v4699 = vpack.c.bf16 %v4615, %v4614
        %v4700 = vpack.c.bf16 %v4617, %v4616
        %v4701 = vpack.c.bf16 %v4619, %v4618
        %v4702 = vpack.c.bf16 %v4621, %v4620
        %v4703 = vpack.c.bf16 %v4623, %v4622
        %v4704 = vpack.c.bf16 %v4625, %v4624
        %v4705 = vpack.c.bf16 %v4627, %v4626
        %v4706 = vpack.c.bf16 %v4629, %v4628
        %v4707 = vpack.c.bf16 %v4631, %v4630
        %v4708 = vpack.c.bf16 %v4633, %v4632
        %v4709 = vpack.c.bf16 %v4635, %v4634
        %v4710 = vpack.c.bf16 %v4637, %v4636
        %v4711 = vpack.c.bf16 %v4639, %v4638
        %v4712 = vpack.c.bf16 %v4641, %v4640
        %v4713 = vpack.c.bf16 %v4643, %v4642
        %v4730 = vunpack.c.l.b16 %v4698
        %v4731 = vunpack.c.h.b16 %v4698
        %v4732 = vunpack.c.l.b16 %v4699
        %v4733 = vunpack.c.h.b16 %v4699
        %v4734 = vunpack.c.l.b16 %v4700
        %v4735 = vunpack.c.h.b16 %v4700
        %v4736 = vunpack.c.l.b16 %v4701
        %v4737 = vunpack.c.h.b16 %v4701
        %v4738 = vunpack.c.l.b16 %v4702
        %v4739 = vunpack.c.h.b16 %v4702
        %v4740 = vunpack.c.l.b16 %v4703
        %v4741 = vunpack.c.h.b16 %v4703
        %v4742 = vunpack.c.l.b16 %v4704
        %v4743 = vunpack.c.h.b16 %v4704
        %v4744 = vunpack.c.l.b16 %v4705
        %v4745 = vunpack.c.h.b16 %v4705
        %v4746 = vunpack.c.l.b16 %v4706
        %v4747 = vunpack.c.h.b16 %v4706
        %v4748 = vunpack.c.l.b16 %v4707
        %v4749 = vunpack.c.h.b16 %v4707
        %v4750 = vunpack.c.l.b16 %v4708
        %v4751 = vunpack.c.h.b16 %v4708
        %v4752 = vunpack.c.l.b16 %v4709
        %v4753 = vunpack.c.h.b16 %v4709
        %v4754 = vunpack.c.l.b16 %v4710
        %v4755 = vunpack.c.h.b16 %v4710
        %v4756 = vunpack.c.l.b16 %v4711
        %v4757 = vunpack.c.h.b16 %v4711
        %v4758 = vunpack.c.l.b16 %v4712
        %v4759 = vunpack.c.h.b16 %v4712
        %v4760 = vunpack.c.l.b16 %v4713
        %v4761 = vunpack.c.h.b16 %v4713
        %v4762 = vpack.c.b16 %v4730, %v4730
        %v4763 = vpack.c.b16 %v4731, %v4731
        %v4764 = vpack.c.b16 %v4732, %v4732
        %v4765 = vpack.c.b16 %v4733, %v4733
        %v4766 = vpack.c.b16 %v4734, %v4734
        %v4767 = vpack.c.b16 %v4735, %v4735
        %v4768 = vpack.c.b16 %v4736, %v4736
        %v4769 = vpack.c.b16 %v4737, %v4737
        %v4770 = vpack.c.b16 %v4738, %v4738
        %v4771 = vpack.c.b16 %v4739, %v4739
        %v4772 = vpack.c.b16 %v4740, %v4740
        %v4773 = vpack.c.b16 %v4741, %v4741
        %v4774 = vpack.c.b16 %v4742, %v4742
        %v4775 = vpack.c.b16 %v4743, %v4743
        %v4776 = vpack.c.b16 %v4744, %v4744
        %v4777 = vpack.c.b16 %v4745, %v4745
        %v4778 = vpack.c.b16 %v4746, %v4746
        %v4779 = vpack.c.b16 %v4747, %v4747
        %v4780 = vpack.c.b16 %v4748, %v4748
        %v4781 = vpack.c.b16 %v4749, %v4749
        %v4782 = vpack.c.b16 %v4750, %v4750
        %v4783 = vpack.c.b16 %v4751, %v4751
        %v4784 = vpack.c.b16 %v4752, %v4752
        %v4785 = vpack.c.b16 %v4753, %v4753
        %v4786 = vpack.c.b16 %v4754, %v4754
        %v4787 = vpack.c.b16 %v4755, %v4755
        %v4788 = vpack.c.b16 %v4756, %v4756
        %v4789 = vpack.c.b16 %v4757, %v4757
        %v4790 = vpack.c.b16 %v4758, %v4758
        %v4791 = vpack.c.b16 %v4759, %v4759
        %v4792 = vpack.c.b16 %v4760, %v4760
        %v4793 = vpack.c.b16 %v4761, %v4761
        %vm4794 = vsmask.f32 256
        %vm4795 = vsmask.f32 4368
        %vm4796 = vmor %vm4794, %vm4795
        %v4798 = vshrl.u32 %v4762, 16
        %v4800 = vrot.slane %v4798, 7
        %v4801 = vshll.u32 %v4762, 16
        %v4803 = vor.u32 %v4800, %v4801
        %v4804 = vrot.slane %v4800, 4
        %v4806 = vshrl.u32 %v4763, 16
        %v4808 = vrot.slane %v4806, 7
        %v4809 = vshll.u32 %v4763, 16
        %v4811 = vor.u32 %v4808, %v4809
        %v4812 = vsel %vm4796, %v4804, %v4811
        %v4813 = vrot.slane %v4808, 4
        %v4815 = vshrl.u32 %v4764, 16
        %v4817 = vrot.slane %v4815, 7
        %v4818 = vshll.u32 %v4764, 16
        %v4820 = vor.u32 %v4817, %v4818
        %v4821 = vrot.slane %v4817, 4
        %v4823 = vshrl.u32 %v4765, 16
        %v4825 = vrot.slane %v4823, 7
        %v4826 = vshll.u32 %v4765, 16
        %v4828 = vor.u32 %v4825, %v4826
        %v4829 = vsel %vm4796, %v4821, %v4828
        %v4830 = vrot.slane %v4825, 4
        %v4832 = vshrl.u32 %v4766, 16
        %v4834 = vrot.slane %v4832, 7
        %v4835 = vshll.u32 %v4766, 16
        %v4837 = vor.u32 %v4834, %v4835
        %v4838 = vrot.slane %v4834, 4
        %v4840 = vshrl.u32 %v4767, 16
        %v4842 = vrot.slane %v4840, 7
        %v4843 = vshll.u32 %v4767, 16
        %v4845 = vor.u32 %v4842, %v4843
        %v4846 = vsel %vm4796, %v4838, %v4845
        %v4847 = vrot.slane %v4842, 4
        %v4849 = vshrl.u32 %v4768, 16
        %v4851 = vrot.slane %v4849, 7
        %v4852 = vshll.u32 %v4768, 16
        %v4854 = vor.u32 %v4851, %v4852
        %v4855 = vrot.slane %v4851, 4
        %v4857 = vshrl.u32 %v4769, 16
        %v4859 = vrot.slane %v4857, 7
        %v4860 = vshll.u32 %v4769, 16
        %v4862 = vor.u32 %v4859, %v4860
        %v4863 = vsel %vm4796, %v4855, %v4862
        %v4864 = vrot.slane %v4859, 4
        %v4866 = vshrl.u32 %v4770, 16
        %v4868 = vrot.slane %v4866, 7
        %v4869 = vshll.u32 %v4770, 16
        %v4871 = vor.u32 %v4868, %v4869
        %v4872 = vrot.slane %v4868, 4
        %v4874 = vshrl.u32 %v4771, 16
        %v4876 = vrot.slane %v4874, 7
        %v4877 = vshll.u32 %v4771, 16
        %v4879 = vor.u32 %v4876, %v4877
        %v4880 = vsel %vm4796, %v4872, %v4879
        %v4881 = vrot.slane %v4876, 4
        %v4883 = vshrl.u32 %v4772, 16
        %v4885 = vrot.slane %v4883, 7
        %v4886 = vshll.u32 %v4772, 16
        %v4888 = vor.u32 %v4885, %v4886
        %v4889 = vrot.slane %v4885, 4
        %v4891 = vshrl.u32 %v4773, 16
        %v4893 = vrot.slane %v4891, 7
        %v4894 = vshll.u32 %v4773, 16
        %v4896 = vor.u32 %v4893, %v4894
        %v4897 = vsel %vm4796, %v4889, %v4896
        %v4898 = vrot.slane %v4893, 4
        %v4900 = vshrl.u32 %v4774, 16
        %v4902 = vrot.slane %v4900, 7
        %v4903 = vshll.u32 %v4774, 16
        %v4905 = vor.u32 %v4902, %v4903
        %v4906 = vrot.slane %v4902, 4
        %v4908 = vshrl.u32 %v4775, 16
        %v4910 = vrot.slane %v4908, 7
        %v4911 = vshll.u32 %v4775, 16
        %v4913 = vor.u32 %v4910, %v4911
        %v4914 = vsel %vm4796, %v4906, %v4913
        %v4915 = vrot.slane %v4910, 4
        %v4917 = vshrl.u32 %v4776, 16
        %v4919 = vrot.slane %v4917, 7
        %v4920 = vshll.u32 %v4776, 16
        %v4922 = vor.u32 %v4919, %v4920
        %v4923 = vrot.slane %v4919, 4
        %v4925 = vshrl.u32 %v4777, 16
        %v4927 = vrot.slane %v4925, 7
        %v4928 = vshll.u32 %v4777, 16
        %v4930 = vor.u32 %v4927, %v4928
        %v4931 = vsel %vm4796, %v4923, %v4930
        %v4932 = vrot.slane %v4927, 4
        %v4934 = vshrl.u32 %v4778, 16
        %v4936 = vrot.slane %v4934, 7
        %v4937 = vshll.u32 %v4778, 16
        %v4939 = vor.u32 %v4936, %v4937
        %v4940 = vrot.slane %v4936, 4
        %v4942 = vshrl.u32 %v4779, 16
        %v4944 = vrot.slane %v4942, 7
        %v4945 = vshll.u32 %v4779, 16
        %v4947 = vor.u32 %v4944, %v4945
        %v4948 = vsel %vm4796, %v4940, %v4947
        %v4949 = vrot.slane %v4944, 4
        %v4951 = vshrl.u32 %v4780, 16
        %v4953 = vrot.slane %v4951, 7
        %v4954 = vshll.u32 %v4780, 16
        %v4956 = vor.u32 %v4953, %v4954
        %v4957 = vrot.slane %v4953, 4
        %v4959 = vshrl.u32 %v4781, 16
        %v4961 = vrot.slane %v4959, 7
        %v4962 = vshll.u32 %v4781, 16
        %v4964 = vor.u32 %v4961, %v4962
        %v4965 = vsel %vm4796, %v4957, %v4964
        %v4966 = vrot.slane %v4961, 4
        %v4968 = vshrl.u32 %v4782, 16
        %v4970 = vrot.slane %v4968, 7
        %v4971 = vshll.u32 %v4782, 16
        %v4973 = vor.u32 %v4970, %v4971
        %v4974 = vrot.slane %v4970, 4
        %v4976 = vshrl.u32 %v4783, 16
        %v4978 = vrot.slane %v4976, 7
        %v4979 = vshll.u32 %v4783, 16
        %v4981 = vor.u32 %v4978, %v4979
        %v4982 = vsel %vm4796, %v4974, %v4981
        %v4983 = vrot.slane %v4978, 4
        %v4985 = vshrl.u32 %v4784, 16
        %v4987 = vrot.slane %v4985, 7
        %v4988 = vshll.u32 %v4784, 16
        %v4990 = vor.u32 %v4987, %v4988
        %v4991 = vrot.slane %v4987, 4
        %v4993 = vshrl.u32 %v4785, 16
        %v4995 = vrot.slane %v4993, 7
        %v4996 = vshll.u32 %v4785, 16
        %v4998 = vor.u32 %v4995, %v4996
        %v4999 = vsel %vm4796, %v4991, %v4998
        %v5000 = vrot.slane %v4995, 4
        %v5002 = vshrl.u32 %v4786, 16
        %v5004 = vrot.slane %v5002, 7
        %v5005 = vshll.u32 %v4786, 16
        %v5007 = vor.u32 %v5004, %v5005
        %v5008 = vrot.slane %v5004, 4
        %v5010 = vshrl.u32 %v4787, 16
        %v5012 = vrot.slane %v5010, 7
        %v5013 = vshll.u32 %v4787, 16
        %v5015 = vor.u32 %v5012, %v5013
        %v5016 = vsel %vm4796, %v5008, %v5015
        %v5017 = vrot.slane %v5012, 4
        %v5019 = vshrl.u32 %v4788, 16
        %v5021 = vrot.slane %v5019, 7
        %v5022 = vshll.u32 %v4788, 16
        %v5024 = vor.u32 %v5021, %v5022
        %v5025 = vrot.slane %v5021, 4
        %v5027 = vshrl.u32 %v4789, 16
        %v5029 = vrot.slane %v5027, 7
        %v5030 = vshll.u32 %v4789, 16
        %v5032 = vor.u32 %v5029, %v5030
        %v5033 = vsel %vm4796, %v5025, %v5032
        %v5034 = vrot.slane %v5029, 4
        %v5036 = vshrl.u32 %v4790, 16
        %v5038 = vrot.slane %v5036, 7
        %v5039 = vshll.u32 %v4790, 16
        %v5041 = vor.u32 %v5038, %v5039
        %v5042 = vrot.slane %v5038, 4
        %v5044 = vshrl.u32 %v4791, 16
        %v5046 = vrot.slane %v5044, 7
        %v5047 = vshll.u32 %v4791, 16
        %v5049 = vor.u32 %v5046, %v5047
        %v5050 = vsel %vm4796, %v5042, %v5049
        %v5051 = vrot.slane %v5046, 4
        %v5053 = vshrl.u32 %v4792, 16
        %v5055 = vrot.slane %v5053, 7
        %v5056 = vshll.u32 %v4792, 16
        %v5058 = vor.u32 %v5055, %v5056
        %v5059 = vrot.slane %v5055, 4
        %v5061 = vshrl.u32 %v4793, 16
        %v5063 = vrot.slane %v5061, 7
        %v5064 = vshll.u32 %v4793, 16
        %v5066 = vor.u32 %v5063, %v5064
        %v5067 = vsel %vm4796, %v5059, %v5066
        %v5068 = vrot.slane %v5063, 4
        %s5117 = scalar_lea.vmem [#allocation2], 12
        %vm5118 = vcmask 1043456
        %vm5119 = vsmask.f32 7938
        %vm5120 = vmand %vm5118, %vm5119
        %v5121 = vld [vmem:[%s5117] sm:$0xf]
        %v5122 = vsel %vm5120, %v4803, %v5121
        %5123 = vst [vmem:[%s5117] sm:$0xf] %v5122
        %5124 = vst [vmem:[%s5117 + $0x4] sm:$0xf] %v4812
        %vm5125 = vcmask 1040384
        %vm5126 = vmand %vm5125, %vm4794
        %v5127 = vld [vmem:[%s5117 + $0x8] sm:$0x1]
        %v5128 = vsel %vm5126, %v4813, %v5127
        %5129 = vst [vmem:[%s5117 + $0x8] sm:$0x1] %v5128
        %v5130 = vld [vmem:[%s5117 + $0xc] sm:$0xf]
        %v5131 = vsel %vm5120, %v4820, %v5130
        %5132 = vst [vmem:[%s5117 + $0xc] sm:$0xf] %v5131
        %5133 = vst [vmem:[%s5117 + $0x10] sm:$0xf] %v4829
        %v5134 = vld [vmem:[%s5117 + $0x14] sm:$0x1]
        %v5135 = vsel %vm5126, %v4830, %v5134
        %5136 = vst [vmem:[%s5117 + $0x14] sm:$0x1] %v5135
        %v5137 = vld [vmem:[%s5117 + $0x18] sm:$0xf]
        %v5138 = vsel %vm5120, %v4837, %v5137
        %5139 = vst [vmem:[%s5117 + $0x18] sm:$0xf] %v5138
        %5140 = vst [vmem:[%s5117 + $0x1c] sm:$0xf] %v4846
        %v5141 = vld [vmem:[%s5117 + $0x20] sm:$0x1]
        %v5142 = vsel %vm5126, %v4847, %v5141
        %5143 = vst [vmem:[%s5117 + $0x20] sm:$0x1] %v5142
        %v5144 = vld [vmem:[%s5117 + $0x24] sm:$0xf]
        %v5145 = vsel %vm5120, %v4854, %v5144
        %5146 = vst [vmem:[%s5117 + $0x24] sm:$0xf] %v5145
        %5147 = vst [vmem:[%s5117 + $0x28] sm:$0xf] %v4863
        %v5148 = vld [vmem:[%s5117 + $0x2c] sm:$0x1]
        %v5149 = vsel %vm5126, %v4864, %v5148
        %5150 = vst [vmem:[%s5117 + $0x2c] sm:$0x1] %v5149
        %v5151 = vld [vmem:[%s5117 + $0x30] sm:$0xf]
        %v5152 = vsel %vm5120, %v4871, %v5151
        %5153 = vst [vmem:[%s5117 + $0x30] sm:$0xf] %v5152
        %5154 = vst [vmem:[%s5117 + $0x34] sm:$0xf] %v4880
        %v5155 = vld [vmem:[%s5117 + $0x38] sm:$0x1]
        %v5156 = vsel %vm5126, %v4881, %v5155
        %5157 = vst [vmem:[%s5117 + $0x38] sm:$0x1] %v5156
        %v5158 = vld [vmem:[%s5117 + $0x3c] sm:$0xf]
        %v5159 = vsel %vm5120, %v4888, %v5158
        %5160 = vst [vmem:[%s5117 + $0x3c] sm:$0xf] %v5159
        %5161 = vst [vmem:[%s5117 + $0x40] sm:$0xf] %v4897
        %v5162 = vld [vmem:[%s5117 + $0x44] sm:$0x1]
        %v5163 = vsel %vm5126, %v4898, %v5162
        %5164 = vst [vmem:[%s5117 + $0x44] sm:$0x1] %v5163
        %v5165 = vld [vmem:[%s5117 + $0x48] sm:$0xf]
        %v5166 = vsel %vm5120, %v4905, %v5165
        %5167 = vst [vmem:[%s5117 + $0x48] sm:$0xf] %v5166
        %5168 = vst [vmem:[%s5117 + $0x4c] sm:$0xf] %v4914
        %v5169 = vld [vmem:[%s5117 + $0x50] sm:$0x1]
        %v5170 = vsel %vm5126, %v4915, %v5169
        %5171 = vst [vmem:[%s5117 + $0x50] sm:$0x1] %v5170
        %v5172 = vld [vmem:[%s5117 + $0x54] sm:$0xf]
        %v5173 = vsel %vm5120, %v4922, %v5172
        %5174 = vst [vmem:[%s5117 + $0x54] sm:$0xf] %v5173
        %5175 = vst [vmem:[%s5117 + $0x58] sm:$0xf] %v4931
        %v5176 = vld [vmem:[%s5117 + $0x5c] sm:$0x1]
        %v5177 = vsel %vm5126, %v4932, %v5176
        %5178 = vst [vmem:[%s5117 + $0x5c] sm:$0x1] %v5177
        %v5179 = vld [vmem:[%s5117 + $0x60] sm:$0xf]
        %v5180 = vsel %vm5120, %v4939, %v5179
        %5181 = vst [vmem:[%s5117 + $0x60] sm:$0xf] %v5180
        %5182 = vst [vmem:[%s5117 + $0x64] sm:$0xf] %v4948
        %v5183 = vld [vmem:[%s5117 + $0x68] sm:$0x1]
        %v5184 = vsel %vm5126, %v4949, %v5183
        %5185 = vst [vmem:[%s5117 + $0x68] sm:$0x1] %v5184
        %v5186 = vld [vmem:[%s5117 + $0x6c] sm:$0xf]
        %v5187 = vsel %vm5120, %v4956, %v5186
        %5188 = vst [vmem:[%s5117 + $0x6c] sm:$0xf] %v5187
        %5189 = vst [vmem:[%s5117 + $0x70] sm:$0xf] %v4965
        %v5190 = vld [vmem:[%s5117 + $0x74] sm:$0x1]
        %v5191 = vsel %vm5126, %v4966, %v5190
        %5192 = vst [vmem:[%s5117 + $0x74] sm:$0x1] %v5191
        %v5193 = vld [vmem:[%s5117 + $0x78] sm:$0xf]
        %v5194 = vsel %vm5120, %v4973, %v5193
        %5195 = vst [vmem:[%s5117 + $0x78] sm:$0xf] %v5194
        %5196 = vst [vmem:[%s5117 + $0x7c] sm:$0xf] %v4982
        %v5197 = vld [vmem:[%s5117 + $0x80] sm:$0x1]
        %v5198 = vsel %vm5126, %v4983, %v5197
        %5199 = vst [vmem:[%s5117 + $0x80] sm:$0x1] %v5198
        %v5200 = vld [vmem:[%s5117 + $0x84] sm:$0xf]
        %v5201 = vsel %vm5120, %v4990, %v5200
        %5202 = vst [vmem:[%s5117 + $0x84] sm:$0xf] %v5201
        %5203 = vst [vmem:[%s5117 + $0x88] sm:$0xf] %v4999
        %v5204 = vld [vmem:[%s5117 + $0x8c] sm:$0x1]
        %v5205 = vsel %vm5126, %v5000, %v5204
        %5206 = vst [vmem:[%s5117 + $0x8c] sm:$0x1] %v5205
        %v5207 = vld [vmem:[%s5117 + $0x90] sm:$0xf]
        %v5208 = vsel %vm5120, %v5007, %v5207
        %5209 = vst [vmem:[%s5117 + $0x90] sm:$0xf] %v5208
        %5210 = vst [vmem:[%s5117 + $0x94] sm:$0xf] %v5016
        %v5211 = vld [vmem:[%s5117 + $0x98] sm:$0x1]
        %v5212 = vsel %vm5126, %v5017, %v5211
        %5213 = vst [vmem:[%s5117 + $0x98] sm:$0x1] %v5212
        %v5214 = vld [vmem:[%s5117 + $0x9c] sm:$0xf]
        %v5215 = vsel %vm5120, %v5024, %v5214
        %5216 = vst [vmem:[%s5117 + $0x9c] sm:$0xf] %v5215
        %5217 = vst [vmem:[%s5117 + $0xa0] sm:$0xf] %v5033
        %v5218 = vld [vmem:[%s5117 + $0xa4] sm:$0x1]
        %v5219 = vsel %vm5126, %v5034, %v5218
        %5220 = vst [vmem:[%s5117 + $0xa4] sm:$0x1] %v5219
        %v5221 = vld [vmem:[%s5117 + $0xa8] sm:$0xf]
        %v5222 = vsel %vm5120, %v5041, %v5221
        %5223 = vst [vmem:[%s5117 + $0xa8] sm:$0xf] %v5222
        %5224 = vst [vmem:[%s5117 + $0xac] sm:$0xf] %v5050
        %v5225 = vld [vmem:[%s5117 + $0xb0] sm:$0x1]
        %v5226 = vsel %vm5126, %v5051, %v5225
        %5227 = vst [vmem:[%s5117 + $0xb0] sm:$0x1] %v5226
        %v5228 = vld [vmem:[%s5117 + $0xb4] sm:$0xf]
        %v5229 = vsel %vm5120, %v5058, %v5228
        %5230 = vst [vmem:[%s5117 + $0xb4] sm:$0xf] %v5229
        %5231 = vst [vmem:[%s5117 + $0xb8] sm:$0xf] %v5067
        %v5232 = vld [vmem:[%s5117 + $0xbc] sm:$0x1]
        %v5233 = vsel %vm5126, %v5068, %v5232
        %5234 = vst [vmem:[%s5117 + $0xbc] sm:$0x1] %v5233
        %v5235 = vld [vmem:[#allocation2] sm:$0xf]
        %v5236 = vld [vmem:[#allocation2 + $0x4] sm:$0xf]
        %v5237 = vld [vmem:[#allocation2 + $0xc] sm:$0xf]
        %v5238 = vld [vmem:[#allocation2 + $0x10] sm:$0xf]
        %v5239 = vld [vmem:[#allocation2 + $0x18] sm:$0xf]
        %v5240 = vld [vmem:[#allocation2 + $0x1c] sm:$0xf]
        %v5241 = vld [vmem:[#allocation2 + $0x24] sm:$0xf]
        %v5242 = vld [vmem:[#allocation2 + $0x28] sm:$0xf]
        %v5243 = vld [vmem:[#allocation2 + $0x30] sm:$0xf]
        %v5244 = vld [vmem:[#allocation2 + $0x34] sm:$0xf]
        %v5245 = vld [vmem:[#allocation2 + $0x3c] sm:$0xf]
        %v5246 = vld [vmem:[#allocation2 + $0x40] sm:$0xf]
        %v5247 = vld [vmem:[#allocation2 + $0x48] sm:$0xf]
        %v5248 = vld [vmem:[#allocation2 + $0x4c] sm:$0xf]
        %v5249 = vld [vmem:[#allocation2 + $0x54] sm:$0xf]
        %v5250 = vld [vmem:[#allocation2 + $0x58] sm:$0xf]
        %v5251 = vld [vmem:[#allocation2 + $0x60] sm:$0xf]
        %v5252 = vld [vmem:[#allocation2 + $0x64] sm:$0xf]
        %v5253 = vld [vmem:[#allocation2 + $0x6c] sm:$0xf]
        %v5254 = vld [vmem:[#allocation2 + $0x70] sm:$0xf]
        %v5255 = vld [vmem:[#allocation2 + $0x78] sm:$0xf]
        %v5256 = vld [vmem:[#allocation2 + $0x7c] sm:$0xf]
        %v5257 = vld [vmem:[#allocation2 + $0x84] sm:$0xf]
        %v5258 = vld [vmem:[#allocation2 + $0x88] sm:$0xf]
        %v5259 = vld [vmem:[#allocation2 + $0x90] sm:$0xf]
        %v5260 = vld [vmem:[#allocation2 + $0x94] sm:$0xf]
        %v5261 = vld [vmem:[#allocation2 + $0x9c] sm:$0xf]
        %v5262 = vld [vmem:[#allocation2 + $0xa0] sm:$0xf]
        %v5263 = vld [vmem:[#allocation2 + $0xa8] sm:$0xf]
        %v5264 = vld [vmem:[#allocation2 + $0xac] sm:$0xf]
        %v5265 = vld [vmem:[#allocation2 + $0xb4] sm:$0xf]
        %v5266 = vld [vmem:[#allocation2 + $0xb8] sm:$0xf]
        %v5299 = vunpack.c.l.b16 %v5235
        %v5300 = vunpack.c.l.b16 %v5236
        %v5301 = vunpack.c.l.b16 %v5237
        %v5302 = vunpack.c.l.b16 %v5238
        %v5303 = vunpack.c.l.b16 %v5239
        %v5304 = vunpack.c.l.b16 %v5240
        %v5305 = vunpack.c.l.b16 %v5241
        %v5306 = vunpack.c.l.b16 %v5242
        %v5307 = vunpack.c.l.b16 %v5243
        %v5308 = vunpack.c.l.b16 %v5244
        %v5309 = vunpack.c.l.b16 %v5245
        %v5310 = vunpack.c.l.b16 %v5246
        %v5311 = vunpack.c.l.b16 %v5247
        %v5312 = vunpack.c.l.b16 %v5248
        %v5313 = vunpack.c.l.b16 %v5249
        %v5314 = vunpack.c.l.b16 %v5250
        %v5315 = vunpack.c.l.b16 %v5251
        %v5316 = vunpack.c.l.b16 %v5252
        %v5317 = vunpack.c.l.b16 %v5253
        %v5318 = vunpack.c.l.b16 %v5254
        %v5319 = vunpack.c.l.b16 %v5255
        %v5320 = vunpack.c.l.b16 %v5256
        %v5321 = vunpack.c.l.b16 %v5257
        %v5322 = vunpack.c.l.b16 %v5258
        %v5323 = vunpack.c.l.b16 %v5259
        %v5324 = vunpack.c.l.b16 %v5260
        %v5325 = vunpack.c.l.b16 %v5261
        %v5326 = vunpack.c.l.b16 %v5262
        %v5327 = vunpack.c.l.b16 %v5263
        %v5328 = vunpack.c.l.b16 %v5264
        %v5329 = vunpack.c.l.b16 %v5265
        %v5330 = vunpack.c.l.b16 %v5266
        %v5331 = vpack.c.b16 %v5300, %v5299
        %v5332 = vpack.c.b16 %v5302, %v5301
        %v5333 = vpack.c.b16 %v5304, %v5303
        %v5334 = vpack.c.b16 %v5306, %v5305
        %v5335 = vpack.c.b16 %v5308, %v5307
        %v5336 = vpack.c.b16 %v5310, %v5309
        %v5337 = vpack.c.b16 %v5312, %v5311
        %v5338 = vpack.c.b16 %v5314, %v5313
        %v5339 = vpack.c.b16 %v5316, %v5315
        %v5340 = vpack.c.b16 %v5318, %v5317
        %v5341 = vpack.c.b16 %v5320, %v5319
        %v5342 = vpack.c.b16 %v5322, %v5321
        %v5343 = vpack.c.b16 %v5324, %v5323
        %v5344 = vpack.c.b16 %v5326, %v5325
        %v5345 = vpack.c.b16 %v5328, %v5327
        %v5346 = vpack.c.b16 %v5330, %v5329
        %5363 = vst [vmem:[#allocation3] sm:$0xff] %v5331
        %5364 = vst [vmem:[#allocation3 + $0x48] sm:$0xff] %v5332
        %5365 = vst [vmem:[#allocation3 + $0x90] sm:$0xff] %v5333
        %5366 = vst [vmem:[#allocation3 + $0xd8] sm:$0xff] %v5334
        %5367 = vst [vmem:[#allocation3 + $0x120] sm:$0xff] %v5335
        %5368 = vst [vmem:[#allocation3 + $0x168] sm:$0xff] %v5336
        %5369 = vst [vmem:[#allocation3 + $0x1b0] sm:$0xff] %v5337
        %5370 = vst [vmem:[#allocation3 + $0x1f8] sm:$0xff] %v5338
        %5371 = vst [vmem:[#allocation3 + $0x240] sm:$0xff] %v5339
        %5372 = vst [vmem:[#allocation3 + $0x288] sm:$0xff] %v5340
        %5373 = vst [vmem:[#allocation3 + $0x2d0] sm:$0xff] %v5341
        %5374 = vst [vmem:[#allocation3 + $0x318] sm:$0xff] %v5342
        %5375 = vst [vmem:[#allocation3 + $0x360] sm:$0xff] %v5343
        %5376 = vst [vmem:[#allocation3 + $0x3a8] sm:$0xff] %v5344
        %5377 = vst [vmem:[#allocation3 + $0x3f0] sm:$0xff] %v5345
        %5378 = vst [vmem:[#allocation3 + $0x438] sm:$0xff] %v5346
        %v5379 = vld [vmem:[#allocation2] sm:$0xf]
        %v5380 = vld [vmem:[#allocation2 + $0x4] sm:$0xf]
        %v5381 = vld [vmem:[#allocation2 + $0x8] sm:$0x1]
        %v5382 = vld [vmem:[#allocation2 + $0xc] sm:$0xf]
        %v5383 = vld [vmem:[#allocation2 + $0x10] sm:$0xf]
        %v5384 = vld [vmem:[#allocation2 + $0x14] sm:$0x1]
        %v5385 = vld [vmem:[#allocation2 + $0x18] sm:$0xf]
        %v5386 = vld [vmem:[#allocation2 + $0x1c] sm:$0xf]
        %v5387 = vld [vmem:[#allocation2 + $0x20] sm:$0x1]
        %v5388 = vld [vmem:[#allocation2 + $0x24] sm:$0xf]
        %v5389 = vld [vmem:[#allocation2 + $0x28] sm:$0xf]
        %v5390 = vld [vmem:[#allocation2 + $0x2c] sm:$0x1]
        %v5391 = vld [vmem:[#allocation2 + $0x30] sm:$0xf]
        %v5392 = vld [vmem:[#allocation2 + $0x34] sm:$0xf]
        %v5393 = vld [vmem:[#allocation2 + $0x38] sm:$0x1]
        %v5394 = vld [vmem:[#allocation2 + $0x3c] sm:$0xf]
        %v5395 = vld [vmem:[#allocation2 + $0x40] sm:$0xf]
        %v5396 = vld [vmem:[#allocation2 + $0x44] sm:$0x1]
        %v5397 = vld [vmem:[#allocation2 + $0x48] sm:$0xf]
        %v5398 = vld [vmem:[#allocation2 + $0x4c] sm:$0xf]
        %v5399 = vld [vmem:[#allocation2 + $0x50] sm:$0x1]
        %v5400 = vld [vmem:[#allocation2 + $0x54] sm:$0xf]
        %v5401 = vld [vmem:[#allocation2 + $0x58] sm:$0xf]
        %v5402 = vld [vmem:[#allocation2 + $0x5c] sm:$0x1]
        %v5403 = vld [vmem:[#allocation2 + $0x60] sm:$0xf]
        %v5404 = vld [vmem:[#allocation2 + $0x64] sm:$0xf]
        %v5405 = vld [vmem:[#allocation2 + $0x68] sm:$0x1]
        %v5406 = vld [vmem:[#allocation2 + $0x6c] sm:$0xf]
        %v5407 = vld [vmem:[#allocation2 + $0x70] sm:$0xf]
        %v5408 = vld [vmem:[#allocation2 + $0x74] sm:$0x1]
        %v5409 = vld [vmem:[#allocation2 + $0x78] sm:$0xf]
        %v5410 = vld [vmem:[#allocation2 + $0x7c] sm:$0xf]
        %v5411 = vld [vmem:[#allocation2 + $0x80] sm:$0x1]
        %v5412 = vld [vmem:[#allocation2 + $0x84] sm:$0xf]
        %v5413 = vld [vmem:[#allocation2 + $0x88] sm:$0xf]
        %v5414 = vld [vmem:[#allocation2 + $0x8c] sm:$0x1]
        %v5415 = vld [vmem:[#allocation2 + $0x90] sm:$0xf]
        %v5416 = vld [vmem:[#allocation2 + $0x94] sm:$0xf]
        %v5417 = vld [vmem:[#allocation2 + $0x98] sm:$0x1]
        %v5418 = vld [vmem:[#allocation2 + $0x9c] sm:$0xf]
        %v5419 = vld [vmem:[#allocation2 + $0xa0] sm:$0xf]
        %v5420 = vld [vmem:[#allocation2 + $0xa4] sm:$0x1]
        %v5421 = vld [vmem:[#allocation2 + $0xa8] sm:$0xf]
        %v5422 = vld [vmem:[#allocation2 + $0xac] sm:$0xf]
        %v5423 = vld [vmem:[#allocation2 + $0xb0] sm:$0x1]
        %v5424 = vld [vmem:[#allocation2 + $0xb4] sm:$0xf]
        %v5425 = vld [vmem:[#allocation2 + $0xb8] sm:$0xf]
        %v5426 = vld [vmem:[#allocation2 + $0xbc] sm:$0x1]
        %v5428 = vshrl.u32 %v5379, 16
        %v5430 = vrot.slane %v5428, 4
        %v5431 = vshll.u32 %v5379, 16
        %v5433 = vrot.slane %v5431, 5
        %v5434 = vor.u32 %v5430, %v5433
        %v5435 = vrot.slane %v5434, 4
        %v5437 = vshll.u32 %v5380, 16
        %v5439 = vrot.slane %v5437, 5
        %v5440 = vsel %vm434, %v5435, %v5439
        %v5441 = vshrl.u32 %v5380, 16
        %v5443 = vrot.slane %v5441, 4
        %v5444 = vor.u32 %v5443, %v5439
        %v5445 = vrot.slane %v5444, 4
        %v5447 = vshll.u32 %v5381, 16
        %v5449 = vrot.slane %v5447, 5
        %v5450 = vsel %vm434, %v5445, %v5449
        %v5452 = vshrl.u32 %v5382, 16
        %v5454 = vrot.slane %v5452, 4
        %v5455 = vshll.u32 %v5382, 16
        %v5457 = vrot.slane %v5455, 5
        %v5458 = vor.u32 %v5454, %v5457
        %v5459 = vrot.slane %v5458, 4
        %v5461 = vshll.u32 %v5383, 16
        %v5463 = vrot.slane %v5461, 5
        %v5464 = vsel %vm434, %v5459, %v5463
        %v5465 = vshrl.u32 %v5383, 16
        %v5467 = vrot.slane %v5465, 4
        %v5468 = vor.u32 %v5467, %v5463
        %v5469 = vrot.slane %v5468, 4
        %v5471 = vshll.u32 %v5384, 16
        %v5473 = vrot.slane %v5471, 5
        %v5474 = vsel %vm434, %v5469, %v5473
        %v5476 = vshrl.u32 %v5385, 16
        %v5478 = vrot.slane %v5476, 4
        %v5479 = vshll.u32 %v5385, 16
        %v5481 = vrot.slane %v5479, 5
        %v5482 = vor.u32 %v5478, %v5481
        %v5483 = vrot.slane %v5482, 4
        %v5485 = vshll.u32 %v5386, 16
        %v5487 = vrot.slane %v5485, 5
        %v5488 = vsel %vm434, %v5483, %v5487
        %v5489 = vshrl.u32 %v5386, 16
        %v5491 = vrot.slane %v5489, 4
        %v5492 = vor.u32 %v5491, %v5487
        %v5493 = vrot.slane %v5492, 4
        %v5495 = vshll.u32 %v5387, 16
        %v5497 = vrot.slane %v5495, 5
        %v5498 = vsel %vm434, %v5493, %v5497
        %v5500 = vshrl.u32 %v5388, 16
        %v5502 = vrot.slane %v5500, 4
        %v5503 = vshll.u32 %v5388, 16
        %v5505 = vrot.slane %v5503, 5
        %v5506 = vor.u32 %v5502, %v5505
        %v5507 = vrot.slane %v5506, 4
        %v5509 = vshll.u32 %v5389, 16
        %v5511 = vrot.slane %v5509, 5
        %v5512 = vsel %vm434, %v5507, %v5511
        %v5513 = vshrl.u32 %v5389, 16
        %v5515 = vrot.slane %v5513, 4
        %v5516 = vor.u32 %v5515, %v5511
        %v5517 = vrot.slane %v5516, 4
        %v5519 = vshll.u32 %v5390, 16
        %v5521 = vrot.slane %v5519, 5
        %v5522 = vsel %vm434, %v5517, %v5521
        %v5524 = vshrl.u32 %v5391, 16
        %v5526 = vrot.slane %v5524, 4
        %v5527 = vshll.u32 %v5391, 16
        %v5529 = vrot.slane %v5527, 5
        %v5530 = vor.u32 %v5526, %v5529
        %v5531 = vrot.slane %v5530, 4
        %v5533 = vshll.u32 %v5392, 16
        %v5535 = vrot.slane %v5533, 5
        %v5536 = vsel %vm434, %v5531, %v5535
        %v5537 = vshrl.u32 %v5392, 16
        %v5539 = vrot.slane %v5537, 4
        %v5540 = vor.u32 %v5539, %v5535
        %v5541 = vrot.slane %v5540, 4
        %v5543 = vshll.u32 %v5393, 16
        %v5545 = vrot.slane %v5543, 5
        %v5546 = vsel %vm434, %v5541, %v5545
        %v5548 = vshrl.u32 %v5394, 16
        %v5550 = vrot.slane %v5548, 4
        %v5551 = vshll.u32 %v5394, 16
        %v5553 = vrot.slane %v5551, 5
        %v5554 = vor.u32 %v5550, %v5553
        %v5555 = vrot.slane %v5554, 4
        %v5557 = vshll.u32 %v5395, 16
        %v5559 = vrot.slane %v5557, 5
        %v5560 = vsel %vm434, %v5555, %v5559
        %v5561 = vshrl.u32 %v5395, 16
        %v5563 = vrot.slane %v5561, 4
        %v5564 = vor.u32 %v5563, %v5559
        %v5565 = vrot.slane %v5564, 4
        %v5567 = vshll.u32 %v5396, 16
        %v5569 = vrot.slane %v5567, 5
        %v5570 = vsel %vm434, %v5565, %v5569
        %v5572 = vshrl.u32 %v5397, 16
        %v5574 = vrot.slane %v5572, 4
        %v5575 = vshll.u32 %v5397, 16
        %v5577 = vrot.slane %v5575, 5
        %v5578 = vor.u32 %v5574, %v5577
        %v5579 = vrot.slane %v5578, 4
        %v5581 = vshll.u32 %v5398, 16
        %v5583 = vrot.slane %v5581, 5
        %v5584 = vsel %vm434, %v5579, %v5583
        %v5585 = vshrl.u32 %v5398, 16
        %v5587 = vrot.slane %v5585, 4
        %v5588 = vor.u32 %v5587, %v5583
        %v5589 = vrot.slane %v5588, 4
        %v5591 = vshll.u32 %v5399, 16
        %v5593 = vrot.slane %v5591, 5
        %v5594 = vsel %vm434, %v5589, %v5593
        %v5596 = vshrl.u32 %v5400, 16
        %v5598 = vrot.slane %v5596, 4
        %v5599 = vshll.u32 %v5400, 16
        %v5601 = vrot.slane %v5599, 5
        %v5602 = vor.u32 %v5598, %v5601
        %v5603 = vrot.slane %v5602, 4
        %v5605 = vshll.u32 %v5401, 16
        %v5607 = vrot.slane %v5605, 5
        %v5608 = vsel %vm434, %v5603, %v5607
        %v5609 = vshrl.u32 %v5401, 16
        %v5611 = vrot.slane %v5609, 4
        %v5612 = vor.u32 %v5611, %v5607
        %v5613 = vrot.slane %v5612, 4
        %v5615 = vshll.u32 %v5402, 16
        %v5617 = vrot.slane %v5615, 5
        %v5618 = vsel %vm434, %v5613, %v5617
        %v5620 = vshrl.u32 %v5403, 16
        %v5622 = vrot.slane %v5620, 4
        %v5623 = vshll.u32 %v5403, 16
        %v5625 = vrot.slane %v5623, 5
        %v5626 = vor.u32 %v5622, %v5625
        %v5627 = vrot.slane %v5626, 4
        %v5629 = vshll.u32 %v5404, 16
        %v5631 = vrot.slane %v5629, 5
        %v5632 = vsel %vm434, %v5627, %v5631
        %v5633 = vshrl.u32 %v5404, 16
        %v5635 = vrot.slane %v5633, 4
        %v5636 = vor.u32 %v5635, %v5631
        %v5637 = vrot.slane %v5636, 4
        %v5639 = vshll.u32 %v5405, 16
        %v5641 = vrot.slane %v5639, 5
        %v5642 = vsel %vm434, %v5637, %v5641
        %v5644 = vshrl.u32 %v5406, 16
        %v5646 = vrot.slane %v5644, 4
        %v5647 = vshll.u32 %v5406, 16
        %v5649 = vrot.slane %v5647, 5
        %v5650 = vor.u32 %v5646, %v5649
        %v5651 = vrot.slane %v5650, 4
        %v5653 = vshll.u32 %v5407, 16
        %v5655 = vrot.slane %v5653, 5
        %v5656 = vsel %vm434, %v5651, %v5655
        %v5657 = vshrl.u32 %v5407, 16
        %v5659 = vrot.slane %v5657, 4
        %v5660 = vor.u32 %v5659, %v5655
        %v5661 = vrot.slane %v5660, 4
        %v5663 = vshll.u32 %v5408, 16
        %v5665 = vrot.slane %v5663, 5
        %v5666 = vsel %vm434, %v5661, %v5665
        %v5668 = vshrl.u32 %v5409, 16
        %v5670 = vrot.slane %v5668, 4
        %v5671 = vshll.u32 %v5409, 16
        %v5673 = vrot.slane %v5671, 5
        %v5674 = vor.u32 %v5670, %v5673
        %v5675 = vrot.slane %v5674, 4
        %v5677 = vshll.u32 %v5410, 16
        %v5679 = vrot.slane %v5677, 5
        %v5680 = vsel %vm434, %v5675, %v5679
        %v5681 = vshrl.u32 %v5410, 16
        %v5683 = vrot.slane %v5681, 4
        %v5684 = vor.u32 %v5683, %v5679
        %v5685 = vrot.slane %v5684, 4
        %v5687 = vshll.u32 %v5411, 16
        %v5689 = vrot.slane %v5687, 5
        %v5690 = vsel %vm434, %v5685, %v5689
        %v5692 = vshrl.u32 %v5412, 16
        %v5694 = vrot.slane %v5692, 4
        %v5695 = vshll.u32 %v5412, 16
        %v5697 = vrot.slane %v5695, 5
        %v5698 = vor.u32 %v5694, %v5697
        %v5699 = vrot.slane %v5698, 4
        %v5701 = vshll.u32 %v5413, 16
        %v5703 = vrot.slane %v5701, 5
        %v5704 = vsel %vm434, %v5699, %v5703
        %v5705 = vshrl.u32 %v5413, 16
        %v5707 = vrot.slane %v5705, 4
        %v5708 = vor.u32 %v5707, %v5703
        %v5709 = vrot.slane %v5708, 4
        %v5711 = vshll.u32 %v5414, 16
        %v5713 = vrot.slane %v5711, 5
        %v5714 = vsel %vm434, %v5709, %v5713
        %v5716 = vshrl.u32 %v5415, 16
        %v5718 = vrot.slane %v5716, 4
        %v5719 = vshll.u32 %v5415, 16
        %v5721 = vrot.slane %v5719, 5
        %v5722 = vor.u32 %v5718, %v5721
        %v5723 = vrot.slane %v5722, 4
        %v5725 = vshll.u32 %v5416, 16
        %v5727 = vrot.slane %v5725, 5
        %v5728 = vsel %vm434, %v5723, %v5727
        %v5729 = vshrl.u32 %v5416, 16
        %v5731 = vrot.slane %v5729, 4
        %v5732 = vor.u32 %v5731, %v5727
        %v5733 = vrot.slane %v5732, 4
        %v5735 = vshll.u32 %v5417, 16
        %v5737 = vrot.slane %v5735, 5
        %v5738 = vsel %vm434, %v5733, %v5737
        %v5740 = vshrl.u32 %v5418, 16
        %v5742 = vrot.slane %v5740, 4
        %v5743 = vshll.u32 %v5418, 16
        %v5745 = vrot.slane %v5743, 5
        %v5746 = vor.u32 %v5742, %v5745
        %v5747 = vrot.slane %v5746, 4
        %v5749 = vshll.u32 %v5419, 16
        %v5751 = vrot.slane %v5749, 5
        %v5752 = vsel %vm434, %v5747, %v5751
        %v5753 = vshrl.u32 %v5419, 16
        %v5755 = vrot.slane %v5753, 4
        %v5756 = vor.u32 %v5755, %v5751
        %v5757 = vrot.slane %v5756, 4
        %v5759 = vshll.u32 %v5420, 16
        %v5761 = vrot.slane %v5759, 5
        %v5762 = vsel %vm434, %v5757, %v5761
        %v5764 = vshrl.u32 %v5421, 16
        %v5766 = vrot.slane %v5764, 4
        %v5767 = vshll.u32 %v5421, 16
        %v5769 = vrot.slane %v5767, 5
        %v5770 = vor.u32 %v5766, %v5769
        %v5771 = vrot.slane %v5770, 4
        %v5773 = vshll.u32 %v5422, 16
        %v5775 = vrot.slane %v5773, 5
        %v5776 = vsel %vm434, %v5771, %v5775
        %v5777 = vshrl.u32 %v5422, 16
        %v5779 = vrot.slane %v5777, 4
        %v5780 = vor.u32 %v5779, %v5775
        %v5781 = vrot.slane %v5780, 4
        %v5783 = vshll.u32 %v5423, 16
        %v5785 = vrot.slane %v5783, 5
        %v5786 = vsel %vm434, %v5781, %v5785
        %v5788 = vshrl.u32 %v5424, 16
        %v5790 = vrot.slane %v5788, 4
        %v5791 = vshll.u32 %v5424, 16
        %v5793 = vrot.slane %v5791, 5
        %v5794 = vor.u32 %v5790, %v5793
        %v5795 = vrot.slane %v5794, 4
        %v5797 = vshll.u32 %v5425, 16
        %v5799 = vrot.slane %v5797, 5
        %v5800 = vsel %vm434, %v5795, %v5799
        %v5801 = vshrl.u32 %v5425, 16
        %v5803 = vrot.slane %v5801, 4
        %v5804 = vor.u32 %v5803, %v5799
        %v5805 = vrot.slane %v5804, 4
        %v5807 = vshll.u32 %v5426, 16
        %v5809 = vrot.slane %v5807, 5
        %v5810 = vsel %vm434, %v5805, %v5809
        %v5811 = vunpack.c.l.b16 %v5440
        %v5812 = vunpack.c.l.b16 %v5450
        %v5813 = vunpack.c.l.b16 %v5464
        %v5814 = vunpack.c.l.b16 %v5474
        %v5815 = vunpack.c.l.b16 %v5488
        %v5816 = vunpack.c.l.b16 %v5498
        %v5817 = vunpack.c.l.b16 %v5512
        %v5818 = vunpack.c.l.b16 %v5522
        %v5819 = vunpack.c.l.b16 %v5536
        %v5820 = vunpack.c.l.b16 %v5546
        %v5821 = vunpack.c.l.b16 %v5560
        %v5822 = vunpack.c.l.b16 %v5570
        %v5823 = vunpack.c.l.b16 %v5584
        %v5824 = vunpack.c.l.b16 %v5594
        %v5825 = vunpack.c.l.b16 %v5608
        %v5826 = vunpack.c.l.b16 %v5618
        %v5827 = vunpack.c.l.b16 %v5632
        %v5828 = vunpack.c.l.b16 %v5642
        %v5829 = vunpack.c.l.b16 %v5656
        %v5830 = vunpack.c.l.b16 %v5666
        %v5831 = vunpack.c.l.b16 %v5680
        %v5832 = vunpack.c.l.b16 %v5690
        %v5833 = vunpack.c.l.b16 %v5704
        %v5834 = vunpack.c.l.b16 %v5714
        %v5835 = vunpack.c.l.b16 %v5728
        %v5836 = vunpack.c.l.b16 %v5738
        %v5837 = vunpack.c.l.b16 %v5752
        %v5838 = vunpack.c.l.b16 %v5762
        %v5839 = vunpack.c.l.b16 %v5776
        %v5840 = vunpack.c.l.b16 %v5786
        %v5841 = vunpack.c.l.b16 %v5800
        %v5842 = vunpack.c.l.b16 %v5810
        %v5843 = vpack.c.b16 %v5812, %v5811
        %v5844 = vpack.c.b16 %v5814, %v5813
        %v5845 = vpack.c.b16 %v5816, %v5815
        %v5846 = vpack.c.b16 %v5818, %v5817
        %v5847 = vpack.c.b16 %v5820, %v5819
        %v5848 = vpack.c.b16 %v5822, %v5821
        %v5849 = vpack.c.b16 %v5824, %v5823
        %v5850 = vpack.c.b16 %v5826, %v5825
        %v5851 = vpack.c.b16 %v5828, %v5827
        %v5852 = vpack.c.b16 %v5830, %v5829
        %v5853 = vpack.c.b16 %v5832, %v5831
        %v5854 = vpack.c.b16 %v5834, %v5833
        %v5855 = vpack.c.b16 %v5836, %v5835
        %v5856 = vpack.c.b16 %v5838, %v5837
        %v5857 = vpack.c.b16 %v5840, %v5839
        %v5858 = vpack.c.b16 %v5842, %v5841
        %5875 = vst [vmem:[#allocation3 + $0x8] sm:$0xff] %v5843
        %5876 = vst [vmem:[#allocation3 + $0x50] sm:$0xff] %v5844
        %5877 = vst [vmem:[#allocation3 + $0x98] sm:$0xff] %v5845
        %5878 = vst [vmem:[#allocation3 + $0xe0] sm:$0xff] %v5846
        %5879 = vst [vmem:[#allocation3 + $0x128] sm:$0xff] %v5847
        %5880 = vst [vmem:[#allocation3 + $0x170] sm:$0xff] %v5848
        %5881 = vst [vmem:[#allocation3 + $0x1b8] sm:$0xff] %v5849
        %5882 = vst [vmem:[#allocation3 + $0x200] sm:$0xff] %v5850
        %5883 = vst [vmem:[#allocation3 + $0x248] sm:$0xff] %v5851
        %5884 = vst [vmem:[#allocation3 + $0x290] sm:$0xff] %v5852
        %5885 = vst [vmem:[#allocation3 + $0x2d8] sm:$0xff] %v5853
        %5886 = vst [vmem:[#allocation3 + $0x320] sm:$0xff] %v5854
        %5887 = vst [vmem:[#allocation3 + $0x368] sm:$0xff] %v5855
        %5888 = vst [vmem:[#allocation3 + $0x3b0] sm:$0xff] %v5856
        %5889 = vst [vmem:[#allocation3 + $0x3f8] sm:$0xff] %v5857
        %5890 = vst [vmem:[#allocation3 + $0x440] sm:$0xff] %v5858
        %v5891 = vld [vmem:[#allocation2] sm:$0xe]
        %v5892 = vld [vmem:[#allocation2 + $0x4] sm:$0xf]
        %v5893 = vld [vmem:[#allocation2 + $0x8] sm:$0x1]
        %v5894 = vld [vmem:[#allocation2 + $0xc] sm:$0xe]
        %v5895 = vld [vmem:[#allocation2 + $0x10] sm:$0xf]
        %v5896 = vld [vmem:[#allocation2 + $0x14] sm:$0x1]
        %v5897 = vld [vmem:[#allocation2 + $0x18] sm:$0xe]
        %v5898 = vld [vmem:[#allocation2 + $0x1c] sm:$0xf]
        %v5899 = vld [vmem:[#allocation2 + $0x20] sm:$0x1]
        %v5900 = vld [vmem:[#allocation2 + $0x24] sm:$0xe]
        %v5901 = vld [vmem:[#allocation2 + $0x28] sm:$0xf]
        %v5902 = vld [vmem:[#allocation2 + $0x2c] sm:$0x1]
        %v5903 = vld [vmem:[#allocation2 + $0x30] sm:$0xe]
        %v5904 = vld [vmem:[#allocation2 + $0x34] sm:$0xf]
        %v5905 = vld [vmem:[#allocation2 + $0x38] sm:$0x1]
        %v5906 = vld [vmem:[#allocation2 + $0x3c] sm:$0xe]
        %v5907 = vld [vmem:[#allocation2 + $0x40] sm:$0xf]
        %v5908 = vld [vmem:[#allocation2 + $0x44] sm:$0x1]
        %v5909 = vld [vmem:[#allocation2 + $0x48] sm:$0xe]
        %v5910 = vld [vmem:[#allocation2 + $0x4c] sm:$0xf]
        %v5911 = vld [vmem:[#allocation2 + $0x50] sm:$0x1]
        %v5912 = vld [vmem:[#allocation2 + $0x54] sm:$0xe]
        %v5913 = vld [vmem:[#allocation2 + $0x58] sm:$0xf]
        %v5914 = vld [vmem:[#allocation2 + $0x5c] sm:$0x1]
        %v5915 = vld [vmem:[#allocation2 + $0x60] sm:$0xe]
        %v5916 = vld [vmem:[#allocation2 + $0x64] sm:$0xf]
        %v5917 = vld [vmem:[#allocation2 + $0x68] sm:$0x1]
        %v5918 = vld [vmem:[#allocation2 + $0x6c] sm:$0xe]
        %v5919 = vld [vmem:[#allocation2 + $0x70] sm:$0xf]
        %v5920 = vld [vmem:[#allocation2 + $0x74] sm:$0x1]
        %v5921 = vld [vmem:[#allocation2 + $0x78] sm:$0xe]
        %v5922 = vld [vmem:[#allocation2 + $0x7c] sm:$0xf]
        %v5923 = vld [vmem:[#allocation2 + $0x80] sm:$0x1]
        %v5924 = vld [vmem:[#allocation2 + $0x84] sm:$0xe]
        %v5925 = vld [vmem:[#allocation2 + $0x88] sm:$0xf]
        %v5926 = vld [vmem:[#allocation2 + $0x8c] sm:$0x1]
        %v5927 = vld [vmem:[#allocation2 + $0x90] sm:$0xe]
        %v5928 = vld [vmem:[#allocation2 + $0x94] sm:$0xf]
        %v5929 = vld [vmem:[#allocation2 + $0x98] sm:$0x1]
        %v5930 = vld [vmem:[#allocation2 + $0x9c] sm:$0xe]
        %v5931 = vld [vmem:[#allocation2 + $0xa0] sm:$0xf]
        %v5932 = vld [vmem:[#allocation2 + $0xa4] sm:$0x1]
        %v5933 = vld [vmem:[#allocation2 + $0xa8] sm:$0xe]
        %v5934 = vld [vmem:[#allocation2 + $0xac] sm:$0xf]
        %v5935 = vld [vmem:[#allocation2 + $0xb0] sm:$0x1]
        %v5936 = vld [vmem:[#allocation2 + $0xb4] sm:$0xe]
        %v5937 = vld [vmem:[#allocation2 + $0xb8] sm:$0xf]
        %v5938 = vld [vmem:[#allocation2 + $0xbc] sm:$0x1]
        %v5987 = vrot.slane %v5891, 5
        %v5988 = vrot.slane %v5987, 4
        %v5989 = vrot.slane %v5892, 5
        %v5990 = vsel %vm997, %v5988, %v5989
        %v5991 = vrot.slane %v5989, 4
        %v5992 = vrot.slane %v5893, 5
        %v5993 = vsel %vm997, %v5991, %v5992
        %v5994 = vrot.slane %v5894, 5
        %v5995 = vrot.slane %v5994, 4
        %v5996 = vrot.slane %v5895, 5
        %v5997 = vsel %vm997, %v5995, %v5996
        %v5998 = vrot.slane %v5996, 4
        %v5999 = vrot.slane %v5896, 5
        %v6000 = vsel %vm997, %v5998, %v5999
        %v6001 = vrot.slane %v5897, 5
        %v6002 = vrot.slane %v6001, 4
        %v6003 = vrot.slane %v5898, 5
        %v6004 = vsel %vm997, %v6002, %v6003
        %v6005 = vrot.slane %v6003, 4
        %v6006 = vrot.slane %v5899, 5
        %v6007 = vsel %vm997, %v6005, %v6006
        %v6008 = vrot.slane %v5900, 5
        %v6009 = vrot.slane %v6008, 4
        %v6010 = vrot.slane %v5901, 5
        %v6011 = vsel %vm997, %v6009, %v6010
        %v6012 = vrot.slane %v6010, 4
        %v6013 = vrot.slane %v5902, 5
        %v6014 = vsel %vm997, %v6012, %v6013
        %v6015 = vrot.slane %v5903, 5
        %v6016 = vrot.slane %v6015, 4
        %v6017 = vrot.slane %v5904, 5
        %v6018 = vsel %vm997, %v6016, %v6017
        %v6019 = vrot.slane %v6017, 4
        %v6020 = vrot.slane %v5905, 5
        %v6021 = vsel %vm997, %v6019, %v6020
        %v6022 = vrot.slane %v5906, 5
        %v6023 = vrot.slane %v6022, 4
        %v6024 = vrot.slane %v5907, 5
        %v6025 = vsel %vm997, %v6023, %v6024
        %v6026 = vrot.slane %v6024, 4
        %v6027 = vrot.slane %v5908, 5
        %v6028 = vsel %vm997, %v6026, %v6027
        %v6029 = vrot.slane %v5909, 5
        %v6030 = vrot.slane %v6029, 4
        %v6031 = vrot.slane %v5910, 5
        %v6032 = vsel %vm997, %v6030, %v6031
        %v6033 = vrot.slane %v6031, 4
        %v6034 = vrot.slane %v5911, 5
        %v6035 = vsel %vm997, %v6033, %v6034
        %v6036 = vrot.slane %v5912, 5
        %v6037 = vrot.slane %v6036, 4
        %v6038 = vrot.slane %v5913, 5
        %v6039 = vsel %vm997, %v6037, %v6038
        %v6040 = vrot.slane %v6038, 4
        %v6041 = vrot.slane %v5914, 5
        %v6042 = vsel %vm997, %v6040, %v6041
        %v6043 = vrot.slane %v5915, 5
        %v6044 = vrot.slane %v6043, 4
        %v6045 = vrot.slane %v5916, 5
        %v6046 = vsel %vm997, %v6044, %v6045
        %v6047 = vrot.slane %v6045, 4
        %v6048 = vrot.slane %v5917, 5
        %v6049 = vsel %vm997, %v6047, %v6048
        %v6050 = vrot.slane %v5918, 5
        %v6051 = vrot.slane %v6050, 4
        %v6052 = vrot.slane %v5919, 5
        %v6053 = vsel %vm997, %v6051, %v6052
        %v6054 = vrot.slane %v6052, 4
        %v6055 = vrot.slane %v5920, 5
        %v6056 = vsel %vm997, %v6054, %v6055
        %v6057 = vrot.slane %v5921, 5
        %v6058 = vrot.slane %v6057, 4
        %v6059 = vrot.slane %v5922, 5
        %v6060 = vsel %vm997, %v6058, %v6059
        %v6061 = vrot.slane %v6059, 4
        %v6062 = vrot.slane %v5923, 5
        %v6063 = vsel %vm997, %v6061, %v6062
        %v6064 = vrot.slane %v5924, 5
        %v6065 = vrot.slane %v6064, 4
        %v6066 = vrot.slane %v5925, 5
        %v6067 = vsel %vm997, %v6065, %v6066
        %v6068 = vrot.slane %v6066, 4
        %v6069 = vrot.slane %v5926, 5
        %v6070 = vsel %vm997, %v6068, %v6069
        %v6071 = vrot.slane %v5927, 5
        %v6072 = vrot.slane %v6071, 4
        %v6073 = vrot.slane %v5928, 5
        %v6074 = vsel %vm997, %v6072, %v6073
        %v6075 = vrot.slane %v6073, 4
        %v6076 = vrot.slane %v5929, 5
        %v6077 = vsel %vm997, %v6075, %v6076
        %v6078 = vrot.slane %v5930, 5
        %v6079 = vrot.slane %v6078, 4
        %v6080 = vrot.slane %v5931, 5
        %v6081 = vsel %vm997, %v6079, %v6080
        %v6082 = vrot.slane %v6080, 4
        %v6083 = vrot.slane %v5932, 5
        %v6084 = vsel %vm997, %v6082, %v6083
        %v6085 = vrot.slane %v5933, 5
        %v6086 = vrot.slane %v6085, 4
        %v6087 = vrot.slane %v5934, 5
        %v6088 = vsel %vm997, %v6086, %v6087
        %v6089 = vrot.slane %v6087, 4
        %v6090 = vrot.slane %v5935, 5
        %v6091 = vsel %vm997, %v6089, %v6090
        %v6092 = vrot.slane %v5936, 5
        %v6093 = vrot.slane %v6092, 4
        %v6094 = vrot.slane %v5937, 5
        %v6095 = vsel %vm997, %v6093, %v6094
        %v6096 = vrot.slane %v6094, 4
        %v6097 = vrot.slane %v5938, 5
        %v6098 = vsel %vm997, %v6096, %v6097
        %v6099 = vunpack.c.l.b16 %v5990
        %v6100 = vunpack.c.l.b16 %v5993
        %v6101 = vunpack.c.l.b16 %v5997
        %v6102 = vunpack.c.l.b16 %v6000
        %v6103 = vunpack.c.l.b16 %v6004
        %v6104 = vunpack.c.l.b16 %v6007
        %v6105 = vunpack.c.l.b16 %v6011
        %v6106 = vunpack.c.l.b16 %v6014
        %v6107 = vunpack.c.l.b16 %v6018
        %v6108 = vunpack.c.l.b16 %v6021
        %v6109 = vunpack.c.l.b16 %v6025
        %v6110 = vunpack.c.l.b16 %v6028
        %v6111 = vunpack.c.l.b16 %v6032
        %v6112 = vunpack.c.l.b16 %v6035
        %v6113 = vunpack.c.l.b16 %v6039
        %v6114 = vunpack.c.l.b16 %v6042
        %v6115 = vunpack.c.l.b16 %v6046
        %v6116 = vunpack.c.l.b16 %v6049
        %v6117 = vunpack.c.l.b16 %v6053
        %v6118 = vunpack.c.l.b16 %v6056
        %v6119 = vunpack.c.l.b16 %v6060
        %v6120 = vunpack.c.l.b16 %v6063
        %v6121 = vunpack.c.l.b16 %v6067
        %v6122 = vunpack.c.l.b16 %v6070
        %v6123 = vunpack.c.l.b16 %v6074
        %v6124 = vunpack.c.l.b16 %v6077
        %v6125 = vunpack.c.l.b16 %v6081
        %v6126 = vunpack.c.l.b16 %v6084
        %v6127 = vunpack.c.l.b16 %v6088
        %v6128 = vunpack.c.l.b16 %v6091
        %v6129 = vunpack.c.l.b16 %v6095
        %v6130 = vunpack.c.l.b16 %v6098
        %v6131 = vpack.c.b16 %v6100, %v6099
        %v6132 = vpack.c.b16 %v6102, %v6101
        %v6133 = vpack.c.b16 %v6104, %v6103
        %v6134 = vpack.c.b16 %v6106, %v6105
        %v6135 = vpack.c.b16 %v6108, %v6107
        %v6136 = vpack.c.b16 %v6110, %v6109
        %v6137 = vpack.c.b16 %v6112, %v6111
        %v6138 = vpack.c.b16 %v6114, %v6113
        %v6139 = vpack.c.b16 %v6116, %v6115
        %v6140 = vpack.c.b16 %v6118, %v6117
        %v6141 = vpack.c.b16 %v6120, %v6119
        %v6142 = vpack.c.b16 %v6122, %v6121
        %v6143 = vpack.c.b16 %v6124, %v6123
        %v6144 = vpack.c.b16 %v6126, %v6125
        %v6145 = vpack.c.b16 %v6128, %v6127
        %v6146 = vpack.c.b16 %v6130, %v6129
        %6163 = vst [vmem:[#allocation3 + $0x10] sm:$0xff] %v6131
        %6164 = vst [vmem:[#allocation3 + $0x58] sm:$0xff] %v6132
        %6165 = vst [vmem:[#allocation3 + $0xa0] sm:$0xff] %v6133
        %6166 = vst [vmem:[#allocation3 + $0xe8] sm:$0xff] %v6134
        %6167 = vst [vmem:[#allocation3 + $0x130] sm:$0xff] %v6135
        %6168 = vst [vmem:[#allocation3 + $0x178] sm:$0xff] %v6136
        %6169 = vst [vmem:[#allocation3 + $0x1c0] sm:$0xff] %v6137
        %6170 = vst [vmem:[#allocation3 + $0x208] sm:$0xff] %v6138
        %6171 = vst [vmem:[#allocation3 + $0x250] sm:$0xff] %v6139
        %6172 = vst [vmem:[#allocation3 + $0x298] sm:$0xff] %v6140
        %6173 = vst [vmem:[#allocation3 + $0x2e0] sm:$0xff] %v6141
        %6174 = vst [vmem:[#allocation3 + $0x328] sm:$0xff] %v6142
        %6175 = vst [vmem:[#allocation3 + $0x370] sm:$0xff] %v6143
        %6176 = vst [vmem:[#allocation3 + $0x3b8] sm:$0xff] %v6144
        %6177 = vst [vmem:[#allocation3 + $0x400] sm:$0xff] %v6145
        %6178 = vst [vmem:[#allocation3 + $0x448] sm:$0xff] %v6146
        %v6179 = vld [vmem:[%s5117] sm:$0xf]
        %v6180 = vld [vmem:[%s5117 + $0x4] sm:$0xf]
        %v6181 = vld [vmem:[%s5117 + $0xc] sm:$0xf]
        %v6182 = vld [vmem:[%s5117 + $0x10] sm:$0xf]
        %v6183 = vld [vmem:[%s5117 + $0x18] sm:$0xf]
        %v6184 = vld [vmem:[%s5117 + $0x1c] sm:$0xf]
        %v6185 = vld [vmem:[%s5117 + $0x24] sm:$0xf]
        %v6186 = vld [vmem:[%s5117 + $0x28] sm:$0xf]
        %v6187 = vld [vmem:[%s5117 + $0x30] sm:$0xf]
        %v6188 = vld [vmem:[%s5117 + $0x34] sm:$0xf]
        %v6189 = vld [vmem:[%s5117 + $0x3c] sm:$0xf]
        %v6190 = vld [vmem:[%s5117 + $0x40] sm:$0xf]
        %v6191 = vld [vmem:[%s5117 + $0x48] sm:$0xf]
        %v6192 = vld [vmem:[%s5117 + $0x4c] sm:$0xf]
        %v6193 = vld [vmem:[%s5117 + $0x54] sm:$0xf]
        %v6194 = vld [vmem:[%s5117 + $0x58] sm:$0xf]
        %v6195 = vld [vmem:[%s5117 + $0x60] sm:$0xf]
        %v6196 = vld [vmem:[%s5117 + $0x64] sm:$0xf]
        %v6197 = vld [vmem:[%s5117 + $0x6c] sm:$0xf]
        %v6198 = vld [vmem:[%s5117 + $0x70] sm:$0xf]
        %v6199 = vld [vmem:[%s5117 + $0x78] sm:$0xf]
        %v6200 = vld [vmem:[%s5117 + $0x7c] sm:$0xf]
        %v6201 = vld [vmem:[%s5117 + $0x84] sm:$0xf]
        %v6202 = vld [vmem:[%s5117 + $0x88] sm:$0xf]
        %v6203 = vld [vmem:[%s5117 + $0x90] sm:$0xf]
        %v6204 = vld [vmem:[%s5117 + $0x94] sm:$0xf]
        %v6205 = vld [vmem:[%s5117 + $0x9c] sm:$0xf]
        %v6206 = vld [vmem:[%s5117 + $0xa0] sm:$0xf]
        %v6207 = vld [vmem:[%s5117 + $0xa8] sm:$0xf]
        %v6208 = vld [vmem:[%s5117 + $0xac] sm:$0xf]
        %v6209 = vld [vmem:[%s5117 + $0xb4] sm:$0xf]
        %v6210 = vld [vmem:[%s5117 + $0xb8] sm:$0xf]
        %v6243 = vunpack.c.l.b16 %v6179
        %v6244 = vunpack.c.l.b16 %v6180
        %v6245 = vunpack.c.l.b16 %v6181
        %v6246 = vunpack.c.l.b16 %v6182
        %v6247 = vunpack.c.l.b16 %v6183
        %v6248 = vunpack.c.l.b16 %v6184
        %v6249 = vunpack.c.l.b16 %v6185
        %v6250 = vunpack.c.l.b16 %v6186
        %v6251 = vunpack.c.l.b16 %v6187
        %v6252 = vunpack.c.l.b16 %v6188
        %v6253 = vunpack.c.l.b16 %v6189
        %v6254 = vunpack.c.l.b16 %v6190
        %v6255 = vunpack.c.l.b16 %v6191
        %v6256 = vunpack.c.l.b16 %v6192
        %v6257 = vunpack.c.l.b16 %v6193
        %v6258 = vunpack.c.l.b16 %v6194
        %v6259 = vunpack.c.l.b16 %v6195
        %v6260 = vunpack.c.l.b16 %v6196
        %v6261 = vunpack.c.l.b16 %v6197
        %v6262 = vunpack.c.l.b16 %v6198
        %v6263 = vunpack.c.l.b16 %v6199
        %v6264 = vunpack.c.l.b16 %v6200
        %v6265 = vunpack.c.l.b16 %v6201
        %v6266 = vunpack.c.l.b16 %v6202
        %v6267 = vunpack.c.l.b16 %v6203
        %v6268 = vunpack.c.l.b16 %v6204
        %v6269 = vunpack.c.l.b16 %v6205
        %v6270 = vunpack.c.l.b16 %v6206
        %v6271 = vunpack.c.l.b16 %v6207
        %v6272 = vunpack.c.l.b16 %v6208
        %v6273 = vunpack.c.l.b16 %v6209
        %v6274 = vunpack.c.l.b16 %v6210
        %v6275 = vpack.c.b16 %v6244, %v6243
        %v6276 = vpack.c.b16 %v6246, %v6245
        %v6277 = vpack.c.b16 %v6248, %v6247
        %v6278 = vpack.c.b16 %v6250, %v6249
        %v6279 = vpack.c.b16 %v6252, %v6251
        %v6280 = vpack.c.b16 %v6254, %v6253
        %v6281 = vpack.c.b16 %v6256, %v6255
        %v6282 = vpack.c.b16 %v6258, %v6257
        %v6283 = vpack.c.b16 %v6260, %v6259
        %v6284 = vpack.c.b16 %v6262, %v6261
        %v6285 = vpack.c.b16 %v6264, %v6263
        %v6286 = vpack.c.b16 %v6266, %v6265
        %v6287 = vpack.c.b16 %v6268, %v6267
        %v6288 = vpack.c.b16 %v6270, %v6269
        %v6289 = vpack.c.b16 %v6272, %v6271
        %v6290 = vpack.c.b16 %v6274, %v6273
        %6307 = vst [vmem:[#allocation3 + $0x18] sm:$0xff] %v6275
        %6308 = vst [vmem:[#allocation3 + $0x60] sm:$0xff] %v6276
        %6309 = vst [vmem:[#allocation3 + $0xa8] sm:$0xff] %v6277
        %6310 = vst [vmem:[#allocation3 + $0xf0] sm:$0xff] %v6278
        %6311 = vst [vmem:[#allocation3 + $0x138] sm:$0xff] %v6279
        %6312 = vst [vmem:[#allocation3 + $0x180] sm:$0xff] %v6280
        %6313 = vst [vmem:[#allocation3 + $0x1c8] sm:$0xff] %v6281
        %6314 = vst [vmem:[#allocation3 + $0x210] sm:$0xff] %v6282
        %6315 = vst [vmem:[#allocation3 + $0x258] sm:$0xff] %v6283
        %6316 = vst [vmem:[#allocation3 + $0x2a0] sm:$0xff] %v6284
        %6317 = vst [vmem:[#allocation3 + $0x2e8] sm:$0xff] %v6285
        %6318 = vst [vmem:[#allocation3 + $0x330] sm:$0xff] %v6286
        %6319 = vst [vmem:[#allocation3 + $0x378] sm:$0xff] %v6287
        %6320 = vst [vmem:[#allocation3 + $0x3c0] sm:$0xff] %v6288
        %6321 = vst [vmem:[#allocation3 + $0x408] sm:$0xff] %v6289
        %6322 = vst [vmem:[#allocation3 + $0x450] sm:$0xff] %v6290
        %v6323 = vld [vmem:[%s5117] sm:$0xf]
        %v6324 = vld [vmem:[%s5117 + $0x4] sm:$0xf]
        %v6325 = vld [vmem:[%s5117 + $0x8] sm:$0x1]
        %v6326 = vld [vmem:[%s5117 + $0xc] sm:$0xf]
        %v6327 = vld [vmem:[%s5117 + $0x10] sm:$0xf]
        %v6328 = vld [vmem:[%s5117 + $0x14] sm:$0x1]
        %v6329 = vld [vmem:[%s5117 + $0x18] sm:$0xf]
        %v6330 = vld [vmem:[%s5117 + $0x1c] sm:$0xf]
        %v6331 = vld [vmem:[%s5117 + $0x20] sm:$0x1]
        %v6332 = vld [vmem:[%s5117 + $0x24] sm:$0xf]
        %v6333 = vld [vmem:[%s5117 + $0x28] sm:$0xf]
        %v6334 = vld [vmem:[%s5117 + $0x2c] sm:$0x1]
        %v6335 = vld [vmem:[%s5117 + $0x30] sm:$0xf]
        %v6336 = vld [vmem:[%s5117 + $0x34] sm:$0xf]
        %v6337 = vld [vmem:[%s5117 + $0x38] sm:$0x1]
        %v6338 = vld [vmem:[%s5117 + $0x3c] sm:$0xf]
        %v6339 = vld [vmem:[%s5117 + $0x40] sm:$0xf]
        %v6340 = vld [vmem:[%s5117 + $0x44] sm:$0x1]
        %v6341 = vld [vmem:[%s5117 + $0x48] sm:$0xf]
        %v6342 = vld [vmem:[%s5117 + $0x4c] sm:$0xf]
        %v6343 = vld [vmem:[%s5117 + $0x50] sm:$0x1]
        %v6344 = vld [vmem:[%s5117 + $0x54] sm:$0xf]
        %v6345 = vld [vmem:[%s5117 + $0x58] sm:$0xf]
        %v6346 = vld [vmem:[%s5117 + $0x5c] sm:$0x1]
        %v6347 = vld [vmem:[%s5117 + $0x60] sm:$0xf]
        %v6348 = vld [vmem:[%s5117 + $0x64] sm:$0xf]
        %v6349 = vld [vmem:[%s5117 + $0x68] sm:$0x1]
        %v6350 = vld [vmem:[%s5117 + $0x6c] sm:$0xf]
        %v6351 = vld [vmem:[%s5117 + $0x70] sm:$0xf]
        %v6352 = vld [vmem:[%s5117 + $0x74] sm:$0x1]
        %v6353 = vld [vmem:[%s5117 + $0x78] sm:$0xf]
        %v6354 = vld [vmem:[%s5117 + $0x7c] sm:$0xf]
        %v6355 = vld [vmem:[%s5117 + $0x80] sm:$0x1]
        %v6356 = vld [vmem:[%s5117 + $0x84] sm:$0xf]
        %v6357 = vld [vmem:[%s5117 + $0x88] sm:$0xf]
        %v6358 = vld [vmem:[%s5117 + $0x8c] sm:$0x1]
        %v6359 = vld [vmem:[%s5117 + $0x90] sm:$0xf]
        %v6360 = vld [vmem:[%s5117 + $0x94] sm:$0xf]
        %v6361 = vld [vmem:[%s5117 + $0x98] sm:$0x1]
        %v6362 = vld [vmem:[%s5117 + $0x9c] sm:$0xf]
        %v6363 = vld [vmem:[%s5117 + $0xa0] sm:$0xf]
        %v6364 = vld [vmem:[%s5117 + $0xa4] sm:$0x1]
        %v6365 = vld [vmem:[%s5117 + $0xa8] sm:$0xf]
        %v6366 = vld [vmem:[%s5117 + $0xac] sm:$0xf]
        %v6367 = vld [vmem:[%s5117 + $0xb0] sm:$0x1]
        %v6368 = vld [vmem:[%s5117 + $0xb4] sm:$0xf]
        %v6369 = vld [vmem:[%s5117 + $0xb8] sm:$0xf]
        %v6370 = vld [vmem:[%s5117 + $0xbc] sm:$0x1]
        %v6372 = vshrl.u32 %v6323, 16
        %v6374 = vrot.slane %v6372, 4
        %v6375 = vshll.u32 %v6323, 16
        %v6377 = vrot.slane %v6375, 5
        %v6378 = vor.u32 %v6374, %v6377
        %v6379 = vrot.slane %v6378, 4
        %v6381 = vshll.u32 %v6324, 16
        %v6383 = vrot.slane %v6381, 5
        %v6384 = vsel %vm434, %v6379, %v6383
        %v6385 = vshrl.u32 %v6324, 16
        %v6387 = vrot.slane %v6385, 4
        %v6388 = vor.u32 %v6387, %v6383
        %v6389 = vrot.slane %v6388, 4
        %v6391 = vshll.u32 %v6325, 16
        %v6393 = vrot.slane %v6391, 5
        %v6394 = vsel %vm434, %v6389, %v6393
        %v6396 = vshrl.u32 %v6326, 16
        %v6398 = vrot.slane %v6396, 4
        %v6399 = vshll.u32 %v6326, 16
        %v6401 = vrot.slane %v6399, 5
        %v6402 = vor.u32 %v6398, %v6401
        %v6403 = vrot.slane %v6402, 4
        %v6405 = vshll.u32 %v6327, 16
        %v6407 = vrot.slane %v6405, 5
        %v6408 = vsel %vm434, %v6403, %v6407
        %v6409 = vshrl.u32 %v6327, 16
        %v6411 = vrot.slane %v6409, 4
        %v6412 = vor.u32 %v6411, %v6407
        %v6413 = vrot.slane %v6412, 4
        %v6415 = vshll.u32 %v6328, 16
        %v6417 = vrot.slane %v6415, 5
        %v6418 = vsel %vm434, %v6413, %v6417
        %v6420 = vshrl.u32 %v6329, 16
        %v6422 = vrot.slane %v6420, 4
        %v6423 = vshll.u32 %v6329, 16
        %v6425 = vrot.slane %v6423, 5
        %v6426 = vor.u32 %v6422, %v6425
        %v6427 = vrot.slane %v6426, 4
        %v6429 = vshll.u32 %v6330, 16
        %v6431 = vrot.slane %v6429, 5
        %v6432 = vsel %vm434, %v6427, %v6431
        %v6433 = vshrl.u32 %v6330, 16
        %v6435 = vrot.slane %v6433, 4
        %v6436 = vor.u32 %v6435, %v6431
        %v6437 = vrot.slane %v6436, 4
        %v6439 = vshll.u32 %v6331, 16
        %v6441 = vrot.slane %v6439, 5
        %v6442 = vsel %vm434, %v6437, %v6441
        %v6444 = vshrl.u32 %v6332, 16
        %v6446 = vrot.slane %v6444, 4
        %v6447 = vshll.u32 %v6332, 16
        %v6449 = vrot.slane %v6447, 5
        %v6450 = vor.u32 %v6446, %v6449
        %v6451 = vrot.slane %v6450, 4
        %v6453 = vshll.u32 %v6333, 16
        %v6455 = vrot.slane %v6453, 5
        %v6456 = vsel %vm434, %v6451, %v6455
        %v6457 = vshrl.u32 %v6333, 16
        %v6459 = vrot.slane %v6457, 4
        %v6460 = vor.u32 %v6459, %v6455
        %v6461 = vrot.slane %v6460, 4
        %v6463 = vshll.u32 %v6334, 16
        %v6465 = vrot.slane %v6463, 5
        %v6466 = vsel %vm434, %v6461, %v6465
        %v6468 = vshrl.u32 %v6335, 16
        %v6470 = vrot.slane %v6468, 4
        %v6471 = vshll.u32 %v6335, 16
        %v6473 = vrot.slane %v6471, 5
        %v6474 = vor.u32 %v6470, %v6473
        %v6475 = vrot.slane %v6474, 4
        %v6477 = vshll.u32 %v6336, 16
        %v6479 = vrot.slane %v6477, 5
        %v6480 = vsel %vm434, %v6475, %v6479
        %v6481 = vshrl.u32 %v6336, 16
        %v6483 = vrot.slane %v6481, 4
        %v6484 = vor.u32 %v6483, %v6479
        %v6485 = vrot.slane %v6484, 4
        %v6487 = vshll.u32 %v6337, 16
        %v6489 = vrot.slane %v6487, 5
        %v6490 = vsel %vm434, %v6485, %v6489
        %v6492 = vshrl.u32 %v6338, 16
        %v6494 = vrot.slane %v6492, 4
        %v6495 = vshll.u32 %v6338, 16
        %v6497 = vrot.slane %v6495, 5
        %v6498 = vor.u32 %v6494, %v6497
        %v6499 = vrot.slane %v6498, 4
        %v6501 = vshll.u32 %v6339, 16
        %v6503 = vrot.slane %v6501, 5
        %v6504 = vsel %vm434, %v6499, %v6503
        %v6505 = vshrl.u32 %v6339, 16
        %v6507 = vrot.slane %v6505, 4
        %v6508 = vor.u32 %v6507, %v6503
        %v6509 = vrot.slane %v6508, 4
        %v6511 = vshll.u32 %v6340, 16
        %v6513 = vrot.slane %v6511, 5
        %v6514 = vsel %vm434, %v6509, %v6513
        %v6516 = vshrl.u32 %v6341, 16
        %v6518 = vrot.slane %v6516, 4
        %v6519 = vshll.u32 %v6341, 16
        %v6521 = vrot.slane %v6519, 5
        %v6522 = vor.u32 %v6518, %v6521
        %v6523 = vrot.slane %v6522, 4
        %v6525 = vshll.u32 %v6342, 16
        %v6527 = vrot.slane %v6525, 5
        %v6528 = vsel %vm434, %v6523, %v6527
        %v6529 = vshrl.u32 %v6342, 16
        %v6531 = vrot.slane %v6529, 4
        %v6532 = vor.u32 %v6531, %v6527
        %v6533 = vrot.slane %v6532, 4
        %v6535 = vshll.u32 %v6343, 16
        %v6537 = vrot.slane %v6535, 5
        %v6538 = vsel %vm434, %v6533, %v6537
        %v6540 = vshrl.u32 %v6344, 16
        %v6542 = vrot.slane %v6540, 4
        %v6543 = vshll.u32 %v6344, 16
        %v6545 = vrot.slane %v6543, 5
        %v6546 = vor.u32 %v6542, %v6545
        %v6547 = vrot.slane %v6546, 4
        %v6549 = vshll.u32 %v6345, 16
        %v6551 = vrot.slane %v6549, 5
        %v6552 = vsel %vm434, %v6547, %v6551
        %v6553 = vshrl.u32 %v6345, 16
        %v6555 = vrot.slane %v6553, 4
        %v6556 = vor.u32 %v6555, %v6551
        %v6557 = vrot.slane %v6556, 4
        %v6559 = vshll.u32 %v6346, 16
        %v6561 = vrot.slane %v6559, 5
        %v6562 = vsel %vm434, %v6557, %v6561
        %v6564 = vshrl.u32 %v6347, 16
        %v6566 = vrot.slane %v6564, 4
        %v6567 = vshll.u32 %v6347, 16
        %v6569 = vrot.slane %v6567, 5
        %v6570 = vor.u32 %v6566, %v6569
        %v6571 = vrot.slane %v6570, 4
        %v6573 = vshll.u32 %v6348, 16
        %v6575 = vrot.slane %v6573, 5
        %v6576 = vsel %vm434, %v6571, %v6575
        %v6577 = vshrl.u32 %v6348, 16
        %v6579 = vrot.slane %v6577, 4
        %v6580 = vor.u32 %v6579, %v6575
        %v6581 = vrot.slane %v6580, 4
        %v6583 = vshll.u32 %v6349, 16
        %v6585 = vrot.slane %v6583, 5
        %v6586 = vsel %vm434, %v6581, %v6585
        %v6588 = vshrl.u32 %v6350, 16
        %v6590 = vrot.slane %v6588, 4
        %v6591 = vshll.u32 %v6350, 16
        %v6593 = vrot.slane %v6591, 5
        %v6594 = vor.u32 %v6590, %v6593
        %v6595 = vrot.slane %v6594, 4
        %v6597 = vshll.u32 %v6351, 16
        %v6599 = vrot.slane %v6597, 5
        %v6600 = vsel %vm434, %v6595, %v6599
        %v6601 = vshrl.u32 %v6351, 16
        %v6603 = vrot.slane %v6601, 4
        %v6604 = vor.u32 %v6603, %v6599
        %v6605 = vrot.slane %v6604, 4
        %v6607 = vshll.u32 %v6352, 16
        %v6609 = vrot.slane %v6607, 5
        %v6610 = vsel %vm434, %v6605, %v6609
        %v6612 = vshrl.u32 %v6353, 16
        %v6614 = vrot.slane %v6612, 4
        %v6615 = vshll.u32 %v6353, 16
        %v6617 = vrot.slane %v6615, 5
        %v6618 = vor.u32 %v6614, %v6617
        %v6619 = vrot.slane %v6618, 4
        %v6621 = vshll.u32 %v6354, 16
        %v6623 = vrot.slane %v6621, 5
        %v6624 = vsel %vm434, %v6619, %v6623
        %v6625 = vshrl.u32 %v6354, 16
        %v6627 = vrot.slane %v6625, 4
        %v6628 = vor.u32 %v6627, %v6623
        %v6629 = vrot.slane %v6628, 4
        %v6631 = vshll.u32 %v6355, 16
        %v6633 = vrot.slane %v6631, 5
        %v6634 = vsel %vm434, %v6629, %v6633
        %v6636 = vshrl.u32 %v6356, 16
        %v6638 = vrot.slane %v6636, 4
        %v6639 = vshll.u32 %v6356, 16
        %v6641 = vrot.slane %v6639, 5
        %v6642 = vor.u32 %v6638, %v6641
        %v6643 = vrot.slane %v6642, 4
        %v6645 = vshll.u32 %v6357, 16
        %v6647 = vrot.slane %v6645, 5
        %v6648 = vsel %vm434, %v6643, %v6647
        %v6649 = vshrl.u32 %v6357, 16
        %v6651 = vrot.slane %v6649, 4
        %v6652 = vor.u32 %v6651, %v6647
        %v6653 = vrot.slane %v6652, 4
        %v6655 = vshll.u32 %v6358, 16
        %v6657 = vrot.slane %v6655, 5
        %v6658 = vsel %vm434, %v6653, %v6657
        %v6660 = vshrl.u32 %v6359, 16
        %v6662 = vrot.slane %v6660, 4
        %v6663 = vshll.u32 %v6359, 16
        %v6665 = vrot.slane %v6663, 5
        %v6666 = vor.u32 %v6662, %v6665
        %v6667 = vrot.slane %v6666, 4
        %v6669 = vshll.u32 %v6360, 16
        %v6671 = vrot.slane %v6669, 5
        %v6672 = vsel %vm434, %v6667, %v6671
        %v6673 = vshrl.u32 %v6360, 16
        %v6675 = vrot.slane %v6673, 4
        %v6676 = vor.u32 %v6675, %v6671
        %v6677 = vrot.slane %v6676, 4
        %v6679 = vshll.u32 %v6361, 16
        %v6681 = vrot.slane %v6679, 5
        %v6682 = vsel %vm434, %v6677, %v6681
        %v6684 = vshrl.u32 %v6362, 16
        %v6686 = vrot.slane %v6684, 4
        %v6687 = vshll.u32 %v6362, 16
        %v6689 = vrot.slane %v6687, 5
        %v6690 = vor.u32 %v6686, %v6689
        %v6691 = vrot.slane %v6690, 4
        %v6693 = vshll.u32 %v6363, 16
        %v6695 = vrot.slane %v6693, 5
        %v6696 = vsel %vm434, %v6691, %v6695
        %v6697 = vshrl.u32 %v6363, 16
        %v6699 = vrot.slane %v6697, 4
        %v6700 = vor.u32 %v6699, %v6695
        %v6701 = vrot.slane %v6700, 4
        %v6703 = vshll.u32 %v6364, 16
        %v6705 = vrot.slane %v6703, 5
        %v6706 = vsel %vm434, %v6701, %v6705
        %v6708 = vshrl.u32 %v6365, 16
        %v6710 = vrot.slane %v6708, 4
        %v6711 = vshll.u32 %v6365, 16
        %v6713 = vrot.slane %v6711, 5
        %v6714 = vor.u32 %v6710, %v6713
        %v6715 = vrot.slane %v6714, 4
        %v6717 = vshll.u32 %v6366, 16
        %v6719 = vrot.slane %v6717, 5
        %v6720 = vsel %vm434, %v6715, %v6719
        %v6721 = vshrl.u32 %v6366, 16
        %v6723 = vrot.slane %v6721, 4
        %v6724 = vor.u32 %v6723, %v6719
        %v6725 = vrot.slane %v6724, 4
        %v6727 = vshll.u32 %v6367, 16
        %v6729 = vrot.slane %v6727, 5
        %v6730 = vsel %vm434, %v6725, %v6729
        %v6732 = vshrl.u32 %v6368, 16
        %v6734 = vrot.slane %v6732, 4
        %v6735 = vshll.u32 %v6368, 16
        %v6737 = vrot.slane %v6735, 5
        %v6738 = vor.u32 %v6734, %v6737
        %v6739 = vrot.slane %v6738, 4
        %v6741 = vshll.u32 %v6369, 16
        %v6743 = vrot.slane %v6741, 5
        %v6744 = vsel %vm434, %v6739, %v6743
        %v6745 = vshrl.u32 %v6369, 16
        %v6747 = vrot.slane %v6745, 4
        %v6748 = vor.u32 %v6747, %v6743
        %v6749 = vrot.slane %v6748, 4
        %v6751 = vshll.u32 %v6370, 16
        %v6753 = vrot.slane %v6751, 5
        %v6754 = vsel %vm434, %v6749, %v6753
        %v6755 = vunpack.c.l.b16 %v6384
        %v6756 = vunpack.c.l.b16 %v6394
        %v6757 = vunpack.c.l.b16 %v6408
        %v6758 = vunpack.c.l.b16 %v6418
        %v6759 = vunpack.c.l.b16 %v6432
        %v6760 = vunpack.c.l.b16 %v6442
        %v6761 = vunpack.c.l.b16 %v6456
        %v6762 = vunpack.c.l.b16 %v6466
        %v6763 = vunpack.c.l.b16 %v6480
        %v6764 = vunpack.c.l.b16 %v6490
        %v6765 = vunpack.c.l.b16 %v6504
        %v6766 = vunpack.c.l.b16 %v6514
        %v6767 = vunpack.c.l.b16 %v6528
        %v6768 = vunpack.c.l.b16 %v6538
        %v6769 = vunpack.c.l.b16 %v6552
        %v6770 = vunpack.c.l.b16 %v6562
        %v6771 = vunpack.c.l.b16 %v6576
        %v6772 = vunpack.c.l.b16 %v6586
        %v6773 = vunpack.c.l.b16 %v6600
        %v6774 = vunpack.c.l.b16 %v6610
        %v6775 = vunpack.c.l.b16 %v6624
        %v6776 = vunpack.c.l.b16 %v6634
        %v6777 = vunpack.c.l.b16 %v6648
        %v6778 = vunpack.c.l.b16 %v6658
        %v6779 = vunpack.c.l.b16 %v6672
        %v6780 = vunpack.c.l.b16 %v6682
        %v6781 = vunpack.c.l.b16 %v6696
        %v6782 = vunpack.c.l.b16 %v6706
        %v6783 = vunpack.c.l.b16 %v6720
        %v6784 = vunpack.c.l.b16 %v6730
        %v6785 = vunpack.c.l.b16 %v6744
        %v6786 = vunpack.c.l.b16 %v6754
        %v6787 = vpack.c.b16 %v6756, %v6755
        %v6788 = vpack.c.b16 %v6758, %v6757
        %v6789 = vpack.c.b16 %v6760, %v6759
        %v6790 = vpack.c.b16 %v6762, %v6761
        %v6791 = vpack.c.b16 %v6764, %v6763
        %v6792 = vpack.c.b16 %v6766, %v6765
        %v6793 = vpack.c.b16 %v6768, %v6767
        %v6794 = vpack.c.b16 %v6770, %v6769
        %v6795 = vpack.c.b16 %v6772, %v6771
        %v6796 = vpack.c.b16 %v6774, %v6773
        %v6797 = vpack.c.b16 %v6776, %v6775
        %v6798 = vpack.c.b16 %v6778, %v6777
        %v6799 = vpack.c.b16 %v6780, %v6779
        %v6800 = vpack.c.b16 %v6782, %v6781
        %v6801 = vpack.c.b16 %v6784, %v6783
        %v6802 = vpack.c.b16 %v6786, %v6785
        %6819 = vst [vmem:[#allocation3 + $0x20] sm:$0xff] %v6787
        %6820 = vst [vmem:[#allocation3 + $0x68] sm:$0xff] %v6788
        %6821 = vst [vmem:[#allocation3 + $0xb0] sm:$0xff] %v6789
        %6822 = vst [vmem:[#allocation3 + $0xf8] sm:$0xff] %v6790
        %6823 = vst [vmem:[#allocation3 + $0x140] sm:$0xff] %v6791
        %6824 = vst [vmem:[#allocation3 + $0x188] sm:$0xff] %v6792
        %6825 = vst [vmem:[#allocation3 + $0x1d0] sm:$0xff] %v6793
        %6826 = vst [vmem:[#allocation3 + $0x218] sm:$0xff] %v6794
        %6827 = vst [vmem:[#allocation3 + $0x260] sm:$0xff] %v6795
        %6828 = vst [vmem:[#allocation3 + $0x2a8] sm:$0xff] %v6796
        %6829 = vst [vmem:[#allocation3 + $0x2f0] sm:$0xff] %v6797
        %6830 = vst [vmem:[#allocation3 + $0x338] sm:$0xff] %v6798
        %6831 = vst [vmem:[#allocation3 + $0x380] sm:$0xff] %v6799
        %6832 = vst [vmem:[#allocation3 + $0x3c8] sm:$0xff] %v6800
        %6833 = vst [vmem:[#allocation3 + $0x410] sm:$0xff] %v6801
        %6834 = vst [vmem:[#allocation3 + $0x458] sm:$0xff] %v6802
        %v6835 = vld [vmem:[%s5117] sm:$0xe]
        %v6836 = vld [vmem:[%s5117 + $0x4] sm:$0xf]
        %v6837 = vld [vmem:[%s5117 + $0x8] sm:$0x1]
        %v6838 = vld [vmem:[%s5117 + $0xc] sm:$0xe]
        %v6839 = vld [vmem:[%s5117 + $0x10] sm:$0xf]
        %v6840 = vld [vmem:[%s5117 + $0x14] sm:$0x1]
        %v6841 = vld [vmem:[%s5117 + $0x18] sm:$0xe]
        %v6842 = vld [vmem:[%s5117 + $0x1c] sm:$0xf]
        %v6843 = vld [vmem:[%s5117 + $0x20] sm:$0x1]
        %v6844 = vld [vmem:[%s5117 + $0x24] sm:$0xe]
        %v6845 = vld [vmem:[%s5117 + $0x28] sm:$0xf]
        %v6846 = vld [vmem:[%s5117 + $0x2c] sm:$0x1]
        %v6847 = vld [vmem:[%s5117 + $0x30] sm:$0xe]
        %v6848 = vld [vmem:[%s5117 + $0x34] sm:$0xf]
        %v6849 = vld [vmem:[%s5117 + $0x38] sm:$0x1]
        %v6850 = vld [vmem:[%s5117 + $0x3c] sm:$0xe]
        %v6851 = vld [vmem:[%s5117 + $0x40] sm:$0xf]
        %v6852 = vld [vmem:[%s5117 + $0x44] sm:$0x1]
        %v6853 = vld [vmem:[%s5117 + $0x48] sm:$0xe]
        %v6854 = vld [vmem:[%s5117 + $0x4c] sm:$0xf]
        %v6855 = vld [vmem:[%s5117 + $0x50] sm:$0x1]
        %v6856 = vld [vmem:[%s5117 + $0x54] sm:$0xe]
        %v6857 = vld [vmem:[%s5117 + $0x58] sm:$0xf]
        %v6858 = vld [vmem:[%s5117 + $0x5c] sm:$0x1]
        %v6859 = vld [vmem:[%s5117 + $0x60] sm:$0xe]
        %v6860 = vld [vmem:[%s5117 + $0x64] sm:$0xf]
        %v6861 = vld [vmem:[%s5117 + $0x68] sm:$0x1]
        %v6862 = vld [vmem:[%s5117 + $0x6c] sm:$0xe]
        %v6863 = vld [vmem:[%s5117 + $0x70] sm:$0xf]
        %v6864 = vld [vmem:[%s5117 + $0x74] sm:$0x1]
        %v6865 = vld [vmem:[%s5117 + $0x78] sm:$0xe]
        %v6866 = vld [vmem:[%s5117 + $0x7c] sm:$0xf]
        %v6867 = vld [vmem:[%s5117 + $0x80] sm:$0x1]
        %v6868 = vld [vmem:[%s5117 + $0x84] sm:$0xe]
        %v6869 = vld [vmem:[%s5117 + $0x88] sm:$0xf]
        %v6870 = vld [vmem:[%s5117 + $0x8c] sm:$0x1]
        %v6871 = vld [vmem:[%s5117 + $0x90] sm:$0xe]
        %v6872 = vld [vmem:[%s5117 + $0x94] sm:$0xf]
        %v6873 = vld [vmem:[%s5117 + $0x98] sm:$0x1]
        %v6874 = vld [vmem:[%s5117 + $0x9c] sm:$0xe]
        %v6875 = vld [vmem:[%s5117 + $0xa0] sm:$0xf]
        %v6876 = vld [vmem:[%s5117 + $0xa4] sm:$0x1]
        %v6877 = vld [vmem:[%s5117 + $0xa8] sm:$0xe]
        %v6878 = vld [vmem:[%s5117 + $0xac] sm:$0xf]
        %v6879 = vld [vmem:[%s5117 + $0xb0] sm:$0x1]
        %v6880 = vld [vmem:[%s5117 + $0xb4] sm:$0xe]
        %v6881 = vld [vmem:[%s5117 + $0xb8] sm:$0xf]
        %v6882 = vld [vmem:[%s5117 + $0xbc] sm:$0x1]
        %v6931 = vrot.slane %v6835, 5
        %v6932 = vrot.slane %v6931, 4
        %v6933 = vrot.slane %v6836, 5
        %v6934 = vsel %vm997, %v6932, %v6933
        %v6935 = vrot.slane %v6933, 4
        %v6936 = vrot.slane %v6837, 5
        %v6937 = vsel %vm997, %v6935, %v6936
        %v6938 = vrot.slane %v6838, 5
        %v6939 = vrot.slane %v6938, 4
        %v6940 = vrot.slane %v6839, 5
        %v6941 = vsel %vm997, %v6939, %v6940
        %v6942 = vrot.slane %v6940, 4
        %v6943 = vrot.slane %v6840, 5
        %v6944 = vsel %vm997, %v6942, %v6943
        %v6945 = vrot.slane %v6841, 5
        %v6946 = vrot.slane %v6945, 4
        %v6947 = vrot.slane %v6842, 5
        %v6948 = vsel %vm997, %v6946, %v6947
        %v6949 = vrot.slane %v6947, 4
        %v6950 = vrot.slane %v6843, 5
        %v6951 = vsel %vm997, %v6949, %v6950
        %v6952 = vrot.slane %v6844, 5
        %v6953 = vrot.slane %v6952, 4
        %v6954 = vrot.slane %v6845, 5
        %v6955 = vsel %vm997, %v6953, %v6954
        %v6956 = vrot.slane %v6954, 4
        %v6957 = vrot.slane %v6846, 5
        %v6958 = vsel %vm997, %v6956, %v6957
        %v6959 = vrot.slane %v6847, 5
        %v6960 = vrot.slane %v6959, 4
        %v6961 = vrot.slane %v6848, 5
        %v6962 = vsel %vm997, %v6960, %v6961
        %v6963 = vrot.slane %v6961, 4
        %v6964 = vrot.slane %v6849, 5
        %v6965 = vsel %vm997, %v6963, %v6964
        %v6966 = vrot.slane %v6850, 5
        %v6967 = vrot.slane %v6966, 4
        %v6968 = vrot.slane %v6851, 5
        %v6969 = vsel %vm997, %v6967, %v6968
        %v6970 = vrot.slane %v6968, 4
        %v6971 = vrot.slane %v6852, 5
        %v6972 = vsel %vm997, %v6970, %v6971
        %v6973 = vrot.slane %v6853, 5
        %v6974 = vrot.slane %v6973, 4
        %v6975 = vrot.slane %v6854, 5
        %v6976 = vsel %vm997, %v6974, %v6975
        %v6977 = vrot.slane %v6975, 4
        %v6978 = vrot.slane %v6855, 5
        %v6979 = vsel %vm997, %v6977, %v6978
        %v6980 = vrot.slane %v6856, 5
        %v6981 = vrot.slane %v6980, 4
        %v6982 = vrot.slane %v6857, 5
        %v6983 = vsel %vm997, %v6981, %v6982
        %v6984 = vrot.slane %v6982, 4
        %v6985 = vrot.slane %v6858, 5
        %v6986 = vsel %vm997, %v6984, %v6985
        %v6987 = vrot.slane %v6859, 5
        %v6988 = vrot.slane %v6987, 4
        %v6989 = vrot.slane %v6860, 5
        %v6990 = vsel %vm997, %v6988, %v6989
        %v6991 = vrot.slane %v6989, 4
        %v6992 = vrot.slane %v6861, 5
        %v6993 = vsel %vm997, %v6991, %v6992
        %v6994 = vrot.slane %v6862, 5
        %v6995 = vrot.slane %v6994, 4
        %v6996 = vrot.slane %v6863, 5
        %v6997 = vsel %vm997, %v6995, %v6996
        %v6998 = vrot.slane %v6996, 4
        %v6999 = vrot.slane %v6864, 5
        %v7000 = vsel %vm997, %v6998, %v6999
        %v7001 = vrot.slane %v6865, 5
        %v7002 = vrot.slane %v7001, 4
        %v7003 = vrot.slane %v6866, 5
        %v7004 = vsel %vm997, %v7002, %v7003
        %v7005 = vrot.slane %v7003, 4
        %v7006 = vrot.slane %v6867, 5
        %v7007 = vsel %vm997, %v7005, %v7006
        %v7008 = vrot.slane %v6868, 5
        %v7009 = vrot.slane %v7008, 4
        %v7010 = vrot.slane %v6869, 5
        %v7011 = vsel %vm997, %v7009, %v7010
        %v7012 = vrot.slane %v7010, 4
        %v7013 = vrot.slane %v6870, 5
        %v7014 = vsel %vm997, %v7012, %v7013
        %v7015 = vrot.slane %v6871, 5
        %v7016 = vrot.slane %v7015, 4
        %v7017 = vrot.slane %v6872, 5
        %v7018 = vsel %vm997, %v7016, %v7017
        %v7019 = vrot.slane %v7017, 4
        %v7020 = vrot.slane %v6873, 5
        %v7021 = vsel %vm997, %v7019, %v7020
        %v7022 = vrot.slane %v6874, 5
        %v7023 = vrot.slane %v7022, 4
        %v7024 = vrot.slane %v6875, 5
        %v7025 = vsel %vm997, %v7023, %v7024
        %v7026 = vrot.slane %v7024, 4
        %v7027 = vrot.slane %v6876, 5
        %v7028 = vsel %vm997, %v7026, %v7027
        %v7029 = vrot.slane %v6877, 5
        %v7030 = vrot.slane %v7029, 4
        %v7031 = vrot.slane %v6878, 5
        %v7032 = vsel %vm997, %v7030, %v7031
        %v7033 = vrot.slane %v7031, 4
        %v7034 = vrot.slane %v6879, 5
        %v7035 = vsel %vm997, %v7033, %v7034
        %v7036 = vrot.slane %v6880, 5
        %v7037 = vrot.slane %v7036, 4
        %v7038 = vrot.slane %v6881, 5
        %v7039 = vsel %vm997, %v7037, %v7038
        %v7040 = vrot.slane %v7038, 4
        %v7041 = vrot.slane %v6882, 5
        %v7042 = vsel %vm997, %v7040, %v7041
        %v7043 = vunpack.c.l.b16 %v6934
        %v7044 = vunpack.c.l.b16 %v6937
        %v7045 = vunpack.c.l.b16 %v6941
        %v7046 = vunpack.c.l.b16 %v6944
        %v7047 = vunpack.c.l.b16 %v6948
        %v7048 = vunpack.c.l.b16 %v6951
        %v7049 = vunpack.c.l.b16 %v6955
        %v7050 = vunpack.c.l.b16 %v6958
        %v7051 = vunpack.c.l.b16 %v6962
        %v7052 = vunpack.c.l.b16 %v6965
        %v7053 = vunpack.c.l.b16 %v6969
        %v7054 = vunpack.c.l.b16 %v6972
        %v7055 = vunpack.c.l.b16 %v6976
        %v7056 = vunpack.c.l.b16 %v6979
        %v7057 = vunpack.c.l.b16 %v6983
        %v7058 = vunpack.c.l.b16 %v6986
        %v7059 = vunpack.c.l.b16 %v6990
        %v7060 = vunpack.c.l.b16 %v6993
        %v7061 = vunpack.c.l.b16 %v6997
        %v7062 = vunpack.c.l.b16 %v7000
        %v7063 = vunpack.c.l.b16 %v7004
        %v7064 = vunpack.c.l.b16 %v7007
        %v7065 = vunpack.c.l.b16 %v7011
        %v7066 = vunpack.c.l.b16 %v7014
        %v7067 = vunpack.c.l.b16 %v7018
        %v7068 = vunpack.c.l.b16 %v7021
        %v7069 = vunpack.c.l.b16 %v7025
        %v7070 = vunpack.c.l.b16 %v7028
        %v7071 = vunpack.c.l.b16 %v7032
        %v7072 = vunpack.c.l.b16 %v7035
        %v7073 = vunpack.c.l.b16 %v7039
        %v7074 = vunpack.c.l.b16 %v7042
        %v7075 = vpack.c.b16 %v7044, %v7043
        %v7076 = vpack.c.b16 %v7046, %v7045
        %v7077 = vpack.c.b16 %v7048, %v7047
        %v7078 = vpack.c.b16 %v7050, %v7049
        %v7079 = vpack.c.b16 %v7052, %v7051
        %v7080 = vpack.c.b16 %v7054, %v7053
        %v7081 = vpack.c.b16 %v7056, %v7055
        %v7082 = vpack.c.b16 %v7058, %v7057
        %v7083 = vpack.c.b16 %v7060, %v7059
        %v7084 = vpack.c.b16 %v7062, %v7061
        %v7085 = vpack.c.b16 %v7064, %v7063
        %v7086 = vpack.c.b16 %v7066, %v7065
        %v7087 = vpack.c.b16 %v7068, %v7067
        %v7088 = vpack.c.b16 %v7070, %v7069
        %v7089 = vpack.c.b16 %v7072, %v7071
        %v7090 = vpack.c.b16 %v7074, %v7073
        %7107 = vst [vmem:[#allocation3 + $0x28] sm:$0xff] %v7075
        %7108 = vst [vmem:[#allocation3 + $0x70] sm:$0xff] %v7076
        %7109 = vst [vmem:[#allocation3 + $0xb8] sm:$0xff] %v7077
        %7110 = vst [vmem:[#allocation3 + $0x100] sm:$0xff] %v7078
        %7111 = vst [vmem:[#allocation3 + $0x148] sm:$0xff] %v7079
        %7112 = vst [vmem:[#allocation3 + $0x190] sm:$0xff] %v7080
        %7113 = vst [vmem:[#allocation3 + $0x1d8] sm:$0xff] %v7081
        %7114 = vst [vmem:[#allocation3 + $0x220] sm:$0xff] %v7082
        %7115 = vst [vmem:[#allocation3 + $0x268] sm:$0xff] %v7083
        %7116 = vst [vmem:[#allocation3 + $0x2b0] sm:$0xff] %v7084
        %7117 = vst [vmem:[#allocation3 + $0x2f8] sm:$0xff] %v7085
        %7118 = vst [vmem:[#allocation3 + $0x340] sm:$0xff] %v7086
        %7119 = vst [vmem:[#allocation3 + $0x388] sm:$0xff] %v7087
        %7120 = vst [vmem:[#allocation3 + $0x3d0] sm:$0xff] %v7088
        %7121 = vst [vmem:[#allocation3 + $0x418] sm:$0xff] %v7089
        %7122 = vst [vmem:[#allocation3 + $0x460] sm:$0xff] %v7090
        %s7123 = scalar_lea.vmem [#allocation2], 24
        %v7124 = vld [vmem:[%s7123] sm:$0xf]
        %v7125 = vld [vmem:[%s7123 + $0x4] sm:$0xf]
        %v7126 = vld [vmem:[%s7123 + $0xc] sm:$0xf]
        %v7127 = vld [vmem:[%s7123 + $0x10] sm:$0xf]
        %v7128 = vld [vmem:[%s7123 + $0x18] sm:$0xf]
        %v7129 = vld [vmem:[%s7123 + $0x1c] sm:$0xf]
        %v7130 = vld [vmem:[%s7123 + $0x24] sm:$0xf]
        %v7131 = vld [vmem:[%s7123 + $0x28] sm:$0xf]
        %v7132 = vld [vmem:[%s7123 + $0x30] sm:$0xf]
        %v7133 = vld [vmem:[%s7123 + $0x34] sm:$0xf]
        %v7134 = vld [vmem:[%s7123 + $0x3c] sm:$0xf]
        %v7135 = vld [vmem:[%s7123 + $0x40] sm:$0xf]
        %v7136 = vld [vmem:[%s7123 + $0x48] sm:$0xf]
        %v7137 = vld [vmem:[%s7123 + $0x4c] sm:$0xf]
        %v7138 = vld [vmem:[%s7123 + $0x54] sm:$0xf]
        %v7139 = vld [vmem:[%s7123 + $0x58] sm:$0xf]
        %v7140 = vld [vmem:[%s7123 + $0x60] sm:$0xf]
        %v7141 = vld [vmem:[%s7123 + $0x64] sm:$0xf]
        %v7142 = vld [vmem:[%s7123 + $0x6c] sm:$0xf]
        %v7143 = vld [vmem:[%s7123 + $0x70] sm:$0xf]
        %v7144 = vld [vmem:[%s7123 + $0x78] sm:$0xf]
        %v7145 = vld [vmem:[%s7123 + $0x7c] sm:$0xf]
        %v7146 = vld [vmem:[%s7123 + $0x84] sm:$0xf]
        %v7147 = vld [vmem:[%s7123 + $0x88] sm:$0xf]
        %v7148 = vld [vmem:[%s7123 + $0x90] sm:$0xf]
        %v7149 = vld [vmem:[%s7123 + $0x94] sm:$0xf]
        %v7150 = vld [vmem:[%s7123 + $0x9c] sm:$0xf]
        %v7151 = vld [vmem:[%s7123 + $0xa0] sm:$0xf]
        %v7152 = vld [vmem:[%s7123 + $0xa8] sm:$0xf]
        %v7153 = vld [vmem:[%s7123 + $0xac] sm:$0xf]
        %v7154 = vld [vmem:[%s7123 + $0xb4] sm:$0xf]
        %v7155 = vld [vmem:[%s7123 + $0xb8] sm:$0xf]
        %v7188 = vunpack.c.l.b16 %v7124
        %v7189 = vunpack.c.l.b16 %v7125
        %v7190 = vunpack.c.l.b16 %v7126
        %v7191 = vunpack.c.l.b16 %v7127
        %v7192 = vunpack.c.l.b16 %v7128
        %v7193 = vunpack.c.l.b16 %v7129
        %v7194 = vunpack.c.l.b16 %v7130
        %v7195 = vunpack.c.l.b16 %v7131
        %v7196 = vunpack.c.l.b16 %v7132
        %v7197 = vunpack.c.l.b16 %v7133
        %v7198 = vunpack.c.l.b16 %v7134
        %v7199 = vunpack.c.l.b16 %v7135
        %v7200 = vunpack.c.l.b16 %v7136
        %v7201 = vunpack.c.l.b16 %v7137
        %v7202 = vunpack.c.l.b16 %v7138
        %v7203 = vunpack.c.l.b16 %v7139
        %v7204 = vunpack.c.l.b16 %v7140
        %v7205 = vunpack.c.l.b16 %v7141
        %v7206 = vunpack.c.l.b16 %v7142
        %v7207 = vunpack.c.l.b16 %v7143
        %v7208 = vunpack.c.l.b16 %v7144
        %v7209 = vunpack.c.l.b16 %v7145
        %v7210 = vunpack.c.l.b16 %v7146
        %v7211 = vunpack.c.l.b16 %v7147
        %v7212 = vunpack.c.l.b16 %v7148
        %v7213 = vunpack.c.l.b16 %v7149
        %v7214 = vunpack.c.l.b16 %v7150
        %v7215 = vunpack.c.l.b16 %v7151
        %v7216 = vunpack.c.l.b16 %v7152
        %v7217 = vunpack.c.l.b16 %v7153
        %v7218 = vunpack.c.l.b16 %v7154
        %v7219 = vunpack.c.l.b16 %v7155
        %v7220 = vpack.c.b16 %v7189, %v7188
        %v7221 = vpack.c.b16 %v7191, %v7190
        %v7222 = vpack.c.b16 %v7193, %v7192
        %v7223 = vpack.c.b16 %v7195, %v7194
        %v7224 = vpack.c.b16 %v7197, %v7196
        %v7225 = vpack.c.b16 %v7199, %v7198
        %v7226 = vpack.c.b16 %v7201, %v7200
        %v7227 = vpack.c.b16 %v7203, %v7202
        %v7228 = vpack.c.b16 %v7205, %v7204
        %v7229 = vpack.c.b16 %v7207, %v7206
        %v7230 = vpack.c.b16 %v7209, %v7208
        %v7231 = vpack.c.b16 %v7211, %v7210
        %v7232 = vpack.c.b16 %v7213, %v7212
        %v7233 = vpack.c.b16 %v7215, %v7214
        %v7234 = vpack.c.b16 %v7217, %v7216
        %v7235 = vpack.c.b16 %v7219, %v7218
        %7252 = vst [vmem:[#allocation3 + $0x30] sm:$0xff] %v7220
        %7253 = vst [vmem:[#allocation3 + $0x78] sm:$0xff] %v7221
        %7254 = vst [vmem:[#allocation3 + $0xc0] sm:$0xff] %v7222
        %7255 = vst [vmem:[#allocation3 + $0x108] sm:$0xff] %v7223
        %7256 = vst [vmem:[#allocation3 + $0x150] sm:$0xff] %v7224
        %7257 = vst [vmem:[#allocation3 + $0x198] sm:$0xff] %v7225
        %7258 = vst [vmem:[#allocation3 + $0x1e0] sm:$0xff] %v7226
        %7259 = vst [vmem:[#allocation3 + $0x228] sm:$0xff] %v7227
        %7260 = vst [vmem:[#allocation3 + $0x270] sm:$0xff] %v7228
        %7261 = vst [vmem:[#allocation3 + $0x2b8] sm:$0xff] %v7229
        %7262 = vst [vmem:[#allocation3 + $0x300] sm:$0xff] %v7230
        %7263 = vst [vmem:[#allocation3 + $0x348] sm:$0xff] %v7231
        %7264 = vst [vmem:[#allocation3 + $0x390] sm:$0xff] %v7232
        %7265 = vst [vmem:[#allocation3 + $0x3d8] sm:$0xff] %v7233
        %7266 = vst [vmem:[#allocation3 + $0x420] sm:$0xff] %v7234
        %7267 = vst [vmem:[#allocation3 + $0x468] sm:$0xff] %v7235
        %v7268 = vld [vmem:[%s7123] sm:$0xf]
        %v7269 = vld [vmem:[%s7123 + $0x4] sm:$0xf]
        %v7270 = vld [vmem:[%s7123 + $0x8] sm:$0x1]
        %v7271 = vld [vmem:[%s7123 + $0xc] sm:$0xf]
        %v7272 = vld [vmem:[%s7123 + $0x10] sm:$0xf]
        %v7273 = vld [vmem:[%s7123 + $0x14] sm:$0x1]
        %v7274 = vld [vmem:[%s7123 + $0x18] sm:$0xf]
        %v7275 = vld [vmem:[%s7123 + $0x1c] sm:$0xf]
        %v7276 = vld [vmem:[%s7123 + $0x20] sm:$0x1]
        %v7277 = vld [vmem:[%s7123 + $0x24] sm:$0xf]
        %v7278 = vld [vmem:[%s7123 + $0x28] sm:$0xf]
        %v7279 = vld [vmem:[%s7123 + $0x2c] sm:$0x1]
        %v7280 = vld [vmem:[%s7123 + $0x30] sm:$0xf]
        %v7281 = vld [vmem:[%s7123 + $0x34] sm:$0xf]
        %v7282 = vld [vmem:[%s7123 + $0x38] sm:$0x1]
        %v7283 = vld [vmem:[%s7123 + $0x3c] sm:$0xf]
        %v7284 = vld [vmem:[%s7123 + $0x40] sm:$0xf]
        %v7285 = vld [vmem:[%s7123 + $0x44] sm:$0x1]
        %v7286 = vld [vmem:[%s7123 + $0x48] sm:$0xf]
        %v7287 = vld [vmem:[%s7123 + $0x4c] sm:$0xf]
        %v7288 = vld [vmem:[%s7123 + $0x50] sm:$0x1]
        %v7289 = vld [vmem:[%s7123 + $0x54] sm:$0xf]
        %v7290 = vld [vmem:[%s7123 + $0x58] sm:$0xf]
        %v7291 = vld [vmem:[%s7123 + $0x5c] sm:$0x1]
        %v7292 = vld [vmem:[%s7123 + $0x60] sm:$0xf]
        %v7293 = vld [vmem:[%s7123 + $0x64] sm:$0xf]
        %v7294 = vld [vmem:[%s7123 + $0x68] sm:$0x1]
        %v7295 = vld [vmem:[%s7123 + $0x6c] sm:$0xf]
        %v7296 = vld [vmem:[%s7123 + $0x70] sm:$0xf]
        %v7297 = vld [vmem:[%s7123 + $0x74] sm:$0x1]
        %v7298 = vld [vmem:[%s7123 + $0x78] sm:$0xf]
        %v7299 = vld [vmem:[%s7123 + $0x7c] sm:$0xf]
        %v7300 = vld [vmem:[%s7123 + $0x80] sm:$0x1]
        %v7301 = vld [vmem:[%s7123 + $0x84] sm:$0xf]
        %v7302 = vld [vmem:[%s7123 + $0x88] sm:$0xf]
        %v7303 = vld [vmem:[%s7123 + $0x8c] sm:$0x1]
        %v7304 = vld [vmem:[%s7123 + $0x90] sm:$0xf]
        %v7305 = vld [vmem:[%s7123 + $0x94] sm:$0xf]
        %v7306 = vld [vmem:[%s7123 + $0x98] sm:$0x1]
        %v7307 = vld [vmem:[%s7123 + $0x9c] sm:$0xf]
        %v7308 = vld [vmem:[%s7123 + $0xa0] sm:$0xf]
        %v7309 = vld [vmem:[%s7123 + $0xa4] sm:$0x1]
        %v7310 = vld [vmem:[%s7123 + $0xa8] sm:$0xf]
        %v7311 = vld [vmem:[%s7123 + $0xac] sm:$0xf]
        %v7312 = vld [vmem:[%s7123 + $0xb0] sm:$0x1]
        %v7313 = vld [vmem:[%s7123 + $0xb4] sm:$0xf]
        %v7314 = vld [vmem:[%s7123 + $0xb8] sm:$0xf]
        %v7315 = vld [vmem:[%s7123 + $0xbc] sm:$0x1]
        %v7317 = vshrl.u32 %v7268, 16
        %v7319 = vrot.slane %v7317, 4
        %v7320 = vshll.u32 %v7268, 16
        %v7322 = vrot.slane %v7320, 5
        %v7323 = vor.u32 %v7319, %v7322
        %v7324 = vrot.slane %v7323, 4
        %v7326 = vshll.u32 %v7269, 16
        %v7328 = vrot.slane %v7326, 5
        %v7329 = vsel %vm434, %v7324, %v7328
        %v7330 = vshrl.u32 %v7269, 16
        %v7332 = vrot.slane %v7330, 4
        %v7333 = vor.u32 %v7332, %v7328
        %v7334 = vrot.slane %v7333, 4
        %v7336 = vshll.u32 %v7270, 16
        %v7338 = vrot.slane %v7336, 5
        %v7339 = vsel %vm434, %v7334, %v7338
        %v7341 = vshrl.u32 %v7271, 16
        %v7343 = vrot.slane %v7341, 4
        %v7344 = vshll.u32 %v7271, 16
        %v7346 = vrot.slane %v7344, 5
        %v7347 = vor.u32 %v7343, %v7346
        %v7348 = vrot.slane %v7347, 4
        %v7350 = vshll.u32 %v7272, 16
        %v7352 = vrot.slane %v7350, 5
        %v7353 = vsel %vm434, %v7348, %v7352
        %v7354 = vshrl.u32 %v7272, 16
        %v7356 = vrot.slane %v7354, 4
        %v7357 = vor.u32 %v7356, %v7352
        %v7358 = vrot.slane %v7357, 4
        %v7360 = vshll.u32 %v7273, 16
        %v7362 = vrot.slane %v7360, 5
        %v7363 = vsel %vm434, %v7358, %v7362
        %v7365 = vshrl.u32 %v7274, 16
        %v7367 = vrot.slane %v7365, 4
        %v7368 = vshll.u32 %v7274, 16
        %v7370 = vrot.slane %v7368, 5
        %v7371 = vor.u32 %v7367, %v7370
        %v7372 = vrot.slane %v7371, 4
        %v7374 = vshll.u32 %v7275, 16
        %v7376 = vrot.slane %v7374, 5
        %v7377 = vsel %vm434, %v7372, %v7376
        %v7378 = vshrl.u32 %v7275, 16
        %v7380 = vrot.slane %v7378, 4
        %v7381 = vor.u32 %v7380, %v7376
        %v7382 = vrot.slane %v7381, 4
        %v7384 = vshll.u32 %v7276, 16
        %v7386 = vrot.slane %v7384, 5
        %v7387 = vsel %vm434, %v7382, %v7386
        %v7389 = vshrl.u32 %v7277, 16
        %v7391 = vrot.slane %v7389, 4
        %v7392 = vshll.u32 %v7277, 16
        %v7394 = vrot.slane %v7392, 5
        %v7395 = vor.u32 %v7391, %v7394
        %v7396 = vrot.slane %v7395, 4
        %v7398 = vshll.u32 %v7278, 16
        %v7400 = vrot.slane %v7398, 5
        %v7401 = vsel %vm434, %v7396, %v7400
        %v7402 = vshrl.u32 %v7278, 16
        %v7404 = vrot.slane %v7402, 4
        %v7405 = vor.u32 %v7404, %v7400
        %v7406 = vrot.slane %v7405, 4
        %v7408 = vshll.u32 %v7279, 16
        %v7410 = vrot.slane %v7408, 5
        %v7411 = vsel %vm434, %v7406, %v7410
        %v7413 = vshrl.u32 %v7280, 16
        %v7415 = vrot.slane %v7413, 4
        %v7416 = vshll.u32 %v7280, 16
        %v7418 = vrot.slane %v7416, 5
        %v7419 = vor.u32 %v7415, %v7418
        %v7420 = vrot.slane %v7419, 4
        %v7422 = vshll.u32 %v7281, 16
        %v7424 = vrot.slane %v7422, 5
        %v7425 = vsel %vm434, %v7420, %v7424
        %v7426 = vshrl.u32 %v7281, 16
        %v7428 = vrot.slane %v7426, 4
        %v7429 = vor.u32 %v7428, %v7424
        %v7430 = vrot.slane %v7429, 4
        %v7432 = vshll.u32 %v7282, 16
        %v7434 = vrot.slane %v7432, 5
        %v7435 = vsel %vm434, %v7430, %v7434
        %v7437 = vshrl.u32 %v7283, 16
        %v7439 = vrot.slane %v7437, 4
        %v7440 = vshll.u32 %v7283, 16
        %v7442 = vrot.slane %v7440, 5
        %v7443 = vor.u32 %v7439, %v7442
        %v7444 = vrot.slane %v7443, 4
        %v7446 = vshll.u32 %v7284, 16
        %v7448 = vrot.slane %v7446, 5
        %v7449 = vsel %vm434, %v7444, %v7448
        %v7450 = vshrl.u32 %v7284, 16
        %v7452 = vrot.slane %v7450, 4
        %v7453 = vor.u32 %v7452, %v7448
        %v7454 = vrot.slane %v7453, 4
        %v7456 = vshll.u32 %v7285, 16
        %v7458 = vrot.slane %v7456, 5
        %v7459 = vsel %vm434, %v7454, %v7458
        %v7461 = vshrl.u32 %v7286, 16
        %v7463 = vrot.slane %v7461, 4
        %v7464 = vshll.u32 %v7286, 16
        %v7466 = vrot.slane %v7464, 5
        %v7467 = vor.u32 %v7463, %v7466
        %v7468 = vrot.slane %v7467, 4
        %v7470 = vshll.u32 %v7287, 16
        %v7472 = vrot.slane %v7470, 5
        %v7473 = vsel %vm434, %v7468, %v7472
        %v7474 = vshrl.u32 %v7287, 16
        %v7476 = vrot.slane %v7474, 4
        %v7477 = vor.u32 %v7476, %v7472
        %v7478 = vrot.slane %v7477, 4
        %v7480 = vshll.u32 %v7288, 16
        %v7482 = vrot.slane %v7480, 5
        %v7483 = vsel %vm434, %v7478, %v7482
        %v7485 = vshrl.u32 %v7289, 16
        %v7487 = vrot.slane %v7485, 4
        %v7488 = vshll.u32 %v7289, 16
        %v7490 = vrot.slane %v7488, 5
        %v7491 = vor.u32 %v7487, %v7490
        %v7492 = vrot.slane %v7491, 4
        %v7494 = vshll.u32 %v7290, 16
        %v7496 = vrot.slane %v7494, 5
        %v7497 = vsel %vm434, %v7492, %v7496
        %v7498 = vshrl.u32 %v7290, 16
        %v7500 = vrot.slane %v7498, 4
        %v7501 = vor.u32 %v7500, %v7496
        %v7502 = vrot.slane %v7501, 4
        %v7504 = vshll.u32 %v7291, 16
        %v7506 = vrot.slane %v7504, 5
        %v7507 = vsel %vm434, %v7502, %v7506
        %v7509 = vshrl.u32 %v7292, 16
        %v7511 = vrot.slane %v7509, 4
        %v7512 = vshll.u32 %v7292, 16
        %v7514 = vrot.slane %v7512, 5
        %v7515 = vor.u32 %v7511, %v7514
        %v7516 = vrot.slane %v7515, 4
        %v7518 = vshll.u32 %v7293, 16
        %v7520 = vrot.slane %v7518, 5
        %v7521 = vsel %vm434, %v7516, %v7520
        %v7522 = vshrl.u32 %v7293, 16
        %v7524 = vrot.slane %v7522, 4
        %v7525 = vor.u32 %v7524, %v7520
        %v7526 = vrot.slane %v7525, 4
        %v7528 = vshll.u32 %v7294, 16
        %v7530 = vrot.slane %v7528, 5
        %v7531 = vsel %vm434, %v7526, %v7530
        %v7533 = vshrl.u32 %v7295, 16
        %v7535 = vrot.slane %v7533, 4
        %v7536 = vshll.u32 %v7295, 16
        %v7538 = vrot.slane %v7536, 5
        %v7539 = vor.u32 %v7535, %v7538
        %v7540 = vrot.slane %v7539, 4
        %v7542 = vshll.u32 %v7296, 16
        %v7544 = vrot.slane %v7542, 5
        %v7545 = vsel %vm434, %v7540, %v7544
        %v7546 = vshrl.u32 %v7296, 16
        %v7548 = vrot.slane %v7546, 4
        %v7549 = vor.u32 %v7548, %v7544
        %v7550 = vrot.slane %v7549, 4
        %v7552 = vshll.u32 %v7297, 16
        %v7554 = vrot.slane %v7552, 5
        %v7555 = vsel %vm434, %v7550, %v7554
        %v7557 = vshrl.u32 %v7298, 16
        %v7559 = vrot.slane %v7557, 4
        %v7560 = vshll.u32 %v7298, 16
        %v7562 = vrot.slane %v7560, 5
        %v7563 = vor.u32 %v7559, %v7562
        %v7564 = vrot.slane %v7563, 4
        %v7566 = vshll.u32 %v7299, 16
        %v7568 = vrot.slane %v7566, 5
        %v7569 = vsel %vm434, %v7564, %v7568
        %v7570 = vshrl.u32 %v7299, 16
        %v7572 = vrot.slane %v7570, 4
        %v7573 = vor.u32 %v7572, %v7568
        %v7574 = vrot.slane %v7573, 4
        %v7576 = vshll.u32 %v7300, 16
        %v7578 = vrot.slane %v7576, 5
        %v7579 = vsel %vm434, %v7574, %v7578
        %v7581 = vshrl.u32 %v7301, 16
        %v7583 = vrot.slane %v7581, 4
        %v7584 = vshll.u32 %v7301, 16
        %v7586 = vrot.slane %v7584, 5
        %v7587 = vor.u32 %v7583, %v7586
        %v7588 = vrot.slane %v7587, 4
        %v7590 = vshll.u32 %v7302, 16
        %v7592 = vrot.slane %v7590, 5
        %v7593 = vsel %vm434, %v7588, %v7592
        %v7594 = vshrl.u32 %v7302, 16
        %v7596 = vrot.slane %v7594, 4
        %v7597 = vor.u32 %v7596, %v7592
        %v7598 = vrot.slane %v7597, 4
        %v7600 = vshll.u32 %v7303, 16
        %v7602 = vrot.slane %v7600, 5
        %v7603 = vsel %vm434, %v7598, %v7602
        %v7605 = vshrl.u32 %v7304, 16
        %v7607 = vrot.slane %v7605, 4
        %v7608 = vshll.u32 %v7304, 16
        %v7610 = vrot.slane %v7608, 5
        %v7611 = vor.u32 %v7607, %v7610
        %v7612 = vrot.slane %v7611, 4
        %v7614 = vshll.u32 %v7305, 16
        %v7616 = vrot.slane %v7614, 5
        %v7617 = vsel %vm434, %v7612, %v7616
        %v7618 = vshrl.u32 %v7305, 16
        %v7620 = vrot.slane %v7618, 4
        %v7621 = vor.u32 %v7620, %v7616
        %v7622 = vrot.slane %v7621, 4
        %v7624 = vshll.u32 %v7306, 16
        %v7626 = vrot.slane %v7624, 5
        %v7627 = vsel %vm434, %v7622, %v7626
        %v7629 = vshrl.u32 %v7307, 16
        %v7631 = vrot.slane %v7629, 4
        %v7632 = vshll.u32 %v7307, 16
        %v7634 = vrot.slane %v7632, 5
        %v7635 = vor.u32 %v7631, %v7634
        %v7636 = vrot.slane %v7635, 4
        %v7638 = vshll.u32 %v7308, 16
        %v7640 = vrot.slane %v7638, 5
        %v7641 = vsel %vm434, %v7636, %v7640
        %v7642 = vshrl.u32 %v7308, 16
        %v7644 = vrot.slane %v7642, 4
        %v7645 = vor.u32 %v7644, %v7640
        %v7646 = vrot.slane %v7645, 4
        %v7648 = vshll.u32 %v7309, 16
        %v7650 = vrot.slane %v7648, 5
        %v7651 = vsel %vm434, %v7646, %v7650
        %v7653 = vshrl.u32 %v7310, 16
        %v7655 = vrot.slane %v7653, 4
        %v7656 = vshll.u32 %v7310, 16
        %v7658 = vrot.slane %v7656, 5
        %v7659 = vor.u32 %v7655, %v7658
        %v7660 = vrot.slane %v7659, 4
        %v7662 = vshll.u32 %v7311, 16
        %v7664 = vrot.slane %v7662, 5
        %v7665 = vsel %vm434, %v7660, %v7664
        %v7666 = vshrl.u32 %v7311, 16
        %v7668 = vrot.slane %v7666, 4
        %v7669 = vor.u32 %v7668, %v7664
        %v7670 = vrot.slane %v7669, 4
        %v7672 = vshll.u32 %v7312, 16
        %v7674 = vrot.slane %v7672, 5
        %v7675 = vsel %vm434, %v7670, %v7674
        %v7677 = vshrl.u32 %v7313, 16
        %v7679 = vrot.slane %v7677, 4
        %v7680 = vshll.u32 %v7313, 16
        %v7682 = vrot.slane %v7680, 5
        %v7683 = vor.u32 %v7679, %v7682
        %v7684 = vrot.slane %v7683, 4
        %v7686 = vshll.u32 %v7314, 16
        %v7688 = vrot.slane %v7686, 5
        %v7689 = vsel %vm434, %v7684, %v7688
        %v7690 = vshrl.u32 %v7314, 16
        %v7692 = vrot.slane %v7690, 4
        %v7693 = vor.u32 %v7692, %v7688
        %v7694 = vrot.slane %v7693, 4
        %v7696 = vshll.u32 %v7315, 16
        %v7698 = vrot.slane %v7696, 5
        %v7699 = vsel %vm434, %v7694, %v7698
        %v7700 = vunpack.c.l.b16 %v7329
        %v7701 = vunpack.c.l.b16 %v7339
        %v7702 = vunpack.c.l.b16 %v7353
        %v7703 = vunpack.c.l.b16 %v7363
        %v7704 = vunpack.c.l.b16 %v7377
        %v7705 = vunpack.c.l.b16 %v7387
        %v7706 = vunpack.c.l.b16 %v7401
        %v7707 = vunpack.c.l.b16 %v7411
        %v7708 = vunpack.c.l.b16 %v7425
        %v7709 = vunpack.c.l.b16 %v7435
        %v7710 = vunpack.c.l.b16 %v7449
        %v7711 = vunpack.c.l.b16 %v7459
        %v7712 = vunpack.c.l.b16 %v7473
        %v7713 = vunpack.c.l.b16 %v7483
        %v7714 = vunpack.c.l.b16 %v7497
        %v7715 = vunpack.c.l.b16 %v7507
        %v7716 = vunpack.c.l.b16 %v7521
        %v7717 = vunpack.c.l.b16 %v7531
        %v7718 = vunpack.c.l.b16 %v7545
        %v7719 = vunpack.c.l.b16 %v7555
        %v7720 = vunpack.c.l.b16 %v7569
        %v7721 = vunpack.c.l.b16 %v7579
        %v7722 = vunpack.c.l.b16 %v7593
        %v7723 = vunpack.c.l.b16 %v7603
        %v7724 = vunpack.c.l.b16 %v7617
        %v7725 = vunpack.c.l.b16 %v7627
        %v7726 = vunpack.c.l.b16 %v7641
        %v7727 = vunpack.c.l.b16 %v7651
        %v7728 = vunpack.c.l.b16 %v7665
        %v7729 = vunpack.c.l.b16 %v7675
        %v7730 = vunpack.c.l.b16 %v7689
        %v7731 = vunpack.c.l.b16 %v7699
        %v7732 = vpack.c.b16 %v7701, %v7700
        %v7733 = vpack.c.b16 %v7703, %v7702
        %v7734 = vpack.c.b16 %v7705, %v7704
        %v7735 = vpack.c.b16 %v7707, %v7706
        %v7736 = vpack.c.b16 %v7709, %v7708
        %v7737 = vpack.c.b16 %v7711, %v7710
        %v7738 = vpack.c.b16 %v7713, %v7712
        %v7739 = vpack.c.b16 %v7715, %v7714
        %v7740 = vpack.c.b16 %v7717, %v7716
        %v7741 = vpack.c.b16 %v7719, %v7718
        %v7742 = vpack.c.b16 %v7721, %v7720
        %v7743 = vpack.c.b16 %v7723, %v7722
        %v7744 = vpack.c.b16 %v7725, %v7724
        %v7745 = vpack.c.b16 %v7727, %v7726
        %v7746 = vpack.c.b16 %v7729, %v7728
        %v7747 = vpack.c.b16 %v7731, %v7730
        %7764 = vst [vmem:[#allocation3 + $0x38] sm:$0xff] %v7732
        %7765 = vst [vmem:[#allocation3 + $0x80] sm:$0xff] %v7733
        %7766 = vst [vmem:[#allocation3 + $0xc8] sm:$0xff] %v7734
        %7767 = vst [vmem:[#allocation3 + $0x110] sm:$0xff] %v7735
        %7768 = vst [vmem:[#allocation3 + $0x158] sm:$0xff] %v7736
        %7769 = vst [vmem:[#allocation3 + $0x1a0] sm:$0xff] %v7737
        %7770 = vst [vmem:[#allocation3 + $0x1e8] sm:$0xff] %v7738
        %7771 = vst [vmem:[#allocation3 + $0x230] sm:$0xff] %v7739
        %7772 = vst [vmem:[#allocation3 + $0x278] sm:$0xff] %v7740
        %7773 = vst [vmem:[#allocation3 + $0x2c0] sm:$0xff] %v7741
        %7774 = vst [vmem:[#allocation3 + $0x308] sm:$0xff] %v7742
        %7775 = vst [vmem:[#allocation3 + $0x350] sm:$0xff] %v7743
        %7776 = vst [vmem:[#allocation3 + $0x398] sm:$0xff] %v7744
        %7777 = vst [vmem:[#allocation3 + $0x3e0] sm:$0xff] %v7745
        %7778 = vst [vmem:[#allocation3 + $0x428] sm:$0xff] %v7746
        %7779 = vst [vmem:[#allocation3 + $0x470] sm:$0xff] %v7747
        %v7780 = vld [vmem:[%s7123] sm:$0xe]
        %v7781 = vld [vmem:[%s7123 + $0x4] sm:$0xf]
        %v7782 = vld [vmem:[%s7123 + $0x8] sm:$0x1]
        %v7783 = vld [vmem:[%s7123 + $0xc] sm:$0xe]
        %v7784 = vld [vmem:[%s7123 + $0x10] sm:$0xf]
        %v7785 = vld [vmem:[%s7123 + $0x14] sm:$0x1]
        %v7786 = vld [vmem:[%s7123 + $0x18] sm:$0xe]
        %v7787 = vld [vmem:[%s7123 + $0x1c] sm:$0xf]
        %v7788 = vld [vmem:[%s7123 + $0x20] sm:$0x1]
        %v7789 = vld [vmem:[%s7123 + $0x24] sm:$0xe]
        %v7790 = vld [vmem:[%s7123 + $0x28] sm:$0xf]
        %v7791 = vld [vmem:[%s7123 + $0x2c] sm:$0x1]
        %v7792 = vld [vmem:[%s7123 + $0x30] sm:$0xe]
        %v7793 = vld [vmem:[%s7123 + $0x34] sm:$0xf]
        %v7794 = vld [vmem:[%s7123 + $0x38] sm:$0x1]
        %v7795 = vld [vmem:[%s7123 + $0x3c] sm:$0xe]
        %v7796 = vld [vmem:[%s7123 + $0x40] sm:$0xf]
        %v7797 = vld [vmem:[%s7123 + $0x44] sm:$0x1]
        %v7798 = vld [vmem:[%s7123 + $0x48] sm:$0xe]
        %v7799 = vld [vmem:[%s7123 + $0x4c] sm:$0xf]
        %v7800 = vld [vmem:[%s7123 + $0x50] sm:$0x1]
        %v7801 = vld [vmem:[%s7123 + $0x54] sm:$0xe]
        %v7802 = vld [vmem:[%s7123 + $0x58] sm:$0xf]
        %v7803 = vld [vmem:[%s7123 + $0x5c] sm:$0x1]
        %v7804 = vld [vmem:[%s7123 + $0x60] sm:$0xe]
        %v7805 = vld [vmem:[%s7123 + $0x64] sm:$0xf]
        %v7806 = vld [vmem:[%s7123 + $0x68] sm:$0x1]
        %v7807 = vld [vmem:[%s7123 + $0x6c] sm:$0xe]
        %v7808 = vld [vmem:[%s7123 + $0x70] sm:$0xf]
        %v7809 = vld [vmem:[%s7123 + $0x74] sm:$0x1]
        %v7810 = vld [vmem:[%s7123 + $0x78] sm:$0xe]
        %v7811 = vld [vmem:[%s7123 + $0x7c] sm:$0xf]
        %v7812 = vld [vmem:[%s7123 + $0x80] sm:$0x1]
        %v7813 = vld [vmem:[%s7123 + $0x84] sm:$0xe]
        %v7814 = vld [vmem:[%s7123 + $0x88] sm:$0xf]
        %v7815 = vld [vmem:[%s7123 + $0x8c] sm:$0x1]
        %v7816 = vld [vmem:[%s7123 + $0x90] sm:$0xe]
        %v7817 = vld [vmem:[%s7123 + $0x94] sm:$0xf]
        %v7818 = vld [vmem:[%s7123 + $0x98] sm:$0x1]
        %v7819 = vld [vmem:[%s7123 + $0x9c] sm:$0xe]
        %v7820 = vld [vmem:[%s7123 + $0xa0] sm:$0xf]
        %v7821 = vld [vmem:[%s7123 + $0xa4] sm:$0x1]
        %v7822 = vld [vmem:[%s7123 + $0xa8] sm:$0xe]
        %v7823 = vld [vmem:[%s7123 + $0xac] sm:$0xf]
        %v7824 = vld [vmem:[%s7123 + $0xb0] sm:$0x1]
        %v7825 = vld [vmem:[%s7123 + $0xb4] sm:$0xe]
        %v7826 = vld [vmem:[%s7123 + $0xb8] sm:$0xf]
        %v7827 = vld [vmem:[%s7123 + $0xbc] sm:$0x1]
        %v7876 = vrot.slane %v7780, 5
        %v7877 = vrot.slane %v7876, 4
        %v7878 = vrot.slane %v7781, 5
        %v7879 = vsel %vm997, %v7877, %v7878
        %v7880 = vrot.slane %v7878, 4
        %v7881 = vrot.slane %v7782, 5
        %v7882 = vsel %vm997, %v7880, %v7881
        %v7883 = vrot.slane %v7783, 5
        %v7884 = vrot.slane %v7883, 4
        %v7885 = vrot.slane %v7784, 5
        %v7886 = vsel %vm997, %v7884, %v7885
        %v7887 = vrot.slane %v7885, 4
        %v7888 = vrot.slane %v7785, 5
        %v7889 = vsel %vm997, %v7887, %v7888
        %v7890 = vrot.slane %v7786, 5
        %v7891 = vrot.slane %v7890, 4
        %v7892 = vrot.slane %v7787, 5
        %v7893 = vsel %vm997, %v7891, %v7892
        %v7894 = vrot.slane %v7892, 4
        %v7895 = vrot.slane %v7788, 5
        %v7896 = vsel %vm997, %v7894, %v7895
        %v7897 = vrot.slane %v7789, 5
        %v7898 = vrot.slane %v7897, 4
        %v7899 = vrot.slane %v7790, 5
        %v7900 = vsel %vm997, %v7898, %v7899
        %v7901 = vrot.slane %v7899, 4
        %v7902 = vrot.slane %v7791, 5
        %v7903 = vsel %vm997, %v7901, %v7902
        %v7904 = vrot.slane %v7792, 5
        %v7905 = vrot.slane %v7904, 4
        %v7906 = vrot.slane %v7793, 5
        %v7907 = vsel %vm997, %v7905, %v7906
        %v7908 = vrot.slane %v7906, 4
        %v7909 = vrot.slane %v7794, 5
        %v7910 = vsel %vm997, %v7908, %v7909
        %v7911 = vrot.slane %v7795, 5
        %v7912 = vrot.slane %v7911, 4
        %v7913 = vrot.slane %v7796, 5
        %v7914 = vsel %vm997, %v7912, %v7913
        %v7915 = vrot.slane %v7913, 4
        %v7916 = vrot.slane %v7797, 5
        %v7917 = vsel %vm997, %v7915, %v7916
        %v7918 = vrot.slane %v7798, 5
        %v7919 = vrot.slane %v7918, 4
        %v7920 = vrot.slane %v7799, 5
        %v7921 = vsel %vm997, %v7919, %v7920
        %v7922 = vrot.slane %v7920, 4
        %v7923 = vrot.slane %v7800, 5
        %v7924 = vsel %vm997, %v7922, %v7923
        %v7925 = vrot.slane %v7801, 5
        %v7926 = vrot.slane %v7925, 4
        %v7927 = vrot.slane %v7802, 5
        %v7928 = vsel %vm997, %v7926, %v7927
        %v7929 = vrot.slane %v7927, 4
        %v7930 = vrot.slane %v7803, 5
        %v7931 = vsel %vm997, %v7929, %v7930
        %v7932 = vrot.slane %v7804, 5
        %v7933 = vrot.slane %v7932, 4
        %v7934 = vrot.slane %v7805, 5
        %v7935 = vsel %vm997, %v7933, %v7934
        %v7936 = vrot.slane %v7934, 4
        %v7937 = vrot.slane %v7806, 5
        %v7938 = vsel %vm997, %v7936, %v7937
        %v7939 = vrot.slane %v7807, 5
        %v7940 = vrot.slane %v7939, 4
        %v7941 = vrot.slane %v7808, 5
        %v7942 = vsel %vm997, %v7940, %v7941
        %v7943 = vrot.slane %v7941, 4
        %v7944 = vrot.slane %v7809, 5
        %v7945 = vsel %vm997, %v7943, %v7944
        %v7946 = vrot.slane %v7810, 5
        %v7947 = vrot.slane %v7946, 4
        %v7948 = vrot.slane %v7811, 5
        %v7949 = vsel %vm997, %v7947, %v7948
        %v7950 = vrot.slane %v7948, 4
        %v7951 = vrot.slane %v7812, 5
        %v7952 = vsel %vm997, %v7950, %v7951
        %v7953 = vrot.slane %v7813, 5
        %v7954 = vrot.slane %v7953, 4
        %v7955 = vrot.slane %v7814, 5
        %v7956 = vsel %vm997, %v7954, %v7955
        %v7957 = vrot.slane %v7955, 4
        %v7958 = vrot.slane %v7815, 5
        %v7959 = vsel %vm997, %v7957, %v7958
        %v7960 = vrot.slane %v7816, 5
        %v7961 = vrot.slane %v7960, 4
        %v7962 = vrot.slane %v7817, 5
        %v7963 = vsel %vm997, %v7961, %v7962
        %v7964 = vrot.slane %v7962, 4
        %v7965 = vrot.slane %v7818, 5
        %v7966 = vsel %vm997, %v7964, %v7965
        %v7967 = vrot.slane %v7819, 5
        %v7968 = vrot.slane %v7967, 4
        %v7969 = vrot.slane %v7820, 5
        %v7970 = vsel %vm997, %v7968, %v7969
        %v7971 = vrot.slane %v7969, 4
        %v7972 = vrot.slane %v7821, 5
        %v7973 = vsel %vm997, %v7971, %v7972
        %v7974 = vrot.slane %v7822, 5
        %v7975 = vrot.slane %v7974, 4
        %v7976 = vrot.slane %v7823, 5
        %v7977 = vsel %vm997, %v7975, %v7976
        %v7978 = vrot.slane %v7976, 4
        %v7979 = vrot.slane %v7824, 5
        %v7980 = vsel %vm997, %v7978, %v7979
        %v7981 = vrot.slane %v7825, 5
        %v7982 = vrot.slane %v7981, 4
        %v7983 = vrot.slane %v7826, 5
        %v7984 = vsel %vm997, %v7982, %v7983
        %v7985 = vrot.slane %v7983, 4
        %v7986 = vrot.slane %v7827, 5
        %v7987 = vsel %vm997, %v7985, %v7986
        %v7988 = vunpack.c.l.b16 %v7879
        %v7989 = vunpack.c.l.b16 %v7882
        %v7990 = vunpack.c.l.b16 %v7886
        %v7991 = vunpack.c.l.b16 %v7889
        %v7992 = vunpack.c.l.b16 %v7893
        %v7993 = vunpack.c.l.b16 %v7896
        %v7994 = vunpack.c.l.b16 %v7900
        %v7995 = vunpack.c.l.b16 %v7903
        %v7996 = vunpack.c.l.b16 %v7907
        %v7997 = vunpack.c.l.b16 %v7910
        %v7998 = vunpack.c.l.b16 %v7914
        %v7999 = vunpack.c.l.b16 %v7917
        %v8000 = vunpack.c.l.b16 %v7921
        %v8001 = vunpack.c.l.b16 %v7924
        %v8002 = vunpack.c.l.b16 %v7928
        %v8003 = vunpack.c.l.b16 %v7931
        %v8004 = vunpack.c.l.b16 %v7935
        %v8005 = vunpack.c.l.b16 %v7938
        %v8006 = vunpack.c.l.b16 %v7942
        %v8007 = vunpack.c.l.b16 %v7945
        %v8008 = vunpack.c.l.b16 %v7949
        %v8009 = vunpack.c.l.b16 %v7952
        %v8010 = vunpack.c.l.b16 %v7956
        %v8011 = vunpack.c.l.b16 %v7959
        %v8012 = vunpack.c.l.b16 %v7963
        %v8013 = vunpack.c.l.b16 %v7966
        %v8014 = vunpack.c.l.b16 %v7970
        %v8015 = vunpack.c.l.b16 %v7973
        %v8016 = vunpack.c.l.b16 %v7977
        %v8017 = vunpack.c.l.b16 %v7980
        %v8018 = vunpack.c.l.b16 %v7984
        %v8019 = vunpack.c.l.b16 %v7987
        %v8020 = vpack.c.b16 %v7989, %v7988
        %v8021 = vpack.c.b16 %v7991, %v7990
        %v8022 = vpack.c.b16 %v7993, %v7992
        %v8023 = vpack.c.b16 %v7995, %v7994
        %v8024 = vpack.c.b16 %v7997, %v7996
        %v8025 = vpack.c.b16 %v7999, %v7998
        %v8026 = vpack.c.b16 %v8001, %v8000
        %v8027 = vpack.c.b16 %v8003, %v8002
        %v8028 = vpack.c.b16 %v8005, %v8004
        %v8029 = vpack.c.b16 %v8007, %v8006
        %v8030 = vpack.c.b16 %v8009, %v8008
        %v8031 = vpack.c.b16 %v8011, %v8010
        %v8032 = vpack.c.b16 %v8013, %v8012
        %v8033 = vpack.c.b16 %v8015, %v8014
        %v8034 = vpack.c.b16 %v8017, %v8016
        %v8035 = vpack.c.b16 %v8019, %v8018
        %8052 = vst [vmem:[#allocation3 + $0x40] sm:$0xff] %v8020
        %8053 = vst [vmem:[#allocation3 + $0x88] sm:$0xff] %v8021
        %8054 = vst [vmem:[#allocation3 + $0xd0] sm:$0xff] %v8022
        %8055 = vst [vmem:[#allocation3 + $0x118] sm:$0xff] %v8023
        %8056 = vst [vmem:[#allocation3 + $0x160] sm:$0xff] %v8024
        %8057 = vst [vmem:[#allocation3 + $0x1a8] sm:$0xff] %v8025
        %8058 = vst [vmem:[#allocation3 + $0x1f0] sm:$0xff] %v8026
        %8059 = vst [vmem:[#allocation3 + $0x238] sm:$0xff] %v8027
        %8060 = vst [vmem:[#allocation3 + $0x280] sm:$0xff] %v8028
        %8061 = vst [vmem:[#allocation3 + $0x2c8] sm:$0xff] %v8029
        %8062 = vst [vmem:[#allocation3 + $0x310] sm:$0xff] %v8030
        %8063 = vst [vmem:[#allocation3 + $0x358] sm:$0xff] %v8031
        %8064 = vst [vmem:[#allocation3 + $0x3a0] sm:$0xff] %v8032
        %8065 = vst [vmem:[#allocation3 + $0x3e8] sm:$0xff] %v8033
        %8066 = vst [vmem:[#allocation3 + $0x430] sm:$0xff] %v8034
        %8067 = vst [vmem:[#allocation3 + $0x478] sm:$0xff] %v8035
        %v8068 = vld [vmem:[#allocation3] sm:$0xff]
        %v8069 = vld [vmem:[#allocation3 + $0x8] sm:$0xff]
        %v8070 = vld [vmem:[#allocation3 + $0x10] sm:$0xff]
        %v8071 = vld [vmem:[#allocation3 + $0x18] sm:$0xff]
        %v8072 = vld [vmem:[#allocation3 + $0x20] sm:$0xff]
        %v8073 = vld [vmem:[#allocation3 + $0x28] sm:$0xff]
        %v8074 = vld [vmem:[#allocation3 + $0x30] sm:$0xff]
        %v8075 = vld [vmem:[#allocation3 + $0x38] sm:$0xff]
        %v8076 = vld [vmem:[#allocation3 + $0x40] sm:$0xff]
        %v8077 = vld [vmem:[#allocation3 + $0x48] sm:$0xff]
        %v8078 = vld [vmem:[#allocation3 + $0x50] sm:$0xff]
        %v8079 = vld [vmem:[#allocation3 + $0x58] sm:$0xff]
        %v8080 = vld [vmem:[#allocation3 + $0x60] sm:$0xff]
        %v8081 = vld [vmem:[#allocation3 + $0x68] sm:$0xff]
        %v8082 = vld [vmem:[#allocation3 + $0x70] sm:$0xff]
        %v8083 = vld [vmem:[#allocation3 + $0x78] sm:$0xff]
        %v8084 = vld [vmem:[#allocation3 + $0x80] sm:$0xff]
        %v8085 = vld [vmem:[#allocation3 + $0x88] sm:$0xff]
        %v8086 = vld [vmem:[#allocation3 + $0x90] sm:$0xff]
        %v8087 = vld [vmem:[#allocation3 + $0x98] sm:$0xff]
        %v8088 = vld [vmem:[#allocation3 + $0xa0] sm:$0xff]
        %v8089 = vld [vmem:[#allocation3 + $0xa8] sm:$0xff]
        %v8090 = vld [vmem:[#allocation3 + $0xb0] sm:$0xff]
        %v8091 = vld [vmem:[#allocation3 + $0xb8] sm:$0xff]
        %v8092 = vld [vmem:[#allocation3 + $0xc0] sm:$0xff]
        %v8093 = vld [vmem:[#allocation3 + $0xc8] sm:$0xff]
        %v8094 = vld [vmem:[#allocation3 + $0xd0] sm:$0xff]
        %v8095 = vld [vmem:[#allocation3 + $0xd8] sm:$0xff]
        %v8096 = vld [vmem:[#allocation3 + $0xe0] sm:$0xff]
        %v8097 = vld [vmem:[#allocation3 + $0xe8] sm:$0xff]
        %v8098 = vld [vmem:[#allocation3 + $0xf0] sm:$0xff]
        %v8099 = vld [vmem:[#allocation3 + $0xf8] sm:$0xff]
        %v8100 = vld [vmem:[#allocation3 + $0x100] sm:$0xff]
        %v8101 = vld [vmem:[#allocation3 + $0x108] sm:$0xff]
        %v8102 = vld [vmem:[#allocation3 + $0x110] sm:$0xff]
        %v8103 = vld [vmem:[#allocation3 + $0x118] sm:$0xff]
        %v8104 = vld [vmem:[#allocation3 + $0x120] sm:$0xff]
        %v8105 = vld [vmem:[#allocation3 + $0x128] sm:$0xff]
        %v8106 = vld [vmem:[#allocation3 + $0x130] sm:$0xff]
        %v8107 = vld [vmem:[#allocation3 + $0x138] sm:$0xff]
        %v8108 = vld [vmem:[#allocation3 + $0x140] sm:$0xff]
        %v8109 = vld [vmem:[#allocation3 + $0x148] sm:$0xff]
        %v8110 = vld [vmem:[#allocation3 + $0x150] sm:$0xff]
        %v8111 = vld [vmem:[#allocation3 + $0x158] sm:$0xff]
        %v8112 = vld [vmem:[#allocation3 + $0x160] sm:$0xff]
        %v8113 = vld [vmem:[#allocation3 + $0x168] sm:$0xff]
        %v8114 = vld [vmem:[#allocation3 + $0x170] sm:$0xff]
        %v8115 = vld [vmem:[#allocation3 + $0x178] sm:$0xff]
        %v8116 = vld [vmem:[#allocation3 + $0x180] sm:$0xff]
        %v8117 = vld [vmem:[#allocation3 + $0x188] sm:$0xff]
        %v8118 = vld [vmem:[#allocation3 + $0x190] sm:$0xff]
        %v8119 = vld [vmem:[#allocation3 + $0x198] sm:$0xff]
        %v8120 = vld [vmem:[#allocation3 + $0x1a0] sm:$0xff]
        %v8121 = vld [vmem:[#allocation3 + $0x1a8] sm:$0xff]
        %v8122 = vld [vmem:[#allocation3 + $0x1b0] sm:$0xff]
        %v8123 = vld [vmem:[#allocation3 + $0x1b8] sm:$0xff]
        %v8124 = vld [vmem:[#allocation3 + $0x1c0] sm:$0xff]
        %v8125 = vld [vmem:[#allocation3 + $0x1c8] sm:$0xff]
        %v8126 = vld [vmem:[#allocation3 + $0x1d0] sm:$0xff]
        %v8127 = vld [vmem:[#allocation3 + $0x1d8] sm:$0xff]
        %v8128 = vld [vmem:[#allocation3 + $0x1e0] sm:$0xff]
        %v8129 = vld [vmem:[#allocation3 + $0x1e8] sm:$0xff]
        %v8130 = vld [vmem:[#allocation3 + $0x1f0] sm:$0xff]
        %v8131 = vld [vmem:[#allocation3 + $0x1f8] sm:$0xff]
        %v8132 = vld [vmem:[#allocation3 + $0x200] sm:$0xff]
        %v8133 = vld [vmem:[#allocation3 + $0x208] sm:$0xff]
        %v8134 = vld [vmem:[#allocation3 + $0x210] sm:$0xff]
        %v8135 = vld [vmem:[#allocation3 + $0x218] sm:$0xff]
        %v8136 = vld [vmem:[#allocation3 + $0x220] sm:$0xff]
        %v8137 = vld [vmem:[#allocation3 + $0x228] sm:$0xff]
        %v8138 = vld [vmem:[#allocation3 + $0x230] sm:$0xff]
        %v8139 = vld [vmem:[#allocation3 + $0x238] sm:$0xff]
        %v8140 = vld [vmem:[#allocation3 + $0x240] sm:$0xff]
        %v8141 = vld [vmem:[#allocation3 + $0x248] sm:$0xff]
        %v8142 = vld [vmem:[#allocation3 + $0x250] sm:$0xff]
        %v8143 = vld [vmem:[#allocation3 + $0x258] sm:$0xff]
        %v8144 = vld [vmem:[#allocation3 + $0x260] sm:$0xff]
        %v8145 = vld [vmem:[#allocation3 + $0x268] sm:$0xff]
        %v8146 = vld [vmem:[#allocation3 + $0x270] sm:$0xff]
        %v8147 = vld [vmem:[#allocation3 + $0x278] sm:$0xff]
        %v8148 = vld [vmem:[#allocation3 + $0x280] sm:$0xff]
        %v8149 = vld [vmem:[#allocation3 + $0x288] sm:$0xff]
        %v8150 = vld [vmem:[#allocation3 + $0x290] sm:$0xff]
        %v8151 = vld [vmem:[#allocation3 + $0x298] sm:$0xff]
        %v8152 = vld [vmem:[#allocation3 + $0x2a0] sm:$0xff]
        %v8153 = vld [vmem:[#allocation3 + $0x2a8] sm:$0xff]
        %v8154 = vld [vmem:[#allocation3 + $0x2b0] sm:$0xff]
        %v8155 = vld [vmem:[#allocation3 + $0x2b8] sm:$0xff]
        %v8156 = vld [vmem:[#allocation3 + $0x2c0] sm:$0xff]
        %v8157 = vld [vmem:[#allocation3 + $0x2c8] sm:$0xff]
        %v8158 = vld [vmem:[#allocation3 + $0x2d0] sm:$0xff]
        %v8159 = vld [vmem:[#allocation3 + $0x2d8] sm:$0xff]
        %v8160 = vld [vmem:[#allocation3 + $0x2e0] sm:$0xff]
        %v8161 = vld [vmem:[#allocation3 + $0x2e8] sm:$0xff]
        %v8162 = vld [vmem:[#allocation3 + $0x2f0] sm:$0xff]
        %v8163 = vld [vmem:[#allocation3 + $0x2f8] sm:$0xff]
        %v8164 = vld [vmem:[#allocation3 + $0x300] sm:$0xff]
        %v8165 = vld [vmem:[#allocation3 + $0x308] sm:$0xff]
        %v8166 = vld [vmem:[#allocation3 + $0x310] sm:$0xff]
        %v8167 = vld [vmem:[#allocation3 + $0x318] sm:$0xff]
        %v8168 = vld [vmem:[#allocation3 + $0x320] sm:$0xff]
        %v8169 = vld [vmem:[#allocation3 + $0x328] sm:$0xff]
        %v8170 = vld [vmem:[#allocation3 + $0x330] sm:$0xff]
        %v8171 = vld [vmem:[#allocation3 + $0x338] sm:$0xff]
        %v8172 = vld [vmem:[#allocation3 + $0x340] sm:$0xff]
        %v8173 = vld [vmem:[#allocation3 + $0x348] sm:$0xff]
        %v8174 = vld [vmem:[#allocation3 + $0x350] sm:$0xff]
        %v8175 = vld [vmem:[#allocation3 + $0x358] sm:$0xff]
        %v8176 = vld [vmem:[#allocation3 + $0x360] sm:$0xff]
        %v8177 = vld [vmem:[#allocation3 + $0x368] sm:$0xff]
        %v8178 = vld [vmem:[#allocation3 + $0x370] sm:$0xff]
        %v8179 = vld [vmem:[#allocation3 + $0x378] sm:$0xff]
        %v8180 = vld [vmem:[#allocation3 + $0x380] sm:$0xff]
        %v8181 = vld [vmem:[#allocation3 + $0x388] sm:$0xff]
        %v8182 = vld [vmem:[#allocation3 + $0x390] sm:$0xff]
        %v8183 = vld [vmem:[#allocation3 + $0x398] sm:$0xff]
        %v8184 = vld [vmem:[#allocation3 + $0x3a0] sm:$0xff]
        %v8185 = vld [vmem:[#allocation3 + $0x3a8] sm:$0xff]
        %v8186 = vld [vmem:[#allocation3 + $0x3b0] sm:$0xff]
        %v8187 = vld [vmem:[#allocation3 + $0x3b8] sm:$0xff]
        %v8188 = vld [vmem:[#allocation3 + $0x3c0] sm:$0xff]
        %v8189 = vld [vmem:[#allocation3 + $0x3c8] sm:$0xff]
        %v8190 = vld [vmem:[#allocation3 + $0x3d0] sm:$0xff]
        %v8191 = vld [vmem:[#allocation3 + $0x3d8] sm:$0xff]
        %v8192 = vld [vmem:[#allocation3 + $0x3e0] sm:$0xff]
        %v8193 = vld [vmem:[#allocation3 + $0x3e8] sm:$0xff]
        %v8194 = vld [vmem:[#allocation3 + $0x3f0] sm:$0xff]
        %v8195 = vld [vmem:[#allocation3 + $0x3f8] sm:$0xff]
        %v8196 = vld [vmem:[#allocation3 + $0x400] sm:$0xff]
        %v8197 = vld [vmem:[#allocation3 + $0x408] sm:$0xff]
        %v8198 = vld [vmem:[#allocation3 + $0x410] sm:$0xff]
        %v8199 = vld [vmem:[#allocation3 + $0x418] sm:$0xff]
        %v8200 = vld [vmem:[#allocation3 + $0x420] sm:$0xff]
        %v8201 = vld [vmem:[#allocation3 + $0x428] sm:$0xff]
        %v8202 = vld [vmem:[#allocation3 + $0x430] sm:$0xff]
        %v8203 = vld [vmem:[#allocation3 + $0x438] sm:$0xff]
        %v8204 = vld [vmem:[#allocation3 + $0x440] sm:$0xff]
        %v8205 = vld [vmem:[#allocation3 + $0x448] sm:$0xff]
        %v8206 = vld [vmem:[#allocation3 + $0x450] sm:$0xff]
        %v8207 = vld [vmem:[#allocation3 + $0x458] sm:$0xff]
        %v8208 = vld [vmem:[#allocation3 + $0x460] sm:$0xff]
        %v8209 = vld [vmem:[#allocation3 + $0x468] sm:$0xff]
        %v8210 = vld [vmem:[#allocation3 + $0x470] sm:$0xff]
        %v8211 = vld [vmem:[#allocation3 + $0x478] sm:$0xff]
        %v8212 = vld [vmem:[#allocation4] sm:$0xf]
        %v8213 = vld [vmem:[#allocation4 + $0x4] sm:$0xf]
        %v8214 = vld [vmem:[#allocation4 + $0x8] sm:$0xf]
        %v8215 = vld [vmem:[#allocation4 + $0xc] sm:$0xf]
        %v8216 = vld [vmem:[#allocation4 + $0x10] sm:$0xf]
        %v8217 = vld [vmem:[#allocation4 + $0x14] sm:$0xf]
        %v8218 = vld [vmem:[#allocation4 + $0x18] sm:$0xf]
        %v8219 = vld [vmem:[#allocation4 + $0x1c] sm:$0xf]
        %v8220 = vld [vmem:[#allocation4 + $0x20] sm:$0xf]
        %v8221 = vld [vmem:[#allocation4 + $0x24] sm:$0xf]
        %v8222 = vld [vmem:[#allocation4 + $0x28] sm:$0xf]
        %v8223 = vld [vmem:[#allocation4 + $0x2c] sm:$0xf]
        %v8224 = vld [vmem:[#allocation4 + $0x30] sm:$0xf]
        %v8225 = vld [vmem:[#allocation4 + $0x34] sm:$0xf]
        %v8226 = vld [vmem:[#allocation4 + $0x38] sm:$0xf]
        %v8227 = vld [vmem:[#allocation4 + $0x3c] sm:$0xf]
        %v8228 = vld [vmem:[#allocation4 + $0x40] sm:$0xf]
        %v8229 = vld [vmem:[#allocation4 + $0x44] sm:$0xf]
        %v8230 = vld [vmem:[#allocation4 + $0x48] sm:$0xf]
        %v8231 = vld [vmem:[#allocation4 + $0x4c] sm:$0xf]
        %v8232 = vld [vmem:[#allocation4 + $0x50] sm:$0xf]
        %v8233 = vld [vmem:[#allocation4 + $0x54] sm:$0xf]
        %v8234 = vld [vmem:[#allocation4 + $0x58] sm:$0xf]
        %v8235 = vld [vmem:[#allocation4 + $0x5c] sm:$0xf]
        %v8236 = vld [vmem:[#allocation4 + $0x60] sm:$0xf]
        %v8237 = vld [vmem:[#allocation4 + $0x64] sm:$0xf]
        %v8238 = vld [vmem:[#allocation4 + $0x68] sm:$0xf]
        %v8239 = vld [vmem:[#allocation4 + $0x6c] sm:$0xf]
        %v8240 = vld [vmem:[#allocation4 + $0x70] sm:$0xf]
        %v8241 = vld [vmem:[#allocation4 + $0x74] sm:$0xf]
        %v8242 = vld [vmem:[#allocation4 + $0x78] sm:$0xf]
        %v8243 = vld [vmem:[#allocation4 + $0x7c] sm:$0xf]
        %v8244 = vld [vmem:[#allocation4 + $0x80] sm:$0xf]
        %v8245 = vld [vmem:[#allocation4 + $0x84] sm:$0xf]
        %v8246 = vld [vmem:[#allocation4 + $0x88] sm:$0xf]
        %v8247 = vld [vmem:[#allocation4 + $0x8c] sm:$0xf]
        %v8248 = vld [vmem:[#allocation4 + $0x90] sm:$0xf]
        %v8249 = vld [vmem:[#allocation4 + $0x94] sm:$0xf]
        %v8250 = vld [vmem:[#allocation4 + $0x98] sm:$0xf]
        %v8251 = vld [vmem:[#allocation4 + $0x9c] sm:$0xf]
        %v8252 = vld [vmem:[#allocation4 + $0xa0] sm:$0xf]
        %v8253 = vld [vmem:[#allocation4 + $0xa4] sm:$0xf]
        %v8254 = vld [vmem:[#allocation4 + $0xa8] sm:$0xf]
        %v8255 = vld [vmem:[#allocation4 + $0xac] sm:$0xf]
        %v8256 = vld [vmem:[#allocation4 + $0xb0] sm:$0xf]
        %v8257 = vld [vmem:[#allocation4 + $0xb4] sm:$0xf]
        %v8258 = vld [vmem:[#allocation4 + $0xb8] sm:$0xf]
        %v8259 = vld [vmem:[#allocation4 + $0xbc] sm:$0xf]
        %v8260 = vld [vmem:[#allocation4 + $0xc0] sm:$0xf]
        %v8261 = vld [vmem:[#allocation4 + $0xc4] sm:$0xf]
        %v8262 = vld [vmem:[#allocation4 + $0xc8] sm:$0xf]
        %v8263 = vld [vmem:[#allocation4 + $0xcc] sm:$0xf]
        %v8264 = vld [vmem:[#allocation4 + $0xd0] sm:$0xf]
        %v8265 = vld [vmem:[#allocation4 + $0xd4] sm:$0xf]
        %v8266 = vld [vmem:[#allocation4 + $0xd8] sm:$0xf]
        %v8267 = vld [vmem:[#allocation4 + $0xdc] sm:$0xf]
        %v8268 = vld [vmem:[#allocation4 + $0xe0] sm:$0xf]
        %v8269 = vld [vmem:[#allocation4 + $0xe4] sm:$0xf]
        %v8270 = vld [vmem:[#allocation4 + $0xe8] sm:$0xf]
        %v8271 = vld [vmem:[#allocation4 + $0xec] sm:$0xf]
        %v8272 = vld [vmem:[#allocation4 + $0xf0] sm:$0xf]
        %v8273 = vld [vmem:[#allocation4 + $0xf4] sm:$0xf]
        %v8274 = vld [vmem:[#allocation4 + $0xf8] sm:$0xf]
        %v8275 = vld [vmem:[#allocation4 + $0xfc] sm:$0xf]
        %v8276 = vld [vmem:[#allocation4 + $0x100] sm:$0xf]
        %v8277 = vld [vmem:[#allocation4 + $0x104] sm:$0xf]
        %v8278 = vld [vmem:[#allocation4 + $0x108] sm:$0xf]
        %v8279 = vld [vmem:[#allocation4 + $0x10c] sm:$0xf]
        %v8280 = vld [vmem:[#allocation4 + $0x110] sm:$0xf]
        %v8281 = vld [vmem:[#allocation4 + $0x114] sm:$0xf]
        %v8282 = vld [vmem:[#allocation4 + $0x118] sm:$0xf]
        %v8283 = vld [vmem:[#allocation4 + $0x11c] sm:$0xf]
        %v8284 = vld [vmem:[#allocation4 + $0x120] sm:$0xf]
        %v8285 = vld [vmem:[#allocation4 + $0x124] sm:$0xf]
        %v8286 = vld [vmem:[#allocation4 + $0x128] sm:$0xf]
        %v8287 = vld [vmem:[#allocation4 + $0x12c] sm:$0xf]
        %v8288 = vld [vmem:[#allocation4 + $0x130] sm:$0xf]
        %v8289 = vld [vmem:[#allocation4 + $0x134] sm:$0xf]
        %v8290 = vld [vmem:[#allocation4 + $0x138] sm:$0xf]
        %v8291 = vld [vmem:[#allocation4 + $0x13c] sm:$0xf]
        %v8292 = vld [vmem:[#allocation4 + $0x140] sm:$0xf]
        %v8293 = vld [vmem:[#allocation4 + $0x144] sm:$0xf]
        %v8294 = vld [vmem:[#allocation4 + $0x148] sm:$0xf]
        %v8295 = vld [vmem:[#allocation4 + $0x14c] sm:$0xf]
        %v8296 = vld [vmem:[#allocation4 + $0x150] sm:$0xf]
        %v8297 = vld [vmem:[#allocation4 + $0x154] sm:$0xf]
        %v8298 = vld [vmem:[#allocation4 + $0x158] sm:$0xf]
        %v8299 = vld [vmem:[#allocation4 + $0x15c] sm:$0xf]
        %v8300 = vld [vmem:[#allocation4 + $0x160] sm:$0xf]
        %v8301 = vld [vmem:[#allocation4 + $0x164] sm:$0xf]
        %v8302 = vld [vmem:[#allocation4 + $0x168] sm:$0xf]
        %v8303 = vld [vmem:[#allocation4 + $0x16c] sm:$0xf]
        %v8304 = vld [vmem:[#allocation4 + $0x170] sm:$0xf]
        %v8305 = vld [vmem:[#allocation4 + $0x174] sm:$0xf]
        %v8306 = vld [vmem:[#allocation4 + $0x178] sm:$0xf]
        %v8307 = vld [vmem:[#allocation4 + $0x17c] sm:$0xf]
        %v8308 = vld [vmem:[#allocation4 + $0x180] sm:$0xf]
        %v8309 = vld [vmem:[#allocation4 + $0x184] sm:$0xf]
        %v8310 = vld [vmem:[#allocation4 + $0x188] sm:$0xf]
        %v8311 = vld [vmem:[#allocation4 + $0x18c] sm:$0xf]
        %v8312 = vld [vmem:[#allocation4 + $0x190] sm:$0xf]
        %v8313 = vld [vmem:[#allocation4 + $0x194] sm:$0xf]
        %v8314 = vld [vmem:[#allocation4 + $0x198] sm:$0xf]
        %v8315 = vld [vmem:[#allocation4 + $0x19c] sm:$0xf]
        %v8316 = vld [vmem:[#allocation4 + $0x1a0] sm:$0xf]
        %v8317 = vld [vmem:[#allocation4 + $0x1a4] sm:$0xf]
        %v8318 = vld [vmem:[#allocation4 + $0x1a8] sm:$0xf]
        %v8319 = vld [vmem:[#allocation4 + $0x1ac] sm:$0xf]
        %v8320 = vld [vmem:[#allocation4 + $0x1b0] sm:$0xf]
        %v8321 = vld [vmem:[#allocation4 + $0x1b4] sm:$0xf]
        %v8322 = vld [vmem:[#allocation4 + $0x1b8] sm:$0xf]
        %v8323 = vld [vmem:[#allocation4 + $0x1bc] sm:$0xf]
        %v8324 = vld [vmem:[#allocation4 + $0x1c0] sm:$0xf]
        %v8325 = vld [vmem:[#allocation4 + $0x1c4] sm:$0xf]
        %v8326 = vld [vmem:[#allocation4 + $0x1c8] sm:$0xf]
        %v8327 = vld [vmem:[#allocation4 + $0x1cc] sm:$0xf]
        %v8328 = vld [vmem:[#allocation4 + $0x1d0] sm:$0xf]
        %v8329 = vld [vmem:[#allocation4 + $0x1d4] sm:$0xf]
        %v8330 = vld [vmem:[#allocation4 + $0x1d8] sm:$0xf]
        %v8331 = vld [vmem:[#allocation4 + $0x1dc] sm:$0xf]
        %v8332 = vld [vmem:[#allocation4 + $0x1e0] sm:$0xf]
        %v8333 = vld [vmem:[#allocation4 + $0x1e4] sm:$0xf]
        %v8334 = vld [vmem:[#allocation4 + $0x1e8] sm:$0xf]
        %v8335 = vld [vmem:[#allocation4 + $0x1ec] sm:$0xf]
        %v8336 = vld [vmem:[#allocation4 + $0x1f0] sm:$0xf]
        %v8337 = vld [vmem:[#allocation4 + $0x1f4] sm:$0xf]
        %v8338 = vld [vmem:[#allocation4 + $0x1f8] sm:$0xf]
        %v8339 = vld [vmem:[#allocation4 + $0x1fc] sm:$0xf]
        %v8340 = vld [vmem:[#allocation4 + $0x200] sm:$0xf]
        %v8341 = vld [vmem:[#allocation4 + $0x204] sm:$0xf]
        %v8342 = vld [vmem:[#allocation4 + $0x208] sm:$0xf]
        %v8343 = vld [vmem:[#allocation4 + $0x20c] sm:$0xf]
        %v8344 = vld [vmem:[#allocation4 + $0x210] sm:$0xf]
        %v8345 = vld [vmem:[#allocation4 + $0x214] sm:$0xf]
        %v8346 = vld [vmem:[#allocation4 + $0x218] sm:$0xf]
        %v8347 = vld [vmem:[#allocation4 + $0x21c] sm:$0xf]
        %v8348 = vld [vmem:[#allocation4 + $0x220] sm:$0xf]
        %v8349 = vld [vmem:[#allocation4 + $0x224] sm:$0xf]
        %v8350 = vld [vmem:[#allocation4 + $0x228] sm:$0xf]
        %v8351 = vld [vmem:[#allocation4 + $0x22c] sm:$0xf]
        %v8352 = vld [vmem:[#allocation4 + $0x230] sm:$0xf]
        %v8353 = vld [vmem:[#allocation4 + $0x234] sm:$0xf]
        %v8354 = vld [vmem:[#allocation4 + $0x238] sm:$0xf]
        %v8355 = vld [vmem:[#allocation4 + $0x23c] sm:$0xf]
        %v8356 = vld [vmem:[%s1190] sm:$0xf]
        %v8357 = vld [vmem:[%s1190 + $0x4] sm:$0xf]
        %v8358 = vld [vmem:[%s1190 + $0x8] sm:$0x1]
        %v8359 = vld [vmem:[%s1190 + $0xc] sm:$0xf]
        %v8360 = vld [vmem:[%s1190 + $0x10] sm:$0xf]
        %v8361 = vld [vmem:[%s1190 + $0x14] sm:$0x1]
        %v8362 = vld [vmem:[%s1190 + $0x18] sm:$0xf]
        %v8363 = vld [vmem:[%s1190 + $0x1c] sm:$0xf]
        %v8364 = vld [vmem:[%s1190 + $0x20] sm:$0x1]
        %v8365 = vld [vmem:[%s1190 + $0x24] sm:$0xf]
        %v8366 = vld [vmem:[%s1190 + $0x28] sm:$0xf]
        %v8367 = vld [vmem:[%s1190 + $0x2c] sm:$0x1]
        %v8368 = vld [vmem:[%s1190 + $0x30] sm:$0xf]
        %v8369 = vld [vmem:[%s1190 + $0x34] sm:$0xf]
        %v8370 = vld [vmem:[%s1190 + $0x38] sm:$0x1]
        %v8371 = vld [vmem:[%s1190 + $0x3c] sm:$0xf]
        %v8372 = vld [vmem:[%s1190 + $0x40] sm:$0xf]
        %v8373 = vld [vmem:[%s1190 + $0x44] sm:$0x1]
        %v8374 = vld [vmem:[%s1190 + $0x48] sm:$0xf]
        %v8375 = vld [vmem:[%s1190 + $0x4c] sm:$0xf]
        %v8376 = vld [vmem:[%s1190 + $0x50] sm:$0x1]
        %v8377 = vld [vmem:[%s1190 + $0x54] sm:$0xf]
        %v8378 = vld [vmem:[%s1190 + $0x58] sm:$0xf]
        %v8379 = vld [vmem:[%s1190 + $0x5c] sm:$0x1]
        %v8380 = vld [vmem:[%s1190 + $0x60] sm:$0xf]
        %v8381 = vld [vmem:[%s1190 + $0x64] sm:$0xf]
        %v8382 = vld [vmem:[%s1190 + $0x68] sm:$0x1]
        %v8383 = vld [vmem:[%s1190 + $0x6c] sm:$0xf]
        %v8384 = vld [vmem:[%s1190 + $0x70] sm:$0xf]
        %v8385 = vld [vmem:[%s1190 + $0x74] sm:$0x1]
        %v8386 = vld [vmem:[%s1190 + $0x78] sm:$0xf]
        %v8387 = vld [vmem:[%s1190 + $0x7c] sm:$0xf]
        %v8388 = vld [vmem:[%s1190 + $0x80] sm:$0x1]
        %v8389 = vld [vmem:[%s1190 + $0x84] sm:$0xf]
        %v8390 = vld [vmem:[%s1190 + $0x88] sm:$0xf]
        %v8391 = vld [vmem:[%s1190 + $0x8c] sm:$0x1]
        %v8392 = vld [vmem:[%s1190 + $0x90] sm:$0xf]
        %v8393 = vld [vmem:[%s1190 + $0x94] sm:$0xf]
        %v8394 = vld [vmem:[%s1190 + $0x98] sm:$0x1]
        %v8395 = vld [vmem:[%s1190 + $0x9c] sm:$0xf]
        %v8396 = vld [vmem:[%s1190 + $0xa0] sm:$0xf]
        %v8397 = vld [vmem:[%s1190 + $0xa4] sm:$0x1]
        %v8398 = vld [vmem:[%s1190 + $0xa8] sm:$0xf]
        %v8399 = vld [vmem:[%s1190 + $0xac] sm:$0xf]
        %v8400 = vld [vmem:[%s1190 + $0xb0] sm:$0x1]
        %v8401 = vld [vmem:[%s1190 + $0xb4] sm:$0xf]
        %v8402 = vld [vmem:[%s1190 + $0xb8] sm:$0xf]
        %v8403 = vld [vmem:[%s1190 + $0xbc] sm:$0x1]
        %v8405 = vshrl.u32 %v8356, 16
        %v8407 = vrot.slane %v8405, 4
        %v8408 = vshll.u32 %v8356, 16
        %v8410 = vrot.slane %v8408, 5
        %v8411 = vor.u32 %v8407, %v8410
        %v8412 = vrot.slane %v8411, 4
        %v8414 = vshll.u32 %v8357, 16
        %v8416 = vrot.slane %v8414, 5
        %v8417 = vsel %vm434, %v8412, %v8416
        %v8418 = vshrl.u32 %v8357, 16
        %v8420 = vrot.slane %v8418, 4
        %v8421 = vor.u32 %v8420, %v8416
        %v8422 = vrot.slane %v8421, 4
        %v8424 = vshll.u32 %v8358, 16
        %v8426 = vrot.slane %v8424, 5
        %v8427 = vsel %vm434, %v8422, %v8426
        %v8429 = vshrl.u32 %v8359, 16
        %v8431 = vrot.slane %v8429, 4
        %v8432 = vshll.u32 %v8359, 16
        %v8434 = vrot.slane %v8432, 5
        %v8435 = vor.u32 %v8431, %v8434
        %v8436 = vrot.slane %v8435, 4
        %v8438 = vshll.u32 %v8360, 16
        %v8440 = vrot.slane %v8438, 5
        %v8441 = vsel %vm434, %v8436, %v8440
        %v8442 = vshrl.u32 %v8360, 16
        %v8444 = vrot.slane %v8442, 4
        %v8445 = vor.u32 %v8444, %v8440
        %v8446 = vrot.slane %v8445, 4
        %v8448 = vshll.u32 %v8361, 16
        %v8450 = vrot.slane %v8448, 5
        %v8451 = vsel %vm434, %v8446, %v8450
        %v8453 = vshrl.u32 %v8362, 16
        %v8455 = vrot.slane %v8453, 4
        %v8456 = vshll.u32 %v8362, 16
        %v8458 = vrot.slane %v8456, 5
        %v8459 = vor.u32 %v8455, %v8458
        %v8460 = vrot.slane %v8459, 4
        %v8462 = vshll.u32 %v8363, 16
        %v8464 = vrot.slane %v8462, 5
        %v8465 = vsel %vm434, %v8460, %v8464
        %v8466 = vshrl.u32 %v8363, 16
        %v8468 = vrot.slane %v8466, 4
        %v8469 = vor.u32 %v8468, %v8464
        %v8470 = vrot.slane %v8469, 4
        %v8472 = vshll.u32 %v8364, 16
        %v8474 = vrot.slane %v8472, 5
        %v8475 = vsel %vm434, %v8470, %v8474
        %v8477 = vshrl.u32 %v8365, 16
        %v8479 = vrot.slane %v8477, 4
        %v8480 = vshll.u32 %v8365, 16
        %v8482 = vrot.slane %v8480, 5
        %v8483 = vor.u32 %v8479, %v8482
        %v8484 = vrot.slane %v8483, 4
        %v8486 = vshll.u32 %v8366, 16
        %v8488 = vrot.slane %v8486, 5
        %v8489 = vsel %vm434, %v8484, %v8488
        %v8490 = vshrl.u32 %v8366, 16
        %v8492 = vrot.slane %v8490, 4
        %v8493 = vor.u32 %v8492, %v8488
        %v8494 = vrot.slane %v8493, 4
        %v8496 = vshll.u32 %v8367, 16
        %v8498 = vrot.slane %v8496, 5
        %v8499 = vsel %vm434, %v8494, %v8498
        %v8501 = vshrl.u32 %v8368, 16
        %v8503 = vrot.slane %v8501, 4
        %v8504 = vshll.u32 %v8368, 16
        %v8506 = vrot.slane %v8504, 5
        %v8507 = vor.u32 %v8503, %v8506
        %v8508 = vrot.slane %v8507, 4
        %v8510 = vshll.u32 %v8369, 16
        %v8512 = vrot.slane %v8510, 5
        %v8513 = vsel %vm434, %v8508, %v8512
        %v8514 = vshrl.u32 %v8369, 16
        %v8516 = vrot.slane %v8514, 4
        %v8517 = vor.u32 %v8516, %v8512
        %v8518 = vrot.slane %v8517, 4
        %v8520 = vshll.u32 %v8370, 16
        %v8522 = vrot.slane %v8520, 5
        %v8523 = vsel %vm434, %v8518, %v8522
        %v8525 = vshrl.u32 %v8371, 16
        %v8527 = vrot.slane %v8525, 4
        %v8528 = vshll.u32 %v8371, 16
        %v8530 = vrot.slane %v8528, 5
        %v8531 = vor.u32 %v8527, %v8530
        %v8532 = vrot.slane %v8531, 4
        %v8534 = vshll.u32 %v8372, 16
        %v8536 = vrot.slane %v8534, 5
        %v8537 = vsel %vm434, %v8532, %v8536
        %v8538 = vshrl.u32 %v8372, 16
        %v8540 = vrot.slane %v8538, 4
        %v8541 = vor.u32 %v8540, %v8536
        %v8542 = vrot.slane %v8541, 4
        %v8544 = vshll.u32 %v8373, 16
        %v8546 = vrot.slane %v8544, 5
        %v8547 = vsel %vm434, %v8542, %v8546
        %v8549 = vshrl.u32 %v8374, 16
        %v8551 = vrot.slane %v8549, 4
        %v8552 = vshll.u32 %v8374, 16
        %v8554 = vrot.slane %v8552, 5
        %v8555 = vor.u32 %v8551, %v8554
        %v8556 = vrot.slane %v8555, 4
        %v8558 = vshll.u32 %v8375, 16
        %v8560 = vrot.slane %v8558, 5
        %v8561 = vsel %vm434, %v8556, %v8560
        %v8562 = vshrl.u32 %v8375, 16
        %v8564 = vrot.slane %v8562, 4
        %v8565 = vor.u32 %v8564, %v8560
        %v8566 = vrot.slane %v8565, 4
        %v8568 = vshll.u32 %v8376, 16
        %v8570 = vrot.slane %v8568, 5
        %v8571 = vsel %vm434, %v8566, %v8570
        %v8573 = vshrl.u32 %v8377, 16
        %v8575 = vrot.slane %v8573, 4
        %v8576 = vshll.u32 %v8377, 16
        %v8578 = vrot.slane %v8576, 5
        %v8579 = vor.u32 %v8575, %v8578
        %v8580 = vrot.slane %v8579, 4
        %v8582 = vshll.u32 %v8378, 16
        %v8584 = vrot.slane %v8582, 5
        %v8585 = vsel %vm434, %v8580, %v8584
        %v8586 = vshrl.u32 %v8378, 16
        %v8588 = vrot.slane %v8586, 4
        %v8589 = vor.u32 %v8588, %v8584
        %v8590 = vrot.slane %v8589, 4
        %v8592 = vshll.u32 %v8379, 16
        %v8594 = vrot.slane %v8592, 5
        %v8595 = vsel %vm434, %v8590, %v8594
        %v8597 = vshrl.u32 %v8380, 16
        %v8599 = vrot.slane %v8597, 4
        %v8600 = vshll.u32 %v8380, 16
        %v8602 = vrot.slane %v8600, 5
        %v8603 = vor.u32 %v8599, %v8602
        %v8604 = vrot.slane %v8603, 4
        %v8606 = vshll.u32 %v8381, 16
        %v8608 = vrot.slane %v8606, 5
        %v8609 = vsel %vm434, %v8604, %v8608
        %v8610 = vshrl.u32 %v8381, 16
        %v8612 = vrot.slane %v8610, 4
        %v8613 = vor.u32 %v8612, %v8608
        %v8614 = vrot.slane %v8613, 4
        %v8616 = vshll.u32 %v8382, 16
        %v8618 = vrot.slane %v8616, 5
        %v8619 = vsel %vm434, %v8614, %v8618
        %v8621 = vshrl.u32 %v8383, 16
        %v8623 = vrot.slane %v8621, 4
        %v8624 = vshll.u32 %v8383, 16
        %v8626 = vrot.slane %v8624, 5
        %v8627 = vor.u32 %v8623, %v8626
        %v8628 = vrot.slane %v8627, 4
        %v8630 = vshll.u32 %v8384, 16
        %v8632 = vrot.slane %v8630, 5
        %v8633 = vsel %vm434, %v8628, %v8632
        %v8634 = vshrl.u32 %v8384, 16
        %v8636 = vrot.slane %v8634, 4
        %v8637 = vor.u32 %v8636, %v8632
        %v8638 = vrot.slane %v8637, 4
        %v8640 = vshll.u32 %v8385, 16
        %v8642 = vrot.slane %v8640, 5
        %v8643 = vsel %vm434, %v8638, %v8642
        %v8645 = vshrl.u32 %v8386, 16
        %v8647 = vrot.slane %v8645, 4
        %v8648 = vshll.u32 %v8386, 16
        %v8650 = vrot.slane %v8648, 5
        %v8651 = vor.u32 %v8647, %v8650
        %v8652 = vrot.slane %v8651, 4
        %v8654 = vshll.u32 %v8387, 16
        %v8656 = vrot.slane %v8654, 5
        %v8657 = vsel %vm434, %v8652, %v8656
        %v8658 = vshrl.u32 %v8387, 16
        %v8660 = vrot.slane %v8658, 4
        %v8661 = vor.u32 %v8660, %v8656
        %v8662 = vrot.slane %v8661, 4
        %v8664 = vshll.u32 %v8388, 16
        %v8666 = vrot.slane %v8664, 5
        %v8667 = vsel %vm434, %v8662, %v8666
        %v8669 = vshrl.u32 %v8389, 16
        %v8671 = vrot.slane %v8669, 4
        %v8672 = vshll.u32 %v8389, 16
        %v8674 = vrot.slane %v8672, 5
        %v8675 = vor.u32 %v8671, %v8674
        %v8676 = vrot.slane %v8675, 4
        %v8678 = vshll.u32 %v8390, 16
        %v8680 = vrot.slane %v8678, 5
        %v8681 = vsel %vm434, %v8676, %v8680
        %v8682 = vshrl.u32 %v8390, 16
        %v8684 = vrot.slane %v8682, 4
        %v8685 = vor.u32 %v8684, %v8680
        %v8686 = vrot.slane %v8685, 4
        %v8688 = vshll.u32 %v8391, 16
        %v8690 = vrot.slane %v8688, 5
        %v8691 = vsel %vm434, %v8686, %v8690
        %v8693 = vshrl.u32 %v8392, 16
        %v8695 = vrot.slane %v8693, 4
        %v8696 = vshll.u32 %v8392, 16
        %v8698 = vrot.slane %v8696, 5
        %v8699 = vor.u32 %v8695, %v8698
        %v8700 = vrot.slane %v8699, 4
        %v8702 = vshll.u32 %v8393, 16
        %v8704 = vrot.slane %v8702, 5
        %v8705 = vsel %vm434, %v8700, %v8704
        %v8706 = vshrl.u32 %v8393, 16
        %v8708 = vrot.slane %v8706, 4
        %v8709 = vor.u32 %v8708, %v8704
        %v8710 = vrot.slane %v8709, 4
        %v8712 = vshll.u32 %v8394, 16
        %v8714 = vrot.slane %v8712, 5
        %v8715 = vsel %vm434, %v8710, %v8714
        %v8717 = vshrl.u32 %v8395, 16
        %v8719 = vrot.slane %v8717, 4
        %v8720 = vshll.u32 %v8395, 16
        %v8722 = vrot.slane %v8720, 5
        %v8723 = vor.u32 %v8719, %v8722
        %v8724 = vrot.slane %v8723, 4
        %v8726 = vshll.u32 %v8396, 16
        %v8728 = vrot.slane %v8726, 5
        %v8729 = vsel %vm434, %v8724, %v8728
        %v8730 = vshrl.u32 %v8396, 16
        %v8732 = vrot.slane %v8730, 4
        %v8733 = vor.u32 %v8732, %v8728
        %v8734 = vrot.slane %v8733, 4
        %v8736 = vshll.u32 %v8397, 16
        %v8738 = vrot.slane %v8736, 5
        %v8739 = vsel %vm434, %v8734, %v8738
        %v8741 = vshrl.u32 %v8398, 16
        %v8743 = vrot.slane %v8741, 4
        %v8744 = vshll.u32 %v8398, 16
        %v8746 = vrot.slane %v8744, 5
        %v8747 = vor.u32 %v8743, %v8746
        %v8748 = vrot.slane %v8747, 4
        %v8750 = vshll.u32 %v8399, 16
        %v8752 = vrot.slane %v8750, 5
        %v8753 = vsel %vm434, %v8748, %v8752
        %v8754 = vshrl.u32 %v8399, 16
        %v8756 = vrot.slane %v8754, 4
        %v8757 = vor.u32 %v8756, %v8752
        %v8758 = vrot.slane %v8757, 4
        %v8760 = vshll.u32 %v8400, 16
        %v8762 = vrot.slane %v8760, 5
        %v8763 = vsel %vm434, %v8758, %v8762
        %v8765 = vshrl.u32 %v8401, 16
        %v8767 = vrot.slane %v8765, 4
        %v8768 = vshll.u32 %v8401, 16
        %v8770 = vrot.slane %v8768, 5
        %v8771 = vor.u32 %v8767, %v8770
        %v8772 = vrot.slane %v8771, 4
        %v8774 = vshll.u32 %v8402, 16
        %v8776 = vrot.slane %v8774, 5
        %v8777 = vsel %vm434, %v8772, %v8776
        %v8778 = vshrl.u32 %v8402, 16
        %v8780 = vrot.slane %v8778, 4
        %v8781 = vor.u32 %v8780, %v8776
        %v8782 = vrot.slane %v8781, 4
        %v8784 = vshll.u32 %v8403, 16
        %v8786 = vrot.slane %v8784, 5
        %v8787 = vsel %vm434, %v8782, %v8786
        %v8820 = vunpack.c.l.bf16 %v8417
        %v8821 = vunpack.c.l.bf16 %v8427
        %v8822 = vunpack.c.l.bf16 %v8441
        %v8823 = vunpack.c.l.bf16 %v8451
        %v8824 = vunpack.c.l.bf16 %v8465
        %v8825 = vunpack.c.l.bf16 %v8475
        %v8826 = vunpack.c.l.bf16 %v8489
        %v8827 = vunpack.c.l.bf16 %v8499
        %v8828 = vunpack.c.l.bf16 %v8513
        %v8829 = vunpack.c.l.bf16 %v8523
        %v8830 = vunpack.c.l.bf16 %v8537
        %v8831 = vunpack.c.l.bf16 %v8547
        %v8832 = vunpack.c.l.bf16 %v8561
        %v8833 = vunpack.c.l.bf16 %v8571
        %v8834 = vunpack.c.l.bf16 %v8585
        %v8835 = vunpack.c.l.bf16 %v8595
        %v8836 = vunpack.c.l.bf16 %v8609
        %v8837 = vunpack.c.l.bf16 %v8619
        %v8838 = vunpack.c.l.bf16 %v8633
        %v8839 = vunpack.c.l.bf16 %v8643
        %v8840 = vunpack.c.l.bf16 %v8657
        %v8841 = vunpack.c.l.bf16 %v8667
        %v8842 = vunpack.c.l.bf16 %v8681
        %v8843 = vunpack.c.l.bf16 %v8691
        %v8844 = vunpack.c.l.bf16 %v8705
        %v8845 = vunpack.c.l.bf16 %v8715
        %v8846 = vunpack.c.l.bf16 %v8729
        %v8847 = vunpack.c.l.bf16 %v8739
        %v8848 = vunpack.c.l.bf16 %v8753
        %v8849 = vunpack.c.l.bf16 %v8763
        %v8850 = vunpack.c.l.bf16 %v8777
        %v8851 = vunpack.c.l.bf16 %v8787
        %v8852 = vld [vmem:[%s4] sm:$0x1]
        %v8854 = vlaneseq
        %v8855 = vshrl.u32 %v8854, 7
        %v8856 = vsub.s32 0, %v8855
        %v8857 = vrot.slane %v8852, %v8856
        %v9003 = vunpack.c.l.b16 %v8212
        %v9004 = vunpack.c.l.b16 %v8213
        %v9005 = vunpack.c.l.b16 %v8214
        %v9006 = vunpack.c.l.b16 %v8215
        %v9007 = vunpack.c.l.b16 %v8216
        %v9008 = vunpack.c.l.b16 %v8217
        %v9009 = vunpack.c.l.b16 %v8218
        %v9010 = vunpack.c.l.b16 %v8219
        %v9011 = vunpack.c.l.b16 %v8220
        %v9012 = vunpack.c.l.b16 %v8221
        %v9013 = vunpack.c.l.b16 %v8222
        %v9014 = vunpack.c.l.b16 %v8223
        %v9015 = vunpack.c.l.b16 %v8224
        %v9016 = vunpack.c.l.b16 %v8225
        %v9017 = vunpack.c.l.b16 %v8226
        %v9018 = vunpack.c.l.b16 %v8227
        %v9019 = vunpack.c.l.b16 %v8228
        %v9020 = vunpack.c.l.b16 %v8229
        %v9021 = vunpack.c.l.b16 %v8230
        %v9022 = vunpack.c.l.b16 %v8231
        %v9023 = vunpack.c.l.b16 %v8232
        %v9024 = vunpack.c.l.b16 %v8233
        %v9025 = vunpack.c.l.b16 %v8234
        %v9026 = vunpack.c.l.b16 %v8235
        %v9027 = vunpack.c.l.b16 %v8236
        %v9028 = vunpack.c.l.b16 %v8237
        %v9029 = vunpack.c.l.b16 %v8238
        %v9030 = vunpack.c.l.b16 %v8239
        %v9031 = vunpack.c.l.b16 %v8240
        %v9032 = vunpack.c.l.b16 %v8241
        %v9033 = vunpack.c.l.b16 %v8242
        %v9034 = vunpack.c.l.b16 %v8243
        %v9035 = vunpack.c.l.b16 %v8244
        %v9036 = vunpack.c.l.b16 %v8245
        %v9037 = vunpack.c.l.b16 %v8246
        %v9038 = vunpack.c.l.b16 %v8247
        %v9039 = vunpack.c.l.b16 %v8248
        %v9040 = vunpack.c.l.b16 %v8249
        %v9041 = vunpack.c.l.b16 %v8250
        %v9042 = vunpack.c.l.b16 %v8251
        %v9043 = vunpack.c.l.b16 %v8252
        %v9044 = vunpack.c.l.b16 %v8253
        %v9045 = vunpack.c.l.b16 %v8254
        %v9046 = vunpack.c.l.b16 %v8255
        %v9047 = vunpack.c.l.b16 %v8256
        %v9048 = vunpack.c.l.b16 %v8257
        %v9049 = vunpack.c.l.b16 %v8258
        %v9050 = vunpack.c.l.b16 %v8259
        %v9051 = vunpack.c.l.b16 %v8260
        %v9052 = vunpack.c.l.b16 %v8261
        %v9053 = vunpack.c.l.b16 %v8262
        %v9054 = vunpack.c.l.b16 %v8263
        %v9055 = vunpack.c.l.b16 %v8264
        %v9056 = vunpack.c.l.b16 %v8265
        %v9057 = vunpack.c.l.b16 %v8266
        %v9058 = vunpack.c.l.b16 %v8267
        %v9059 = vunpack.c.l.b16 %v8268
        %v9060 = vunpack.c.l.b16 %v8269
        %v9061 = vunpack.c.l.b16 %v8270
        %v9062 = vunpack.c.l.b16 %v8271
        %v9063 = vunpack.c.l.b16 %v8272
        %v9064 = vunpack.c.l.b16 %v8273
        %v9065 = vunpack.c.l.b16 %v8274
        %v9066 = vunpack.c.l.b16 %v8275
        %v9067 = vunpack.c.l.b16 %v8276
        %v9068 = vunpack.c.l.b16 %v8277
        %v9069 = vunpack.c.l.b16 %v8278
        %v9070 = vunpack.c.l.b16 %v8279
        %v9071 = vunpack.c.l.b16 %v8280
        %v9072 = vunpack.c.l.b16 %v8281
        %v9073 = vunpack.c.l.b16 %v8282
        %v9074 = vunpack.c.l.b16 %v8283
        %v9075 = vunpack.c.l.b16 %v8284
        %v9076 = vunpack.c.l.b16 %v8285
        %v9077 = vunpack.c.l.b16 %v8286
        %v9078 = vunpack.c.l.b16 %v8287
        %v9079 = vunpack.c.l.b16 %v8288
        %v9080 = vunpack.c.l.b16 %v8289
        %v9081 = vunpack.c.l.b16 %v8290
        %v9082 = vunpack.c.l.b16 %v8291
        %v9083 = vunpack.c.l.b16 %v8292
        %v9084 = vunpack.c.l.b16 %v8293
        %v9085 = vunpack.c.l.b16 %v8294
        %v9086 = vunpack.c.l.b16 %v8295
        %v9087 = vunpack.c.l.b16 %v8296
        %v9088 = vunpack.c.l.b16 %v8297
        %v9089 = vunpack.c.l.b16 %v8298
        %v9090 = vunpack.c.l.b16 %v8299
        %v9091 = vunpack.c.l.b16 %v8300
        %v9092 = vunpack.c.l.b16 %v8301
        %v9093 = vunpack.c.l.b16 %v8302
        %v9094 = vunpack.c.l.b16 %v8303
        %v9095 = vunpack.c.l.b16 %v8304
        %v9096 = vunpack.c.l.b16 %v8305
        %v9097 = vunpack.c.l.b16 %v8306
        %v9098 = vunpack.c.l.b16 %v8307
        %v9099 = vunpack.c.l.b16 %v8308
        %v9100 = vunpack.c.l.b16 %v8309
        %v9101 = vunpack.c.l.b16 %v8310
        %v9102 = vunpack.c.l.b16 %v8311
        %v9103 = vunpack.c.l.b16 %v8312
        %v9104 = vunpack.c.l.b16 %v8313
        %v9105 = vunpack.c.l.b16 %v8314
        %v9106 = vunpack.c.l.b16 %v8315
        %v9107 = vunpack.c.l.b16 %v8316
        %v9108 = vunpack.c.l.b16 %v8317
        %v9109 = vunpack.c.l.b16 %v8318
        %v9110 = vunpack.c.l.b16 %v8319
        %v9111 = vunpack.c.l.b16 %v8320
        %v9112 = vunpack.c.l.b16 %v8321
        %v9113 = vunpack.c.l.b16 %v8322
        %v9114 = vunpack.c.l.b16 %v8323
        %v9115 = vunpack.c.l.b16 %v8324
        %v9116 = vunpack.c.l.b16 %v8325
        %v9117 = vunpack.c.l.b16 %v8326
        %v9118 = vunpack.c.l.b16 %v8327
        %v9119 = vunpack.c.l.b16 %v8328
        %v9120 = vunpack.c.l.b16 %v8329
        %v9121 = vunpack.c.l.b16 %v8330
        %v9122 = vunpack.c.l.b16 %v8331
        %v9123 = vunpack.c.l.b16 %v8332
        %v9124 = vunpack.c.l.b16 %v8333
        %v9125 = vunpack.c.l.b16 %v8334
        %v9126 = vunpack.c.l.b16 %v8335
        %v9127 = vunpack.c.l.b16 %v8336
        %v9128 = vunpack.c.l.b16 %v8337
        %v9129 = vunpack.c.l.b16 %v8338
        %v9130 = vunpack.c.l.b16 %v8339
        %v9131 = vunpack.c.l.b16 %v8340
        %v9132 = vunpack.c.l.b16 %v8341
        %v9133 = vunpack.c.l.b16 %v8342
        %v9134 = vunpack.c.l.b16 %v8343
        %v9135 = vunpack.c.l.b16 %v8344
        %v9136 = vunpack.c.l.b16 %v8345
        %v9137 = vunpack.c.l.b16 %v8346
        %v9138 = vunpack.c.l.b16 %v8347
        %v9139 = vunpack.c.l.b16 %v8348
        %v9140 = vunpack.c.l.b16 %v8349
        %v9141 = vunpack.c.l.b16 %v8350
        %v9142 = vunpack.c.l.b16 %v8351
        %v9143 = vunpack.c.l.b16 %v8352
        %v9144 = vunpack.c.l.b16 %v8353
        %v9145 = vunpack.c.l.b16 %v8354
        %v9146 = vunpack.c.l.b16 %v8355
        %v9147 = vpack.c.b16 %v9004, %v9003
        %v9148 = vpack.c.b16 %v9006, %v9005
        %v9149 = vpack.c.b16 %v9008, %v9007
        %v9150 = vpack.c.b16 %v9010, %v9009
        %v9151 = vpack.c.b16 %v9012, %v9011
        %v9152 = vpack.c.b16 %v9014, %v9013
        %v9153 = vpack.c.b16 %v9016, %v9015
        %v9154 = vpack.c.b16 %v9018, %v9017
        %v9155 = vpack.c.b16 %v9020, %v9019
        %v9156 = vpack.c.b16 %v9022, %v9021
        %v9157 = vpack.c.b16 %v9024, %v9023
        %v9158 = vpack.c.b16 %v9026, %v9025
        %v9159 = vpack.c.b16 %v9028, %v9027
        %v9160 = vpack.c.b16 %v9030, %v9029
        %v9161 = vpack.c.b16 %v9032, %v9031
        %v9162 = vpack.c.b16 %v9034, %v9033
        %v9163 = vpack.c.b16 %v9036, %v9035
        %v9164 = vpack.c.b16 %v9038, %v9037
        %v9165 = vpack.c.b16 %v9040, %v9039
        %v9166 = vpack.c.b16 %v9042, %v9041
        %v9167 = vpack.c.b16 %v9044, %v9043
        %v9168 = vpack.c.b16 %v9046, %v9045
        %v9169 = vpack.c.b16 %v9048, %v9047
        %v9170 = vpack.c.b16 %v9050, %v9049
        %v9171 = vpack.c.b16 %v9052, %v9051
        %v9172 = vpack.c.b16 %v9054, %v9053
        %v9173 = vpack.c.b16 %v9056, %v9055
        %v9174 = vpack.c.b16 %v9058, %v9057
        %v9175 = vpack.c.b16 %v9060, %v9059
        %v9176 = vpack.c.b16 %v9062, %v9061
        %v9177 = vpack.c.b16 %v9064, %v9063
        %v9178 = vpack.c.b16 %v9066, %v9065
        %v9179 = vpack.c.b16 %v9068, %v9067
        %v9180 = vpack.c.b16 %v9070, %v9069
        %v9181 = vpack.c.b16 %v9072, %v9071
        %v9182 = vpack.c.b16 %v9074, %v9073
        %v9183 = vpack.c.b16 %v9076, %v9075
        %v9184 = vpack.c.b16 %v9078, %v9077
        %v9185 = vpack.c.b16 %v9080, %v9079
        %v9186 = vpack.c.b16 %v9082, %v9081
        %v9187 = vpack.c.b16 %v9084, %v9083
        %v9188 = vpack.c.b16 %v9086, %v9085
        %v9189 = vpack.c.b16 %v9088, %v9087
        %v9190 = vpack.c.b16 %v9090, %v9089
        %v9191 = vpack.c.b16 %v9092, %v9091
        %v9192 = vpack.c.b16 %v9094, %v9093
        %v9193 = vpack.c.b16 %v9096, %v9095
        %v9194 = vpack.c.b16 %v9098, %v9097
        %v9195 = vpack.c.b16 %v9100, %v9099
        %v9196 = vpack.c.b16 %v9102, %v9101
        %v9197 = vpack.c.b16 %v9104, %v9103
        %v9198 = vpack.c.b16 %v9106, %v9105
        %v9199 = vpack.c.b16 %v9108, %v9107
        %v9200 = vpack.c.b16 %v9110, %v9109
        %v9201 = vpack.c.b16 %v9112, %v9111
        %v9202 = vpack.c.b16 %v9114, %v9113
        %v9203 = vpack.c.b16 %v9116, %v9115
        %v9204 = vpack.c.b16 %v9118, %v9117
        %v9205 = vpack.c.b16 %v9120, %v9119
        %v9206 = vpack.c.b16 %v9122, %v9121
        %v9207 = vpack.c.b16 %v9124, %v9123
        %v9208 = vpack.c.b16 %v9126, %v9125
        %v9209 = vpack.c.b16 %v9128, %v9127
        %v9210 = vpack.c.b16 %v9130, %v9129
        %v9211 = vpack.c.b16 %v9132, %v9131
        %v9212 = vpack.c.b16 %v9134, %v9133
        %v9213 = vpack.c.b16 %v9136, %v9135
        %v9214 = vpack.c.b16 %v9138, %v9137
        %v9215 = vpack.c.b16 %v9140, %v9139
        %v9216 = vpack.c.b16 %v9142, %v9141
        %v9217 = vpack.c.b16 %v9144, %v9143
        %v9218 = vpack.c.b16 %v9146, %v9145
        %9291 = vmatprep.subr.bf16.mxu0 0
        %9292 = vmatpush1.bf16.msra.mxu0 %v9147
        %9293 = vmatprep.subr.bf16.mxu0 0
        %9294 = vmatpush1.bf16.msra.mxu0 %v9148
        %9295 = vmatprep.subr.bf16.mxu0 0
        %9296 = vmatpush1.bf16.msra.mxu0 %v9149
        %9297 = vmatprep.subr.bf16.mxu0 0
        %9298 = vmatpush1.bf16.msra.mxu0 %v9150
        %9299 = vmatprep.subr.bf16.mxu0 0
        %9300 = vmatpush1.bf16.msra.mxu0 %v9151
        %9301 = vmatprep.subr.bf16.mxu0 0
        %9302 = vmatpush1.bf16.msra.mxu0 %v9152
        %9303 = vmatprep.subr.bf16.mxu0 0
        %9304 = vmatpush1.bf16.msra.mxu0 %v9153
        %9305 = vmatprep.subr.bf16.mxu0 0
        %9306 = vmatpush1.bf16.msra.mxu0 %v9154
        %9307 = vmatprep.subr.bf16.mxu0 0
        %9308 = vmatpush1.bf16.msra.mxu0 %v9155
        %9309 = vmatprep.subr.bf16.mxu0 0
        %9310 = vmatpush1.bf16.msra.mxu0 %v9156
        %9311 = vmatprep.subr.bf16.mxu0 0
        %9312 = vmatpush1.bf16.msra.mxu0 %v9157
        %9313 = vmatprep.subr.bf16.mxu0 0
        %9314 = vmatpush1.bf16.msra.mxu0 %v9158
        %9315 = vmatprep.subr.bf16.mxu0 0
        %9316 = vmatpush1.bf16.msra.mxu0 %v9159
        %9317 = vmatprep.subr.bf16.mxu0 0
        %9318 = vmatpush1.bf16.msra.mxu0 %v9160
        %9319 = vmatprep.subr.bf16.mxu0 0
        %9320 = vmatpush1.bf16.msra.mxu0 %v9161
        %9321 = vmatprep.subr.bf16.mxu0 0
        %9322 = vmatpush1.bf16.msra.mxu0 %v9162
        %9323 = vmatprep.mubr.bf16.mxu0 %v8069
        %9324 = vmatmul.mubr.bf16.gmra.mrb[0].mxu0 %v8068
        %v9325 = vpop.f32.mrb[0].mxu0
        %v9326 = vadd.f32 %v8857, %v9325
        %v9327 = vpop.f32.mrb[0].mxu0
        %v9328 = vpop.f32.mrb[0].mxu0
        %v9329 = vadd.f32 %v8857, %v9328
        %v9330 = vpop.f32.mrb[0].mxu0
        %9331 = vmatprep.mubr.bf16.mxu0 %v8078
        %9332 = vmatmul.mubr.bf16.gmra.mrb[0].mxu0 %v8077
        %v9333 = vpop.f32.mrb[0].mxu0
        %v9334 = vadd.f32 %v8857, %v9333
        %v9335 = vpop.f32.mrb[0].mxu0
        %v9336 = vpop.f32.mrb[0].mxu0
        %v9337 = vadd.f32 %v8857, %v9336
        %v9338 = vpop.f32.mrb[0].mxu0
        %9339 = vmatprep.mubr.bf16.mxu0 %v8087
        %9340 = vmatmul.mubr.bf16.gmra.mrb[0].mxu0 %v8086
        %v9341 = vpop.f32.mrb[0].mxu0
        %v9342 = vadd.f32 %v8857, %v9341
        %v9343 = vpop.f32.mrb[0].mxu0
        %v9344 = vpop.f32.mrb[0].mxu0
        %v9345 = vadd.f32 %v8857, %v9344
        %v9346 = vpop.f32.mrb[0].mxu0
        %9347 = vmatprep.mubr.bf16.mxu0 %v8096
        %9348 = vmatmul.mubr.bf16.gmra.mrb[0].mxu0 %v8095
        %v9349 = vpop.f32.mrb[0].mxu0
        %v9350 = vadd.f32 %v8857, %v9349
        %v9351 = vpop.f32.mrb[0].mxu0
        %v9352 = vpop.f32.mrb[0].mxu0
        %v9353 = vadd.f32 %v8857, %v9352
        %v9354 = vpop.f32.mrb[0].mxu0
        %9355 = vmatprep.mubr.bf16.mxu0 %v8105
        %9356 = vmatmul.mubr.bf16.gmra.mrb[0].mxu0 %v8104
        %v9357 = vpop.f32.mrb[0].mxu0
        %v9358 = vadd.f32 %v8857, %v9357
        %v9359 = vpop.f32.mrb[0].mxu0
        %v9360 = vpop.f32.mrb[0].mxu0
        %v9361 = vadd.f32 %v8857, %v9360
        %v9362 = vpop.f32.mrb[0].mxu0
        %9363 = vmatprep.mubr.bf16.mxu0 %v8114
        %9364 = vmatmul.mubr.bf16.gmra.mrb[0].mxu0 %v8113
        %v9365 = vpop.f32.mrb[0].mxu0
        %v9366 = vadd.f32 %v8857, %v9365
        %v9367 = vpop.f32.mrb[0].mxu0
        %v9368 = vpop.f32.mrb[0].mxu0
        %v9369 = vadd.f32 %v8857, %v9368
        %v9370 = vpop.f32.mrb[0].mxu0
        %9371 = vmatprep.mubr.bf16.mxu0 %v8123
        %9372 = vmatmul.mubr.bf16.gmra.mrb[0].mxu0 %v8122
        %v9373 = vpop.f32.mrb[0].mxu0
        %v9374 = vadd.f32 %v8857, %v9373
        %v9375 = vpop.f32.mrb[0].mxu0
        %v9376 = vpop.f32.mrb[0].mxu0
        %v9377 = vadd.f32 %v8857, %v9376
        %v9378 = vpop.f32.mrb[0].mxu0
        %9379 = vmatprep.mubr.bf16.mxu0 %v8132
        %9380 = vmatmul.mubr.bf16.gmra.mrb[0].mxu0 %v8131
        %v9381 = vpop.f32.mrb[0].mxu0
        %v9382 = vadd.f32 %v8857, %v9381
        %v9383 = vpop.f32.mrb[0].mxu0
        %v9384 = vpop.f32.mrb[0].mxu0
        %v9385 = vadd.f32 %v8857, %v9384
        %v9386 = vpop.f32.mrb[0].mxu0
        %9387 = vmatprep.mubr.bf16.mxu0 %v8141
        %9388 = vmatmul.mubr.bf16.gmra.mrb[0].mxu0 %v8140
        %v9389 = vpop.f32.mrb[0].mxu0
        %v9390 = vadd.f32 %v8857, %v9389
        %v9391 = vpop.f32.mrb[0].mxu0
        %v9392 = vpop.f32.mrb[0].mxu0
        %v9393 = vadd.f32 %v8857, %v9392
        %v9394 = vpop.f32.mrb[0].mxu0
        %9395 = vmatprep.mubr.bf16.mxu0 %v8150
        %9396 = vmatmul.mubr.bf16.gmra.mrb[0].mxu0 %v8149
        %v9397 = vpop.f32.mrb[0].mxu0
        %v9398 = vadd.f32 %v8857, %v9397
        %v9399 = vpop.f32.mrb[0].mxu0
        %v9400 = vpop.f32.mrb[0].mxu0
        %v9401 = vadd.f32 %v8857, %v9400
        %v9402 = vpop.f32.mrb[0].mxu0
        %9403 = vmatprep.mubr.bf16.mxu0 %v8159
        %9404 = vmatmul.mubr.bf16.gmra.mrb[0].mxu0 %v8158
        %v9405 = vpop.f32.mrb[0].mxu0
        %v9406 = vadd.f32 %v8857, %v9405
        %v9407 = vpop.f32.mrb[0].mxu0
        %v9408 = vpop.f32.mrb[0].mxu0
        %v9409 = vadd.f32 %v8857, %v9408
        %v9410 = vpop.f32.mrb[0].mxu0
        %9411 = vmatprep.mubr.bf16.mxu0 %v8168
        %9412 = vmatmul.mubr.bf16.gmra.mrb[0].mxu0 %v8167
        %v9413 = vpop.f32.mrb[0].mxu0
        %v9414 = vadd.f32 %v8857, %v9413
        %v9415 = vpop.f32.mrb[0].mxu0
        %v9416 = vpop.f32.mrb[0].mxu0
        %v9417 = vadd.f32 %v8857, %v9416
        %v9418 = vpop.f32.mrb[0].mxu0
        %9419 = vmatprep.mubr.bf16.mxu0 %v8177
        %9420 = vmatmul.mubr.bf16.gmra.mrb[0].mxu0 %v8176
        %v9421 = vpop.f32.mrb[0].mxu0
        %v9422 = vadd.f32 %v8857, %v9421
        %v9423 = vpop.f32.mrb[0].mxu0
        %v9424 = vpop.f32.mrb[0].mxu0
        %v9425 = vadd.f32 %v8857, %v9424
        %v9426 = vpop.f32.mrb[0].mxu0
        %9427 = vmatprep.mubr.bf16.mxu0 %v8186
        %9428 = vmatmul.mubr.bf16.gmra.mrb[0].mxu0 %v8185
        %v9429 = vpop.f32.mrb[0].mxu0
        %v9430 = vadd.f32 %v8857, %v9429
        %v9431 = vpop.f32.mrb[0].mxu0
        %v9432 = vpop.f32.mrb[0].mxu0
        %v9433 = vadd.f32 %v8857, %v9432
        %v9434 = vpop.f32.mrb[0].mxu0
        %9435 = vmatprep.mubr.bf16.mxu0 %v8195
        %9436 = vmatmul.mubr.bf16.gmra.mrb[0].mxu0 %v8194
        %v9437 = vpop.f32.mrb[0].mxu0
        %v9438 = vadd.f32 %v8857, %v9437
        %v9439 = vpop.f32.mrb[0].mxu0
        %v9440 = vpop.f32.mrb[0].mxu0
        %v9441 = vadd.f32 %v8857, %v9440
        %v9442 = vpop.f32.mrb[0].mxu0
        %9443 = vmatprep.mubr.bf16.mxu0 %v8204
        %9444 = vmatmul.mubr.bf16.gmra.mrb[0].mxu0 %v8203
        %v9445 = vpop.f32.mrb[0].mxu0
        %v9446 = vadd.f32 %v8857, %v9445
        %v9447 = vpop.f32.mrb[0].mxu0
        %v9448 = vpop.f32.mrb[0].mxu0
        %v9449 = vadd.f32 %v8857, %v9448
        %v9450 = vpop.f32.mrb[0].mxu0
        %9451 = vdwg.mxu0
        %9452 = vmatprep.subr.bf16.mxu0 0
        %9453 = vmatpush1.bf16.msra.mxu0 %v9163
        %9454 = vmatprep.subr.bf16.mxu0 0
        %9455 = vmatpush1.bf16.msra.mxu0 %v9164
        %9456 = vmatprep.subr.bf16.mxu0 0
        %9457 = vmatpush1.bf16.msra.mxu0 %v9165
        %9458 = vmatprep.subr.bf16.mxu0 0
        %9459 = vmatpush1.bf16.msra.mxu0 %v9166
        %9460 = vmatprep.subr.bf16.mxu0 0
        %9461 = vmatpush1.bf16.msra.mxu0 %v9167
        %9462 = vmatprep.subr.bf16.mxu0 0
        %9463 = vmatpush1.bf16.msra.mxu0 %v9168
        %9464 = vmatprep.subr.bf16.mxu0 0
        %9465 = vmatpush1.bf16.msra.mxu0 %v9169
        %9466 = vmatprep.subr.bf16.mxu0 0
        %9467 = vmatpush1.bf16.msra.mxu0 %v9170
        %9468 = vmatprep.subr.bf16.mxu0 0
        %9469 = vmatpush1.bf16.msra.mxu0 %v9171
        %9470 = vmatprep.subr.bf16.mxu0 0
        %9471 = vmatpush1.bf16.msra.mxu0 %v9172
        %9472 = vmatprep.subr.bf16.mxu0 0
        %9473 = vmatpush1.bf16.msra.mxu0 %v9173
        %9474 = vmatprep.subr.bf16.mxu0 0
        %9475 = vmatpush1.bf16.msra.mxu0 %v9174
        %9476 = vmatprep.subr.bf16.mxu0 0
        %9477 = vmatpush1.bf16.msra.mxu0 %v9175
        %9478 = vmatprep.subr.bf16.mxu0 0
        %9479 = vmatpush1.bf16.msra.mxu0 %v9176
        %9480 = vmatprep.subr.bf16.mxu0 0
        %9481 = vmatpush1.bf16.msra.mxu0 %v9177
        %9482 = vmatprep.subr.bf16.mxu0 0
        %9483 = vmatpush1.bf16.msra.mxu0 %v9178
        %9484 = vmatprep.mubr.bf16.mxu0 %v8071
        %9485 = vmatmul.mubr.bf16.gmra.mrb[0].mxu0 %v8070
        %v9486 = vpop.f32.mrb[0].mxu0
        %v9487 = vadd.f32 %v9326, %v9486
        %v9488 = vpop.f32.mrb[0].mxu0
        %v9489 = vpop.f32.mrb[0].mxu0
        %v9490 = vadd.f32 %v9329, %v9489
        %v9491 = vpop.f32.mrb[0].mxu0
        %9492 = vmatprep.mubr.bf16.mxu0 %v8080
        %9493 = vmatmul.mubr.bf16.gmra.mrb[0].mxu0 %v8079
        %v9494 = vpop.f32.mrb[0].mxu0
        %v9495 = vadd.f32 %v9334, %v9494
        %v9496 = vpop.f32.mrb[0].mxu0
        %v9497 = vpop.f32.mrb[0].mxu0
        %v9498 = vadd.f32 %v9337, %v9497
        %v9499 = vpop.f32.mrb[0].mxu0
        %9500 = vmatprep.mubr.bf16.mxu0 %v8089
        %9501 = vmatmul.mubr.bf16.gmra.mrb[0].mxu0 %v8088
        %v9502 = vpop.f32.mrb[0].mxu0
        %v9503 = vadd.f32 %v9342, %v9502
        %v9504 = vpop.f32.mrb[0].mxu0
        %v9505 = vpop.f32.mrb[0].mxu0
        %v9506 = vadd.f32 %v9345, %v9505
        %v9507 = vpop.f32.mrb[0].mxu0
        %9508 = vmatprep.mubr.bf16.mxu0 %v8098
        %9509 = vmatmul.mubr.bf16.gmra.mrb[0].mxu0 %v8097
        %v9510 = vpop.f32.mrb[0].mxu0
        %v9511 = vadd.f32 %v9350, %v9510
        %v9512 = vpop.f32.mrb[0].mxu0
        %v9513 = vpop.f32.mrb[0].mxu0
        %v9514 = vadd.f32 %v9353, %v9513
        %v9515 = vpop.f32.mrb[0].mxu0
        %9516 = vmatprep.mubr.bf16.mxu0 %v8107
        %9517 = vmatmul.mubr.bf16.gmra.mrb[0].mxu0 %v8106
        %v9518 = vpop.f32.mrb[0].mxu0
        %v9519 = vadd.f32 %v9358, %v9518
        %v9520 = vpop.f32.mrb[0].mxu0
        %v9521 = vpop.f32.mrb[0].mxu0
        %v9522 = vadd.f32 %v9361, %v9521
        %v9523 = vpop.f32.mrb[0].mxu0
        %9524 = vmatprep.mubr.bf16.mxu0 %v8116
        %9525 = vmatmul.mubr.bf16.gmra.mrb[0].mxu0 %v8115
        %v9526 = vpop.f32.mrb[0].mxu0
        %v9527 = vadd.f32 %v9366, %v9526
        %v9528 = vpop.f32.mrb[0].mxu0
        %v9529 = vpop.f32.mrb[0].mxu0
        %v9530 = vadd.f32 %v9369, %v9529
        %v9531 = vpop.f32.mrb[0].mxu0
        %9532 = vmatprep.mubr.bf16.mxu0 %v8125
        %9533 = vmatmul.mubr.bf16.gmra.mrb[0].mxu0 %v8124
        %v9534 = vpop.f32.mrb[0].mxu0
        %v9535 = vadd.f32 %v9374, %v9534
        %v9536 = vpop.f32.mrb[0].mxu0
        %v9537 = vpop.f32.mrb[0].mxu0
        %v9538 = vadd.f32 %v9377, %v9537
        %v9539 = vpop.f32.mrb[0].mxu0
        %9540 = vmatprep.mubr.bf16.mxu0 %v8134
        %9541 = vmatmul.mubr.bf16.gmra.mrb[0].mxu0 %v8133
        %v9542 = vpop.f32.mrb[0].mxu0
        %v9543 = vadd.f32 %v9382, %v9542
        %v9544 = vpop.f32.mrb[0].mxu0
        %v9545 = vpop.f32.mrb[0].mxu0
        %v9546 = vadd.f32 %v9385, %v9545
        %v9547 = vpop.f32.mrb[0].mxu0
        %9548 = vmatprep.mubr.bf16.mxu0 %v8143
        %9549 = vmatmul.mubr.bf16.gmra.mrb[0].mxu0 %v8142
        %v9550 = vpop.f32.mrb[0].mxu0
        %v9551 = vadd.f32 %v9390, %v9550
        %v9552 = vpop.f32.mrb[0].mxu0
        %v9553 = vpop.f32.mrb[0].mxu0
        %v9554 = vadd.f32 %v9393, %v9553
        %v9555 = vpop.f32.mrb[0].mxu0
        %9556 = vmatprep.mubr.bf16.mxu0 %v8152
        %9557 = vmatmul.mubr.bf16.gmra.mrb[0].mxu0 %v8151
        %v9558 = vpop.f32.mrb[0].mxu0
        %v9559 = vadd.f32 %v9398, %v9558
        %v9560 = vpop.f32.mrb[0].mxu0
        %v9561 = vpop.f32.mrb[0].mxu0
        %v9562 = vadd.f32 %v9401, %v9561
        %v9563 = vpop.f32.mrb[0].mxu0
        %9564 = vmatprep.mubr.bf16.mxu0 %v8161
        %9565 = vmatmul.mubr.bf16.gmra.mrb[0].mxu0 %v8160
        %v9566 = vpop.f32.mrb[0].mxu0
        %v9567 = vadd.f32 %v9406, %v9566
        %v9568 = vpop.f32.mrb[0].mxu0
        %v9569 = vpop.f32.mrb[0].mxu0
        %v9570 = vadd.f32 %v9409, %v9569
        %v9571 = vpop.f32.mrb[0].mxu0
        %9572 = vmatprep.mubr.bf16.mxu0 %v8170
        %9573 = vmatmul.mubr.bf16.gmra.mrb[0].mxu0 %v8169
        %v9574 = vpop.f32.mrb[0].mxu0
        %v9575 = vadd.f32 %v9414, %v9574
        %v9576 = vpop.f32.mrb[0].mxu0
        %v9577 = vpop.f32.mrb[0].mxu0
        %v9578 = vadd.f32 %v9417, %v9577
        %v9579 = vpop.f32.mrb[0].mxu0
        %9580 = vmatprep.mubr.bf16.mxu0 %v8179
        %9581 = vmatmul.mubr.bf16.gmra.mrb[0].mxu0 %v8178
        %v9582 = vpop.f32.mrb[0].mxu0
        %v9583 = vadd.f32 %v9422, %v9582
        %v9584 = vpop.f32.mrb[0].mxu0
        %v9585 = vpop.f32.mrb[0].mxu0
        %v9586 = vadd.f32 %v9425, %v9585
        %v9587 = vpop.f32.mrb[0].mxu0
        %9588 = vmatprep.mubr.bf16.mxu0 %v8188
        %9589 = vmatmul.mubr.bf16.gmra.mrb[0].mxu0 %v8187
        %v9590 = vpop.f32.mrb[0].mxu0
        %v9591 = vadd.f32 %v9430, %v9590
        %v9592 = vpop.f32.mrb[0].mxu0
        %v9593 = vpop.f32.mrb[0].mxu0
        %v9594 = vadd.f32 %v9433, %v9593
        %v9595 = vpop.f32.mrb[0].mxu0
        %9596 = vmatprep.mubr.bf16.mxu0 %v8197
        %9597 = vmatmul.mubr.bf16.gmra.mrb[0].mxu0 %v8196
        %v9598 = vpop.f32.mrb[0].mxu0
        %v9599 = vadd.f32 %v9438, %v9598
        %v9600 = vpop.f32.mrb[0].mxu0
        %v9601 = vpop.f32.mrb[0].mxu0
        %v9602 = vadd.f32 %v9441, %v9601
        %v9603 = vpop.f32.mrb[0].mxu0
        %9604 = vmatprep.mubr.bf16.mxu0 %v8206
        %9605 = vmatmul.mubr.bf16.gmra.mrb[0].mxu0 %v8205
        %v9606 = vpop.f32.mrb[0].mxu0
        %v9607 = vadd.f32 %v9446, %v9606
        %v9608 = vpop.f32.mrb[0].mxu0
        %v9609 = vpop.f32.mrb[0].mxu0
        %v9610 = vadd.f32 %v9449, %v9609
        %v9611 = vpop.f32.mrb[0].mxu0
        %9612 = vdwg.mxu0
        %9613 = vmatprep.subr.bf16.mxu0 0
        %9614 = vmatpush1.bf16.msra.mxu0 %v9179
        %9615 = vmatprep.subr.bf16.mxu0 0
        %9616 = vmatpush1.bf16.msra.mxu0 %v9180
        %9617 = vmatprep.subr.bf16.mxu0 0
        %9618 = vmatpush1.bf16.msra.mxu0 %v9181
        %9619 = vmatprep.subr.bf16.mxu0 0
        %9620 = vmatpush1.bf16.msra.mxu0 %v9182
        %9621 = vmatprep.subr.bf16.mxu0 0
        %9622 = vmatpush1.bf16.msra.mxu0 %v9183
        %9623 = vmatprep.subr.bf16.mxu0 0
        %9624 = vmatpush1.bf16.msra.mxu0 %v9184
        %9625 = vmatprep.subr.bf16.mxu0 0
        %9626 = vmatpush1.bf16.msra.mxu0 %v9185
        %9627 = vmatprep.subr.bf16.mxu0 0
        %9628 = vmatpush1.bf16.msra.mxu0 %v9186
        %9629 = vmatprep.subr.bf16.mxu0 0
        %9630 = vmatpush1.bf16.msra.mxu0 %v9187
        %9631 = vmatprep.subr.bf16.mxu0 0
        %9632 = vmatpush1.bf16.msra.mxu0 %v9188
        %9633 = vmatprep.subr.bf16.mxu0 0
        %9634 = vmatpush1.bf16.msra.mxu0 %v9189
        %9635 = vmatprep.subr.bf16.mxu0 0
        %9636 = vmatpush1.bf16.msra.mxu0 %v9190
        %9637 = vmatprep.subr.bf16.mxu0 0
        %9638 = vmatpush1.bf16.msra.mxu0 %v9191
        %9639 = vmatprep.subr.bf16.mxu0 0
        %9640 = vmatpush1.bf16.msra.mxu0 %v9192
        %9641 = vmatprep.subr.bf16.mxu0 0
        %9642 = vmatpush1.bf16.msra.mxu0 %v9193
        %9643 = vmatprep.subr.bf16.mxu0 0
        %9644 = vmatpush1.bf16.msra.mxu0 %v9194
        %9645 = vmatprep.mubr.bf16.mxu0 %v8073
        %9646 = vmatmul.mubr.bf16.gmra.mrb[0].mxu0 %v8072
        %v9647 = vpop.f32.mrb[0].mxu0
        %v9648 = vadd.f32 %v9487, %v9647
        %v9649 = vpop.f32.mrb[0].mxu0
        %v9650 = vpop.f32.mrb[0].mxu0
        %v9651 = vadd.f32 %v9490, %v9650
        %v9652 = vpop.f32.mrb[0].mxu0
        %9653 = vmatprep.mubr.bf16.mxu0 %v8082
        %9654 = vmatmul.mubr.bf16.gmra.mrb[0].mxu0 %v8081
        %v9655 = vpop.f32.mrb[0].mxu0
        %v9656 = vadd.f32 %v9495, %v9655
        %v9657 = vpop.f32.mrb[0].mxu0
        %v9658 = vpop.f32.mrb[0].mxu0
        %v9659 = vadd.f32 %v9498, %v9658
        %v9660 = vpop.f32.mrb[0].mxu0
        %9661 = vmatprep.mubr.bf16.mxu0 %v8091
        %9662 = vmatmul.mubr.bf16.gmra.mrb[0].mxu0 %v8090
        %v9663 = vpop.f32.mrb[0].mxu0
        %v9664 = vadd.f32 %v9503, %v9663
        %v9665 = vpop.f32.mrb[0].mxu0
        %v9666 = vpop.f32.mrb[0].mxu0
        %v9667 = vadd.f32 %v9506, %v9666
        %v9668 = vpop.f32.mrb[0].mxu0
        %9669 = vmatprep.mubr.bf16.mxu0 %v8100
        %9670 = vmatmul.mubr.bf16.gmra.mrb[0].mxu0 %v8099
        %v9671 = vpop.f32.mrb[0].mxu0
        %v9672 = vadd.f32 %v9511, %v9671
        %v9673 = vpop.f32.mrb[0].mxu0
        %v9674 = vpop.f32.mrb[0].mxu0
        %v9675 = vadd.f32 %v9514, %v9674
        %v9676 = vpop.f32.mrb[0].mxu0
        %9677 = vmatprep.mubr.bf16.mxu0 %v8109
        %9678 = vmatmul.mubr.bf16.gmra.mrb[0].mxu0 %v8108
        %v9679 = vpop.f32.mrb[0].mxu0
        %v9680 = vadd.f32 %v9519, %v9679
        %v9681 = vpop.f32.mrb[0].mxu0
        %v9682 = vpop.f32.mrb[0].mxu0
        %v9683 = vadd.f32 %v9522, %v9682
        %v9684 = vpop.f32.mrb[0].mxu0
        %9685 = vmatprep.mubr.bf16.mxu0 %v8118
        %9686 = vmatmul.mubr.bf16.gmra.mrb[0].mxu0 %v8117
        %v9687 = vpop.f32.mrb[0].mxu0
        %v9688 = vadd.f32 %v9527, %v9687
        %v9689 = vpop.f32.mrb[0].mxu0
        %v9690 = vpop.f32.mrb[0].mxu0
        %v9691 = vadd.f32 %v9530, %v9690
        %v9692 = vpop.f32.mrb[0].mxu0
        %9693 = vmatprep.mubr.bf16.mxu0 %v8127
        %9694 = vmatmul.mubr.bf16.gmra.mrb[0].mxu0 %v8126
        %v9695 = vpop.f32.mrb[0].mxu0
        %v9696 = vadd.f32 %v9535, %v9695
        %v9697 = vpop.f32.mrb[0].mxu0
        %v9698 = vpop.f32.mrb[0].mxu0
        %v9699 = vadd.f32 %v9538, %v9698
        %v9700 = vpop.f32.mrb[0].mxu0
        %9701 = vmatprep.mubr.bf16.mxu0 %v8136
        %9702 = vmatmul.mubr.bf16.gmra.mrb[0].mxu0 %v8135
        %v9703 = vpop.f32.mrb[0].mxu0
        %v9704 = vadd.f32 %v9543, %v9703
        %v9705 = vpop.f32.mrb[0].mxu0
        %v9706 = vpop.f32.mrb[0].mxu0
        %v9707 = vadd.f32 %v9546, %v9706
        %v9708 = vpop.f32.mrb[0].mxu0
        %9709 = vmatprep.mubr.bf16.mxu0 %v8145
        %9710 = vmatmul.mubr.bf16.gmra.mrb[0].mxu0 %v8144
        %v9711 = vpop.f32.mrb[0].mxu0
        %v9712 = vadd.f32 %v9551, %v9711
        %v9713 = vpop.f32.mrb[0].mxu0
        %v9714 = vpop.f32.mrb[0].mxu0
        %v9715 = vadd.f32 %v9554, %v9714
        %v9716 = vpop.f32.mrb[0].mxu0
        %9717 = vmatprep.mubr.bf16.mxu0 %v8154
        %9718 = vmatmul.mubr.bf16.gmra.mrb[0].mxu0 %v8153
        %v9719 = vpop.f32.mrb[0].mxu0
        %v9720 = vadd.f32 %v9559, %v9719
        %v9721 = vpop.f32.mrb[0].mxu0
        %v9722 = vpop.f32.mrb[0].mxu0
        %v9723 = vadd.f32 %v9562, %v9722
        %v9724 = vpop.f32.mrb[0].mxu0
        %9725 = vmatprep.mubr.bf16.mxu0 %v8163
        %9726 = vmatmul.mubr.bf16.gmra.mrb[0].mxu0 %v8162
        %v9727 = vpop.f32.mrb[0].mxu0
        %v9728 = vadd.f32 %v9567, %v9727
        %v9729 = vpop.f32.mrb[0].mxu0
        %v9730 = vpop.f32.mrb[0].mxu0
        %v9731 = vadd.f32 %v9570, %v9730
        %v9732 = vpop.f32.mrb[0].mxu0
        %9733 = vmatprep.mubr.bf16.mxu0 %v8172
        %9734 = vmatmul.mubr.bf16.gmra.mrb[0].mxu0 %v8171
        %v9735 = vpop.f32.mrb[0].mxu0
        %v9736 = vadd.f32 %v9575, %v9735
        %v9737 = vpop.f32.mrb[0].mxu0
        %v9738 = vpop.f32.mrb[0].mxu0
        %v9739 = vadd.f32 %v9578, %v9738
        %v9740 = vpop.f32.mrb[0].mxu0
        %9741 = vmatprep.mubr.bf16.mxu0 %v8181
        %9742 = vmatmul.mubr.bf16.gmra.mrb[0].mxu0 %v8180
        %v9743 = vpop.f32.mrb[0].mxu0
        %v9744 = vadd.f32 %v9583, %v9743
        %v9745 = vpop.f32.mrb[0].mxu0
        %v9746 = vpop.f32.mrb[0].mxu0
        %v9747 = vadd.f32 %v9586, %v9746
        %v9748 = vpop.f32.mrb[0].mxu0
        %9749 = vmatprep.mubr.bf16.mxu0 %v8190
        %9750 = vmatmul.mubr.bf16.gmra.mrb[0].mxu0 %v8189
        %v9751 = vpop.f32.mrb[0].mxu0
        %v9752 = vadd.f32 %v9591, %v9751
        %v9753 = vpop.f32.mrb[0].mxu0
        %v9754 = vpop.f32.mrb[0].mxu0
        %v9755 = vadd.f32 %v9594, %v9754
        %v9756 = vpop.f32.mrb[0].mxu0
        %9757 = vmatprep.mubr.bf16.mxu0 %v8199
        %9758 = vmatmul.mubr.bf16.gmra.mrb[0].mxu0 %v8198
        %v9759 = vpop.f32.mrb[0].mxu0
        %v9760 = vadd.f32 %v9599, %v9759
        %v9761 = vpop.f32.mrb[0].mxu0
        %v9762 = vpop.f32.mrb[0].mxu0
        %v9763 = vadd.f32 %v9602, %v9762
        %v9764 = vpop.f32.mrb[0].mxu0
        %9765 = vmatprep.mubr.bf16.mxu0 %v8208
        %9766 = vmatmul.mubr.bf16.gmra.mrb[0].mxu0 %v8207
        %v9767 = vpop.f32.mrb[0].mxu0
        %v9768 = vadd.f32 %v9607, %v9767
        %v9769 = vpop.f32.mrb[0].mxu0
        %v9770 = vpop.f32.mrb[0].mxu0
        %v9771 = vadd.f32 %v9610, %v9770
        %v9772 = vpop.f32.mrb[0].mxu0
        %9773 = vdwg.mxu0
        %9774 = vmatprep.subr.bf16.mxu0 0
        %9775 = vmatpush1.bf16.msra.mxu0 %v9195
        %9776 = vmatprep.subr.bf16.mxu0 0
        %9777 = vmatpush1.bf16.msra.mxu0 %v9196
        %9778 = vmatprep.subr.bf16.mxu0 0
        %9779 = vmatpush1.bf16.msra.mxu0 %v9197
        %9780 = vmatprep.subr.bf16.mxu0 0
        %9781 = vmatpush1.bf16.msra.mxu0 %v9198
        %9782 = vmatprep.subr.bf16.mxu0 0
        %9783 = vmatpush1.bf16.msra.mxu0 %v9199
        %9784 = vmatprep.subr.bf16.mxu0 0
        %9785 = vmatpush1.bf16.msra.mxu0 %v9200
        %9786 = vmatprep.subr.bf16.mxu0 0
        %9787 = vmatpush1.bf16.msra.mxu0 %v9201
        %9788 = vmatprep.subr.bf16.mxu0 0
        %9789 = vmatpush1.bf16.msra.mxu0 %v9202
        %9790 = vmatprep.subr.bf16.mxu0 0
        %9791 = vmatpush1.bf16.msra.mxu0 %v9203
        %9792 = vmatprep.subr.bf16.mxu0 0
        %9793 = vmatpush1.bf16.msra.mxu0 %v9204
        %9794 = vmatprep.subr.bf16.mxu0 0
        %9795 = vmatpush1.bf16.msra.mxu0 %v9205
        %9796 = vmatprep.subr.bf16.mxu0 0
        %9797 = vmatpush1.bf16.msra.mxu0 %v9206
        %9798 = vmatprep.subr.bf16.mxu0 0
        %9799 = vmatpush1.bf16.msra.mxu0 %v9207
        %9800 = vmatprep.subr.bf16.mxu0 0
        %9801 = vmatpush1.bf16.msra.mxu0 %v9208
        %9802 = vmatprep.subr.bf16.mxu0 0
        %9803 = vmatpush1.bf16.msra.mxu0 %v9209
        %9804 = vmatprep.subr.bf16.mxu0 0
        %9805 = vmatpush1.bf16.msra.mxu0 %v9210
        %9806 = vmatprep.mubr.bf16.mxu0 %v8075
        %9807 = vmatmul.mubr.bf16.gmra.mrb[0].mxu0 %v8074
        %v9808 = vpop.f32.mrb[0].mxu0
        %v9809 = vadd.f32 %v9648, %v9808
        %v9810 = vpop.f32.mrb[0].mxu0
        %v9811 = vpop.f32.mrb[0].mxu0
        %v9812 = vadd.f32 %v9651, %v9811
        %v9813 = vpop.f32.mrb[0].mxu0
        %9814 = vmatprep.mubr.bf16.mxu0 %v8084
        %9815 = vmatmul.mubr.bf16.gmra.mrb[0].mxu0 %v8083
        %v9816 = vpop.f32.mrb[0].mxu0
        %v9817 = vadd.f32 %v9656, %v9816
        %v9818 = vpop.f32.mrb[0].mxu0
        %v9819 = vpop.f32.mrb[0].mxu0
        %v9820 = vadd.f32 %v9659, %v9819
        %v9821 = vpop.f32.mrb[0].mxu0
        %9822 = vmatprep.mubr.bf16.mxu0 %v8093
        %9823 = vmatmul.mubr.bf16.gmra.mrb[0].mxu0 %v8092
        %v9824 = vpop.f32.mrb[0].mxu0
        %v9825 = vadd.f32 %v9664, %v9824
        %v9826 = vpop.f32.mrb[0].mxu0
        %v9827 = vpop.f32.mrb[0].mxu0
        %v9828 = vadd.f32 %v9667, %v9827
        %v9829 = vpop.f32.mrb[0].mxu0
        %9830 = vmatprep.mubr.bf16.mxu0 %v8102
        %9831 = vmatmul.mubr.bf16.gmra.mrb[0].mxu0 %v8101
        %v9832 = vpop.f32.mrb[0].mxu0
        %v9833 = vadd.f32 %v9672, %v9832
        %v9834 = vpop.f32.mrb[0].mxu0
        %v9835 = vpop.f32.mrb[0].mxu0
        %v9836 = vadd.f32 %v9675, %v9835
        %v9837 = vpop.f32.mrb[0].mxu0
        %9838 = vmatprep.mubr.bf16.mxu0 %v8111
        %9839 = vmatmul.mubr.bf16.gmra.mrb[0].mxu0 %v8110
        %v9840 = vpop.f32.mrb[0].mxu0
        %v9841 = vadd.f32 %v9680, %v9840
        %v9842 = vpop.f32.mrb[0].mxu0
        %v9843 = vpop.f32.mrb[0].mxu0
        %v9844 = vadd.f32 %v9683, %v9843
        %v9845 = vpop.f32.mrb[0].mxu0
        %9846 = vmatprep.mubr.bf16.mxu0 %v8120
        %9847 = vmatmul.mubr.bf16.gmra.mrb[0].mxu0 %v8119
        %v9848 = vpop.f32.mrb[0].mxu0
        %v9849 = vadd.f32 %v9688, %v9848
        %v9850 = vpop.f32.mrb[0].mxu0
        %v9851 = vpop.f32.mrb[0].mxu0
        %v9852 = vadd.f32 %v9691, %v9851
        %v9853 = vpop.f32.mrb[0].mxu0
        %9854 = vmatprep.mubr.bf16.mxu0 %v8129
        %9855 = vmatmul.mubr.bf16.gmra.mrb[0].mxu0 %v8128
        %v9856 = vpop.f32.mrb[0].mxu0
        %v9857 = vadd.f32 %v9696, %v9856
        %v9858 = vpop.f32.mrb[0].mxu0
        %v9859 = vpop.f32.mrb[0].mxu0
        %v9860 = vadd.f32 %v9699, %v9859
        %v9861 = vpop.f32.mrb[0].mxu0
        %9862 = vmatprep.mubr.bf16.mxu0 %v8138
        %9863 = vmatmul.mubr.bf16.gmra.mrb[0].mxu0 %v8137
        %v9864 = vpop.f32.mrb[0].mxu0
        %v9865 = vadd.f32 %v9704, %v9864
        %v9866 = vpop.f32.mrb[0].mxu0
        %v9867 = vpop.f32.mrb[0].mxu0
        %v9868 = vadd.f32 %v9707, %v9867
        %v9869 = vpop.f32.mrb[0].mxu0
        %9870 = vmatprep.mubr.bf16.mxu0 %v8147
        %9871 = vmatmul.mubr.bf16.gmra.mrb[0].mxu0 %v8146
        %v9872 = vpop.f32.mrb[0].mxu0
        %v9873 = vadd.f32 %v9712, %v9872
        %v9874 = vpop.f32.mrb[0].mxu0
        %v9875 = vpop.f32.mrb[0].mxu0
        %v9876 = vadd.f32 %v9715, %v9875
        %v9877 = vpop.f32.mrb[0].mxu0
        %9878 = vmatprep.mubr.bf16.mxu0 %v8156
        %9879 = vmatmul.mubr.bf16.gmra.mrb[0].mxu0 %v8155
        %v9880 = vpop.f32.mrb[0].mxu0
        %v9881 = vadd.f32 %v9720, %v9880
        %v9882 = vpop.f32.mrb[0].mxu0
        %v9883 = vpop.f32.mrb[0].mxu0
        %v9884 = vadd.f32 %v9723, %v9883
        %v9885 = vpop.f32.mrb[0].mxu0
        %9886 = vmatprep.mubr.bf16.mxu0 %v8165
        %9887 = vmatmul.mubr.bf16.gmra.mrb[0].mxu0 %v8164
        %v9888 = vpop.f32.mrb[0].mxu0
        %v9889 = vadd.f32 %v9728, %v9888
        %v9890 = vpop.f32.mrb[0].mxu0
        %v9891 = vpop.f32.mrb[0].mxu0
        %v9892 = vadd.f32 %v9731, %v9891
        %v9893 = vpop.f32.mrb[0].mxu0
        %9894 = vmatprep.mubr.bf16.mxu0 %v8174
        %9895 = vmatmul.mubr.bf16.gmra.mrb[0].mxu0 %v8173
        %v9896 = vpop.f32.mrb[0].mxu0
        %v9897 = vadd.f32 %v9736, %v9896
        %v9898 = vpop.f32.mrb[0].mxu0
        %v9899 = vpop.f32.mrb[0].mxu0
        %v9900 = vadd.f32 %v9739, %v9899
        %v9901 = vpop.f32.mrb[0].mxu0
        %9902 = vmatprep.mubr.bf16.mxu0 %v8183
        %9903 = vmatmul.mubr.bf16.gmra.mrb[0].mxu0 %v8182
        %v9904 = vpop.f32.mrb[0].mxu0
        %v9905 = vadd.f32 %v9744, %v9904
        %v9906 = vpop.f32.mrb[0].mxu0
        %v9907 = vpop.f32.mrb[0].mxu0
        %v9908 = vadd.f32 %v9747, %v9907
        %v9909 = vpop.f32.mrb[0].mxu0
        %9910 = vmatprep.mubr.bf16.mxu0 %v8192
        %9911 = vmatmul.mubr.bf16.gmra.mrb[0].mxu0 %v8191
        %v9912 = vpop.f32.mrb[0].mxu0
        %v9913 = vadd.f32 %v9752, %v9912
        %v9914 = vpop.f32.mrb[0].mxu0
        %v9915 = vpop.f32.mrb[0].mxu0
        %v9916 = vadd.f32 %v9755, %v9915
        %v9917 = vpop.f32.mrb[0].mxu0
        %9918 = vmatprep.mubr.bf16.mxu0 %v8201
        %9919 = vmatmul.mubr.bf16.gmra.mrb[0].mxu0 %v8200
        %v9920 = vpop.f32.mrb[0].mxu0
        %v9921 = vadd.f32 %v9760, %v9920
        %v9922 = vpop.f32.mrb[0].mxu0
        %v9923 = vpop.f32.mrb[0].mxu0
        %v9924 = vadd.f32 %v9763, %v9923
        %v9925 = vpop.f32.mrb[0].mxu0
        %9926 = vmatprep.mubr.bf16.mxu0 %v8210
        %9927 = vmatmul.mubr.bf16.gmra.mrb[0].mxu0 %v8209
        %v9928 = vpop.f32.mrb[0].mxu0
        %v9929 = vadd.f32 %v9768, %v9928
        %v9930 = vpop.f32.mrb[0].mxu0
        %v9931 = vpop.f32.mrb[0].mxu0
        %v9932 = vadd.f32 %v9771, %v9931
        %v9933 = vpop.f32.mrb[0].mxu0
        %9934 = vdwg.mxu0
        %9935 = vmatprep.subr.bf16.mxu0 0
        %9936 = vmatpush1.bf16.msra.mxu0 %v9211
        %9937 = vmatprep.subr.bf16.mxu0 0
        %9938 = vmatpush1.bf16.msra.mxu0 %v9212
        %9939 = vmatprep.subr.bf16.mxu0 0
        %9940 = vmatpush1.bf16.msra.mxu0 %v9213
        %9941 = vmatprep.subr.bf16.mxu0 0
        %9942 = vmatpush1.bf16.msra.mxu0 %v9214
        %9943 = vmatprep.subr.bf16.mxu0 0
        %9944 = vmatpush1.bf16.msra.mxu0 %v9215
        %9945 = vmatprep.subr.bf16.mxu0 0
        %9946 = vmatpush1.bf16.msra.mxu0 %v9216
        %9947 = vmatprep.subr.bf16.mxu0 0
        %9948 = vmatpush1.bf16.msra.mxu0 %v9217
        %9949 = vmatprep.subr.bf16.mxu0 0
        %9950 = vmatpush1.bf16.msra.mxu0 %v9218
        %9951 = vmatprep.subr.bf16.mxu0 0
        %9952 = vmatpush1.bf16.msra.mxu0 0
        %9953 = vmatprep.subr.bf16.mxu0 0
        %9954 = vmatpush1.bf16.msra.mxu0 0
        %9955 = vmatprep.subr.bf16.mxu0 0
        %9956 = vmatpush1.bf16.msra.mxu0 0
        %9957 = vmatprep.subr.bf16.mxu0 0
        %9958 = vmatpush1.bf16.msra.mxu0 0
        %9959 = vmatprep.subr.bf16.mxu0 0
        %9960 = vmatpush1.bf16.msra.mxu0 0
        %9961 = vmatprep.subr.bf16.mxu0 0
        %9962 = vmatpush1.bf16.msra.mxu0 0
        %9963 = vmatprep.subr.bf16.mxu0 0
        %9964 = vmatpush1.bf16.msra.mxu0 0
        %9965 = vmatprep.subr.bf16.mxu0 0
        %9966 = vmatpush1.bf16.msra.mxu0 0
        %9967 = vmatprep.mubr.bf16.mxu0 0
        %9968 = vmatmul.mubr.bf16.gmra.mrb[0].mxu0 %v8076
        %v9969 = vpop.f32.mrb[0].mxu0
        %v9970 = vadd.f32 %v9809, %v9969
        %v9971 = vpop.f32.mrb[0].mxu0
        %v9972 = vpop.f32.mrb[0].mxu0
        %v9973 = vadd.f32 %v9812, %v9972
        %v9974 = vpop.f32.mrb[0].mxu0
        %9975 = vmatprep.mubr.bf16.mxu0 0
        %9976 = vmatmul.mubr.bf16.gmra.mrb[0].mxu0 %v8085
        %v9977 = vpop.f32.mrb[0].mxu0
        %v9978 = vadd.f32 %v9817, %v9977
        %v9979 = vpop.f32.mrb[0].mxu0
        %v9980 = vpop.f32.mrb[0].mxu0
        %v9981 = vadd.f32 %v9820, %v9980
        %v9982 = vpop.f32.mrb[0].mxu0
        %9983 = vmatprep.mubr.bf16.mxu0 0
        %9984 = vmatmul.mubr.bf16.gmra.mrb[0].mxu0 %v8094
        %v9985 = vpop.f32.mrb[0].mxu0
        %v9986 = vadd.f32 %v9825, %v9985
        %v9987 = vpop.f32.mrb[0].mxu0
        %v9988 = vpop.f32.mrb[0].mxu0
        %v9989 = vadd.f32 %v9828, %v9988
        %v9990 = vpop.f32.mrb[0].mxu0
        %9991 = vmatprep.mubr.bf16.mxu0 0
        %9992 = vmatmul.mubr.bf16.gmra.mrb[0].mxu0 %v8103
        %v9993 = vpop.f32.mrb[0].mxu0
        %v9994 = vadd.f32 %v9833, %v9993
        %v9995 = vpop.f32.mrb[0].mxu0
        %v9996 = vpop.f32.mrb[0].mxu0
        %v9997 = vadd.f32 %v9836, %v9996
        %v9998 = vpop.f32.mrb[0].mxu0
        %9999 = vmatprep.mubr.bf16.mxu0 0
        %10000 = vmatmul.mubr.bf16.gmra.mrb[0].mxu0 %v8112
        %v10001 = vpop.f32.mrb[0].mxu0
        %v10002 = vadd.f32 %v9841, %v10001
        %v10003 = vpop.f32.mrb[0].mxu0
        %v10004 = vpop.f32.mrb[0].mxu0
        %v10005 = vadd.f32 %v9844, %v10004
        %v10006 = vpop.f32.mrb[0].mxu0
        %10007 = vmatprep.mubr.bf16.mxu0 0
        %10008 = vmatmul.mubr.bf16.gmra.mrb[0].mxu0 %v8121
        %v10009 = vpop.f32.mrb[0].mxu0
        %v10010 = vadd.f32 %v9849, %v10009
        %v10011 = vpop.f32.mrb[0].mxu0
        %v10012 = vpop.f32.mrb[0].mxu0
        %v10013 = vadd.f32 %v9852, %v10012
        %v10014 = vpop.f32.mrb[0].mxu0
        %10015 = vmatprep.mubr.bf16.mxu0 0
        %10016 = vmatmul.mubr.bf16.gmra.mrb[0].mxu0 %v8130
        %v10017 = vpop.f32.mrb[0].mxu0
        %v10018 = vadd.f32 %v9857, %v10017
        %v10019 = vpop.f32.mrb[0].mxu0
        %v10020 = vpop.f32.mrb[0].mxu0
        %v10021 = vadd.f32 %v9860, %v10020
        %v10022 = vpop.f32.mrb[0].mxu0
        %10023 = vmatprep.mubr.bf16.mxu0 0
        %10024 = vmatmul.mubr.bf16.gmra.mrb[0].mxu0 %v8139
        %v10025 = vpop.f32.mrb[0].mxu0
        %v10026 = vadd.f32 %v9865, %v10025
        %v10027 = vpop.f32.mrb[0].mxu0
        %v10028 = vpop.f32.mrb[0].mxu0
        %v10029 = vadd.f32 %v9868, %v10028
        %v10030 = vpop.f32.mrb[0].mxu0
        %10031 = vmatprep.mubr.bf16.mxu0 0
        %10032 = vmatmul.mubr.bf16.gmra.mrb[0].mxu0 %v8148
        %v10033 = vpop.f32.mrb[0].mxu0
        %v10034 = vadd.f32 %v9873, %v10033
        %v10035 = vpop.f32.mrb[0].mxu0
        %v10036 = vpop.f32.mrb[0].mxu0
        %v10037 = vadd.f32 %v9876, %v10036
        %v10038 = vpop.f32.mrb[0].mxu0
        %10039 = vmatprep.mubr.bf16.mxu0 0
        %10040 = vmatmul.mubr.bf16.gmra.mrb[0].mxu0 %v8157
        %v10041 = vpop.f32.mrb[0].mxu0
        %v10042 = vadd.f32 %v9881, %v10041
        %v10043 = vpop.f32.mrb[0].mxu0
        %v10044 = vpop.f32.mrb[0].mxu0
        %v10045 = vadd.f32 %v9884, %v10044
        %v10046 = vpop.f32.mrb[0].mxu0
        %10047 = vmatprep.mubr.bf16.mxu0 0
        %10048 = vmatmul.mubr.bf16.gmra.mrb[0].mxu0 %v8166
        %v10049 = vpop.f32.mrb[0].mxu0
        %v10050 = vadd.f32 %v9889, %v10049
        %v10051 = vpop.f32.mrb[0].mxu0
        %v10052 = vpop.f32.mrb[0].mxu0
        %v10053 = vadd.f32 %v9892, %v10052
        %v10054 = vpop.f32.mrb[0].mxu0
        %10055 = vmatprep.mubr.bf16.mxu0 0
        %10056 = vmatmul.mubr.bf16.gmra.mrb[0].mxu0 %v8175
        %v10057 = vpop.f32.mrb[0].mxu0
        %v10058 = vadd.f32 %v9897, %v10057
        %v10059 = vpop.f32.mrb[0].mxu0
        %v10060 = vpop.f32.mrb[0].mxu0
        %v10061 = vadd.f32 %v9900, %v10060
        %v10062 = vpop.f32.mrb[0].mxu0
        %10063 = vmatprep.mubr.bf16.mxu0 0
        %10064 = vmatmul.mubr.bf16.gmra.mrb[0].mxu0 %v8184
        %v10065 = vpop.f32.mrb[0].mxu0
        %v10066 = vadd.f32 %v9905, %v10065
        %v10067 = vpop.f32.mrb[0].mxu0
        %v10068 = vpop.f32.mrb[0].mxu0
        %v10069 = vadd.f32 %v9908, %v10068
        %v10070 = vpop.f32.mrb[0].mxu0
        %10071 = vmatprep.mubr.bf16.mxu0 0
        %10072 = vmatmul.mubr.bf16.gmra.mrb[0].mxu0 %v8193
        %v10073 = vpop.f32.mrb[0].mxu0
        %v10074 = vadd.f32 %v9913, %v10073
        %v10075 = vpop.f32.mrb[0].mxu0
        %v10076 = vpop.f32.mrb[0].mxu0
        %v10077 = vadd.f32 %v9916, %v10076
        %v10078 = vpop.f32.mrb[0].mxu0
        %10079 = vmatprep.mubr.bf16.mxu0 0
        %10080 = vmatmul.mubr.bf16.gmra.mrb[0].mxu0 %v8202
        %v10081 = vpop.f32.mrb[0].mxu0
        %v10082 = vadd.f32 %v9921, %v10081
        %v10083 = vpop.f32.mrb[0].mxu0
        %v10084 = vpop.f32.mrb[0].mxu0
        %v10085 = vadd.f32 %v9924, %v10084
        %v10086 = vpop.f32.mrb[0].mxu0
        %10087 = vmatprep.mubr.bf16.mxu0 0
        %10088 = vmatmul.mubr.bf16.gmra.mrb[0].mxu0 %v8211
        %v10089 = vpop.f32.mrb[0].mxu0
        %v10090 = vadd.f32 %v9929, %v10089
        %v10091 = vpop.f32.mrb[0].mxu0
        %v10092 = vpop.f32.mrb[0].mxu0
        %v10093 = vadd.f32 %v9932, %v10092
        %v10094 = vpop.f32.mrb[0].mxu0
        %10095 = vdwg.mxu0
        %v10096 = vadd.f32 %v9970, %v8820
        %v10097 = vadd.f32 %v9973, %v8821
        %v10098 = vadd.f32 %v9978, %v8822
        %v10099 = vadd.f32 %v9981, %v8823
        %v10100 = vadd.f32 %v9986, %v8824
        %v10101 = vadd.f32 %v9989, %v8825
        %v10102 = vadd.f32 %v9994, %v8826
        %v10103 = vadd.f32 %v9997, %v8827
        %v10104 = vadd.f32 %v10002, %v8828
        %v10105 = vadd.f32 %v10005, %v8829
        %v10106 = vadd.f32 %v10010, %v8830
        %v10107 = vadd.f32 %v10013, %v8831
        %v10108 = vadd.f32 %v10018, %v8832
        %v10109 = vadd.f32 %v10021, %v8833
        %v10110 = vadd.f32 %v10026, %v8834
        %v10111 = vadd.f32 %v10029, %v8835
        %v10112 = vadd.f32 %v10034, %v8836
        %v10113 = vadd.f32 %v10037, %v8837
        %v10114 = vadd.f32 %v10042, %v8838
        %v10115 = vadd.f32 %v10045, %v8839
        %v10116 = vadd.f32 %v10050, %v8840
        %v10117 = vadd.f32 %v10053, %v8841
        %v10118 = vadd.f32 %v10058, %v8842
        %v10119 = vadd.f32 %v10061, %v8843
        %v10120 = vadd.f32 %v10066, %v8844
        %v10121 = vadd.f32 %v10069, %v8845
        %v10122 = vadd.f32 %v10074, %v8846
        %v10123 = vadd.f32 %v10077, %v8847
        %v10124 = vadd.f32 %v10082, %v8848
        %v10125 = vadd.f32 %v10085, %v8849
        %v10126 = vadd.f32 %v10090, %v8850
        %v10127 = vadd.f32 %v10093, %v8851
        %v10128 = vmax.f32 %v10096, 0.0
        %v10129 = vmax.f32 %v10097, 0.0
        %v10130 = vmax.f32 %v10098, 0.0
        %v10131 = vmax.f32 %v10099, 0.0
        %v10132 = vmax.f32 %v10100, 0.0
        %v10133 = vmax.f32 %v10101, 0.0
        %v10134 = vmax.f32 %v10102, 0.0
        %v10135 = vmax.f32 %v10103, 0.0
        %v10136 = vmax.f32 %v10104, 0.0
        %v10137 = vmax.f32 %v10105, 0.0
        %v10138 = vmax.f32 %v10106, 0.0
        %v10139 = vmax.f32 %v10107, 0.0
        %v10140 = vmax.f32 %v10108, 0.0
        %v10141 = vmax.f32 %v10109, 0.0
        %v10142 = vmax.f32 %v10110, 0.0
        %v10143 = vmax.f32 %v10111, 0.0
        %v10144 = vmax.f32 %v10112, 0.0
        %v10145 = vmax.f32 %v10113, 0.0
        %v10146 = vmax.f32 %v10114, 0.0
        %v10147 = vmax.f32 %v10115, 0.0
        %v10148 = vmax.f32 %v10116, 0.0
        %v10149 = vmax.f32 %v10117, 0.0
        %v10150 = vmax.f32 %v10118, 0.0
        %v10151 = vmax.f32 %v10119, 0.0
        %v10152 = vmax.f32 %v10120, 0.0
        %v10153 = vmax.f32 %v10121, 0.0
        %v10154 = vmax.f32 %v10122, 0.0
        %v10155 = vmax.f32 %v10123, 0.0
        %v10156 = vmax.f32 %v10124, 0.0
        %v10157 = vmax.f32 %v10125, 0.0
        %v10158 = vmax.f32 %v10126, 0.0
        %v10159 = vmax.f32 %v10127, 0.0
        %v10160 = vpack.c.bf16 %v10129, %v10128
        %v10161 = vpack.c.bf16 %v10131, %v10130
        %v10162 = vpack.c.bf16 %v10133, %v10132
        %v10163 = vpack.c.bf16 %v10135, %v10134
        %v10164 = vpack.c.bf16 %v10137, %v10136
        %v10165 = vpack.c.bf16 %v10139, %v10138
        %v10166 = vpack.c.bf16 %v10141, %v10140
        %v10167 = vpack.c.bf16 %v10143, %v10142
        %v10168 = vpack.c.bf16 %v10145, %v10144
        %v10169 = vpack.c.bf16 %v10147, %v10146
        %v10170 = vpack.c.bf16 %v10149, %v10148
        %v10171 = vpack.c.bf16 %v10151, %v10150
        %v10172 = vpack.c.bf16 %v10153, %v10152
        %v10173 = vpack.c.bf16 %v10155, %v10154
        %v10174 = vpack.c.bf16 %v10157, %v10156
        %v10175 = vpack.c.bf16 %v10159, %v10158
        %v10192 = vunpack.c.l.b16 %v10160
        %v10193 = vunpack.c.h.b16 %v10160
        %v10194 = vunpack.c.l.b16 %v10161
        %v10195 = vunpack.c.h.b16 %v10161
        %v10196 = vunpack.c.l.b16 %v10162
        %v10197 = vunpack.c.h.b16 %v10162
        %v10198 = vunpack.c.l.b16 %v10163
        %v10199 = vunpack.c.h.b16 %v10163
        %v10200 = vunpack.c.l.b16 %v10164
        %v10201 = vunpack.c.h.b16 %v10164
        %v10202 = vunpack.c.l.b16 %v10165
        %v10203 = vunpack.c.h.b16 %v10165
        %v10204 = vunpack.c.l.b16 %v10166
        %v10205 = vunpack.c.h.b16 %v10166
        %v10206 = vunpack.c.l.b16 %v10167
        %v10207 = vunpack.c.h.b16 %v10167
        %v10208 = vunpack.c.l.b16 %v10168
        %v10209 = vunpack.c.h.b16 %v10168
        %v10210 = vunpack.c.l.b16 %v10169
        %v10211 = vunpack.c.h.b16 %v10169
        %v10212 = vunpack.c.l.b16 %v10170
        %v10213 = vunpack.c.h.b16 %v10170
        %v10214 = vunpack.c.l.b16 %v10171
        %v10215 = vunpack.c.h.b16 %v10171
        %v10216 = vunpack.c.l.b16 %v10172
        %v10217 = vunpack.c.h.b16 %v10172
        %v10218 = vunpack.c.l.b16 %v10173
        %v10219 = vunpack.c.h.b16 %v10173
        %v10220 = vunpack.c.l.b16 %v10174
        %v10221 = vunpack.c.h.b16 %v10174
        %v10222 = vunpack.c.l.b16 %v10175
        %v10223 = vunpack.c.h.b16 %v10175
        %v10224 = vpack.c.b16 %v10192, %v10192
        %v10225 = vpack.c.b16 %v10193, %v10193
        %v10226 = vpack.c.b16 %v10194, %v10194
        %v10227 = vpack.c.b16 %v10195, %v10195
        %v10228 = vpack.c.b16 %v10196, %v10196
        %v10229 = vpack.c.b16 %v10197, %v10197
        %v10230 = vpack.c.b16 %v10198, %v10198
        %v10231 = vpack.c.b16 %v10199, %v10199
        %v10232 = vpack.c.b16 %v10200, %v10200
        %v10233 = vpack.c.b16 %v10201, %v10201
        %v10234 = vpack.c.b16 %v10202, %v10202
        %v10235 = vpack.c.b16 %v10203, %v10203
        %v10236 = vpack.c.b16 %v10204, %v10204
        %v10237 = vpack.c.b16 %v10205, %v10205
        %v10238 = vpack.c.b16 %v10206, %v10206
        %v10239 = vpack.c.b16 %v10207, %v10207
        %v10240 = vpack.c.b16 %v10208, %v10208
        %v10241 = vpack.c.b16 %v10209, %v10209
        %v10242 = vpack.c.b16 %v10210, %v10210
        %v10243 = vpack.c.b16 %v10211, %v10211
        %v10244 = vpack.c.b16 %v10212, %v10212
        %v10245 = vpack.c.b16 %v10213, %v10213
        %v10246 = vpack.c.b16 %v10214, %v10214
        %v10247 = vpack.c.b16 %v10215, %v10215
        %v10248 = vpack.c.b16 %v10216, %v10216
        %v10249 = vpack.c.b16 %v10217, %v10217
        %v10250 = vpack.c.b16 %v10218, %v10218
        %v10251 = vpack.c.b16 %v10219, %v10219
        %v10252 = vpack.c.b16 %v10220, %v10220
        %v10253 = vpack.c.b16 %v10221, %v10221
        %v10254 = vpack.c.b16 %v10222, %v10222
        %v10255 = vpack.c.b16 %v10223, %v10223
        %10288 = vst [vmem:[%s232] sm:$0xf] %v10224
        %10289 = vst [vmem:[%s232 + $0x4] sm:$0xf] %v10225
        %10290 = vst [vmem:[%s232 + $0x8] sm:$0xf] %v10226
        %10291 = vst [vmem:[%s232 + $0xc] sm:$0xf] %v10227
        %10292 = vst [vmem:[%s232 + $0x10] sm:$0xf] %v10228
        %10293 = vst [vmem:[%s232 + $0x14] sm:$0xf] %v10229
        %10294 = vst [vmem:[%s232 + $0x18] sm:$0xf] %v10230
        %10295 = vst [vmem:[%s232 + $0x1c] sm:$0xf] %v10231
        %10296 = vst [vmem:[%s232 + $0x20] sm:$0xf] %v10232
        %10297 = vst [vmem:[%s232 + $0x24] sm:$0xf] %v10233
        %10298 = vst [vmem:[%s232 + $0x28] sm:$0xf] %v10234
        %10299 = vst [vmem:[%s232 + $0x2c] sm:$0xf] %v10235
        %10300 = vst [vmem:[%s232 + $0x30] sm:$0xf] %v10236
        %10301 = vst [vmem:[%s232 + $0x34] sm:$0xf] %v10237
        %10302 = vst [vmem:[%s232 + $0x38] sm:$0xf] %v10238
        %10303 = vst [vmem:[%s232 + $0x3c] sm:$0xf] %v10239
        %10304 = vst [vmem:[%s232 + $0x40] sm:$0xf] %v10240
        %10305 = vst [vmem:[%s232 + $0x44] sm:$0xf] %v10241
        %10306 = vst [vmem:[%s232 + $0x48] sm:$0xf] %v10242
        %10307 = vst [vmem:[%s232 + $0x4c] sm:$0xf] %v10243
        %10308 = vst [vmem:[%s232 + $0x50] sm:$0xf] %v10244
        %10309 = vst [vmem:[%s232 + $0x54] sm:$0xf] %v10245
        %10310 = vst [vmem:[%s232 + $0x58] sm:$0xf] %v10246
        %10311 = vst [vmem:[%s232 + $0x5c] sm:$0xf] %v10247
        %10312 = vst [vmem:[%s232 + $0x60] sm:$0xf] %v10248
        %10313 = vst [vmem:[%s232 + $0x64] sm:$0xf] %v10249
        %10314 = vst [vmem:[%s232 + $0x68] sm:$0xf] %v10250
        %10315 = vst [vmem:[%s232 + $0x6c] sm:$0xf] %v10251
        %10316 = vst [vmem:[%s232 + $0x70] sm:$0xf] %v10252
        %10317 = vst [vmem:[%s232 + $0x74] sm:$0xf] %v10253
        %10318 = vst [vmem:[%s232 + $0x78] sm:$0xf] %v10254
        %10319 = vst [vmem:[%s232 + $0x7c] sm:$0xf] %v10255
        %s10320 = sand.u32 %s138, 1
        %s10321 = scalar_lea.sflag [#allocation6], %s10320
        %s10322 = sand.u32 %s138, 1
        %s10323 = smul.addr %s10322, 128
        %s10324 = scalar_lea.vmem [#allocation7], %s10323
        // Predicated region
        $region45: #{tpu_custom_call.1} parent=39 // pred_check
          %p10325 = pneg %p148
        $region46: #{tpu_custom_call.1} parent=39 // pred_check_branch
          %10327 = sbr.rel (%p10325) target = $region48
        $region47: #{tpu_custom_call.1} parent=39 // pred_region
          %s10328 = smul.u32 32, %s20
          %s10330 = ssub.s32 2048, 2048
          %10331 = vsyncadd %s10321, %s10330
          %s10332 = smul.addr %s10328, 64
          %s10333 = scalar_lea.hbm %s5, %s10332
          %s10334 = sshll.u32 %s10324, 4
          %s10335 = int_to_ptr.vmem [resolvable:$true] %s10334
          %10340 = dma.vmem_to_hbm [thread:$0]  %s10335, 2048, %s10333, %s10321, 64, 64, 4
        $region48: #{tpu_custom_call.1} parent=39 // pred_fallthru
          _
      $region40: #{tpu_custom_call.1} parent=5 // pred_fallthru
        _
      %p10341 = scmp.le.s32.totalorder 2, %s15
      // Predicated region
      $region49: #{tpu_custom_call.1} parent=5 // pred_check
        %p10342 = pneg %p10341
      $region50: #{tpu_custom_call.1} parent=5 // pred_check_branch
        %10344 = sbr.rel (%p10342) target = $region52
      $region51: #{tpu_custom_call.1} parent=5 // pred_region
        %s10345 = ssub.s32 %s15, 2
        // Predicated region
        $region53: #{tpu_custom_call.1} parent=51 // pred_check
          %p10346 = pneg %p154
        $region54: #{tpu_custom_call.1} parent=51 // pred_check_branch
          %10348 = sbr.rel (%p10346) target = $region56
        $region55: #{tpu_custom_call.1} parent=51 // pred_region
          %s10349 = sand.u32 %s139, 1
          %s10350 = scalar_lea.sflag [#allocation6], %s10349
          %s10351 = sand.u32 %s139, 1
          %s10352 = smul.addr %s10351, 128
          %s10353 = scalar_lea.vmem [#allocation7], %s10352
          %10354 = dma.done %s10350, 2048
        $region56: #{tpu_custom_call.1} parent=51 // pred_fallthru
          _
      $region52: #{tpu_custom_call.1} parent=5 // pred_fallthru
        _
    $region6: #{tpu_custom_call.1} parent=1 // loop_footer
      %s19 = sadd.s32 1, %s15
    $region7: #{tpu_custom_call.1} parent=1 // loop_footer_branch
      %14 = sbr.rel target = $region3
    $region8: #{tpu_custom_call.1} parent=1 // loop_exit
      _
    %10355 = vsyncpa [#allocation5], 1
    %s10356 = scalar_lea.sflag [#allocation5], 1
    %10357 = vsyncpa %s10356, 1
    %10358 = vsyncpa [#allocation6], 1
    %s10359 = scalar_lea.sflag [#allocation6], 1
    %10360 = vsyncpa %s10359, 1

</llo_original>
